<compile_context>
chip_gen: v7x
topology: tpu7x:2x2x1
jax: 0.10.0
libtpu: 0.0.40
codegen_flags: <defaults>
</compile_context>

<pallas_src>
import jax
import jax.numpy as jnp
from jax import lax
from jax.experimental import pallas as pl
from jax.experimental.pallas import tpu as pltpu

K0, PAD0 = 5, 2            # conv0: 5x5 depthwise, padding 2
K1, PAD1, DIL1 = 7, 9, 3   # conv_spatial: 7x7 depthwise, padding 9, dilation 3

# Interior offsets inside the zero-padded scratch planes.
# Row (sublane) offsets are multiples of 8 and column (lane) offsets are
# multiples of 128 so the big interior stores are fully aligned.
HO0, WO0 = 8, 128          # conv0 padded-input plane interior origin
HO1, WO1 = 16, 128         # conv_spatial padded-input plane interior origin
RS0, CS0 = HO0 - PAD0, WO0 - PAD0   # readable-window origin (6, 126)
RS1, CS1 = HO1 - PAD1, WO1 - PAD1   # readable-window origin (7, 119)


def _chained_taps(read_tap, w_s, base, ntaps, n_chains=4):
    """Sum_{t} read_tap(t) * w_s[base+t] using independent partial chains."""
    accs = [None] * n_chains
    for t in range(ntaps):
        term = read_tap(t) * w_s[base + t]
        k = t % n_chains
        accs[k] = term if accs[k] is None else accs[k] + term
    total = accs[0]
    for a in accs[1:]:
        if a is not None:
            total = total + a
    return total


def lka_kernel(x_ref, w0_s, b0_s, w1_s, b1_s, w2_s, b2_s, o_ref,
               xp0, s0, a1p, s1):
    # x_ref : (1, C, H, W) VMEM block        o_ref : (1, C, H, W) VMEM block
    # w0_s  : (C*25,) SMEM   b0_s: (C,) SMEM
    # w1_s  : (C*49,) SMEM   b1_s: (C,) SMEM
    # w2_s  : (C*C,)  SMEM (row-major (Cin, Cout))   b2_s: (C,) SMEM
    # xp0   : VMEM (HO0+H+PAD0, WO0+W+PAD0)   zero-padded conv0 input plane
    # s0    : VMEM (K0, H+K0-1, W)            column-shifted copies (conv0)
    # a1p   : VMEM (HO1+H+PAD1, WO1+W+PAD1)   zero-padded conv_spatial input
    # s1    : VMEM (K1, H+DIL1*(K1-1), W)     column-shifted copies (dilated)
    _, C, H, W = x_ref.shape
    f32 = jnp.float32
    WP0 = WO0 + W + PAD0
    WP1 = WO1 + W + PAD1
    HS0 = H + K0 - 1               # rows needed by the conv0 shifted copies
    HS1 = H + DIL1 * (K1 - 1)      # rows needed by the conv_spatial copies

    # ---- zero exactly the readable-but-never-written border cells ----------
    # Done once per grid step (NOT under program_id==0): with the batch axis
    # marked "parallel" each TensorCore owns a private scratch instance.
    xp0[RS0:HO0, :] = jnp.zeros((PAD0, WP0), f32)
    xp0[HO0 + H:HO0 + H + PAD0, :] = jnp.zeros((PAD0, WP0), f32)
    xp0[HO0:HO0 + H, CS0:WO0] = jnp.zeros((H, PAD0), f32)
    xp0[HO0:HO0 + H, WO0 + W:WO0 + W + PAD0] = jnp.zeros((H, PAD0), f32)

    a1p[RS1:HO1, :] = jnp.zeros((PAD1, WP1), f32)
    a1p[HO1 + H:HO1 + H + PAD1, :] = jnp.zeros((PAD1, WP1), f32)
    a1p[HO1:HO1 + H, CS1:WO1] = jnp.zeros((H, PAD1), f32)
    a1p[HO1:HO1 + H, WO1 + W:WO1 + W + PAD1] = jnp.zeros((H, PAD1), f32)

    # ---- per-channel depthwise pipeline (C is small: 3-4) -------------------
    for c in range(C):
        # conv0: depthwise 5x5, padding 2.
        # Aligned interior store, then one lane-shift pass per dj; the 25-tap
        # accumulation afterwards only uses row (sublane) offsets.
        xp0[HO0:HO0 + H, WO0:WO0 + W] = x_ref[0, c, :, :].astype(f32)
        for dj in range(K0):
            s0[dj, :, :] = xp0[RS0:RS0 + HS0, CS0 + dj:CS0 + dj + W]
        base0 = c * K0 * K0
        acc = _chained_taps(
            lambda t: s0[t % K0, (t // K0):(t // K0) + H, :],
            w0_s, base0, K0 * K0)
        acc = acc + b0_s[c]

        # conv_spatial: depthwise 7x7, dilation 3, padding 9.
        a1p[HO1:HO1 + H, WO1:WO1 + W] = acc
        for dj in range(K1):
            q = CS1 + DIL1 * dj
            s1[dj, :, :] = a1p[RS1:RS1 + HS1, q:q + W]
        base1 = c * K1 * K1
        attn_c = _chained_taps(
            lambda t: s1[t % K1, DIL1 * (t // K1):DIL1 * (t // K1) + H, :],
            w1_s, base1, K1 * K1)
        attn_c = attn_c + b1_s[c]

        # conv1 (1x1): accumulate this channel's contribution directly into
        # o_ref (float32 output doubles as the f32 accumulator -> no (C,H,W)
        # scratch needed).
        for co in range(C):
            contrib = attn_c * w2_s[c * C + co]
            if c == 0:
                o_ref[0, co, :, :] = (contrib + b2_s[co]).astype(o_ref.dtype)
            else:
                o_ref[0, co, :, :] = (o_ref[0, co, :, :].astype(f32)
                                      + contrib).astype(o_ref.dtype)

    # ---- residual gate: out = x * attn --------------------------------------
    for co in range(C):
        o_ref[0, co, :, :] = (x_ref[0, co, :, :].astype(f32)
                              * o_ref[0, co, :, :].astype(f32)
                              ).astype(o_ref.dtype)


def _round_up(v, m):
    return (v + m - 1) // m * m


def _vmem_bytes_estimate(C, H, W):
    """Rough per-step VMEM footprint (f32 words), incl. double-buffered I/O."""
    wl = _round_up(W, 128)
    io = 2 * 2 * C * _round_up(H, 8) * wl            # x + out blocks, 2-deep
    xp0 = _round_up(HO0 + H + PAD0, 8) * _round_up(WO0 + W + PAD0, 128)
    a1p = _round_up(HO1 + H + PAD1, 8) * _round_up(WO1 + W + PAD1, 128)
    s0 = K0 * _round_up(H + K0 - 1, 8) * wl
    s1 = K1 * _round_up(H + DIL1 * (K1 - 1), 8) * wl
    return 4 * (io + xp0 + a1p + s0 + s1)


def lka_forward(x_nchw, params):
    """x_nchw: (N, C, H, W) float32. Returns (N, C, H, W)."""
    w0, b0, w1, b1, w2, b2 = params   # (C,5,5),(C,),(C,7,7),(C,),(C,C),(C,)
    N, C, H, W = x_nchw.shape
    # o_ref doubles as the f32 conv1 accumulator inside the kernel.
    assert x_nchw.dtype == jnp.float32

    w0f = w0.reshape(C * K0 * K0).astype(jnp.float32)
    w1f = w1.reshape(C * K1 * K1).astype(jnp.float32)
    w2f = w2.reshape(C * C).astype(jnp.float32)       # row-major (Cin, Cout)
    b0f = b0.reshape(C).astype(jnp.float32)
    b1f = b1.reshape(C).astype(jnp.float32)
    b2f = b2.reshape(C).astype(jnp.float32)

    smem = pl.BlockSpec(memory_space=pltpu.MemorySpace.SMEM)
    vmem_limit = int(min(64 << 20,
                         max(32 << 20, 2 * _vmem_bytes_estimate(C, H, W))))

    return pl.pallas_call(
        lka_kernel,
        out_shape=jax.ShapeDtypeStruct((N, C, H, W), x_nchw.dtype),
        grid_spec=pltpu.PrefetchScalarGridSpec(
            num_scalar_prefetch=0,
            grid=(N,),
            in_specs=[
                pl.BlockSpec((1, C, H, W), lambda n: (n, 0, 0, 0)),
                smem, smem, smem, smem, smem, smem,
            ],
            out_specs=pl.BlockSpec((1, C, H, W), lambda n: (n, 0, 0, 0)),
            scratch_shapes=[
                pltpu.VMEM((HO0 + H + PAD0, WO0 + W + PAD0), jnp.float32),
                pltpu.VMEM((K0, H + K0 - 1, W), jnp.float32),
                pltpu.VMEM((HO1 + H + PAD1, WO1 + W + PAD1), jnp.float32),
                pltpu.VMEM((K1, H + DIL1 * (K1 - 1), W), jnp.float32),
            ],
        ),
        compiler_params=pltpu.CompilerParams(
            dimension_semantics=("parallel",),
            vmem_limit_bytes=vmem_limit),
    )(x_nchw, w0f, b0f, w1f, b1f, w2f, b2f)


def lka_reference(x_nchw, params):
    """Pure-JAX reference matching nn.Conv2d semantics (NCHW)."""
    w0, b0, w1, b1, w2, b2 = params
    C = x_nchw.shape[1]
    dn = ('NCHW', 'OIHW', 'NCHW')
    w0_pt = w0[:, None]                                   # (C,1,5,5)
    w1_pt = w1[:, None]                                   # (C,1,7,7)
    w2_pt = jnp.transpose(w2, (1, 0))[:, :, None, None]   # (Cout,Cin,1,1)

    a = lax.conv_general_dilated(x_nchw, w0_pt, (1, 1),
                                 [(PAD0, PAD0), (PAD0, PAD0)],
                                 feature_group_count=C, dimension_numbers=dn)
    a = a + b0.reshape(1, C, 1, 1)
    a = lax.conv_general_dilated(a, w1_pt, (1, 1),
                                 [(PAD1, PAD1), (PAD1, PAD1)],
                                 rhs_dilation=(DIL1, DIL1),
                                 feature_group_count=C, dimension_numbers=dn)
    a = a + b1.reshape(1, C, 1, 1)
    a = lax.conv_general_dilated(a, w2_pt, (1, 1), [(0, 0), (0, 0)],
                                 dimension_numbers=dn)
    a = a + b2.reshape(1, C, 1, 1)
    return x_nchw * a


if __name__ == "__main__":
    def make_params(key, C):
        k0, kb0, k1, kb1, k2, kb2 = jax.random.split(key, 6)
        w0 = jax.random.normal(k0, (C, K0, K0), jnp.float32) * 0.1
        b0 = jax.random.normal(kb0, (C,), jnp.float32) * 0.1
        w1 = jax.random.normal(k1, (C, K1, K1), jnp.float32) * 0.1
        b1 = jax.random.normal(kb1, (C,), jnp.float32) * 0.1
        w2 = jax.random.normal(k2, (C, C), jnp.float32) * 0.1   # (Cin, Cout)
        b2 = jax.random.normal(kb2, (C,), jnp.float32) * 0.1
        return (w0, b0, w1, b1, w2, b2)

    key = jax.random.PRNGKey(0)
    for (N, C, H, W) in [(2, 4, 16, 16), (1, 3, 32, 32)]:
        key, kx, kp = jax.random.split(key, 3)
        x = jax.random.uniform(kx, (N, C, H, W), dtype=jnp.float32)
        params = make_params(kp, C)

        out = jax.block_until_ready(lka_forward(x, params))
        ref = jax.block_until_ready(lka_reference(x, params))
        assert out.shape == (N, C, H, W)
        assert jnp.allclose(out, ref, rtol=1e-4, atol=1e-4), \
            f"mismatch vs reference at shape {(N, C, H, W)}"

    print("KERNEL_OK")
</pallas_src>

<mosaic_0001>
module attributes {stable_mosaic.version = 11 : i64} {
  func.func @lka_kernel(%arg0: i32, %arg1: memref<1x4x16x16xf32, #tpu.memory_space<vmem>>, %arg2: memref<100xf32, #tpu.memory_space<smem>>, %arg3: memref<4xf32, #tpu.memory_space<smem>>, %arg4: memref<196xf32, #tpu.memory_space<smem>>, %arg5: memref<4xf32, #tpu.memory_space<smem>>, %arg6: memref<16xf32, #tpu.memory_space<smem>>, %arg7: memref<4xf32, #tpu.memory_space<smem>>, %arg8: memref<1x4x16x16xf32, #tpu.memory_space<vmem>>, %arg9: memref<26x146xf32, #tpu.memory_space<vmem>>, %arg10: memref<5x20x16xf32, #tpu.memory_space<vmem>>, %arg11: memref<41x153xf32, #tpu.memory_space<vmem>>, %arg12: memref<7x34x16xf32, #tpu.memory_space<vmem>>) attributes {dimension_semantics = [#tpu.dimension_semantics<parallel>], iteration_bounds = array<i64: 2>, scalar_prefetch = 0 : i64, scratch_operands = 4 : i64, tpu.core_type = #tpu.core_type<tc>, window_params = [{transform_indices = @transform_0, window_bounds = array<i64: 1, 4, 16, 16>}, {transform_indices = @transform_1, window_bounds = array<i64: 100>}, {transform_indices = @transform_2, window_bounds = array<i64: 4>}, {transform_indices = @transform_3, window_bounds = array<i64: 196>}, {transform_indices = @transform_4, window_bounds = array<i64: 4>}, {transform_indices = @transform_5, window_bounds = array<i64: 16>}, {transform_indices = @transform_6, window_bounds = array<i64: 4>}, {transform_indices = @transform_7, window_bounds = array<i64: 1, 4, 16, 16>}]} {
    %cst = arith.constant 0.000000e+00 : f32
    %0 = vector.broadcast %cst : f32 to vector<2x146xf32>
    %c6 = arith.constant 6 : index
    %c0 = arith.constant 0 : index
    %1 = vector.load %arg9[%c6, %c0] : memref<26x146xf32, #tpu.memory_space<vmem>>, vector<2x146xf32>
    tpu.vector_store %arg9[%c6, %c0], %0 {strides = array<i32>} : memref<26x146xf32, #tpu.memory_space<vmem>>, vector<2x146xf32>,
    %cst_0 = arith.constant 0.000000e+00 : f32
    %2 = vector.broadcast %cst_0 : f32 to vector<2x146xf32>
    %c24 = arith.constant 24 : index
    %c0_1 = arith.constant 0 : index
    %3 = vector.load %arg9[%c24, %c0_1] : memref<26x146xf32, #tpu.memory_space<vmem>>, vector<2x146xf32>
    tpu.vector_store %arg9[%c24, %c0_1], %2 {strides = array<i32>} : memref<26x146xf32, #tpu.memory_space<vmem>>, vector<2x146xf32>,
    %cst_2 = arith.constant 0.000000e+00 : f32
    %4 = vector.broadcast %cst_2 : f32 to vector<16x2xf32>
    %c8 = arith.constant 8 : index
    %c126 = arith.constant 126 : index
    %5 = vector.load %arg9[%c8, %c126] : memref<26x146xf32, #tpu.memory_space<vmem>>, vector<16x2xf32>
    tpu.vector_store %arg9[%c8, %c126], %4 {strides = array<i32>} : memref<26x146xf32, #tpu.memory_space<vmem>>, vector<16x2xf32>,
    %cst_3 = arith.constant 0.000000e+00 : f32
    %6 = vector.broadcast %cst_3 : f32 to vector<16x2xf32>
    %c8_4 = arith.constant 8 : index
    %c144 = arith.constant 144 : index
    %7 = vector.load %arg9[%c8_4, %c144] : memref<26x146xf32, #tpu.memory_space<vmem>>, vector<16x2xf32>
    tpu.vector_store %arg9[%c8_4, %c144], %6 {strides = array<i32>} : memref<26x146xf32, #tpu.memory_space<vmem>>, vector<16x2xf32>,
    %cst_5 = arith.constant 0.000000e+00 : f32
    %8 = vector.broadcast %cst_5 : f32 to vector<9x153xf32>
    %c7 = arith.constant 7 : index
    %c0_6 = arith.constant 0 : index
    %9 = vector.load %arg11[%c7, %c0_6] : memref<41x153xf32, #tpu.memory_space<vmem>>, vector<9x153xf32>
    tpu.vector_store %arg11[%c7, %c0_6], %8 {strides = array<i32>} : memref<41x153xf32, #tpu.memory_space<vmem>>, vector<9x153xf32>,
    %cst_7 = arith.constant 0.000000e+00 : f32
    %10 = vector.broadcast %cst_7 : f32 to vector<9x153xf32>
    %c32 = arith.constant 32 : index
    %c0_8 = arith.constant 0 : index
    %11 = vector.load %arg11[%c32, %c0_8] : memref<41x153xf32, #tpu.memory_space<vmem>>, vector<9x153xf32>
    tpu.vector_store %arg11[%c32, %c0_8], %10 {strides = array<i32>} : memref<41x153xf32, #tpu.memory_space<vmem>>, vector<9x153xf32>,
    %cst_9 = arith.constant 0.000000e+00 : f32
    %12 = vector.broadcast %cst_9 : f32 to vector<16x9xf32>
    %c16 = arith.constant 16 : index
    %c119 = arith.constant 119 : index
    %13 = vector.load %arg11[%c16, %c119] : memref<41x153xf32, #tpu.memory_space<vmem>>, vector<16x9xf32>
    tpu.vector_store %arg11[%c16, %c119], %12 {strides = array<i32>} : memref<41x153xf32, #tpu.memory_space<vmem>>, vector<16x9xf32>,
    %cst_10 = arith.constant 0.000000e+00 : f32
    %14 = vector.broadcast %cst_10 : f32 to vector<16x9xf32>
    %c16_11 = arith.constant 16 : index
    %c144_12 = arith.constant 144 : index
    %15 = vector.load %arg11[%c16_11, %c144_12] : memref<41x153xf32, #tpu.memory_space<vmem>>, vector<16x9xf32>
    tpu.vector_store %arg11[%c16_11, %c144_12], %14 {strides = array<i32>} : memref<41x153xf32, #tpu.memory_space<vmem>>, vector<16x9xf32>,
    %c0_13 = arith.constant 0 : index
    %c0_14 = arith.constant 0 : index
    %c0_15 = arith.constant 0 : index
    %c0_16 = arith.constant 0 : index
    %16 = vector.load %arg1[%c0_13, %c0_14, %c0_15, %c0_16] : memref<1x4x16x16xf32, #tpu.memory_space<vmem>>, vector<1x1x16x16xf32>
    %17 = vector.shape_cast %16 : vector<1x1x16x16xf32> to vector<16x16xf32>
    %c8_17 = arith.constant 8 : index
    %c128 = arith.constant 128 : index
    %18 = vector.load %arg9[%c8_17, %c128] : memref<26x146xf32, #tpu.memory_space<vmem>>, vector<16x16xf32>
    tpu.vector_store %arg9[%c8_17, %c128], %17 {strides = array<i32>} : memref<26x146xf32, #tpu.memory_space<vmem>>, vector<16x16xf32>,
    %c6_18 = arith.constant 6 : index
    %c126_19 = arith.constant 126 : index
    %19 = vector.load %arg9[%c6_18, %c126_19] : memref<26x146xf32, #tpu.memory_space<vmem>>, vector<20x16xf32>
    %c0_20 = arith.constant 0 : index
    %c0_21 = arith.constant 0 : index
    %c0_22 = arith.constant 0 : index
    %20 = vector.load %arg10[%c0_20, %c0_21, %c0_22] : memref<5x20x16xf32, #tpu.memory_space<vmem>>, vector<1x20x16xf32>
    %21 = vector.shape_cast %20 : vector<1x20x16xf32> to vector<20x16xf32>
    %22 = vector.shape_cast %19 : vector<20x16xf32> to vector<1x20x16xf32>
    tpu.vector_store %arg10[%c0_20, %c0_21, %c0_22], %22 {strides = array<i32>} : memref<5x20x16xf32, #tpu.memory_space<vmem>>, vector<1x20x16xf32>,
    %c6_23 = arith.constant 6 : index
    %c127 = arith.constant 127 : index
    %23 = vector.load %arg9[%c6_23, %c127] : memref<26x146xf32, #tpu.memory_space<vmem>>, vector<20x16xf32>
    %c1 = arith.constant 1 : index
    %c0_24 = arith.constant 0 : index
    %c0_25 = arith.constant 0 : index
    %24 = vector.load %arg10[%c1, %c0_24, %c0_25] : memref<5x20x16xf32, #tpu.memory_space<vmem>>, vector<1x20x16xf32>
    %25 = vector.shape_cast %24 : vector<1x20x16xf32> to vector<20x16xf32>
    %26 = vector.shape_cast %23 : vector<20x16xf32> to vector<1x20x16xf32>
    tpu.vector_store %arg10[%c1, %c0_24, %c0_25], %26 {strides = array<i32>} : memref<5x20x16xf32, #tpu.memory_space<vmem>>, vector<1x20x16xf32>,
    %c6_26 = arith.constant 6 : index
    %c128_27 = arith.constant 128 : index
    %27 = vector.load %arg9[%c6_26, %c128_27] : memref<26x146xf32, #tpu.memory_space<vmem>>, vector<20x16xf32>
    %c2 = arith.constant 2 : index
    %c0_28 = arith.constant 0 : index
    %c0_29 = arith.constant 0 : index
    %28 = vector.load %arg10[%c2, %c0_28, %c0_29] : memref<5x20x16xf32, #tpu.memory_space<vmem>>, vector<1x20x16xf32>
    %29 = vector.shape_cast %28 : vector<1x20x16xf32> to vector<20x16xf32>
    %30 = vector.shape_cast %27 : vector<20x16xf32> to vector<1x20x16xf32>
    tpu.vector_store %arg10[%c2, %c0_28, %c0_29], %30 {strides = array<i32>} : memref<5x20x16xf32, #tpu.memory_space<vmem>>, vector<1x20x16xf32>,
    %c6_30 = arith.constant 6 : index
    %c129 = arith.constant 129 : index
    %31 = vector.load %arg9[%c6_30, %c129] : memref<26x146xf32, #tpu.memory_space<vmem>>, vector<20x16xf32>
    %c3 = arith.constant 3 : index
    %c0_31 = arith.constant 0 : index
    %c0_32 = arith.constant 0 : index
    %32 = vector.load %arg10[%c3, %c0_31, %c0_32] : memref<5x20x16xf32, #tpu.memory_space<vmem>>, vector<1x20x16xf32>
    %33 = vector.shape_cast %32 : vector<1x20x16xf32> to vector<20x16xf32>
    %34 = vector.shape_cast %31 : vector<20x16xf32> to vector<1x20x16xf32>
    tpu.vector_store %arg10[%c3, %c0_31, %c0_32], %34 {strides = array<i32>} : memref<5x20x16xf32, #tpu.memory_space<vmem>>, vector<1x20x16xf32>,
    %c6_33 = arith.constant 6 : index
    %c130 = arith.constant 130 : index
    %35 = vector.load %arg9[%c6_33, %c130] : memref<26x146xf32, #tpu.memory_space<vmem>>, vector<20x16xf32>
    %c4 = arith.constant 4 : index
    %c0_34 = arith.constant 0 : index
    %c0_35 = arith.constant 0 : index
    %36 = vector.load %arg10[%c4, %c0_34, %c0_35] : memref<5x20x16xf32, #tpu.memory_space<vmem>>, vector<1x20x16xf32>
    %37 = vector.shape_cast %36 : vector<1x20x16xf32> to vector<20x16xf32>
    %38 = vector.shape_cast %35 : vector<20x16xf32> to vector<1x20x16xf32>
    tpu.vector_store %arg10[%c4, %c0_34, %c0_35], %38 {strides = array<i32>} : memref<5x20x16xf32, #tpu.memory_space<vmem>>, vector<1x20x16xf32>,
    %c0_36 = arith.constant 0 : index
    %c0_37 = arith.constant 0 : index
    %c0_38 = arith.constant 0 : index
    %39 = vector.load %arg10[%c0_36, %c0_37, %c0_38] : memref<5x20x16xf32, #tpu.memory_space<vmem>>, vector<1x16x16xf32>
    %40 = vector.shape_cast %39 : vector<1x16x16xf32> to vector<16x16xf32>
    %c0_39 = arith.constant 0 : index
    %41 = memref.load %arg2[%c0_39] : memref<100xf32, #tpu.memory_space<smem>>
    %42 = vector.broadcast %41 : f32 to vector<16x16xf32>
    %43 = arith.mulf %40, %42 : vector<16x16xf32>
    %c1_40 = arith.constant 1 : index
    %c0_41 = arith.constant 0 : index
    %c0_42 = arith.constant 0 : index
    %44 = vector.load %arg10[%c1_40, %c0_41, %c0_42] : memref<5x20x16xf32, #tpu.memory_space<vmem>>, vector<1x16x16xf32>
    %45 = vector.shape_cast %44 : vector<1x16x16xf32> to vector<16x16xf32>
    %c1_43 = arith.constant 1 : index
    %46 = memref.load %arg2[%c1_43] : memref<100xf32, #tpu.memory_space<smem>>
    %47 = vector.broadcast %46 : f32 to vector<16x16xf32>
    %48 = arith.mulf %45, %47 : vector<16x16xf32>
    %c2_44 = arith.constant 2 : index
    %c0_45 = arith.constant 0 : index
    %c0_46 = arith.constant 0 : index
    %49 = vector.load %arg10[%c2_44, %c0_45, %c0_46] : memref<5x20x16xf32, #tpu.memory_space<vmem>>, vector<1x16x16xf32>
    %50 = vector.shape_cast %49 : vector<1x16x16xf32> to vector<16x16xf32>
    %c2_47 = arith.constant 2 : index
    %51 = memref.load %arg2[%c2_47] : memref<100xf32, #tpu.memory_space<smem>>
    %52 = vector.broadcast %51 : f32 to vector<16x16xf32>
    %53 = arith.mulf %50, %52 : vector<16x16xf32>
    %c3_48 = arith.constant 3 : index
    %c0_49 = arith.constant 0 : index
    %c0_50 = arith.constant 0 : index
    %54 = vector.load %arg10[%c3_48, %c0_49, %c0_50] : memref<5x20x16xf32, #tpu.memory_space<vmem>>, vector<1x16x16xf32>
    %55 = vector.shape_cast %54 : vector<1x16x16xf32> to vector<16x16xf32>
    %c3_51 = arith.constant 3 : index
    %56 = memref.load %arg2[%c3_51] : memref<100xf32, #tpu.memory_space<smem>>
    %57 = vector.broadcast %56 : f32 to vector<16x16xf32>
    %58 = arith.mulf %55, %57 : vector<16x16xf32>
    %c4_52 = arith.constant 4 : index
    %c0_53 = arith.constant 0 : index
    %c0_54 = arith.constant 0 : index
    %59 = vector.load %arg10[%c4_52, %c0_53, %c0_54] : memref<5x20x16xf32, #tpu.memory_space<vmem>>, vector<1x16x16xf32>
    %60 = vector.shape_cast %59 : vector<1x16x16xf32> to vector<16x16xf32>
    %c4_55 = arith.constant 4 : index
    %61 = memref.load %arg2[%c4_55] : memref<100xf32, #tpu.memory_space<smem>>
    %62 = vector.broadcast %61 : f32 to vector<16x16xf32>
    %63 = arith.mulf %60, %62 : vector<16x16xf32>
    %64 = arith.addf %43, %63 : vector<16x16xf32>
    %c0_56 = arith.constant 0 : index
    %c1_57 = arith.constant 1 : index
    %c0_58 = arith.constant 0 : index
    %65 = vector.load %arg10[%c0_56, %c1_57, %c0_58] : memref<5x20x16xf32, #tpu.memory_space<vmem>>, vector<1x16x16xf32>
    %66 = vector.shape_cast %65 : vector<1x16x16xf32> to vector<16x16xf32>
    %c5 = arith.constant 5 : index
    %67 = memref.load %arg2[%c5] : memref<100xf32, #tpu.memory_space<smem>>
    %68 = vector.broadcast %67 : f32 to vector<16x16xf32>
    %69 = arith.mulf %66, %68 : vector<16x16xf32>
    %70 = arith.addf %48, %69 : vector<16x16xf32>
    %c1_59 = arith.constant 1 : index
    %c1_60 = arith.constant 1 : index
    %c0_61 = arith.constant 0 : index
    %71 = vector.load %arg10[%c1_59, %c1_60, %c0_61] : memref<5x20x16xf32, #tpu.memory_space<vmem>>, vector<1x16x16xf32>
    %72 = vector.shape_cast %71 : vector<1x16x16xf32> to vector<16x16xf32>
    %c6_62 = arith.constant 6 : index
    %73 = memref.load %arg2[%c6_62] : memref<100xf32, #tpu.memory_space<smem>>
    %74 = vector.broadcast %73 : f32 to vector<16x16xf32>
    %75 = arith.mulf %72, %74 : vector<16x16xf32>
    %76 = arith.addf %53, %75 : vector<16x16xf32>
    %c2_63 = arith.constant 2 : index
    %c1_64 = arith.constant 1 : index
    %c0_65 = arith.constant 0 : index
    %77 = vector.load %arg10[%c2_63, %c1_64, %c0_65] : memref<5x20x16xf32, #tpu.memory_space<vmem>>, vector<1x16x16xf32>
    %78 = vector.shape_cast %77 : vector<1x16x16xf32> to vector<16x16xf32>
    %c7_66 = arith.constant 7 : index
    %79 = memref.load %arg2[%c7_66] : memref<100xf32, #tpu.memory_space<smem>>
    %80 = vector.broadcast %79 : f32 to vector<16x16xf32>
    %81 = arith.mulf %78, %80 : vector<16x16xf32>
    %82 = arith.addf %58, %81 : vector<16x16xf32>
    %c3_67 = arith.constant 3 : index
    %c1_68 = arith.constant 1 : index
    %c0_69 = arith.constant 0 : index
    %83 = vector.load %arg10[%c3_67, %c1_68, %c0_69] : memref<5x20x16xf32, #tpu.memory_space<vmem>>, vector<1x16x16xf32>
    %84 = vector.shape_cast %83 : vector<1x16x16xf32> to vector<16x16xf32>
    %c8_70 = arith.constant 8 : index
    %85 = memref.load %arg2[%c8_70] : memref<100xf32, #tpu.memory_space<smem>>
    %86 = vector.broadcast %85 : f32 to vector<16x16xf32>
    %87 = arith.mulf %84, %86 : vector<16x16xf32>
    %88 = arith.addf %64, %87 : vector<16x16xf32>
    %c4_71 = arith.constant 4 : index
    %c1_72 = arith.constant 1 : index
    %c0_73 = arith.constant 0 : index
    %89 = vector.load %arg10[%c4_71, %c1_72, %c0_73] : memref<5x20x16xf32, #tpu.memory_space<vmem>>, vector<1x16x16xf32>
    %90 = vector.shape_cast %89 : vector<1x16x16xf32> to vector<16x16xf32>
    %c9 = arith.constant 9 : index
    %91 = memref.load %arg2[%c9] : memref<100xf32, #tpu.memory_space<smem>>
    %92 = vector.broadcast %91 : f32 to vector<16x16xf32>
    %93 = arith.mulf %90, %92 : vector<16x16xf32>
    %94 = arith.addf %70, %93 : vector<16x16xf32>
    %c0_74 = arith.constant 0 : index
    %c2_75 = arith.constant 2 : index
    %c0_76 = arith.constant 0 : index
    %95 = vector.load %arg10[%c0_74, %c2_75, %c0_76] : memref<5x20x16xf32, #tpu.memory_space<vmem>>, vector<1x16x16xf32>
    %96 = vector.shape_cast %95 : vector<1x16x16xf32> to vector<16x16xf32>
    %c10 = arith.constant 10 : index
    %97 = memref.load %arg2[%c10] : memref<100xf32, #tpu.memory_space<smem>>
    %98 = vector.broadcast %97 : f32 to vector<16x16xf32>
    %99 = arith.mulf %96, %98 : vector<16x16xf32>
    %100 = arith.addf %76, %99 : vector<16x16xf32>
    %c1_77 = arith.constant 1 : index
    %c2_78 = arith.constant 2 : index
    %c0_79 = arith.constant 0 : index
    %101 = vector.load %arg10[%c1_77, %c2_78, %c0_79] : memref<5x20x16xf32, #tpu.memory_space<vmem>>, vector<1x16x16xf32>
    %102 = vector.shape_cast %101 : vector<1x16x16xf32> to vector<16x16xf32>
    %c11 = arith.constant 11 : index
    %103 = memref.load %arg2[%c11] : memref<100xf32, #tpu.memory_space<smem>>
    %104 = vector.broadcast %103 : f32 to vector<16x16xf32>
    %105 = arith.mulf %102, %104 : vector<16x16xf32>
    %106 = arith.addf %82, %105 : vector<16x16xf32>
    %c2_80 = arith.constant 2 : index
    %c2_81 = arith.constant 2 : index
    %c0_82 = arith.constant 0 : index
    %107 = vector.load %arg10[%c2_80, %c2_81, %c0_82] : memref<5x20x16xf32, #tpu.memory_space<vmem>>, vector<1x16x16xf32>
    %108 = vector.shape_cast %107 : vector<1x16x16xf32> to vector<16x16xf32>
    %c12 = arith.constant 12 : index
    %109 = memref.load %arg2[%c12] : memref<100xf32, #tpu.memory_space<smem>>
    %110 = vector.broadcast %109 : f32 to vector<16x16xf32>
    %111 = arith.mulf %108, %110 : vector<16x16xf32>
    %112 = arith.addf %88, %111 : vector<16x16xf32>
    %c3_83 = arith.constant 3 : index
    %c2_84 = arith.constant 2 : index
    %c0_85 = arith.constant 0 : index
    %113 = vector.load %arg10[%c3_83, %c2_84, %c0_85] : memref<5x20x16xf32, #tpu.memory_space<vmem>>, vector<1x16x16xf32>
    %114 = vector.shape_cast %113 : vector<1x16x16xf32> to vector<16x16xf32>
    %c13 = arith.constant 13 : index
    %115 = memref.load %arg2[%c13] : memref<100xf32, #tpu.memory_space<smem>>
    %116 = vector.broadcast %115 : f32 to vector<16x16xf32>
    %117 = arith.mulf %114, %116 : vector<16x16xf32>
    %118 = arith.addf %94, %117 : vector<16x16xf32>
    %c4_86 = arith.constant 4 : index
    %c2_87 = arith.constant 2 : index
    %c0_88 = arith.constant 0 : index
    %119 = vector.load %arg10[%c4_86, %c2_87, %c0_88] : memref<5x20x16xf32, #tpu.memory_space<vmem>>, vector<1x16x16xf32>
    %120 = vector.shape_cast %119 : vector<1x16x16xf32> to vector<16x16xf32>
    %c14 = arith.constant 14 : index
    %121 = memref.load %arg2[%c14] : memref<100xf32, #tpu.memory_space<smem>>
    %122 = vector.broadcast %121 : f32 to vector<16x16xf32>
    %123 = arith.mulf %120, %122 : vector<16x16xf32>
    %124 = arith.addf %100, %123 : vector<16x16xf32>
    %c0_89 = arith.constant 0 : index
    %c3_90 = arith.constant 3 : index
    %c0_91 = arith.constant 0 : index
    %125 = vector.load %arg10[%c0_89, %c3_90, %c0_91] : memref<5x20x16xf32, #tpu.memory_space<vmem>>, vector<1x16x16xf32>
    %126 = vector.shape_cast %125 : vector<1x16x16xf32> to vector<16x16xf32>
    %c15 = arith.constant 15 : index
    %127 = memref.load %arg2[%c15] : memref<100xf32, #tpu.memory_space<smem>>
    %128 = vector.broadcast %127 : f32 to vector<16x16xf32>
    %129 = arith.mulf %126, %128 : vector<16x16xf32>
    %130 = arith.addf %106, %129 : vector<16x16xf32>
    %c1_92 = arith.constant 1 : index
    %c3_93 = arith.constant 3 : index
    %c0_94 = arith.constant 0 : index
    %131 = vector.load %arg10[%c1_92, %c3_93, %c0_94] : memref<5x20x16xf32, #tpu.memory_space<vmem>>, vector<1x16x16xf32>
    %132 = vector.shape_cast %131 : vector<1x16x16xf32> to vector<16x16xf32>
    %c16_95 = arith.constant 16 : index
    %133 = memref.load %arg2[%c16_95] : memref<100xf32, #tpu.memory_space<smem>>
    %134 = vector.broadcast %133 : f32 to vector<16x16xf32>
    %135 = arith.mulf %132, %134 : vector<16x16xf32>
    %136 = arith.addf %112, %135 : vector<16x16xf32>
    %c2_96 = arith.constant 2 : index
    %c3_97 = arith.constant 3 : index
    %c0_98 = arith.constant 0 : index
    %137 = vector.load %arg10[%c2_96, %c3_97, %c0_98] : memref<5x20x16xf32, #tpu.memory_space<vmem>>, vector<1x16x16xf32>
    %138 = vector.shape_cast %137 : vector<1x16x16xf32> to vector<16x16xf32>
    %c17 = arith.constant 17 : index
    %139 = memref.load %arg2[%c17] : memref<100xf32, #tpu.memory_space<smem>>
    %140 = vector.broadcast %139 : f32 to vector<16x16xf32>
    %141 = arith.mulf %138, %140 : vector<16x16xf32>
    %142 = arith.addf %118, %141 : vector<16x16xf32>
    %c3_99 = arith.constant 3 : index
    %c3_100 = arith.constant 3 : index
    %c0_101 = arith.constant 0 : index
    %143 = vector.load %arg10[%c3_99, %c3_100, %c0_101] : memref<5x20x16xf32, #tpu.memory_space<vmem>>, vector<1x16x16xf32>
    %144 = vector.shape_cast %143 : vector<1x16x16xf32> to vector<16x16xf32>
    %c18 = arith.constant 18 : index
    %145 = memref.load %arg2[%c18] : memref<100xf32, #tpu.memory_space<smem>>
    %146 = vector.broadcast %145 : f32 to vector<16x16xf32>
    %147 = arith.mulf %144, %146 : vector<16x16xf32>
    %148 = arith.addf %124, %147 : vector<16x16xf32>
    %c4_102 = arith.constant 4 : index
    %c3_103 = arith.constant 3 : index
    %c0_104 = arith.constant 0 : index
    %149 = vector.load %arg10[%c4_102, %c3_103, %c0_104] : memref<5x20x16xf32, #tpu.memory_space<vmem>>, vector<1x16x16xf32>
    %150 = vector.shape_cast %149 : vector<1x16x16xf32> to vector<16x16xf32>
    %c19 = arith.constant 19 : index
    %151 = memref.load %arg2[%c19] : memref<100xf32, #tpu.memory_space<smem>>
    %152 = vector.broadcast %151 : f32 to vector<16x16xf32>
    %153 = arith.mulf %150, %152 : vector<16x16xf32>
    %154 = arith.addf %130, %153 : vector<16x16xf32>
    %c0_105 = arith.constant 0 : index
    %c4_106 = arith.constant 4 : index
    %c0_107 = arith.constant 0 : index
    %155 = vector.load %arg10[%c0_105, %c4_106, %c0_107] : memref<5x20x16xf32, #tpu.memory_space<vmem>>, vector<1x16x16xf32>
    %156 = vector.shape_cast %155 : vector<1x16x16xf32> to vector<16x16xf32>
    %c20 = arith.constant 20 : index
    %157 = memref.load %arg2[%c20] : memref<100xf32, #tpu.memory_space<smem>>
    %158 = vector.broadcast %157 : f32 to vector<16x16xf32>
    %159 = arith.mulf %156, %158 : vector<16x16xf32>
    %160 = arith.addf %136, %159 : vector<16x16xf32>
    %c1_108 = arith.constant 1 : index
    %c4_109 = arith.constant 4 : index
    %c0_110 = arith.constant 0 : index
    %161 = vector.load %arg10[%c1_108, %c4_109, %c0_110] : memref<5x20x16xf32, #tpu.memory_space<vmem>>, vector<1x16x16xf32>
    %162 = vector.shape_cast %161 : vector<1x16x16xf32> to vector<16x16xf32>
    %c21 = arith.constant 21 : index
    %163 = memref.load %arg2[%c21] : memref<100xf32, #tpu.memory_space<smem>>
    %164 = vector.broadcast %163 : f32 to vector<16x16xf32>
    %165 = arith.mulf %162, %164 : vector<16x16xf32>
    %166 = arith.addf %142, %165 : vector<16x16xf32>
    %c2_111 = arith.constant 2 : index
    %c4_112 = arith.constant 4 : index
    %c0_113 = arith.constant 0 : index
    %167 = vector.load %arg10[%c2_111, %c4_112, %c0_113] : memref<5x20x16xf32, #tpu.memory_space<vmem>>, vector<1x16x16xf32>
    %168 = vector.shape_cast %167 : vector<1x16x16xf32> to vector<16x16xf32>
    %c22 = arith.constant 22 : index
    %169 = memref.load %arg2[%c22] : memref<100xf32, #tpu.memory_space<smem>>
    %170 = vector.broadcast %169 : f32 to vector<16x16xf32>
    %171 = arith.mulf %168, %170 : vector<16x16xf32>
    %172 = arith.addf %148, %171 : vector<16x16xf32>
    %c3_114 = arith.constant 3 : index
    %c4_115 = arith.constant 4 : index
    %c0_116 = arith.constant 0 : index
    %173 = vector.load %arg10[%c3_114, %c4_115, %c0_116] : memref<5x20x16xf32, #tpu.memory_space<vmem>>, vector<1x16x16xf32>
    %174 = vector.shape_cast %173 : vector<1x16x16xf32> to vector<16x16xf32>
    %c23 = arith.constant 23 : index
    %175 = memref.load %arg2[%c23] : memref<100xf32, #tpu.memory_space<smem>>
    %176 = vector.broadcast %175 : f32 to vector<16x16xf32>
    %177 = arith.mulf %174, %176 : vector<16x16xf32>
    %178 = arith.addf %154, %177 : vector<16x16xf32>
    %c4_117 = arith.constant 4 : index
    %c4_118 = arith.constant 4 : index
    %c0_119 = arith.constant 0 : index
    %179 = vector.load %arg10[%c4_117, %c4_118, %c0_119] : memref<5x20x16xf32, #tpu.memory_space<vmem>>, vector<1x16x16xf32>
    %180 = vector.shape_cast %179 : vector<1x16x16xf32> to vector<16x16xf32>
    %c24_120 = arith.constant 24 : index
    %181 = memref.load %arg2[%c24_120] : memref<100xf32, #tpu.memory_space<smem>>
    %182 = vector.broadcast %181 : f32 to vector<16x16xf32>
    %183 = arith.mulf %180, %182 : vector<16x16xf32>
    %184 = arith.addf %160, %183 : vector<16x16xf32>
    %185 = arith.addf %184, %166 : vector<16x16xf32>
    %186 = arith.addf %185, %172 : vector<16x16xf32>
    %187 = arith.addf %186, %178 : vector<16x16xf32>
    %c0_121 = arith.constant 0 : index
    %188 = memref.load %arg3[%c0_121] : memref<4xf32, #tpu.memory_space<smem>>
    %189 = vector.broadcast %188 : f32 to vector<16x16xf32>
    %190 = arith.addf %187, %189 : vector<16x16xf32>
    %c16_122 = arith.constant 16 : index
    %c128_123 = arith.constant 128 : index
    %191 = vector.load %arg11[%c16_122, %c128_123] : memref<41x153xf32, #tpu.memory_space<vmem>>, vector<16x16xf32>
    tpu.vector_store %arg11[%c16_122, %c128_123], %190 {strides = array<i32>} : memref<41x153xf32, #tpu.memory_space<vmem>>, vector<16x16xf32>,
    %c7_124 = arith.constant 7 : index
    %c119_125 = arith.constant 119 : index
    %192 = vector.load %arg11[%c7_124, %c119_125] : memref<41x153xf32, #tpu.memory_space<vmem>>, vector<34x16xf32>
    %c0_126 = arith.constant 0 : index
    %c0_127 = arith.constant 0 : index
    %c0_128 = arith.constant 0 : index
    %193 = vector.load %arg12[%c0_126, %c0_127, %c0_128] : memref<7x34x16xf32, #tpu.memory_space<vmem>>, vector<1x34x16xf32>
    %194 = vector.shape_cast %193 : vector<1x34x16xf32> to vector<34x16xf32>
    %195 = vector.shape_cast %192 : vector<34x16xf32> to vector<1x34x16xf32>
    tpu.vector_store %arg12[%c0_126, %c0_127, %c0_128], %195 {strides = array<i32>} : memref<7x34x16xf32, #tpu.memory_space<vmem>>, vector<1x34x16xf32>,
    %c7_129 = arith.constant 7 : index
    %c122 = arith.constant 122 : index
    %196 = vector.load %arg11[%c7_129, %c122] : memref<41x153xf32, #tpu.memory_space<vmem>>, vector<34x16xf32>
    %c1_130 = arith.constant 1 : index
    %c0_131 = arith.constant 0 : index
    %c0_132 = arith.constant 0 : index
    %197 = vector.load %arg12[%c1_130, %c0_131, %c0_132] : memref<7x34x16xf32, #tpu.memory_space<vmem>>, vector<1x34x16xf32>
    %198 = vector.shape_cast %197 : vector<1x34x16xf32> to vector<34x16xf32>
    %199 = vector.shape_cast %196 : vector<34x16xf32> to vector<1x34x16xf32>
    tpu.vector_store %arg12[%c1_130, %c0_131, %c0_132], %199 {strides = array<i32>} : memref<7x34x16xf32, #tpu.memory_space<vmem>>, vector<1x34x16xf32>,
    %c7_133 = arith.constant 7 : index
    %c125 = arith.constant 125 : index
    %200 = vector.load %arg11[%c7_133, %c125] : memref<41x153xf32, #tpu.memory_space<vmem>>, vector<34x16xf32>
    %c2_134 = arith.constant 2 : index
    %c0_135 = arith.constant 0 : index
    %c0_136 = arith.constant 0 : index
    %201 = vector.load %arg12[%c2_134, %c0_135, %c0_136] : memref<7x34x16xf32, #tpu.memory_space<vmem>>, vector<1x34x16xf32>
    %202 = vector.shape_cast %201 : vector<1x34x16xf32> to vector<34x16xf32>
    %203 = vector.shape_cast %200 : vector<34x16xf32> to vector<1x34x16xf32>
    tpu.vector_store %arg12[%c2_134, %c0_135, %c0_136], %203 {strides = array<i32>} : memref<7x34x16xf32, #tpu.memory_space<vmem>>, vector<1x34x16xf32>,
    %c7_137 = arith.constant 7 : index
    %c128_138 = arith.constant 128 : index
    %204 = vector.load %arg11[%c7_137, %c128_138] : memref<41x153xf32, #tpu.memory_space<vmem>>, vector<34x16xf32>
    %c3_139 = arith.constant 3 : index
    %c0_140 = arith.constant 0 : index
    %c0_141 = arith.constant 0 : index
    %205 = vector.load %arg12[%c3_139, %c0_140, %c0_141] : memref<7x34x16xf32, #tpu.memory_space<vmem>>, vector<1x34x16xf32>
    %206 = vector.shape_cast %205 : vector<1x34x16xf32> to vector<34x16xf32>
    %207 = vector.shape_cast %204 : vector<34x16xf32> to vector<1x34x16xf32>
    tpu.vector_store %arg12[%c3_139, %c0_140, %c0_141], %207 {strides = array<i32>} : memref<7x34x16xf32, #tpu.memory_space<vmem>>, vector<1x34x16xf32>,
    %c7_142 = arith.constant 7 : index
    %c131 = arith.constant 131 : index
    %208 = vector.load %arg11[%c7_142, %c131] : memref<41x153xf32, #tpu.memory_space<vmem>>, vector<34x16xf32>
    %c4_143 = arith.constant 4 : index
    %c0_144 = arith.constant 0 : index
    %c0_145 = arith.constant 0 : index
    %209 = vector.load %arg12[%c4_143, %c0_144, %c0_145] : memref<7x34x16xf32, #tpu.memory_space<vmem>>, vector<1x34x16xf32>
    %210 = vector.shape_cast %209 : vector<1x34x16xf32> to vector<34x16xf32>
    %211 = vector.shape_cast %208 : vector<34x16xf32> to vector<1x34x16xf32>
    tpu.vector_store %arg12[%c4_143, %c0_144, %c0_145], %211 {strides = array<i32>} : memref<7x34x16xf32, #tpu.memory_space<vmem>>, vector<1x34x16xf32>,
    %c7_146 = arith.constant 7 : index
    %c134 = arith.constant 134 : index
    %212 = vector.load %arg11[%c7_146, %c134] : memref<41x153xf32, #tpu.memory_space<vmem>>, vector<34x16xf32>
    %c5_147 = arith.constant 5 : index
    %c0_148 = arith.constant 0 : index
    %c0_149 = arith.constant 0 : index
    %213 = vector.load %arg12[%c5_147, %c0_148, %c0_149] : memref<7x34x16xf32, #tpu.memory_space<vmem>>, vector<1x34x16xf32>
    %214 = vector.shape_cast %213 : vector<1x34x16xf32> to vector<34x16xf32>
    %215 = vector.shape_cast %212 : vector<34x16xf32> to vector<1x34x16xf32>
    tpu.vector_store %arg12[%c5_147, %c0_148, %c0_149], %215 {strides = array<i32>} : memref<7x34x16xf32, #tpu.memory_space<vmem>>, vector<1x34x16xf32>,
    %c7_150 = arith.constant 7 : index
    %c137 = arith.constant 137 : index
    %216 = vector.load %arg11[%c7_150, %c137] : memref<41x153xf32, #tpu.memory_space<vmem>>, vector<34x16xf32>
    %c6_151 = arith.constant 6 : index
    %c0_152 = arith.constant 0 : index
    %c0_153 = arith.constant 0 : index
    %217 = vector.load %arg12[%c6_151, %c0_152, %c0_153] : memref<7x34x16xf32, #tpu.memory_space<vmem>>, vector<1x34x16xf32>
    %218 = vector.shape_cast %217 : vector<1x34x16xf32> to vector<34x16xf32>
    %219 = vector.shape_cast %216 : vector<34x16xf32> to vector<1x34x16xf32>
    tpu.vector_store %arg12[%c6_151, %c0_152, %c0_153], %219 {strides = array<i32>} : memref<7x34x16xf32, #tpu.memory_space<vmem>>, vector<1x34x16xf32>,
    %c0_154 = arith.constant 0 : index
    %c0_155 = arith.constant 0 : index
    %c0_156 = arith.constant 0 : index
    %220 = vector.load %arg12[%c0_154, %c0_155, %c0_156] : memref<7x34x16xf32, #tpu.memory_space<vmem>>, vector<1x16x16xf32>
    %221 = vector.shape_cast %220 : vector<1x16x16xf32> to vector<16x16xf32>
    %c0_157 = arith.constant 0 : index
    %222 = memref.load %arg4[%c0_157] : memref<196xf32, #tpu.memory_space<smem>>
    %223 = vector.broadcast %222 : f32 to vector<16x16xf32>
    %224 = arith.mulf %221, %223 : vector<16x16xf32>
    %c1_158 = arith.constant 1 : index
    %c0_159 = arith.constant 0 : index
    %c0_160 = arith.constant 0 : index
    %225 = vector.load %arg12[%c1_158, %c0_159, %c0_160] : memref<7x34x16xf32, #tpu.memory_space<vmem>>, vector<1x16x16xf32>
    %226 = vector.shape_cast %225 : vector<1x16x16xf32> to vector<16x16xf32>
    %c1_161 = arith.constant 1 : index
    %227 = memref.load %arg4[%c1_161] : memref<196xf32, #tpu.memory_space<smem>>
    %228 = vector.broadcast %227 : f32 to vector<16x16xf32>
    %229 = arith.mulf %226, %228 : vector<16x16xf32>
    %c2_162 = arith.constant 2 : index
    %c0_163 = arith.constant 0 : index
    %c0_164 = arith.constant 0 : index
    %230 = vector.load %arg12[%c2_162, %c0_163, %c0_164] : memref<7x34x16xf32, #tpu.memory_space<vmem>>, vector<1x16x16xf32>
    %231 = vector.shape_cast %230 : vector<1x16x16xf32> to vector<16x16xf32>
    %c2_165 = arith.constant 2 : index
    %232 = memref.load %arg4[%c2_165] : memref<196xf32, #tpu.memory_space<smem>>
    %233 = vector.broadcast %232 : f32 to vector<16x16xf32>
    %234 = arith.mulf %231, %233 : vector<16x16xf32>
    %c3_166 = arith.constant 3 : index
    %c0_167 = arith.constant 0 : index
    %c0_168 = arith.constant 0 : index
    %235 = vector.load %arg12[%c3_166, %c0_167, %c0_168] : memref<7x34x16xf32, #tpu.memory_space<vmem>>, vector<1x16x16xf32>
    %236 = vector.shape_cast %235 : vector<1x16x16xf32> to vector<16x16xf32>
    %c3_169 = arith.constant 3 : index
    %237 = memref.load %arg4[%c3_169] : memref<196xf32, #tpu.memory_space<smem>>
    %238 = vector.broadcast %237 : f32 to vector<16x16xf32>
    %239 = arith.mulf %236, %238 : vector<16x16xf32>
    %c4_170 = arith.constant 4 : index
    %c0_171 = arith.constant 0 : index
    %c0_172 = arith.constant 0 : index
    %240 = vector.load %arg12[%c4_170, %c0_171, %c0_172] : memref<7x34x16xf32, #tpu.memory_space<vmem>>, vector<1x16x16xf32>
    %241 = vector.shape_cast %240 : vector<1x16x16xf32> to vector<16x16xf32>
    %c4_173 = arith.constant 4 : index
    %242 = memref.load %arg4[%c4_173] : memref<196xf32, #tpu.memory_space<smem>>
    %243 = vector.broadcast %242 : f32 to vector<16x16xf32>
    %244 = arith.mulf %241, %243 : vector<16x16xf32>
    %245 = arith.addf %224, %244 : vector<16x16xf32>
    %c5_174 = arith.constant 5 : index
    %c0_175 = arith.constant 0 : index
    %c0_176 = arith.constant 0 : index
    %246 = vector.load %arg12[%c5_174, %c0_175, %c0_176] : memref<7x34x16xf32, #tpu.memory_space<vmem>>, vector<1x16x16xf32>
    %247 = vector.shape_cast %246 : vector<1x16x16xf32> to vector<16x16xf32>
    %c5_177 = arith.constant 5 : index
    %248 = memref.load %arg4[%c5_177] : memref<196xf32, #tpu.memory_space<smem>>
    %249 = vector.broadcast %248 : f32 to vector<16x16xf32>
    %250 = arith.mulf %247, %249 : vector<16x16xf32>
    %251 = arith.addf %229, %250 : vector<16x16xf32>
    %c6_178 = arith.constant 6 : index
    %c0_179 = arith.constant 0 : index
    %c0_180 = arith.constant 0 : index
    %252 = vector.load %arg12[%c6_178, %c0_179, %c0_180] : memref<7x34x16xf32, #tpu.memory_space<vmem>>, vector<1x16x16xf32>
    %253 = vector.shape_cast %252 : vector<1x16x16xf32> to vector<16x16xf32>
    %c6_181 = arith.constant 6 : index
    %254 = memref.load %arg4[%c6_181] : memref<196xf32, #tpu.memory_space<smem>>
    %255 = vector.broadcast %254 : f32 to vector<16x16xf32>
    %256 = arith.mulf %253, %255 : vector<16x16xf32>
    %257 = arith.addf %234, %256 : vector<16x16xf32>
    %c0_182 = arith.constant 0 : index
    %c3_183 = arith.constant 3 : index
    %c0_184 = arith.constant 0 : index
    %258 = vector.load %arg12[%c0_182, %c3_183, %c0_184] : memref<7x34x16xf32, #tpu.memory_space<vmem>>, vector<1x16x16xf32>
    %259 = vector.shape_cast %258 : vector<1x16x16xf32> to vector<16x16xf32>
    %c7_185 = arith.constant 7 : index
    %260 = memref.load %arg4[%c7_185] : memref<196xf32, #tpu.memory_space<smem>>
    %261 = vector.broadcast %260 : f32 to vector<16x16xf32>
    %262 = arith.mulf %259, %261 : vector<16x16xf32>
    %263 = arith.addf %239, %262 : vector<16x16xf32>
    %c1_186 = arith.constant 1 : index
    %c3_187 = arith.constant 3 : index
    %c0_188 = arith.constant 0 : index
    %264 = vector.load %arg12[%c1_186, %c3_187, %c0_188] : memref<7x34x16xf32, #tpu.memory_space<vmem>>, vector<1x16x16xf32>
    %265 = vector.shape_cast %264 : vector<1x16x16xf32> to vector<16x16xf32>
    %c8_189 = arith.constant 8 : index
    %266 = memref.load %arg4[%c8_189] : memref<196xf32, #tpu.memory_space<smem>>
    %267 = vector.broadcast %266 : f32 to vector<16x16xf32>
    %268 = arith.mulf %265, %267 : vector<16x16xf32>
    %269 = arith.addf %245, %268 : vector<16x16xf32>
    %c2_190 = arith.constant 2 : index
    %c3_191 = arith.constant 3 : index
    %c0_192 = arith.constant 0 : index
    %270 = vector.load %arg12[%c2_190, %c3_191, %c0_192] : memref<7x34x16xf32, #tpu.memory_space<vmem>>, vector<1x16x16xf32>
    %271 = vector.shape_cast %270 : vector<1x16x16xf32> to vector<16x16xf32>
    %c9_193 = arith.constant 9 : index
    %272 = memref.load %arg4[%c9_193] : memref<196xf32, #tpu.memory_space<smem>>
    %273 = vector.broadcast %272 : f32 to vector<16x16xf32>
    %274 = arith.mulf %271, %273 : vector<16x16xf32>
    %275 = arith.addf %251, %274 : vector<16x16xf32>
    %c3_194 = arith.constant 3 : index
    %c3_195 = arith.constant 3 : index
    %c0_196 = arith.constant 0 : index
    %276 = vector.load %arg12[%c3_194, %c3_195, %c0_196] : memref<7x34x16xf32, #tpu.memory_space<vmem>>, vector<1x16x16xf32>
    %277 = vector.shape_cast %276 : vector<1x16x16xf32> to vector<16x16xf32>
    %c10_197 = arith.constant 10 : index
    %278 = memref.load %arg4[%c10_197] : memref<196xf32, #tpu.memory_space<smem>>
    %279 = vector.broadcast %278 : f32 to vector<16x16xf32>
    %280 = arith.mulf %277, %279 : vector<16x16xf32>
    %281 = arith.addf %257, %280 : vector<16x16xf32>
    %c4_198 = arith.constant 4 : index
    %c3_199 = arith.constant 3 : index
    %c0_200 = arith.constant 0 : index
    %282 = vector.load %arg12[%c4_198, %c3_199, %c0_200] : memref<7x34x16xf32, #tpu.memory_space<vmem>>, vector<1x16x16xf32>
    %283 = vector.shape_cast %282 : vector<1x16x16xf32> to vector<16x16xf32>
    %c11_201 = arith.constant 11 : index
    %284 = memref.load %arg4[%c11_201] : memref<196xf32, #tpu.memory_space<smem>>
    %285 = vector.broadcast %284 : f32 to vector<16x16xf32>
    %286 = arith.mulf %283, %285 : vector<16x16xf32>
    %287 = arith.addf %263, %286 : vector<16x16xf32>
    %c5_202 = arith.constant 5 : index
    %c3_203 = arith.constant 3 : index
    %c0_204 = arith.constant 0 : index
    %288 = vector.load %arg12[%c5_202, %c3_203, %c0_204] : memref<7x34x16xf32, #tpu.memory_space<vmem>>, vector<1x16x16xf32>
    %289 = vector.shape_cast %288 : vector<1x16x16xf32> to vector<16x16xf32>
    %c12_205 = arith.constant 12 : index
    %290 = memref.load %arg4[%c12_205] : memref<196xf32, #tpu.memory_space<smem>>
    %291 = vector.broadcast %290 : f32 to vector<16x16xf32>
    %292 = arith.mulf %289, %291 : vector<16x16xf32>
    %293 = arith.addf %269, %292 : vector<16x16xf32>
    %c6_206 = arith.constant 6 : index
    %c3_207 = arith.constant 3 : index
    %c0_208 = arith.constant 0 : index
    %294 = vector.load %arg12[%c6_206, %c3_207, %c0_208] : memref<7x34x16xf32, #tpu.memory_space<vmem>>, vector<1x16x16xf32>
    %295 = vector.shape_cast %294 : vector<1x16x16xf32> to vector<16x16xf32>
    %c13_209 = arith.constant 13 : index
    %296 = memref.load %arg4[%c13_209] : memref<196xf32, #tpu.memory_space<smem>>
    %297 = vector.broadcast %296 : f32 to vector<16x16xf32>
    %298 = arith.mulf %295, %297 : vector<16x16xf32>
    %299 = arith.addf %275, %298 : vector<16x16xf32>
    %c0_210 = arith.constant 0 : index
    %c6_211 = arith.constant 6 : index
    %c0_212 = arith.constant 0 : index
    %300 = vector.load %arg12[%c0_210, %c6_211, %c0_212] : memref<7x34x16xf32, #tpu.memory_space<vmem>>, vector<1x16x16xf32>
    %301 = vector.shape_cast %300 : vector<1x16x16xf32> to vector<16x16xf32>
    %c14_213 = arith.constant 14 : index
    %302 = memref.load %arg4[%c14_213] : memref<196xf32, #tpu.memory_space<smem>>
    %303 = vector.broadcast %302 : f32 to vector<16x16xf32>
    %304 = arith.mulf %301, %303 : vector<16x16xf32>
    %305 = arith.addf %281, %304 : vector<16x16xf32>
    %c1_214 = arith.constant 1 : index
    %c6_215 = arith.constant 6 : index
    %c0_216 = arith.constant 0 : index
    %306 = vector.load %arg12[%c1_214, %c6_215, %c0_216] : memref<7x34x16xf32, #tpu.memory_space<vmem>>, vector<1x16x16xf32>
    %307 = vector.shape_cast %306 : vector<1x16x16xf32> to vector<16x16xf32>
    %c15_217 = arith.constant 15 : index
    %308 = memref.load %arg4[%c15_217] : memref<196xf32, #tpu.memory_space<smem>>
    %309 = vector.broadcast %308 : f32 to vector<16x16xf32>
    %310 = arith.mulf %307, %309 : vector<16x16xf32>
    %311 = arith.addf %287, %310 : vector<16x16xf32>
    %c2_218 = arith.constant 2 : index
    %c6_219 = arith.constant 6 : index
    %c0_220 = arith.constant 0 : index
    %312 = vector.load %arg12[%c2_218, %c6_219, %c0_220] : memref<7x34x16xf32, #tpu.memory_space<vmem>>, vector<1x16x16xf32>
    %313 = vector.shape_cast %312 : vector<1x16x16xf32> to vector<16x16xf32>
    %c16_221 = arith.constant 16 : index
    %314 = memref.load %arg4[%c16_221] : memref<196xf32, #tpu.memory_space<smem>>
    %315 = vector.broadcast %314 : f32 to vector<16x16xf32>
    %316 = arith.mulf %313, %315 : vector<16x16xf32>
    %317 = arith.addf %293, %316 : vector<16x16xf32>
    %c3_222 = arith.constant 3 : index
    %c6_223 = arith.constant 6 : index
    %c0_224 = arith.constant 0 : index
    %318 = vector.load %arg12[%c3_222, %c6_223, %c0_224] : memref<7x34x16xf32, #tpu.memory_space<vmem>>, vector<1x16x16xf32>
    %319 = vector.shape_cast %318 : vector<1x16x16xf32> to vector<16x16xf32>
    %c17_225 = arith.constant 17 : index
    %320 = memref.load %arg4[%c17_225] : memref<196xf32, #tpu.memory_space<smem>>
    %321 = vector.broadcast %320 : f32 to vector<16x16xf32>
    %322 = arith.mulf %319, %321 : vector<16x16xf32>
    %323 = arith.addf %299, %322 : vector<16x16xf32>
    %c4_226 = arith.constant 4 : index
    %c6_227 = arith.constant 6 : index
    %c0_228 = arith.constant 0 : index
    %324 = vector.load %arg12[%c4_226, %c6_227, %c0_228] : memref<7x34x16xf32, #tpu.memory_space<vmem>>, vector<1x16x16xf32>
    %325 = vector.shape_cast %324 : vector<1x16x16xf32> to vector<16x16xf32>
    %c18_229 = arith.constant 18 : index
    %326 = memref.load %arg4[%c18_229] : memref<196xf32, #tpu.memory_space<smem>>
    %327 = vector.broadcast %326 : f32 to vector<16x16xf32>
    %328 = arith.mulf %325, %327 : vector<16x16xf32>
    %329 = arith.addf %305, %328 : vector<16x16xf32>
    %c5_230 = arith.constant 5 : index
    %c6_231 = arith.constant 6 : index
    %c0_232 = arith.constant 0 : index
    %330 = vector.load %arg12[%c5_230, %c6_231, %c0_232] : memref<7x34x16xf32, #tpu.memory_space<vmem>>, vector<1x16x16xf32>
    %331 = vector.shape_cast %330 : vector<1x16x16xf32> to vector<16x16xf32>
    %c19_233 = arith.constant 19 : index
    %332 = memref.load %arg4[%c19_233] : memref<196xf32, #tpu.memory_space<smem>>
    %333 = vector.broadcast %332 : f32 to vector<16x16xf32>
    %334 = arith.mulf %331, %333 : vector<16x16xf32>
    %335 = arith.addf %311, %334 : vector<16x16xf32>
    %c6_234 = arith.constant 6 : index
    %c6_235 = arith.constant 6 : index
    %c0_236 = arith.constant 0 : index
    %336 = vector.load %arg12[%c6_234, %c6_235, %c0_236] : memref<7x34x16xf32, #tpu.memory_space<vmem>>, vector<1x16x16xf32>
    %337 = vector.shape_cast %336 : vector<1x16x16xf32> to vector<16x16xf32>
    %c20_237 = arith.constant 20 : index
    %338 = memref.load %arg4[%c20_237] : memref<196xf32, #tpu.memory_space<smem>>
    %339 = vector.broadcast %338 : f32 to vector<16x16xf32>
    %340 = arith.mulf %337, %339 : vector<16x16xf32>
    %341 = arith.addf %317, %340 : vector<16x16xf32>
    %c0_238 = arith.constant 0 : index
    %c9_239 = arith.constant 9 : index
    %c0_240 = arith.constant 0 : index
    %342 = vector.load %arg12[%c0_238, %c9_239, %c0_240] : memref<7x34x16xf32, #tpu.memory_space<vmem>>, vector<1x16x16xf32>
    %343 = vector.shape_cast %342 : vector<1x16x16xf32> to vector<16x16xf32>
    %c21_241 = arith.constant 21 : index
    %344 = memref.load %arg4[%c21_241] : memref<196xf32, #tpu.memory_space<smem>>
    %345 = vector.broadcast %344 : f32 to vector<16x16xf32>
    %346 = arith.mulf %343, %345 : vector<16x16xf32>
    %347 = arith.addf %323, %346 : vector<16x16xf32>
    %c1_242 = arith.constant 1 : index
    %c9_243 = arith.constant 9 : index
    %c0_244 = arith.constant 0 : index
    %348 = vector.load %arg12[%c1_242, %c9_243, %c0_244] : memref<7x34x16xf32, #tpu.memory_space<vmem>>, vector<1x16x16xf32>
    %349 = vector.shape_cast %348 : vector<1x16x16xf32> to vector<16x16xf32>
    %c22_245 = arith.constant 22 : index
    %350 = memref.load %arg4[%c22_245] : memref<196xf32, #tpu.memory_space<smem>>
    %351 = vector.broadcast %350 : f32 to vector<16x16xf32>
    %352 = arith.mulf %349, %351 : vector<16x16xf32>
    %353 = arith.addf %329, %352 : vector<16x16xf32>
    %c2_246 = arith.constant 2 : index
    %c9_247 = arith.constant 9 : index
    %c0_248 = arith.constant 0 : index
    %354 = vector.load %arg12[%c2_246, %c9_247, %c0_248] : memref<7x34x16xf32, #tpu.memory_space<vmem>>, vector<1x16x16xf32>
    %355 = vector.shape_cast %354 : vector<1x16x16xf32> to vector<16x16xf32>
    %c23_249 = arith.constant 23 : index
    %356 = memref.load %arg4[%c23_249] : memref<196xf32, #tpu.memory_space<smem>>
    %357 = vector.broadcast %356 : f32 to vector<16x16xf32>
    %358 = arith.mulf %355, %357 : vector<16x16xf32>
    %359 = arith.addf %335, %358 : vector<16x16xf32>
    %c3_250 = arith.constant 3 : index
    %c9_251 = arith.constant 9 : index
    %c0_252 = arith.constant 0 : index
    %360 = vector.load %arg12[%c3_250, %c9_251, %c0_252] : memref<7x34x16xf32, #tpu.memory_space<vmem>>, vector<1x16x16xf32>
    %361 = vector.shape_cast %360 : vector<1x16x16xf32> to vector<16x16xf32>
    %c24_253 = arith.constant 24 : index
    %362 = memref.load %arg4[%c24_253] : memref<196xf32, #tpu.memory_space<smem>>
    %363 = vector.broadcast %362 : f32 to vector<16x16xf32>
    %364 = arith.mulf %361, %363 : vector<16x16xf32>
    %365 = arith.addf %341, %364 : vector<16x16xf32>
    %c4_254 = arith.constant 4 : index
    %c9_255 = arith.constant 9 : index
    %c0_256 = arith.constant 0 : index
    %366 = vector.load %arg12[%c4_254, %c9_255, %c0_256] : memref<7x34x16xf32, #tpu.memory_space<vmem>>, vector<1x16x16xf32>
    %367 = vector.shape_cast %366 : vector<1x16x16xf32> to vector<16x16xf32>
    %c25 = arith.constant 25 : index
    %368 = memref.load %arg4[%c25] : memref<196xf32, #tpu.memory_space<smem>>
    %369 = vector.broadcast %368 : f32 to vector<16x16xf32>
    %370 = arith.mulf %367, %369 : vector<16x16xf32>
    %371 = arith.addf %347, %370 : vector<16x16xf32>
    %c5_257 = arith.constant 5 : index
    %c9_258 = arith.constant 9 : index
    %c0_259 = arith.constant 0 : index
    %372 = vector.load %arg12[%c5_257, %c9_258, %c0_259] : memref<7x34x16xf32, #tpu.memory_space<vmem>>, vector<1x16x16xf32>
    %373 = vector.shape_cast %372 : vector<1x16x16xf32> to vector<16x16xf32>
    %c26 = arith.constant 26 : index
    %374 = memref.load %arg4[%c26] : memref<196xf32, #tpu.memory_space<smem>>
    %375 = vector.broadcast %374 : f32 to vector<16x16xf32>
    %376 = arith.mulf %373, %375 : vector<16x16xf32>
    %377 = arith.addf %353, %376 : vector<16x16xf32>
    %c6_260 = arith.constant 6 : index
    %c9_261 = arith.constant 9 : index
    %c0_262 = arith.constant 0 : index
    %378 = vector.load %arg12[%c6_260, %c9_261, %c0_262] : memref<7x34x16xf32, #tpu.memory_space<vmem>>, vector<1x16x16xf32>
    %379 = vector.shape_cast %378 : vector<1x16x16xf32> to vector<16x16xf32>
    %c27 = arith.constant 27 : index
    %380 = memref.load %arg4[%c27] : memref<196xf32, #tpu.memory_space<smem>>
    %381 = vector.broadcast %380 : f32 to vector<16x16xf32>
    %382 = arith.mulf %379, %381 : vector<16x16xf32>
    %383 = arith.addf %359, %382 : vector<16x16xf32>
    %c0_263 = arith.constant 0 : index
    %c12_264 = arith.constant 12 : index
    %c0_265 = arith.constant 0 : index
    %384 = vector.load %arg12[%c0_263, %c12_264, %c0_265] : memref<7x34x16xf32, #tpu.memory_space<vmem>>, vector<1x16x16xf32>
    %385 = vector.shape_cast %384 : vector<1x16x16xf32> to vector<16x16xf32>
    %c28 = arith.constant 28 : index
    %386 = memref.load %arg4[%c28] : memref<196xf32, #tpu.memory_space<smem>>
    %387 = vector.broadcast %386 : f32 to vector<16x16xf32>
    %388 = arith.mulf %385, %387 : vector<16x16xf32>
    %389 = arith.addf %365, %388 : vector<16x16xf32>
    %c1_266 = arith.constant 1 : index
    %c12_267 = arith.constant 12 : index
    %c0_268 = arith.constant 0 : index
    %390 = vector.load %arg12[%c1_266, %c12_267, %c0_268] : memref<7x34x16xf32, #tpu.memory_space<vmem>>, vector<1x16x16xf32>
    %391 = vector.shape_cast %390 : vector<1x16x16xf32> to vector<16x16xf32>
    %c29 = arith.constant 29 : index
    %392 = memref.load %arg4[%c29] : memref<196xf32, #tpu.memory_space<smem>>
    %393 = vector.broadcast %392 : f32 to vector<16x16xf32>
    %394 = arith.mulf %391, %393 : vector<16x16xf32>
    %395 = arith.addf %371, %394 : vector<16x16xf32>
    %c2_269 = arith.constant 2 : index
    %c12_270 = arith.constant 12 : index
    %c0_271 = arith.constant 0 : index
    %396 = vector.load %arg12[%c2_269, %c12_270, %c0_271] : memref<7x34x16xf32, #tpu.memory_space<vmem>>, vector<1x16x16xf32>
    %397 = vector.shape_cast %396 : vector<1x16x16xf32> to vector<16x16xf32>
    %c30 = arith.constant 30 : index
    %398 = memref.load %arg4[%c30] : memref<196xf32, #tpu.memory_space<smem>>
    %399 = vector.broadcast %398 : f32 to vector<16x16xf32>
    %400 = arith.mulf %397, %399 : vector<16x16xf32>
    %401 = arith.addf %377, %400 : vector<16x16xf32>
    %c3_272 = arith.constant 3 : index
    %c12_273 = arith.constant 12 : index
    %c0_274 = arith.constant 0 : index
    %402 = vector.load %arg12[%c3_272, %c12_273, %c0_274] : memref<7x34x16xf32, #tpu.memory_space<vmem>>, vector<1x16x16xf32>
    %403 = vector.shape_cast %402 : vector<1x16x16xf32> to vector<16x16xf32>
    %c31 = arith.constant 31 : index
    %404 = memref.load %arg4[%c31] : memref<196xf32, #tpu.memory_space<smem>>
    %405 = vector.broadcast %404 : f32 to vector<16x16xf32>
    %406 = arith.mulf %403, %405 : vector<16x16xf32>
    %407 = arith.addf %383, %406 : vector<16x16xf32>
    %c4_275 = arith.constant 4 : index
    %c12_276 = arith.constant 12 : index
    %c0_277 = arith.constant 0 : index
    %408 = vector.load %arg12[%c4_275, %c12_276, %c0_277] : memref<7x34x16xf32, #tpu.memory_space<vmem>>, vector<1x16x16xf32>
    %409 = vector.shape_cast %408 : vector<1x16x16xf32> to vector<16x16xf32>
    %c32_278 = arith.constant 32 : index
    %410 = memref.load %arg4[%c32_278] : memref<196xf32, #tpu.memory_space<smem>>
    %411 = vector.broadcast %410 : f32 to vector<16x16xf32>
    %412 = arith.mulf %409, %411 : vector<16x16xf32>
    %413 = arith.addf %389, %412 : vector<16x16xf32>
    %c5_279 = arith.constant 5 : index
    %c12_280 = arith.constant 12 : index
    %c0_281 = arith.constant 0 : index
    %414 = vector.load %arg12[%c5_279, %c12_280, %c0_281] : memref<7x34x16xf32, #tpu.memory_space<vmem>>, vector<1x16x16xf32>
    %415 = vector.shape_cast %414 : vector<1x16x16xf32> to vector<16x16xf32>
    %c33 = arith.constant 33 : index
    %416 = memref.load %arg4[%c33] : memref<196xf32, #tpu.memory_space<smem>>
    %417 = vector.broadcast %416 : f32 to vector<16x16xf32>
    %418 = arith.mulf %415, %417 : vector<16x16xf32>
    %419 = arith.addf %395, %418 : vector<16x16xf32>
    %c6_282 = arith.constant 6 : index
    %c12_283 = arith.constant 12 : index
    %c0_284 = arith.constant 0 : index
    %420 = vector.load %arg12[%c6_282, %c12_283, %c0_284] : memref<7x34x16xf32, #tpu.memory_space<vmem>>, vector<1x16x16xf32>
    %421 = vector.shape_cast %420 : vector<1x16x16xf32> to vector<16x16xf32>
    %c34 = arith.constant 34 : index
    %422 = memref.load %arg4[%c34] : memref<196xf32, #tpu.memory_space<smem>>
    %423 = vector.broadcast %422 : f32 to vector<16x16xf32>
    %424 = arith.mulf %421, %423 : vector<16x16xf32>
    %425 = arith.addf %401, %424 : vector<16x16xf32>
    %c0_285 = arith.constant 0 : index
    %c15_286 = arith.constant 15 : index
    %c0_287 = arith.constant 0 : index
    %426 = vector.load %arg12[%c0_285, %c15_286, %c0_287] : memref<7x34x16xf32, #tpu.memory_space<vmem>>, vector<1x16x16xf32>
    %427 = vector.shape_cast %426 : vector<1x16x16xf32> to vector<16x16xf32>
    %c35 = arith.constant 35 : index
    %428 = memref.load %arg4[%c35] : memref<196xf32, #tpu.memory_space<smem>>
    %429 = vector.broadcast %428 : f32 to vector<16x16xf32>
    %430 = arith.mulf %427, %429 : vector<16x16xf32>
    %431 = arith.addf %407, %430 : vector<16x16xf32>
    %c1_288 = arith.constant 1 : index
    %c15_289 = arith.constant 15 : index
    %c0_290 = arith.constant 0 : index
    %432 = vector.load %arg12[%c1_288, %c15_289, %c0_290] : memref<7x34x16xf32, #tpu.memory_space<vmem>>, vector<1x16x16xf32>
    %433 = vector.shape_cast %432 : vector<1x16x16xf32> to vector<16x16xf32>
    %c36 = arith.constant 36 : index
    %434 = memref.load %arg4[%c36] : memref<196xf32, #tpu.memory_space<smem>>
    %435 = vector.broadcast %434 : f32 to vector<16x16xf32>
    %436 = arith.mulf %433, %435 : vector<16x16xf32>
    %437 = arith.addf %413, %436 : vector<16x16xf32>
    %c2_291 = arith.constant 2 : index
    %c15_292 = arith.constant 15 : index
    %c0_293 = arith.constant 0 : index
    %438 = vector.load %arg12[%c2_291, %c15_292, %c0_293] : memref<7x34x16xf32, #tpu.memory_space<vmem>>, vector<1x16x16xf32>
    %439 = vector.shape_cast %438 : vector<1x16x16xf32> to vector<16x16xf32>
    %c37 = arith.constant 37 : index
    %440 = memref.load %arg4[%c37] : memref<196xf32, #tpu.memory_space<smem>>
    %441 = vector.broadcast %440 : f32 to vector<16x16xf32>
    %442 = arith.mulf %439, %441 : vector<16x16xf32>
    %443 = arith.addf %419, %442 : vector<16x16xf32>
    %c3_294 = arith.constant 3 : index
    %c15_295 = arith.constant 15 : index
    %c0_296 = arith.constant 0 : index
    %444 = vector.load %arg12[%c3_294, %c15_295, %c0_296] : memref<7x34x16xf32, #tpu.memory_space<vmem>>, vector<1x16x16xf32>
    %445 = vector.shape_cast %444 : vector<1x16x16xf32> to vector<16x16xf32>
    %c38 = arith.constant 38 : index
    %446 = memref.load %arg4[%c38] : memref<196xf32, #tpu.memory_space<smem>>
    %447 = vector.broadcast %446 : f32 to vector<16x16xf32>
    %448 = arith.mulf %445, %447 : vector<16x16xf32>
    %449 = arith.addf %425, %448 : vector<16x16xf32>
    %c4_297 = arith.constant 4 : index
    %c15_298 = arith.constant 15 : index
    %c0_299 = arith.constant 0 : index
    %450 = vector.load %arg12[%c4_297, %c15_298, %c0_299] : memref<7x34x16xf32, #tpu.memory_space<vmem>>, vector<1x16x16xf32>
    %451 = vector.shape_cast %450 : vector<1x16x16xf32> to vector<16x16xf32>
    %c39 = arith.constant 39 : index
    %452 = memref.load %arg4[%c39] : memref<196xf32, #tpu.memory_space<smem>>
    %453 = vector.broadcast %452 : f32 to vector<16x16xf32>
    %454 = arith.mulf %451, %453 : vector<16x16xf32>
    %455 = arith.addf %431, %454 : vector<16x16xf32>
    %c5_300 = arith.constant 5 : index
    %c15_301 = arith.constant 15 : index
    %c0_302 = arith.constant 0 : index
    %456 = vector.load %arg12[%c5_300, %c15_301, %c0_302] : memref<7x34x16xf32, #tpu.memory_space<vmem>>, vector<1x16x16xf32>
    %457 = vector.shape_cast %456 : vector<1x16x16xf32> to vector<16x16xf32>
    %c40 = arith.constant 40 : index
    %458 = memref.load %arg4[%c40] : memref<196xf32, #tpu.memory_space<smem>>
    %459 = vector.broadcast %458 : f32 to vector<16x16xf32>
    %460 = arith.mulf %457, %459 : vector<16x16xf32>
    %461 = arith.addf %437, %460 : vector<16x16xf32>
    %c6_303 = arith.constant 6 : index
    %c15_304 = arith.constant 15 : index
    %c0_305 = arith.constant 0 : index
    %462 = vector.load %arg12[%c6_303, %c15_304, %c0_305] : memref<7x34x16xf32, #tpu.memory_space<vmem>>, vector<1x16x16xf32>
    %463 = vector.shape_cast %462 : vector<1x16x16xf32> to vector<16x16xf32>
    %c41 = arith.constant 41 : index
    %464 = memref.load %arg4[%c41] : memref<196xf32, #tpu.memory_space<smem>>
    %465 = vector.broadcast %464 : f32 to vector<16x16xf32>
    %466 = arith.mulf %463, %465 : vector<16x16xf32>
    %467 = arith.addf %443, %466 : vector<16x16xf32>
    %c0_306 = arith.constant 0 : index
    %c18_307 = arith.constant 18 : index
    %c0_308 = arith.constant 0 : index
    %468 = vector.load %arg12[%c0_306, %c18_307, %c0_308] : memref<7x34x16xf32, #tpu.memory_space<vmem>>, vector<1x16x16xf32>
    %469 = vector.shape_cast %468 : vector<1x16x16xf32> to vector<16x16xf32>
    %c42 = arith.constant 42 : index
    %470 = memref.load %arg4[%c42] : memref<196xf32, #tpu.memory_space<smem>>
    %471 = vector.broadcast %470 : f32 to vector<16x16xf32>
    %472 = arith.mulf %469, %471 : vector<16x16xf32>
    %473 = arith.addf %449, %472 : vector<16x16xf32>
    %c1_309 = arith.constant 1 : index
    %c18_310 = arith.constant 18 : index
    %c0_311 = arith.constant 0 : index
    %474 = vector.load %arg12[%c1_309, %c18_310, %c0_311] : memref<7x34x16xf32, #tpu.memory_space<vmem>>, vector<1x16x16xf32>
    %475 = vector.shape_cast %474 : vector<1x16x16xf32> to vector<16x16xf32>
    %c43 = arith.constant 43 : index
    %476 = memref.load %arg4[%c43] : memref<196xf32, #tpu.memory_space<smem>>
    %477 = vector.broadcast %476 : f32 to vector<16x16xf32>
    %478 = arith.mulf %475, %477 : vector<16x16xf32>
    %479 = arith.addf %455, %478 : vector<16x16xf32>
    %c2_312 = arith.constant 2 : index
    %c18_313 = arith.constant 18 : index
    %c0_314 = arith.constant 0 : index
    %480 = vector.load %arg12[%c2_312, %c18_313, %c0_314] : memref<7x34x16xf32, #tpu.memory_space<vmem>>, vector<1x16x16xf32>
    %481 = vector.shape_cast %480 : vector<1x16x16xf32> to vector<16x16xf32>
    %c44 = arith.constant 44 : index
    %482 = memref.load %arg4[%c44] : memref<196xf32, #tpu.memory_space<smem>>
    %483 = vector.broadcast %482 : f32 to vector<16x16xf32>
    %484 = arith.mulf %481, %483 : vector<16x16xf32>
    %485 = arith.addf %461, %484 : vector<16x16xf32>
    %c3_315 = arith.constant 3 : index
    %c18_316 = arith.constant 18 : index
    %c0_317 = arith.constant 0 : index
    %486 = vector.load %arg12[%c3_315, %c18_316, %c0_317] : memref<7x34x16xf32, #tpu.memory_space<vmem>>, vector<1x16x16xf32>
    %487 = vector.shape_cast %486 : vector<1x16x16xf32> to vector<16x16xf32>
    %c45 = arith.constant 45 : index
    %488 = memref.load %arg4[%c45] : memref<196xf32, #tpu.memory_space<smem>>
    %489 = vector.broadcast %488 : f32 to vector<16x16xf32>
    %490 = arith.mulf %487, %489 : vector<16x16xf32>
    %491 = arith.addf %467, %490 : vector<16x16xf32>
    %c4_318 = arith.constant 4 : index
    %c18_319 = arith.constant 18 : index
    %c0_320 = arith.constant 0 : index
    %492 = vector.load %arg12[%c4_318, %c18_319, %c0_320] : memref<7x34x16xf32, #tpu.memory_space<vmem>>, vector<1x16x16xf32>
    %493 = vector.shape_cast %492 : vector<1x16x16xf32> to vector<16x16xf32>
    %c46 = arith.constant 46 : index
    %494 = memref.load %arg4[%c46] : memref<196xf32, #tpu.memory_space<smem>>
    %495 = vector.broadcast %494 : f32 to vector<16x16xf32>
    %496 = arith.mulf %493, %495 : vector<16x16xf32>
    %497 = arith.addf %473, %496 : vector<16x16xf32>
    %c5_321 = arith.constant 5 : index
    %c18_322 = arith.constant 18 : index
    %c0_323 = arith.constant 0 : index
    %498 = vector.load %arg12[%c5_321, %c18_322, %c0_323] : memref<7x34x16xf32, #tpu.memory_space<vmem>>, vector<1x16x16xf32>
    %499 = vector.shape_cast %498 : vector<1x16x16xf32> to vector<16x16xf32>
    %c47 = arith.constant 47 : index
    %500 = memref.load %arg4[%c47] : memref<196xf32, #tpu.memory_space<smem>>
    %501 = vector.broadcast %500 : f32 to vector<16x16xf32>
    %502 = arith.mulf %499, %501 : vector<16x16xf32>
    %503 = arith.addf %479, %502 : vector<16x16xf32>
    %c6_324 = arith.constant 6 : index
    %c18_325 = arith.constant 18 : index
    %c0_326 = arith.constant 0 : index
    %504 = vector.load %arg12[%c6_324, %c18_325, %c0_326] : memref<7x34x16xf32, #tpu.memory_space<vmem>>, vector<1x16x16xf32>
    %505 = vector.shape_cast %504 : vector<1x16x16xf32> to vector<16x16xf32>
    %c48 = arith.constant 48 : index
    %506 = memref.load %arg4[%c48] : memref<196xf32, #tpu.memory_space<smem>>
    %507 = vector.broadcast %506 : f32 to vector<16x16xf32>
    %508 = arith.mulf %505, %507 : vector<16x16xf32>
    %509 = arith.addf %485, %508 : vector<16x16xf32>
    %510 = arith.addf %509, %491 : vector<16x16xf32>
    %511 = arith.addf %510, %497 : vector<16x16xf32>
    %512 = arith.addf %511, %503 : vector<16x16xf32>
    %c0_327 = arith.constant 0 : index
    %513 = memref.load %arg5[%c0_327] : memref<4xf32, #tpu.memory_space<smem>>
    %514 = vector.broadcast %513 : f32 to vector<16x16xf32>
    %515 = arith.addf %512, %514 : vector<16x16xf32>
    %c0_328 = arith.constant 0 : index
    %516 = memref.load %arg6[%c0_328] : memref<16xf32, #tpu.memory_space<smem>>
    %517 = vector.broadcast %516 : f32 to vector<16x16xf32>
    %518 = arith.mulf %515, %517 : vector<16x16xf32>
    %c0_329 = arith.constant 0 : index
    %519 = memref.load %arg7[%c0_329] : memref<4xf32, #tpu.memory_space<smem>>
    %520 = vector.broadcast %519 : f32 to vector<16x16xf32>
    %521 = arith.addf %518, %520 : vector<16x16xf32>
    %c0_330 = arith.constant 0 : index
    %c0_331 = arith.constant 0 : index
    %c0_332 = arith.constant 0 : index
    %c0_333 = arith.constant 0 : index
    %522 = vector.load %arg8[%c0_330, %c0_331, %c0_332, %c0_333] : memref<1x4x16x16xf32, #tpu.memory_space<vmem>>, vector<1x1x16x16xf32>
    %523 = vector.shape_cast %522 : vector<1x1x16x16xf32> to vector<16x16xf32>
    %524 = vector.shape_cast %521 : vector<16x16xf32> to vector<1x1x16x16xf32>
    tpu.vector_store %arg8[%c0_330, %c0_331, %c0_332, %c0_333], %524 {strides = array<i32>} : memref<1x4x16x16xf32, #tpu.memory_space<vmem>>, vector<1x1x16x16xf32>,
    %c1_334 = arith.constant 1 : index
    %525 = memref.load %arg6[%c1_334] : memref<16xf32, #tpu.memory_space<smem>>
    %526 = vector.broadcast %525 : f32 to vector<16x16xf32>
    %527 = arith.mulf %515, %526 : vector<16x16xf32>
    %c1_335 = arith.constant 1 : index
    %528 = memref.load %arg7[%c1_335] : memref<4xf32, #tpu.memory_space<smem>>
    %529 = vector.broadcast %528 : f32 to vector<16x16xf32>
    %530 = arith.addf %527, %529 : vector<16x16xf32>
    %c0_336 = arith.constant 0 : index
    %c1_337 = arith.constant 1 : index
    %c0_338 = arith.constant 0 : index
    %c0_339 = arith.constant 0 : index
    %531 = vector.load %arg8[%c0_336, %c1_337, %c0_338, %c0_339] : memref<1x4x16x16xf32, #tpu.memory_space<vmem>>, vector<1x1x16x16xf32>
    %532 = vector.shape_cast %531 : vector<1x1x16x16xf32> to vector<16x16xf32>
    %533 = vector.shape_cast %530 : vector<16x16xf32> to vector<1x1x16x16xf32>
    tpu.vector_store %arg8[%c0_336, %c1_337, %c0_338, %c0_339], %533 {strides = array<i32>} : memref<1x4x16x16xf32, #tpu.memory_space<vmem>>, vector<1x1x16x16xf32>,
    %c2_340 = arith.constant 2 : index
    %534 = memref.load %arg6[%c2_340] : memref<16xf32, #tpu.memory_space<smem>>
    %535 = vector.broadcast %534 : f32 to vector<16x16xf32>
    %536 = arith.mulf %515, %535 : vector<16x16xf32>
    %c2_341 = arith.constant 2 : index
    %537 = memref.load %arg7[%c2_341] : memref<4xf32, #tpu.memory_space<smem>>
    %538 = vector.broadcast %537 : f32 to vector<16x16xf32>
    %539 = arith.addf %536, %538 : vector<16x16xf32>
    %c0_342 = arith.constant 0 : index
    %c2_343 = arith.constant 2 : index
    %c0_344 = arith.constant 0 : index
    %c0_345 = arith.constant 0 : index
    %540 = vector.load %arg8[%c0_342, %c2_343, %c0_344, %c0_345] : memref<1x4x16x16xf32, #tpu.memory_space<vmem>>, vector<1x1x16x16xf32>
    %541 = vector.shape_cast %540 : vector<1x1x16x16xf32> to vector<16x16xf32>
    %542 = vector.shape_cast %539 : vector<16x16xf32> to vector<1x1x16x16xf32>
    tpu.vector_store %arg8[%c0_342, %c2_343, %c0_344, %c0_345], %542 {strides = array<i32>} : memref<1x4x16x16xf32, #tpu.memory_space<vmem>>, vector<1x1x16x16xf32>,
    %c3_346 = arith.constant 3 : index
    %543 = memref.load %arg6[%c3_346] : memref<16xf32, #tpu.memory_space<smem>>
    %544 = vector.broadcast %543 : f32 to vector<16x16xf32>
    %545 = arith.mulf %515, %544 : vector<16x16xf32>
    %c3_347 = arith.constant 3 : index
    %546 = memref.load %arg7[%c3_347] : memref<4xf32, #tpu.memory_space<smem>>
    %547 = vector.broadcast %546 : f32 to vector<16x16xf32>
    %548 = arith.addf %545, %547 : vector<16x16xf32>
    %c0_348 = arith.constant 0 : index
    %c3_349 = arith.constant 3 : index
    %c0_350 = arith.constant 0 : index
    %c0_351 = arith.constant 0 : index
    %549 = vector.load %arg8[%c0_348, %c3_349, %c0_350, %c0_351] : memref<1x4x16x16xf32, #tpu.memory_space<vmem>>, vector<1x1x16x16xf32>
    %550 = vector.shape_cast %549 : vector<1x1x16x16xf32> to vector<16x16xf32>
    %551 = vector.shape_cast %548 : vector<16x16xf32> to vector<1x1x16x16xf32>
    tpu.vector_store %arg8[%c0_348, %c3_349, %c0_350, %c0_351], %551 {strides = array<i32>} : memref<1x4x16x16xf32, #tpu.memory_space<vmem>>, vector<1x1x16x16xf32>,
    %c0_352 = arith.constant 0 : index
    %c1_353 = arith.constant 1 : index
    %c0_354 = arith.constant 0 : index
    %c0_355 = arith.constant 0 : index
    %552 = vector.load %arg1[%c0_352, %c1_353, %c0_354, %c0_355] : memref<1x4x16x16xf32, #tpu.memory_space<vmem>>, vector<1x1x16x16xf32>
    %553 = vector.shape_cast %552 : vector<1x1x16x16xf32> to vector<16x16xf32>
    %c8_356 = arith.constant 8 : index
    %c128_357 = arith.constant 128 : index
    %554 = vector.load %arg9[%c8_356, %c128_357] : memref<26x146xf32, #tpu.memory_space<vmem>>, vector<16x16xf32>
    tpu.vector_store %arg9[%c8_356, %c128_357], %553 {strides = array<i32>} : memref<26x146xf32, #tpu.memory_space<vmem>>, vector<16x16xf32>,
    %c6_358 = arith.constant 6 : index
    %c126_359 = arith.constant 126 : index
    %555 = vector.load %arg9[%c6_358, %c126_359] : memref<26x146xf32, #tpu.memory_space<vmem>>, vector<20x16xf32>
    %c0_360 = arith.constant 0 : index
    %c0_361 = arith.constant 0 : index
    %c0_362 = arith.constant 0 : index
    %556 = vector.load %arg10[%c0_360, %c0_361, %c0_362] : memref<5x20x16xf32, #tpu.memory_space<vmem>>, vector<1x20x16xf32>
    %557 = vector.shape_cast %556 : vector<1x20x16xf32> to vector<20x16xf32>
    %558 = vector.shape_cast %555 : vector<20x16xf32> to vector<1x20x16xf32>
    tpu.vector_store %arg10[%c0_360, %c0_361, %c0_362], %558 {strides = array<i32>} : memref<5x20x16xf32, #tpu.memory_space<vmem>>, vector<1x20x16xf32>,
    %c6_363 = arith.constant 6 : index
    %c127_364 = arith.constant 127 : index
    %559 = vector.load %arg9[%c6_363, %c127_364] : memref<26x146xf32, #tpu.memory_space<vmem>>, vector<20x16xf32>
    %c1_365 = arith.constant 1 : index
    %c0_366 = arith.constant 0 : index
    %c0_367 = arith.constant 0 : index
    %560 = vector.load %arg10[%c1_365, %c0_366, %c0_367] : memref<5x20x16xf32, #tpu.memory_space<vmem>>, vector<1x20x16xf32>
    %561 = vector.shape_cast %560 : vector<1x20x16xf32> to vector<20x16xf32>
    %562 = vector.shape_cast %559 : vector<20x16xf32> to vector<1x20x16xf32>
    tpu.vector_store %arg10[%c1_365, %c0_366, %c0_367], %562 {strides = array<i32>} : memref<5x20x16xf32, #tpu.memory_space<vmem>>, vector<1x20x16xf32>,
    %c6_368 = arith.constant 6 : index
    %c128_369 = arith.constant 128 : index
    %563 = vector.load %arg9[%c6_368, %c128_369] : memref<26x146xf32, #tpu.memory_space<vmem>>, vector<20x16xf32>
    %c2_370 = arith.constant 2 : index
    %c0_371 = arith.constant 0 : index
    %c0_372 = arith.constant 0 : index
    %564 = vector.load %arg10[%c2_370, %c0_371, %c0_372] : memref<5x20x16xf32, #tpu.memory_space<vmem>>, vector<1x20x16xf32>
    %565 = vector.shape_cast %564 : vector<1x20x16xf32> to vector<20x16xf32>
    %566 = vector.shape_cast %563 : vector<20x16xf32> to vector<1x20x16xf32>
    tpu.vector_store %arg10[%c2_370, %c0_371, %c0_372], %566 {strides = array<i32>} : memref<5x20x16xf32, #tpu.memory_space<vmem>>, vector<1x20x16xf32>,
    %c6_373 = arith.constant 6 : index
    %c129_374 = arith.constant 129 : index
    %567 = vector.load %arg9[%c6_373, %c129_374] : memref<26x146xf32, #tpu.memory_space<vmem>>, vector<20x16xf32>
    %c3_375 = arith.constant 3 : index
    %c0_376 = arith.constant 0 : index
    %c0_377 = arith.constant 0 : index
    %568 = vector.load %arg10[%c3_375, %c0_376, %c0_377] : memref<5x20x16xf32, #tpu.memory_space<vmem>>, vector<1x20x16xf32>
    %569 = vector.shape_cast %568 : vector<1x20x16xf32> to vector<20x16xf32>
    %570 = vector.shape_cast %567 : vector<20x16xf32> to vector<1x20x16xf32>
    tpu.vector_store %arg10[%c3_375, %c0_376, %c0_377], %570 {strides = array<i32>} : memref<5x20x16xf32, #tpu.memory_space<vmem>>, vector<1x20x16xf32>,
    %c6_378 = arith.constant 6 : index
    %c130_379 = arith.constant 130 : index
    %571 = vector.load %arg9[%c6_378, %c130_379] : memref<26x146xf32, #tpu.memory_space<vmem>>, vector<20x16xf32>
    %c4_380 = arith.constant 4 : index
    %c0_381 = arith.constant 0 : index
    %c0_382 = arith.constant 0 : index
    %572 = vector.load %arg10[%c4_380, %c0_381, %c0_382] : memref<5x20x16xf32, #tpu.memory_space<vmem>>, vector<1x20x16xf32>
    %573 = vector.shape_cast %572 : vector<1x20x16xf32> to vector<20x16xf32>
    %574 = vector.shape_cast %571 : vector<20x16xf32> to vector<1x20x16xf32>
    tpu.vector_store %arg10[%c4_380, %c0_381, %c0_382], %574 {strides = array<i32>} : memref<5x20x16xf32, #tpu.memory_space<vmem>>, vector<1x20x16xf32>,
    %c0_383 = arith.constant 0 : index
    %c0_384 = arith.constant 0 : index
    %c0_385 = arith.constant 0 : index
    %575 = vector.load %arg10[%c0_383, %c0_384, %c0_385] : memref<5x20x16xf32, #tpu.memory_space<vmem>>, vector<1x16x16xf32>
    %576 = vector.shape_cast %575 : vector<1x16x16xf32> to vector<16x16xf32>
    %c25_386 = arith.constant 25 : index
    %577 = memref.load %arg2[%c25_386] : memref<100xf32, #tpu.memory_space<smem>>
    %578 = vector.broadcast %577 : f32 to vector<16x16xf32>
    %579 = arith.mulf %576, %578 : vector<16x16xf32>
    %c1_387 = arith.constant 1 : index
    %c0_388 = arith.constant 0 : index
    %c0_389 = arith.constant 0 : index
    %580 = vector.load %arg10[%c1_387, %c0_388, %c0_389] : memref<5x20x16xf32, #tpu.memory_space<vmem>>, vector<1x16x16xf32>
    %581 = vector.shape_cast %580 : vector<1x16x16xf32> to vector<16x16xf32>
    %c26_390 = arith.constant 26 : index
    %582 = memref.load %arg2[%c26_390] : memref<100xf32, #tpu.memory_space<smem>>
    %583 = vector.broadcast %582 : f32 to vector<16x16xf32>
    %584 = arith.mulf %581, %583 : vector<16x16xf32>
    %c2_391 = arith.constant 2 : index
    %c0_392 = arith.constant 0 : index
    %c0_393 = arith.constant 0 : index
    %585 = vector.load %arg10[%c2_391, %c0_392, %c0_393] : memref<5x20x16xf32, #tpu.memory_space<vmem>>, vector<1x16x16xf32>
    %586 = vector.shape_cast %585 : vector<1x16x16xf32> to vector<16x16xf32>
    %c27_394 = arith.constant 27 : index
    %587 = memref.load %arg2[%c27_394] : memref<100xf32, #tpu.memory_space<smem>>
    %588 = vector.broadcast %587 : f32 to vector<16x16xf32>
    %589 = arith.mulf %586, %588 : vector<16x16xf32>
    %c3_395 = arith.constant 3 : index
    %c0_396 = arith.constant 0 : index
    %c0_397 = arith.constant 0 : index
    %590 = vector.load %arg10[%c3_395, %c0_396, %c0_397] : memref<5x20x16xf32, #tpu.memory_space<vmem>>, vector<1x16x16xf32>
    %591 = vector.shape_cast %590 : vector<1x16x16xf32> to vector<16x16xf32>
    %c28_398 = arith.constant 28 : index
    %592 = memref.load %arg2[%c28_398] : memref<100xf32, #tpu.memory_space<smem>>
    %593 = vector.broadcast %592 : f32 to vector<16x16xf32>
    %594 = arith.mulf %591, %593 : vector<16x16xf32>
    %c4_399 = arith.constant 4 : index
    %c0_400 = arith.constant 0 : index
    %c0_401 = arith.constant 0 : index
    %595 = vector.load %arg10[%c4_399, %c0_400, %c0_401] : memref<5x20x16xf32, #tpu.memory_space<vmem>>, vector<1x16x16xf32>
    %596 = vector.shape_cast %595 : vector<1x16x16xf32> to vector<16x16xf32>
    %c29_402 = arith.constant 29 : index
    %597 = memref.load %arg2[%c29_402] : memref<100xf32, #tpu.memory_space<smem>>
    %598 = vector.broadcast %597 : f32 to vector<16x16xf32>
    %599 = arith.mulf %596, %598 : vector<16x16xf32>
    %600 = arith.addf %579, %599 : vector<16x16xf32>
    %c0_403 = arith.constant 0 : index
    %c1_404 = arith.constant 1 : index
    %c0_405 = arith.constant 0 : index
    %601 = vector.load %arg10[%c0_403, %c1_404, %c0_405] : memref<5x20x16xf32, #tpu.memory_space<vmem>>, vector<1x16x16xf32>
    %602 = vector.shape_cast %601 : vector<1x16x16xf32> to vector<16x16xf32>
    %c30_406 = arith.constant 30 : index
    %603 = memref.load %arg2[%c30_406] : memref<100xf32, #tpu.memory_space<smem>>
    %604 = vector.broadcast %603 : f32 to vector<16x16xf32>
    %605 = arith.mulf %602, %604 : vector<16x16xf32>
    %606 = arith.addf %584, %605 : vector<16x16xf32>
    %c1_407 = arith.constant 1 : index
    %c1_408 = arith.constant 1 : index
    %c0_409 = arith.constant 0 : index
    %607 = vector.load %arg10[%c1_407, %c1_408, %c0_409] : memref<5x20x16xf32, #tpu.memory_space<vmem>>, vector<1x16x16xf32>
    %608 = vector.shape_cast %607 : vector<1x16x16xf32> to vector<16x16xf32>
    %c31_410 = arith.constant 31 : index
    %609 = memref.load %arg2[%c31_410] : memref<100xf32, #tpu.memory_space<smem>>
    %610 = vector.broadcast %609 : f32 to vector<16x16xf32>
    %611 = arith.mulf %608, %610 : vector<16x16xf32>
    %612 = arith.addf %589, %611 : vector<16x16xf32>
    %c2_411 = arith.constant 2 : index
    %c1_412 = arith.constant 1 : index
    %c0_413 = arith.constant 0 : index
    %613 = vector.load %arg10[%c2_411, %c1_412, %c0_413] : memref<5x20x16xf32, #tpu.memory_space<vmem>>, vector<1x16x16xf32>
    %614 = vector.shape_cast %613 : vector<1x16x16xf32> to vector<16x16xf32>
    %c32_414 = arith.constant 32 : index
    %615 = memref.load %arg2[%c32_414] : memref<100xf32, #tpu.memory_space<smem>>
    %616 = vector.broadcast %615 : f32 to vector<16x16xf32>
    %617 = arith.mulf %614, %616 : vector<16x16xf32>
    %618 = arith.addf %594, %617 : vector<16x16xf32>
    %c3_415 = arith.constant 3 : index
    %c1_416 = arith.constant 1 : index
    %c0_417 = arith.constant 0 : index
    %619 = vector.load %arg10[%c3_415, %c1_416, %c0_417] : memref<5x20x16xf32, #tpu.memory_space<vmem>>, vector<1x16x16xf32>
    %620 = vector.shape_cast %619 : vector<1x16x16xf32> to vector<16x16xf32>
    %c33_418 = arith.constant 33 : index
    %621 = memref.load %arg2[%c33_418] : memref<100xf32, #tpu.memory_space<smem>>
    %622 = vector.broadcast %621 : f32 to vector<16x16xf32>
    %623 = arith.mulf %620, %622 : vector<16x16xf32>
    %624 = arith.addf %600, %623 : vector<16x16xf32>
    %c4_419 = arith.constant 4 : index
    %c1_420 = arith.constant 1 : index
    %c0_421 = arith.constant 0 : index
    %625 = vector.load %arg10[%c4_419, %c1_420, %c0_421] : memref<5x20x16xf32, #tpu.memory_space<vmem>>, vector<1x16x16xf32>
    %626 = vector.shape_cast %625 : vector<1x16x16xf32> to vector<16x16xf32>
    %c34_422 = arith.constant 34 : index
    %627 = memref.load %arg2[%c34_422] : memref<100xf32, #tpu.memory_space<smem>>
    %628 = vector.broadcast %627 : f32 to vector<16x16xf32>
    %629 = arith.mulf %626, %628 : vector<16x16xf32>
    %630 = arith.addf %606, %629 : vector<16x16xf32>
    %c0_423 = arith.constant 0 : index
    %c2_424 = arith.constant 2 : index
    %c0_425 = arith.constant 0 : index
    %631 = vector.load %arg10[%c0_423, %c2_424, %c0_425] : memref<5x20x16xf32, #tpu.memory_space<vmem>>, vector<1x16x16xf32>
    %632 = vector.shape_cast %631 : vector<1x16x16xf32> to vector<16x16xf32>
    %c35_426 = arith.constant 35 : index
    %633 = memref.load %arg2[%c35_426] : memref<100xf32, #tpu.memory_space<smem>>
    %634 = vector.broadcast %633 : f32 to vector<16x16xf32>
    %635 = arith.mulf %632, %634 : vector<16x16xf32>
    %636 = arith.addf %612, %635 : vector<16x16xf32>
    %c1_427 = arith.constant 1 : index
    %c2_428 = arith.constant 2 : index
    %c0_429 = arith.constant 0 : index
    %637 = vector.load %arg10[%c1_427, %c2_428, %c0_429] : memref<5x20x16xf32, #tpu.memory_space<vmem>>, vector<1x16x16xf32>
    %638 = vector.shape_cast %637 : vector<1x16x16xf32> to vector<16x16xf32>
    %c36_430 = arith.constant 36 : index
    %639 = memref.load %arg2[%c36_430] : memref<100xf32, #tpu.memory_space<smem>>
    %640 = vector.broadcast %639 : f32 to vector<16x16xf32>
    %641 = arith.mulf %638, %640 : vector<16x16xf32>
    %642 = arith.addf %618, %641 : vector<16x16xf32>
    %c2_431 = arith.constant 2 : index
    %c2_432 = arith.constant 2 : index
    %c0_433 = arith.constant 0 : index
    %643 = vector.load %arg10[%c2_431, %c2_432, %c0_433] : memref<5x20x16xf32, #tpu.memory_space<vmem>>, vector<1x16x16xf32>
    %644 = vector.shape_cast %643 : vector<1x16x16xf32> to vector<16x16xf32>
    %c37_434 = arith.constant 37 : index
    %645 = memref.load %arg2[%c37_434] : memref<100xf32, #tpu.memory_space<smem>>
    %646 = vector.broadcast %645 : f32 to vector<16x16xf32>
    %647 = arith.mulf %644, %646 : vector<16x16xf32>
    %648 = arith.addf %624, %647 : vector<16x16xf32>
    %c3_435 = arith.constant 3 : index
    %c2_436 = arith.constant 2 : index
    %c0_437 = arith.constant 0 : index
    %649 = vector.load %arg10[%c3_435, %c2_436, %c0_437] : memref<5x20x16xf32, #tpu.memory_space<vmem>>, vector<1x16x16xf32>
    %650 = vector.shape_cast %649 : vector<1x16x16xf32> to vector<16x16xf32>
    %c38_438 = arith.constant 38 : index
    %651 = memref.load %arg2[%c38_438] : memref<100xf32, #tpu.memory_space<smem>>
    %652 = vector.broadcast %651 : f32 to vector<16x16xf32>
    %653 = arith.mulf %650, %652 : vector<16x16xf32>
    %654 = arith.addf %630, %653 : vector<16x16xf32>
    %c4_439 = arith.constant 4 : index
    %c2_440 = arith.constant 2 : index
    %c0_441 = arith.constant 0 : index
    %655 = vector.load %arg10[%c4_439, %c2_440, %c0_441] : memref<5x20x16xf32, #tpu.memory_space<vmem>>, vector<1x16x16xf32>
    %656 = vector.shape_cast %655 : vector<1x16x16xf32> to vector<16x16xf32>
    %c39_442 = arith.constant 39 : index
    %657 = memref.load %arg2[%c39_442] : memref<100xf32, #tpu.memory_space<smem>>
    %658 = vector.broadcast %657 : f32 to vector<16x16xf32>
    %659 = arith.mulf %656, %658 : vector<16x16xf32>
    %660 = arith.addf %636, %659 : vector<16x16xf32>
    %c0_443 = arith.constant 0 : index
    %c3_444 = arith.constant 3 : index
    %c0_445 = arith.constant 0 : index
    %661 = vector.load %arg10[%c0_443, %c3_444, %c0_445] : memref<5x20x16xf32, #tpu.memory_space<vmem>>, vector<1x16x16xf32>
    %662 = vector.shape_cast %661 : vector<1x16x16xf32> to vector<16x16xf32>
    %c40_446 = arith.constant 40 : index
    %663 = memref.load %arg2[%c40_446] : memref<100xf32, #tpu.memory_space<smem>>
    %664 = vector.broadcast %663 : f32 to vector<16x16xf32>
    %665 = arith.mulf %662, %664 : vector<16x16xf32>
    %666 = arith.addf %642, %665 : vector<16x16xf32>
    %c1_447 = arith.constant 1 : index
    %c3_448 = arith.constant 3 : index
    %c0_449 = arith.constant 0 : index
    %667 = vector.load %arg10[%c1_447, %c3_448, %c0_449] : memref<5x20x16xf32, #tpu.memory_space<vmem>>, vector<1x16x16xf32>
    %668 = vector.shape_cast %667 : vector<1x16x16xf32> to vector<16x16xf32>
    %c41_450 = arith.constant 41 : index
    %669 = memref.load %arg2[%c41_450] : memref<100xf32, #tpu.memory_space<smem>>
    %670 = vector.broadcast %669 : f32 to vector<16x16xf32>
    %671 = arith.mulf %668, %670 : vector<16x16xf32>
    %672 = arith.addf %648, %671 : vector<16x16xf32>
    %c2_451 = arith.constant 2 : index
    %c3_452 = arith.constant 3 : index
    %c0_453 = arith.constant 0 : index
    %673 = vector.load %arg10[%c2_451, %c3_452, %c0_453] : memref<5x20x16xf32, #tpu.memory_space<vmem>>, vector<1x16x16xf32>
    %674 = vector.shape_cast %673 : vector<1x16x16xf32> to vector<16x16xf32>
    %c42_454 = arith.constant 42 : index
    %675 = memref.load %arg2[%c42_454] : memref<100xf32, #tpu.memory_space<smem>>
    %676 = vector.broadcast %675 : f32 to vector<16x16xf32>
    %677 = arith.mulf %674, %676 : vector<16x16xf32>
    %678 = arith.addf %654, %677 : vector<16x16xf32>
    %c3_455 = arith.constant 3 : index
    %c3_456 = arith.constant 3 : index
    %c0_457 = arith.constant 0 : index
    %679 = vector.load %arg10[%c3_455, %c3_456, %c0_457] : memref<5x20x16xf32, #tpu.memory_space<vmem>>, vector<1x16x16xf32>
    %680 = vector.shape_cast %679 : vector<1x16x16xf32> to vector<16x16xf32>
    %c43_458 = arith.constant 43 : index
    %681 = memref.load %arg2[%c43_458] : memref<100xf32, #tpu.memory_space<smem>>
    %682 = vector.broadcast %681 : f32 to vector<16x16xf32>
    %683 = arith.mulf %680, %682 : vector<16x16xf32>
    %684 = arith.addf %660, %683 : vector<16x16xf32>
    %c4_459 = arith.constant 4 : index
    %c3_460 = arith.constant 3 : index
    %c0_461 = arith.constant 0 : index
    %685 = vector.load %arg10[%c4_459, %c3_460, %c0_461] : memref<5x20x16xf32, #tpu.memory_space<vmem>>, vector<1x16x16xf32>
    %686 = vector.shape_cast %685 : vector<1x16x16xf32> to vector<16x16xf32>
    %c44_462 = arith.constant 44 : index
    %687 = memref.load %arg2[%c44_462] : memref<100xf32, #tpu.memory_space<smem>>
    %688 = vector.broadcast %687 : f32 to vector<16x16xf32>
    %689 = arith.mulf %686, %688 : vector<16x16xf32>
    %690 = arith.addf %666, %689 : vector<16x16xf32>
    %c0_463 = arith.constant 0 : index
    %c4_464 = arith.constant 4 : index
    %c0_465 = arith.constant 0 : index
    %691 = vector.load %arg10[%c0_463, %c4_464, %c0_465] : memref<5x20x16xf32, #tpu.memory_space<vmem>>, vector<1x16x16xf32>
    %692 = vector.shape_cast %691 : vector<1x16x16xf32> to vector<16x16xf32>
    %c45_466 = arith.constant 45 : index
    %693 = memref.load %arg2[%c45_466] : memref<100xf32, #tpu.memory_space<smem>>
    %694 = vector.broadcast %693 : f32 to vector<16x16xf32>
    %695 = arith.mulf %692, %694 : vector<16x16xf32>
    %696 = arith.addf %672, %695 : vector<16x16xf32>
    %c1_467 = arith.constant 1 : index
    %c4_468 = arith.constant 4 : index
    %c0_469 = arith.constant 0 : index
    %697 = vector.load %arg10[%c1_467, %c4_468, %c0_469] : memref<5x20x16xf32, #tpu.memory_space<vmem>>, vector<1x16x16xf32>
    %698 = vector.shape_cast %697 : vector<1x16x16xf32> to vector<16x16xf32>
    %c46_470 = arith.constant 46 : index
    %699 = memref.load %arg2[%c46_470] : memref<100xf32, #tpu.memory_space<smem>>
    %700 = vector.broadcast %699 : f32 to vector<16x16xf32>
    %701 = arith.mulf %698, %700 : vector<16x16xf32>
    %702 = arith.addf %678, %701 : vector<16x16xf32>
    %c2_471 = arith.constant 2 : index
    %c4_472 = arith.constant 4 : index
    %c0_473 = arith.constant 0 : index
    %703 = vector.load %arg10[%c2_471, %c4_472, %c0_473] : memref<5x20x16xf32, #tpu.memory_space<vmem>>, vector<1x16x16xf32>
    %704 = vector.shape_cast %703 : vector<1x16x16xf32> to vector<16x16xf32>
    %c47_474 = arith.constant 47 : index
    %705 = memref.load %arg2[%c47_474] : memref<100xf32, #tpu.memory_space<smem>>
    %706 = vector.broadcast %705 : f32 to vector<16x16xf32>
    %707 = arith.mulf %704, %706 : vector<16x16xf32>
    %708 = arith.addf %684, %707 : vector<16x16xf32>
    %c3_475 = arith.constant 3 : index
    %c4_476 = arith.constant 4 : index
    %c0_477 = arith.constant 0 : index
    %709 = vector.load %arg10[%c3_475, %c4_476, %c0_477] : memref<5x20x16xf32, #tpu.memory_space<vmem>>, vector<1x16x16xf32>
    %710 = vector.shape_cast %709 : vector<1x16x16xf32> to vector<16x16xf32>
    %c48_478 = arith.constant 48 : index
    %711 = memref.load %arg2[%c48_478] : memref<100xf32, #tpu.memory_space<smem>>
    %712 = vector.broadcast %711 : f32 to vector<16x16xf32>
    %713 = arith.mulf %710, %712 : vector<16x16xf32>
    %714 = arith.addf %690, %713 : vector<16x16xf32>
    %c4_479 = arith.constant 4 : index
    %c4_480 = arith.constant 4 : index
    %c0_481 = arith.constant 0 : index
    %715 = vector.load %arg10[%c4_479, %c4_480, %c0_481] : memref<5x20x16xf32, #tpu.memory_space<vmem>>, vector<1x16x16xf32>
    %716 = vector.shape_cast %715 : vector<1x16x16xf32> to vector<16x16xf32>
    %c49 = arith.constant 49 : index
    %717 = memref.load %arg2[%c49] : memref<100xf32, #tpu.memory_space<smem>>
    %718 = vector.broadcast %717 : f32 to vector<16x16xf32>
    %719 = arith.mulf %716, %718 : vector<16x16xf32>
    %720 = arith.addf %696, %719 : vector<16x16xf32>
    %721 = arith.addf %720, %702 : vector<16x16xf32>
    %722 = arith.addf %721, %708 : vector<16x16xf32>
    %723 = arith.addf %722, %714 : vector<16x16xf32>
    %c1_482 = arith.constant 1 : index
    %724 = memref.load %arg3[%c1_482] : memref<4xf32, #tpu.memory_space<smem>>
    %725 = vector.broadcast %724 : f32 to vector<16x16xf32>
    %726 = arith.addf %723, %725 : vector<16x16xf32>
    %c16_483 = arith.constant 16 : index
    %c128_484 = arith.constant 128 : index
    %727 = vector.load %arg11[%c16_483, %c128_484] : memref<41x153xf32, #tpu.memory_space<vmem>>, vector<16x16xf32>
    tpu.vector_store %arg11[%c16_483, %c128_484], %726 {strides = array<i32>} : memref<41x153xf32, #tpu.memory_space<vmem>>, vector<16x16xf32>,
    %c7_485 = arith.constant 7 : index
    %c119_486 = arith.constant 119 : index
    %728 = vector.load %arg11[%c7_485, %c119_486] : memref<41x153xf32, #tpu.memory_space<vmem>>, vector<34x16xf32>
    %c0_487 = arith.constant 0 : index
    %c0_488 = arith.constant 0 : index
    %c0_489 = arith.constant 0 : index
    %729 = vector.load %arg12[%c0_487, %c0_488, %c0_489] : memref<7x34x16xf32, #tpu.memory_space<vmem>>, vector<1x34x16xf32>
    %730 = vector.shape_cast %729 : vector<1x34x16xf32> to vector<34x16xf32>
    %731 = vector.shape_cast %728 : vector<34x16xf32> to vector<1x34x16xf32>
    tpu.vector_store %arg12[%c0_487, %c0_488, %c0_489], %731 {strides = array<i32>} : memref<7x34x16xf32, #tpu.memory_space<vmem>>, vector<1x34x16xf32>,
    %c7_490 = arith.constant 7 : index
    %c122_491 = arith.constant 122 : index
    %732 = vector.load %arg11[%c7_490, %c122_491] : memref<41x153xf32, #tpu.memory_space<vmem>>, vector<34x16xf32>
    %c1_492 = arith.constant 1 : index
    %c0_493 = arith.constant 0 : index
    %c0_494 = arith.constant 0 : index
    %733 = vector.load %arg12[%c1_492, %c0_493, %c0_494] : memref<7x34x16xf32, #tpu.memory_space<vmem>>, vector<1x34x16xf32>
    %734 = vector.shape_cast %733 : vector<1x34x16xf32> to vector<34x16xf32>
    %735 = vector.shape_cast %732 : vector<34x16xf32> to vector<1x34x16xf32>
    tpu.vector_store %arg12[%c1_492, %c0_493, %c0_494], %735 {strides = array<i32>} : memref<7x34x16xf32, #tpu.memory_space<vmem>>, vector<1x34x16xf32>,
    %c7_495 = arith.constant 7 : index
    %c125_496 = arith.constant 125 : index
    %736 = vector.load %arg11[%c7_495, %c125_496] : memref<41x153xf32, #tpu.memory_space<vmem>>, vector<34x16xf32>
    %c2_497 = arith.constant 2 : index
    %c0_498 = arith.constant 0 : index
    %c0_499 = arith.constant 0 : index
    %737 = vector.load %arg12[%c2_497, %c0_498, %c0_499] : memref<7x34x16xf32, #tpu.memory_space<vmem>>, vector<1x34x16xf32>
    %738 = vector.shape_cast %737 : vector<1x34x16xf32> to vector<34x16xf32>
    %739 = vector.shape_cast %736 : vector<34x16xf32> to vector<1x34x16xf32>
    tpu.vector_store %arg12[%c2_497, %c0_498, %c0_499], %739 {strides = array<i32>} : memref<7x34x16xf32, #tpu.memory_space<vmem>>, vector<1x34x16xf32>,
    %c7_500 = arith.constant 7 : index
    %c128_501 = arith.constant 128 : index
    %740 = vector.load %arg11[%c7_500, %c128_501] : memref<41x153xf32, #tpu.memory_space<vmem>>, vector<34x16xf32>
    %c3_502 = arith.constant 3 : index
    %c0_503 = arith.constant 0 : index
    %c0_504 = arith.constant 0 : index
    %741 = vector.load %arg12[%c3_502, %c0_503, %c0_504] : memref<7x34x16xf32, #tpu.memory_space<vmem>>, vector<1x34x16xf32>
    %742 = vector.shape_cast %741 : vector<1x34x16xf32> to vector<34x16xf32>
    %743 = vector.shape_cast %740 : vector<34x16xf32> to vector<1x34x16xf32>
    tpu.vector_store %arg12[%c3_502, %c0_503, %c0_504], %743 {strides = array<i32>} : memref<7x34x16xf32, #tpu.memory_space<vmem>>, vector<1x34x16xf32>,
    %c7_505 = arith.constant 7 : index
    %c131_506 = arith.constant 131 : index
    %744 = vector.load %arg11[%c7_505, %c131_506] : memref<41x153xf32, #tpu.memory_space<vmem>>, vector<34x16xf32>
    %c4_507 = arith.constant 4 : index
    %c0_508 = arith.constant 0 : index
    %c0_509 = arith.constant 0 : index
    %745 = vector.load %arg12[%c4_507, %c0_508, %c0_509] : memref<7x34x16xf32, #tpu.memory_space<vmem>>, vector<1x34x16xf32>
    %746 = vector.shape_cast %745 : vector<1x34x16xf32> to vector<34x16xf32>
    %747 = vector.shape_cast %744 : vector<34x16xf32> to vector<1x34x16xf32>
    tpu.vector_store %arg12[%c4_507, %c0_508, %c0_509], %747 {strides = array<i32>} : memref<7x34x16xf32, #tpu.memory_space<vmem>>, vector<1x34x16xf32>,
    %c7_510 = arith.constant 7 : index
    %c134_511 = arith.constant 134 : index
    %748 = vector.load %arg11[%c7_510, %c134_511] : memref<41x153xf32, #tpu.memory_space<vmem>>, vector<34x16xf32>
    %c5_512 = arith.constant 5 : index
    %c0_513 = arith.constant 0 : index
    %c0_514 = arith.constant 0 : index
    %749 = vector.load %arg12[%c5_512, %c0_513, %c0_514] : memref<7x34x16xf32, #tpu.memory_space<vmem>>, vector<1x34x16xf32>
    %750 = vector.shape_cast %749 : vector<1x34x16xf32> to vector<34x16xf32>
    %751 = vector.shape_cast %748 : vector<34x16xf32> to vector<1x34x16xf32>
    tpu.vector_store %arg12[%c5_512, %c0_513, %c0_514], %751 {strides = array<i32>} : memref<7x34x16xf32, #tpu.memory_space<vmem>>, vector<1x34x16xf32>,
    %c7_515 = arith.constant 7 : index
    %c137_516 = arith.constant 137 : index
    %752 = vector.load %arg11[%c7_515, %c137_516] : memref<41x153xf32, #tpu.memory_space<vmem>>, vector<34x16xf32>
    %c6_517 = arith.constant 6 : index
    %c0_518 = arith.constant 0 : index
    %c0_519 = arith.constant 0 : index
    %753 = vector.load %arg12[%c6_517, %c0_518, %c0_519] : memref<7x34x16xf32, #tpu.memory_space<vmem>>, vector<1x34x16xf32>
    %754 = vector.shape_cast %753 : vector<1x34x16xf32> to vector<34x16xf32>
    %755 = vector.shape_cast %752 : vector<34x16xf32> to vector<1x34x16xf32>
    tpu.vector_store %arg12[%c6_517, %c0_518, %c0_519], %755 {strides = array<i32>} : memref<7x34x16xf32, #tpu.memory_space<vmem>>, vector<1x34x16xf32>,
    %c0_520 = arith.constant 0 : index
    %c0_521 = arith.constant 0 : index
    %c0_522 = arith.constant 0 : index
    %756 = vector.load %arg12[%c0_520, %c0_521, %c0_522] : memref<7x34x16xf32, #tpu.memory_space<vmem>>, vector<1x16x16xf32>
    %757 = vector.shape_cast %756 : vector<1x16x16xf32> to vector<16x16xf32>
    %c49_523 = arith.constant 49 : index
    %758 = memref.load %arg4[%c49_523] : memref<196xf32, #tpu.memory_space<smem>>
    %759 = vector.broadcast %758 : f32 to vector<16x16xf32>
    %760 = arith.mulf %757, %759 : vector<16x16xf32>
    %c1_524 = arith.constant 1 : index
    %c0_525 = arith.constant 0 : index
    %c0_526 = arith.constant 0 : index
    %761 = vector.load %arg12[%c1_524, %c0_525, %c0_526] : memref<7x34x16xf32, #tpu.memory_space<vmem>>, vector<1x16x16xf32>
    %762 = vector.shape_cast %761 : vector<1x16x16xf32> to vector<16x16xf32>
    %c50 = arith.constant 50 : index
    %763 = memref.load %arg4[%c50] : memref<196xf32, #tpu.memory_space<smem>>
    %764 = vector.broadcast %763 : f32 to vector<16x16xf32>
    %765 = arith.mulf %762, %764 : vector<16x16xf32>
    %c2_527 = arith.constant 2 : index
    %c0_528 = arith.constant 0 : index
    %c0_529 = arith.constant 0 : index
    %766 = vector.load %arg12[%c2_527, %c0_528, %c0_529] : memref<7x34x16xf32, #tpu.memory_space<vmem>>, vector<1x16x16xf32>
    %767 = vector.shape_cast %766 : vector<1x16x16xf32> to vector<16x16xf32>
    %c51 = arith.constant 51 : index
    %768 = memref.load %arg4[%c51] : memref<196xf32, #tpu.memory_space<smem>>
    %769 = vector.broadcast %768 : f32 to vector<16x16xf32>
    %770 = arith.mulf %767, %769 : vector<16x16xf32>
    %c3_530 = arith.constant 3 : index
    %c0_531 = arith.constant 0 : index
    %c0_532 = arith.constant 0 : index
    %771 = vector.load %arg12[%c3_530, %c0_531, %c0_532] : memref<7x34x16xf32, #tpu.memory_space<vmem>>, vector<1x16x16xf32>
    %772 = vector.shape_cast %771 : vector<1x16x16xf32> to vector<16x16xf32>
    %c52 = arith.constant 52 : index
    %773 = memref.load %arg4[%c52] : memref<196xf32, #tpu.memory_space<smem>>
    %774 = vector.broadcast %773 : f32 to vector<16x16xf32>
    %775 = arith.mulf %772, %774 : vector<16x16xf32>
    %c4_533 = arith.constant 4 : index
    %c0_534 = arith.constant 0 : index
    %c0_535 = arith.constant 0 : index
    %776 = vector.load %arg12[%c4_533, %c0_534, %c0_535] : memref<7x34x16xf32, #tpu.memory_space<vmem>>, vector<1x16x16xf32>
    %777 = vector.shape_cast %776 : vector<1x16x16xf32> to vector<16x16xf32>
    %c53 = arith.constant 53 : index
    %778 = memref.load %arg4[%c53] : memref<196xf32, #tpu.memory_space<smem>>
    %779 = vector.broadcast %778 : f32 to vector<16x16xf32>
    %780 = arith.mulf %777, %779 : vector<16x16xf32>
    %781 = arith.addf %760, %780 : vector<16x16xf32>
    %c5_536 = arith.constant 5 : index
    %c0_537 = arith.constant 0 : index
    %c0_538 = arith.constant 0 : index
    %782 = vector.load %arg12[%c5_536, %c0_537, %c0_538] : memref<7x34x16xf32, #tpu.memory_space<vmem>>, vector<1x16x16xf32>
    %783 = vector.shape_cast %782 : vector<1x16x16xf32> to vector<16x16xf32>
    %c54 = arith.constant 54 : index
    %784 = memref.load %arg4[%c54] : memref<196xf32, #tpu.memory_space<smem>>
    %785 = vector.broadcast %784 : f32 to vector<16x16xf32>
    %786 = arith.mulf %783, %785 : vector<16x16xf32>
    %787 = arith.addf %765, %786 : vector<16x16xf32>
    %c6_539 = arith.constant 6 : index
    %c0_540 = arith.constant 0 : index
    %c0_541 = arith.constant 0 : index
    %788 = vector.load %arg12[%c6_539, %c0_540, %c0_541] : memref<7x34x16xf32, #tpu.memory_space<vmem>>, vector<1x16x16xf32>
    %789 = vector.shape_cast %788 : vector<1x16x16xf32> to vector<16x16xf32>
    %c55 = arith.constant 55 : index
    %790 = memref.load %arg4[%c55] : memref<196xf32, #tpu.memory_space<smem>>
    %791 = vector.broadcast %790 : f32 to vector<16x16xf32>
    %792 = arith.mulf %789, %791 : vector<16x16xf32>
    %793 = arith.addf %770, %792 : vector<16x16xf32>
    %c0_542 = arith.constant 0 : index
    %c3_543 = arith.constant 3 : index
    %c0_544 = arith.constant 0 : index
    %794 = vector.load %arg12[%c0_542, %c3_543, %c0_544] : memref<7x34x16xf32, #tpu.memory_space<vmem>>, vector<1x16x16xf32>
    %795 = vector.shape_cast %794 : vector<1x16x16xf32> to vector<16x16xf32>
    %c56 = arith.constant 56 : index
    %796 = memref.load %arg4[%c56] : memref<196xf32, #tpu.memory_space<smem>>
    %797 = vector.broadcast %796 : f32 to vector<16x16xf32>
    %798 = arith.mulf %795, %797 : vector<16x16xf32>
    %799 = arith.addf %775, %798 : vector<16x16xf32>
    %c1_545 = arith.constant 1 : index
    %c3_546 = arith.constant 3 : index
    %c0_547 = arith.constant 0 : index
    %800 = vector.load %arg12[%c1_545, %c3_546, %c0_547] : memref<7x34x16xf32, #tpu.memory_space<vmem>>, vector<1x16x16xf32>
    %801 = vector.shape_cast %800 : vector<1x16x16xf32> to vector<16x16xf32>
    %c57 = arith.constant 57 : index
    %802 = memref.load %arg4[%c57] : memref<196xf32, #tpu.memory_space<smem>>
    %803 = vector.broadcast %802 : f32 to vector<16x16xf32>
    %804 = arith.mulf %801, %803 : vector<16x16xf32>
    %805 = arith.addf %781, %804 : vector<16x16xf32>
    %c2_548 = arith.constant 2 : index
    %c3_549 = arith.constant 3 : index
    %c0_550 = arith.constant 0 : index
    %806 = vector.load %arg12[%c2_548, %c3_549, %c0_550] : memref<7x34x16xf32, #tpu.memory_space<vmem>>, vector<1x16x16xf32>
    %807 = vector.shape_cast %806 : vector<1x16x16xf32> to vector<16x16xf32>
    %c58 = arith.constant 58 : index
    %808 = memref.load %arg4[%c58] : memref<196xf32, #tpu.memory_space<smem>>
    %809 = vector.broadcast %808 : f32 to vector<16x16xf32>
    %810 = arith.mulf %807, %809 : vector<16x16xf32>
    %811 = arith.addf %787, %810 : vector<16x16xf32>
    %c3_551 = arith.constant 3 : index
    %c3_552 = arith.constant 3 : index
    %c0_553 = arith.constant 0 : index
    %812 = vector.load %arg12[%c3_551, %c3_552, %c0_553] : memref<7x34x16xf32, #tpu.memory_space<vmem>>, vector<1x16x16xf32>
    %813 = vector.shape_cast %812 : vector<1x16x16xf32> to vector<16x16xf32>
    %c59 = arith.constant 59 : index
    %814 = memref.load %arg4[%c59] : memref<196xf32, #tpu.memory_space<smem>>
    %815 = vector.broadcast %814 : f32 to vector<16x16xf32>
    %816 = arith.mulf %813, %815 : vector<16x16xf32>
    %817 = arith.addf %793, %816 : vector<16x16xf32>
    %c4_554 = arith.constant 4 : index
    %c3_555 = arith.constant 3 : index
    %c0_556 = arith.constant 0 : index
    %818 = vector.load %arg12[%c4_554, %c3_555, %c0_556] : memref<7x34x16xf32, #tpu.memory_space<vmem>>, vector<1x16x16xf32>
    %819 = vector.shape_cast %818 : vector<1x16x16xf32> to vector<16x16xf32>
    %c60 = arith.constant 60 : index
    %820 = memref.load %arg4[%c60] : memref<196xf32, #tpu.memory_space<smem>>
    %821 = vector.broadcast %820 : f32 to vector<16x16xf32>
    %822 = arith.mulf %819, %821 : vector<16x16xf32>
    %823 = arith.addf %799, %822 : vector<16x16xf32>
    %c5_557 = arith.constant 5 : index
    %c3_558 = arith.constant 3 : index
    %c0_559 = arith.constant 0 : index
    %824 = vector.load %arg12[%c5_557, %c3_558, %c0_559] : memref<7x34x16xf32, #tpu.memory_space<vmem>>, vector<1x16x16xf32>
    %825 = vector.shape_cast %824 : vector<1x16x16xf32> to vector<16x16xf32>
    %c61 = arith.constant 61 : index
    %826 = memref.load %arg4[%c61] : memref<196xf32, #tpu.memory_space<smem>>
    %827 = vector.broadcast %826 : f32 to vector<16x16xf32>
    %828 = arith.mulf %825, %827 : vector<16x16xf32>
    %829 = arith.addf %805, %828 : vector<16x16xf32>
    %c6_560 = arith.constant 6 : index
    %c3_561 = arith.constant 3 : index
    %c0_562 = arith.constant 0 : index
    %830 = vector.load %arg12[%c6_560, %c3_561, %c0_562] : memref<7x34x16xf32, #tpu.memory_space<vmem>>, vector<1x16x16xf32>
    %831 = vector.shape_cast %830 : vector<1x16x16xf32> to vector<16x16xf32>
    %c62 = arith.constant 62 : index
    %832 = memref.load %arg4[%c62] : memref<196xf32, #tpu.memory_space<smem>>
    %833 = vector.broadcast %832 : f32 to vector<16x16xf32>
    %834 = arith.mulf %831, %833 : vector<16x16xf32>
    %835 = arith.addf %811, %834 : vector<16x16xf32>
    %c0_563 = arith.constant 0 : index
    %c6_564 = arith.constant 6 : index
    %c0_565 = arith.constant 0 : index
    %836 = vector.load %arg12[%c0_563, %c6_564, %c0_565] : memref<7x34x16xf32, #tpu.memory_space<vmem>>, vector<1x16x16xf32>
    %837 = vector.shape_cast %836 : vector<1x16x16xf32> to vector<16x16xf32>
    %c63 = arith.constant 63 : index
    %838 = memref.load %arg4[%c63] : memref<196xf32, #tpu.memory_space<smem>>
    %839 = vector.broadcast %838 : f32 to vector<16x16xf32>
    %840 = arith.mulf %837, %839 : vector<16x16xf32>
    %841 = arith.addf %817, %840 : vector<16x16xf32>
    %c1_566 = arith.constant 1 : index
    %c6_567 = arith.constant 6 : index
    %c0_568 = arith.constant 0 : index
    %842 = vector.load %arg12[%c1_566, %c6_567, %c0_568] : memref<7x34x16xf32, #tpu.memory_space<vmem>>, vector<1x16x16xf32>
    %843 = vector.shape_cast %842 : vector<1x16x16xf32> to vector<16x16xf32>
    %c64 = arith.constant 64 : index
    %844 = memref.load %arg4[%c64] : memref<196xf32, #tpu.memory_space<smem>>
    %845 = vector.broadcast %844 : f32 to vector<16x16xf32>
    %846 = arith.mulf %843, %845 : vector<16x16xf32>
    %847 = arith.addf %823, %846 : vector<16x16xf32>
    %c2_569 = arith.constant 2 : index
    %c6_570 = arith.constant 6 : index
    %c0_571 = arith.constant 0 : index
    %848 = vector.load %arg12[%c2_569, %c6_570, %c0_571] : memref<7x34x16xf32, #tpu.memory_space<vmem>>, vector<1x16x16xf32>
    %849 = vector.shape_cast %848 : vector<1x16x16xf32> to vector<16x16xf32>
    %c65 = arith.constant 65 : index
    %850 = memref.load %arg4[%c65] : memref<196xf32, #tpu.memory_space<smem>>
    %851 = vector.broadcast %850 : f32 to vector<16x16xf32>
    %852 = arith.mulf %849, %851 : vector<16x16xf32>
    %853 = arith.addf %829, %852 : vector<16x16xf32>
    %c3_572 = arith.constant 3 : index
    %c6_573 = arith.constant 6 : index
    %c0_574 = arith.constant 0 : index
    %854 = vector.load %arg12[%c3_572, %c6_573, %c0_574] : memref<7x34x16xf32, #tpu.memory_space<vmem>>, vector<1x16x16xf32>
    %855 = vector.shape_cast %854 : vector<1x16x16xf32> to vector<16x16xf32>
    %c66 = arith.constant 66 : index
    %856 = memref.load %arg4[%c66] : memref<196xf32, #tpu.memory_space<smem>>
    %857 = vector.broadcast %856 : f32 to vector<16x16xf32>
    %858 = arith.mulf %855, %857 : vector<16x16xf32>
    %859 = arith.addf %835, %858 : vector<16x16xf32>
    %c4_575 = arith.constant 4 : index
    %c6_576 = arith.constant 6 : index
    %c0_577 = arith.constant 0 : index
    %860 = vector.load %arg12[%c4_575, %c6_576, %c0_577] : memref<7x34x16xf32, #tpu.memory_space<vmem>>, vector<1x16x16xf32>
    %861 = vector.shape_cast %860 : vector<1x16x16xf32> to vector<16x16xf32>
    %c67 = arith.constant 67 : index
    %862 = memref.load %arg4[%c67] : memref<196xf32, #tpu.memory_space<smem>>
    %863 = vector.broadcast %862 : f32 to vector<16x16xf32>
    %864 = arith.mulf %861, %863 : vector<16x16xf32>
    %865 = arith.addf %841, %864 : vector<16x16xf32>
    %c5_578 = arith.constant 5 : index
    %c6_579 = arith.constant 6 : index
    %c0_580 = arith.constant 0 : index
    %866 = vector.load %arg12[%c5_578, %c6_579, %c0_580] : memref<7x34x16xf32, #tpu.memory_space<vmem>>, vector<1x16x16xf32>
    %867 = vector.shape_cast %866 : vector<1x16x16xf32> to vector<16x16xf32>
    %c68 = arith.constant 68 : index
    %868 = memref.load %arg4[%c68] : memref<196xf32, #tpu.memory_space<smem>>
    %869 = vector.broadcast %868 : f32 to vector<16x16xf32>
    %870 = arith.mulf %867, %869 : vector<16x16xf32>
    %871 = arith.addf %847, %870 : vector<16x16xf32>
    %c6_581 = arith.constant 6 : index
    %c6_582 = arith.constant 6 : index
    %c0_583 = arith.constant 0 : index
    %872 = vector.load %arg12[%c6_581, %c6_582, %c0_583] : memref<7x34x16xf32, #tpu.memory_space<vmem>>, vector<1x16x16xf32>
    %873 = vector.shape_cast %872 : vector<1x16x16xf32> to vector<16x16xf32>
    %c69 = arith.constant 69 : index
    %874 = memref.load %arg4[%c69] : memref<196xf32, #tpu.memory_space<smem>>
    %875 = vector.broadcast %874 : f32 to vector<16x16xf32>
    %876 = arith.mulf %873, %875 : vector<16x16xf32>
    %877 = arith.addf %853, %876 : vector<16x16xf32>
    %c0_584 = arith.constant 0 : index
    %c9_585 = arith.constant 9 : index
    %c0_586 = arith.constant 0 : index
    %878 = vector.load %arg12[%c0_584, %c9_585, %c0_586] : memref<7x34x16xf32, #tpu.memory_space<vmem>>, vector<1x16x16xf32>
    %879 = vector.shape_cast %878 : vector<1x16x16xf32> to vector<16x16xf32>
    %c70 = arith.constant 70 : index
    %880 = memref.load %arg4[%c70] : memref<196xf32, #tpu.memory_space<smem>>
    %881 = vector.broadcast %880 : f32 to vector<16x16xf32>
    %882 = arith.mulf %879, %881 : vector<16x16xf32>
    %883 = arith.addf %859, %882 : vector<16x16xf32>
    %c1_587 = arith.constant 1 : index
    %c9_588 = arith.constant 9 : index
    %c0_589 = arith.constant 0 : index
    %884 = vector.load %arg12[%c1_587, %c9_588, %c0_589] : memref<7x34x16xf32, #tpu.memory_space<vmem>>, vector<1x16x16xf32>
    %885 = vector.shape_cast %884 : vector<1x16x16xf32> to vector<16x16xf32>
    %c71 = arith.constant 71 : index
    %886 = memref.load %arg4[%c71] : memref<196xf32, #tpu.memory_space<smem>>
    %887 = vector.broadcast %886 : f32 to vector<16x16xf32>
    %888 = arith.mulf %885, %887 : vector<16x16xf32>
    %889 = arith.addf %865, %888 : vector<16x16xf32>
    %c2_590 = arith.constant 2 : index
    %c9_591 = arith.constant 9 : index
    %c0_592 = arith.constant 0 : index
    %890 = vector.load %arg12[%c2_590, %c9_591, %c0_592] : memref<7x34x16xf32, #tpu.memory_space<vmem>>, vector<1x16x16xf32>
    %891 = vector.shape_cast %890 : vector<1x16x16xf32> to vector<16x16xf32>
    %c72 = arith.constant 72 : index
    %892 = memref.load %arg4[%c72] : memref<196xf32, #tpu.memory_space<smem>>
    %893 = vector.broadcast %892 : f32 to vector<16x16xf32>
    %894 = arith.mulf %891, %893 : vector<16x16xf32>
    %895 = arith.addf %871, %894 : vector<16x16xf32>
    %c3_593 = arith.constant 3 : index
    %c9_594 = arith.constant 9 : index
    %c0_595 = arith.constant 0 : index
    %896 = vector.load %arg12[%c3_593, %c9_594, %c0_595] : memref<7x34x16xf32, #tpu.memory_space<vmem>>, vector<1x16x16xf32>
    %897 = vector.shape_cast %896 : vector<1x16x16xf32> to vector<16x16xf32>
    %c73 = arith.constant 73 : index
    %898 = memref.load %arg4[%c73] : memref<196xf32, #tpu.memory_space<smem>>
    %899 = vector.broadcast %898 : f32 to vector<16x16xf32>
    %900 = arith.mulf %897, %899 : vector<16x16xf32>
    %901 = arith.addf %877, %900 : vector<16x16xf32>
    %c4_596 = arith.constant 4 : index
    %c9_597 = arith.constant 9 : index
    %c0_598 = arith.constant 0 : index
    %902 = vector.load %arg12[%c4_596, %c9_597, %c0_598] : memref<7x34x16xf32, #tpu.memory_space<vmem>>, vector<1x16x16xf32>
    %903 = vector.shape_cast %902 : vector<1x16x16xf32> to vector<16x16xf32>
    %c74 = arith.constant 74 : index
    %904 = memref.load %arg4[%c74] : memref<196xf32, #tpu.memory_space<smem>>
    %905 = vector.broadcast %904 : f32 to vector<16x16xf32>
    %906 = arith.mulf %903, %905 : vector<16x16xf32>
    %907 = arith.addf %883, %906 : vector<16x16xf32>
    %c5_599 = arith.constant 5 : index
    %c9_600 = arith.constant 9 : index
    %c0_601 = arith.constant 0 : index
    %908 = vector.load %arg12[%c5_599, %c9_600, %c0_601] : memref<7x34x16xf32, #tpu.memory_space<vmem>>, vector<1x16x16xf32>
    %909 = vector.shape_cast %908 : vector<1x16x16xf32> to vector<16x16xf32>
    %c75 = arith.constant 75 : index
    %910 = memref.load %arg4[%c75] : memref<196xf32, #tpu.memory_space<smem>>
    %911 = vector.broadcast %910 : f32 to vector<16x16xf32>
    %912 = arith.mulf %909, %911 : vector<16x16xf32>
    %913 = arith.addf %889, %912 : vector<16x16xf32>
    %c6_602 = arith.constant 6 : index
    %c9_603 = arith.constant 9 : index
    %c0_604 = arith.constant 0 : index
    %914 = vector.load %arg12[%c6_602, %c9_603, %c0_604] : memref<7x34x16xf32, #tpu.memory_space<vmem>>, vector<1x16x16xf32>
    %915 = vector.shape_cast %914 : vector<1x16x16xf32> to vector<16x16xf32>
    %c76 = arith.constant 76 : index
    %916 = memref.load %arg4[%c76] : memref<196xf32, #tpu.memory_space<smem>>
    %917 = vector.broadcast %916 : f32 to vector<16x16xf32>
    %918 = arith.mulf %915, %917 : vector<16x16xf32>
    %919 = arith.addf %895, %918 : vector<16x16xf32>
    %c0_605 = arith.constant 0 : index
    %c12_606 = arith.constant 12 : index
    %c0_607 = arith.constant 0 : index
    %920 = vector.load %arg12[%c0_605, %c12_606, %c0_607] : memref<7x34x16xf32, #tpu.memory_space<vmem>>, vector<1x16x16xf32>
    %921 = vector.shape_cast %920 : vector<1x16x16xf32> to vector<16x16xf32>
    %c77 = arith.constant 77 : index
    %922 = memref.load %arg4[%c77] : memref<196xf32, #tpu.memory_space<smem>>
    %923 = vector.broadcast %922 : f32 to vector<16x16xf32>
    %924 = arith.mulf %921, %923 : vector<16x16xf32>
    %925 = arith.addf %901, %924 : vector<16x16xf32>
    %c1_608 = arith.constant 1 : index
    %c12_609 = arith.constant 12 : index
    %c0_610 = arith.constant 0 : index
    %926 = vector.load %arg12[%c1_608, %c12_609, %c0_610] : memref<7x34x16xf32, #tpu.memory_space<vmem>>, vector<1x16x16xf32>
    %927 = vector.shape_cast %926 : vector<1x16x16xf32> to vector<16x16xf32>
    %c78 = arith.constant 78 : index
    %928 = memref.load %arg4[%c78] : memref<196xf32, #tpu.memory_space<smem>>
    %929 = vector.broadcast %928 : f32 to vector<16x16xf32>
    %930 = arith.mulf %927, %929 : vector<16x16xf32>
    %931 = arith.addf %907, %930 : vector<16x16xf32>
    %c2_611 = arith.constant 2 : index
    %c12_612 = arith.constant 12 : index
    %c0_613 = arith.constant 0 : index
    %932 = vector.load %arg12[%c2_611, %c12_612, %c0_613] : memref<7x34x16xf32, #tpu.memory_space<vmem>>, vector<1x16x16xf32>
    %933 = vector.shape_cast %932 : vector<1x16x16xf32> to vector<16x16xf32>
    %c79 = arith.constant 79 : index
    %934 = memref.load %arg4[%c79] : memref<196xf32, #tpu.memory_space<smem>>
    %935 = vector.broadcast %934 : f32 to vector<16x16xf32>
    %936 = arith.mulf %933, %935 : vector<16x16xf32>
    %937 = arith.addf %913, %936 : vector<16x16xf32>
    %c3_614 = arith.constant 3 : index
    %c12_615 = arith.constant 12 : index
    %c0_616 = arith.constant 0 : index
    %938 = vector.load %arg12[%c3_614, %c12_615, %c0_616] : memref<7x34x16xf32, #tpu.memory_space<vmem>>, vector<1x16x16xf32>
    %939 = vector.shape_cast %938 : vector<1x16x16xf32> to vector<16x16xf32>
    %c80 = arith.constant 80 : index
    %940 = memref.load %arg4[%c80] : memref<196xf32, #tpu.memory_space<smem>>
    %941 = vector.broadcast %940 : f32 to vector<16x16xf32>
    %942 = arith.mulf %939, %941 : vector<16x16xf32>
    %943 = arith.addf %919, %942 : vector<16x16xf32>
    %c4_617 = arith.constant 4 : index
    %c12_618 = arith.constant 12 : index
    %c0_619 = arith.constant 0 : index
    %944 = vector.load %arg12[%c4_617, %c12_618, %c0_619] : memref<7x34x16xf32, #tpu.memory_space<vmem>>, vector<1x16x16xf32>
    %945 = vector.shape_cast %944 : vector<1x16x16xf32> to vector<16x16xf32>
    %c81 = arith.constant 81 : index
    %946 = memref.load %arg4[%c81] : memref<196xf32, #tpu.memory_space<smem>>
    %947 = vector.broadcast %946 : f32 to vector<16x16xf32>
    %948 = arith.mulf %945, %947 : vector<16x16xf32>
    %949 = arith.addf %925, %948 : vector<16x16xf32>
    %c5_620 = arith.constant 5 : index
    %c12_621 = arith.constant 12 : index
    %c0_622 = arith.constant 0 : index
    %950 = vector.load %arg12[%c5_620, %c12_621, %c0_622] : memref<7x34x16xf32, #tpu.memory_space<vmem>>, vector<1x16x16xf32>
    %951 = vector.shape_cast %950 : vector<1x16x16xf32> to vector<16x16xf32>
    %c82 = arith.constant 82 : index
    %952 = memref.load %arg4[%c82] : memref<196xf32, #tpu.memory_space<smem>>
    %953 = vector.broadcast %952 : f32 to vector<16x16xf32>
    %954 = arith.mulf %951, %953 : vector<16x16xf32>
    %955 = arith.addf %931, %954 : vector<16x16xf32>
    %c6_623 = arith.constant 6 : index
    %c12_624 = arith.constant 12 : index
    %c0_625 = arith.constant 0 : index
    %956 = vector.load %arg12[%c6_623, %c12_624, %c0_625] : memref<7x34x16xf32, #tpu.memory_space<vmem>>, vector<1x16x16xf32>
    %957 = vector.shape_cast %956 : vector<1x16x16xf32> to vector<16x16xf32>
    %c83 = arith.constant 83 : index
    %958 = memref.load %arg4[%c83] : memref<196xf32, #tpu.memory_space<smem>>
    %959 = vector.broadcast %958 : f32 to vector<16x16xf32>
    %960 = arith.mulf %957, %959 : vector<16x16xf32>
    %961 = arith.addf %937, %960 : vector<16x16xf32>
    %c0_626 = arith.constant 0 : index
    %c15_627 = arith.constant 15 : index
    %c0_628 = arith.constant 0 : index
    %962 = vector.load %arg12[%c0_626, %c15_627, %c0_628] : memref<7x34x16xf32, #tpu.memory_space<vmem>>, vector<1x16x16xf32>
    %963 = vector.shape_cast %962 : vector<1x16x16xf32> to vector<16x16xf32>
    %c84 = arith.constant 84 : index
    %964 = memref.load %arg4[%c84] : memref<196xf32, #tpu.memory_space<smem>>
    %965 = vector.broadcast %964 : f32 to vector<16x16xf32>
    %966 = arith.mulf %963, %965 : vector<16x16xf32>
    %967 = arith.addf %943, %966 : vector<16x16xf32>
    %c1_629 = arith.constant 1 : index
    %c15_630 = arith.constant 15 : index
    %c0_631 = arith.constant 0 : index
    %968 = vector.load %arg12[%c1_629, %c15_630, %c0_631] : memref<7x34x16xf32, #tpu.memory_space<vmem>>, vector<1x16x16xf32>
    %969 = vector.shape_cast %968 : vector<1x16x16xf32> to vector<16x16xf32>
    %c85 = arith.constant 85 : index
    %970 = memref.load %arg4[%c85] : memref<196xf32, #tpu.memory_space<smem>>
    %971 = vector.broadcast %970 : f32 to vector<16x16xf32>
    %972 = arith.mulf %969, %971 : vector<16x16xf32>
    %973 = arith.addf %949, %972 : vector<16x16xf32>
    %c2_632 = arith.constant 2 : index
    %c15_633 = arith.constant 15 : index
    %c0_634 = arith.constant 0 : index
    %974 = vector.load %arg12[%c2_632, %c15_633, %c0_634] : memref<7x34x16xf32, #tpu.memory_space<vmem>>, vector<1x16x16xf32>
    %975 = vector.shape_cast %974 : vector<1x16x16xf32> to vector<16x16xf32>
    %c86 = arith.constant 86 : index
    %976 = memref.load %arg4[%c86] : memref<196xf32, #tpu.memory_space<smem>>
    %977 = vector.broadcast %976 : f32 to vector<16x16xf32>
    %978 = arith.mulf %975, %977 : vector<16x16xf32>
    %979 = arith.addf %955, %978 : vector<16x16xf32>
    %c3_635 = arith.constant 3 : index
    %c15_636 = arith.constant 15 : index
    %c0_637 = arith.constant 0 : index
    %980 = vector.load %arg12[%c3_635, %c15_636, %c0_637] : memref<7x34x16xf32, #tpu.memory_space<vmem>>, vector<1x16x16xf32>
    %981 = vector.shape_cast %980 : vector<1x16x16xf32> to vector<16x16xf32>
    %c87 = arith.constant 87 : index
    %982 = memref.load %arg4[%c87] : memref<196xf32, #tpu.memory_space<smem>>
    %983 = vector.broadcast %982 : f32 to vector<16x16xf32>
    %984 = arith.mulf %981, %983 : vector<16x16xf32>
    %985 = arith.addf %961, %984 : vector<16x16xf32>
    %c4_638 = arith.constant 4 : index
    %c15_639 = arith.constant 15 : index
    %c0_640 = arith.constant 0 : index
    %986 = vector.load %arg12[%c4_638, %c15_639, %c0_640] : memref<7x34x16xf32, #tpu.memory_space<vmem>>, vector<1x16x16xf32>
    %987 = vector.shape_cast %986 : vector<1x16x16xf32> to vector<16x16xf32>
    %c88 = arith.constant 88 : index
    %988 = memref.load %arg4[%c88] : memref<196xf32, #tpu.memory_space<smem>>
    %989 = vector.broadcast %988 : f32 to vector<16x16xf32>
    %990 = arith.mulf %987, %989 : vector<16x16xf32>
    %991 = arith.addf %967, %990 : vector<16x16xf32>
    %c5_641 = arith.constant 5 : index
    %c15_642 = arith.constant 15 : index
    %c0_643 = arith.constant 0 : index
    %992 = vector.load %arg12[%c5_641, %c15_642, %c0_643] : memref<7x34x16xf32, #tpu.memory_space<vmem>>, vector<1x16x16xf32>
    %993 = vector.shape_cast %992 : vector<1x16x16xf32> to vector<16x16xf32>
    %c89 = arith.constant 89 : index
    %994 = memref.load %arg4[%c89] : memref<196xf32, #tpu.memory_space<smem>>
    %995 = vector.broadcast %994 : f32 to vector<16x16xf32>
    %996 = arith.mulf %993, %995 : vector<16x16xf32>
    %997 = arith.addf %973, %996 : vector<16x16xf32>
    %c6_644 = arith.constant 6 : index
    %c15_645 = arith.constant 15 : index
    %c0_646 = arith.constant 0 : index
    %998 = vector.load %arg12[%c6_644, %c15_645, %c0_646] : memref<7x34x16xf32, #tpu.memory_space<vmem>>, vector<1x16x16xf32>
    %999 = vector.shape_cast %998 : vector<1x16x16xf32> to vector<16x16xf32>
    %c90 = arith.constant 90 : index
    %1000 = memref.load %arg4[%c90] : memref<196xf32, #tpu.memory_space<smem>>
    %1001 = vector.broadcast %1000 : f32 to vector<16x16xf32>
    %1002 = arith.mulf %999, %1001 : vector<16x16xf32>
    %1003 = arith.addf %979, %1002 : vector<16x16xf32>
    %c0_647 = arith.constant 0 : index
    %c18_648 = arith.constant 18 : index
    %c0_649 = arith.constant 0 : index
    %1004 = vector.load %arg12[%c0_647, %c18_648, %c0_649] : memref<7x34x16xf32, #tpu.memory_space<vmem>>, vector<1x16x16xf32>
    %1005 = vector.shape_cast %1004 : vector<1x16x16xf32> to vector<16x16xf32>
    %c91 = arith.constant 91 : index
    %1006 = memref.load %arg4[%c91] : memref<196xf32, #tpu.memory_space<smem>>
    %1007 = vector.broadcast %1006 : f32 to vector<16x16xf32>
    %1008 = arith.mulf %1005, %1007 : vector<16x16xf32>
    %1009 = arith.addf %985, %1008 : vector<16x16xf32>
    %c1_650 = arith.constant 1 : index
    %c18_651 = arith.constant 18 : index
    %c0_652 = arith.constant 0 : index
    %1010 = vector.load %arg12[%c1_650, %c18_651, %c0_652] : memref<7x34x16xf32, #tpu.memory_space<vmem>>, vector<1x16x16xf32>
    %1011 = vector.shape_cast %1010 : vector<1x16x16xf32> to vector<16x16xf32>
    %c92 = arith.constant 92 : index
    %1012 = memref.load %arg4[%c92] : memref<196xf32, #tpu.memory_space<smem>>
    %1013 = vector.broadcast %1012 : f32 to vector<16x16xf32>
    %1014 = arith.mulf %1011, %1013 : vector<16x16xf32>
    %1015 = arith.addf %991, %1014 : vector<16x16xf32>
    %c2_653 = arith.constant 2 : index
    %c18_654 = arith.constant 18 : index
    %c0_655 = arith.constant 0 : index
    %1016 = vector.load %arg12[%c2_653, %c18_654, %c0_655] : memref<7x34x16xf32, #tpu.memory_space<vmem>>, vector<1x16x16xf32>
    %1017 = vector.shape_cast %1016 : vector<1x16x16xf32> to vector<16x16xf32>
    %c93 = arith.constant 93 : index
    %1018 = memref.load %arg4[%c93] : memref<196xf32, #tpu.memory_space<smem>>
    %1019 = vector.broadcast %1018 : f32 to vector<16x16xf32>
    %1020 = arith.mulf %1017, %1019 : vector<16x16xf32>
    %1021 = arith.addf %997, %1020 : vector<16x16xf32>
    %c3_656 = arith.constant 3 : index
    %c18_657 = arith.constant 18 : index
    %c0_658 = arith.constant 0 : index
    %1022 = vector.load %arg12[%c3_656, %c18_657, %c0_658] : memref<7x34x16xf32, #tpu.memory_space<vmem>>, vector<1x16x16xf32>
    %1023 = vector.shape_cast %1022 : vector<1x16x16xf32> to vector<16x16xf32>
    %c94 = arith.constant 94 : index
    %1024 = memref.load %arg4[%c94] : memref<196xf32, #tpu.memory_space<smem>>
    %1025 = vector.broadcast %1024 : f32 to vector<16x16xf32>
    %1026 = arith.mulf %1023, %1025 : vector<16x16xf32>
    %1027 = arith.addf %1003, %1026 : vector<16x16xf32>
    %c4_659 = arith.constant 4 : index
    %c18_660 = arith.constant 18 : index
    %c0_661 = arith.constant 0 : index
    %1028 = vector.load %arg12[%c4_659, %c18_660, %c0_661] : memref<7x34x16xf32, #tpu.memory_space<vmem>>, vector<1x16x16xf32>
    %1029 = vector.shape_cast %1028 : vector<1x16x16xf32> to vector<16x16xf32>
    %c95 = arith.constant 95 : index
    %1030 = memref.load %arg4[%c95] : memref<196xf32, #tpu.memory_space<smem>>
    %1031 = vector.broadcast %1030 : f32 to vector<16x16xf32>
    %1032 = arith.mulf %1029, %1031 : vector<16x16xf32>
    %1033 = arith.addf %1009, %1032 : vector<16x16xf32>
    %c5_662 = arith.constant 5 : index
    %c18_663 = arith.constant 18 : index
    %c0_664 = arith.constant 0 : index
    %1034 = vector.load %arg12[%c5_662, %c18_663, %c0_664] : memref<7x34x16xf32, #tpu.memory_space<vmem>>, vector<1x16x16xf32>
    %1035 = vector.shape_cast %1034 : vector<1x16x16xf32> to vector<16x16xf32>
    %c96 = arith.constant 96 : index
    %1036 = memref.load %arg4[%c96] : memref<196xf32, #tpu.memory_space<smem>>
    %1037 = vector.broadcast %1036 : f32 to vector<16x16xf32>
    %1038 = arith.mulf %1035, %1037 : vector<16x16xf32>
    %1039 = arith.addf %1015, %1038 : vector<16x16xf32>
    %c6_665 = arith.constant 6 : index
    %c18_666 = arith.constant 18 : index
    %c0_667 = arith.constant 0 : index
    %1040 = vector.load %arg12[%c6_665, %c18_666, %c0_667] : memref<7x34x16xf32, #tpu.memory_space<vmem>>, vector<1x16x16xf32>
    %1041 = vector.shape_cast %1040 : vector<1x16x16xf32> to vector<16x16xf32>
    %c97 = arith.constant 97 : index
    %1042 = memref.load %arg4[%c97] : memref<196xf32, #tpu.memory_space<smem>>
    %1043 = vector.broadcast %1042 : f32 to vector<16x16xf32>
    %1044 = arith.mulf %1041, %1043 : vector<16x16xf32>
    %1045 = arith.addf %1021, %1044 : vector<16x16xf32>
    %1046 = arith.addf %1045, %1027 : vector<16x16xf32>
    %1047 = arith.addf %1046, %1033 : vector<16x16xf32>
    %1048 = arith.addf %1047, %1039 : vector<16x16xf32>
    %c1_668 = arith.constant 1 : index
    %1049 = memref.load %arg5[%c1_668] : memref<4xf32, #tpu.memory_space<smem>>
    %1050 = vector.broadcast %1049 : f32 to vector<16x16xf32>
    %1051 = arith.addf %1048, %1050 : vector<16x16xf32>
    %c4_669 = arith.constant 4 : index
    %1052 = memref.load %arg6[%c4_669] : memref<16xf32, #tpu.memory_space<smem>>
    %1053 = vector.broadcast %1052 : f32 to vector<16x16xf32>
    %1054 = arith.mulf %1051, %1053 : vector<16x16xf32>
    %c0_670 = arith.constant 0 : index
    %c0_671 = arith.constant 0 : index
    %c0_672 = arith.constant 0 : index
    %c0_673 = arith.constant 0 : index
    %1055 = vector.load %arg8[%c0_670, %c0_671, %c0_672, %c0_673] : memref<1x4x16x16xf32, #tpu.memory_space<vmem>>, vector<1x1x16x16xf32>
    %1056 = vector.shape_cast %1055 : vector<1x1x16x16xf32> to vector<16x16xf32>
    %1057 = arith.addf %1056, %1054 : vector<16x16xf32>
    %c0_674 = arith.constant 0 : index
    %c0_675 = arith.constant 0 : index
    %c0_676 = arith.constant 0 : index
    %c0_677 = arith.constant 0 : index
    %1058 = vector.load %arg8[%c0_674, %c0_675, %c0_676, %c0_677] : memref<1x4x16x16xf32, #tpu.memory_space<vmem>>, vector<1x1x16x16xf32>
    %1059 = vector.shape_cast %1058 : vector<1x1x16x16xf32> to vector<16x16xf32>
    %1060 = vector.shape_cast %1057 : vector<16x16xf32> to vector<1x1x16x16xf32>
    tpu.vector_store %arg8[%c0_674, %c0_675, %c0_676, %c0_677], %1060 {strides = array<i32>} : memref<1x4x16x16xf32, #tpu.memory_space<vmem>>, vector<1x1x16x16xf32>,
    %c5_678 = arith.constant 5 : index
    %1061 = memref.load %arg6[%c5_678] : memref<16xf32, #tpu.memory_space<smem>>
    %1062 = vector.broadcast %1061 : f32 to vector<16x16xf32>
    %1063 = arith.mulf %1051, %1062 : vector<16x16xf32>
    %c0_679 = arith.constant 0 : index
    %c1_680 = arith.constant 1 : index
    %c0_681 = arith.constant 0 : index
    %c0_682 = arith.constant 0 : index
    %1064 = vector.load %arg8[%c0_679, %c1_680, %c0_681, %c0_682] : memref<1x4x16x16xf32, #tpu.memory_space<vmem>>, vector<1x1x16x16xf32>
    %1065 = vector.shape_cast %1064 : vector<1x1x16x16xf32> to vector<16x16xf32>
    %1066 = arith.addf %1065, %1063 : vector<16x16xf32>
    %c0_683 = arith.constant 0 : index
    %c1_684 = arith.constant 1 : index
    %c0_685 = arith.constant 0 : index
    %c0_686 = arith.constant 0 : index
    %1067 = vector.load %arg8[%c0_683, %c1_684, %c0_685, %c0_686] : memref<1x4x16x16xf32, #tpu.memory_space<vmem>>, vector<1x1x16x16xf32>
    %1068 = vector.shape_cast %1067 : vector<1x1x16x16xf32> to vector<16x16xf32>
    %1069 = vector.shape_cast %1066 : vector<16x16xf32> to vector<1x1x16x16xf32>
    tpu.vector_store %arg8[%c0_683, %c1_684, %c0_685, %c0_686], %1069 {strides = array<i32>} : memref<1x4x16x16xf32, #tpu.memory_space<vmem>>, vector<1x1x16x16xf32>,
    %c6_687 = arith.constant 6 : index
    %1070 = memref.load %arg6[%c6_687] : memref<16xf32, #tpu.memory_space<smem>>
    %1071 = vector.broadcast %1070 : f32 to vector<16x16xf32>
    %1072 = arith.mulf %1051, %1071 : vector<16x16xf32>
    %c0_688 = arith.constant 0 : index
    %c2_689 = arith.constant 2 : index
    %c0_690 = arith.constant 0 : index
    %c0_691 = arith.constant 0 : index
    %1073 = vector.load %arg8[%c0_688, %c2_689, %c0_690, %c0_691] : memref<1x4x16x16xf32, #tpu.memory_space<vmem>>, vector<1x1x16x16xf32>
    %1074 = vector.shape_cast %1073 : vector<1x1x16x16xf32> to vector<16x16xf32>
    %1075 = arith.addf %1074, %1072 : vector<16x16xf32>
    %c0_692 = arith.constant 0 : index
    %c2_693 = arith.constant 2 : index
    %c0_694 = arith.constant 0 : index
    %c0_695 = arith.constant 0 : index
    %1076 = vector.load %arg8[%c0_692, %c2_693, %c0_694, %c0_695] : memref<1x4x16x16xf32, #tpu.memory_space<vmem>>, vector<1x1x16x16xf32>
    %1077 = vector.shape_cast %1076 : vector<1x1x16x16xf32> to vector<16x16xf32>
    %1078 = vector.shape_cast %1075 : vector<16x16xf32> to vector<1x1x16x16xf32>
    tpu.vector_store %arg8[%c0_692, %c2_693, %c0_694, %c0_695], %1078 {strides = array<i32>} : memref<1x4x16x16xf32, #tpu.memory_space<vmem>>, vector<1x1x16x16xf32>,
    %c7_696 = arith.constant 7 : index
    %1079 = memref.load %arg6[%c7_696] : memref<16xf32, #tpu.memory_space<smem>>
    %1080 = vector.broadcast %1079 : f32 to vector<16x16xf32>
    %1081 = arith.mulf %1051, %1080 : vector<16x16xf32>
    %c0_697 = arith.constant 0 : index
    %c3_698 = arith.constant 3 : index
    %c0_699 = arith.constant 0 : index
    %c0_700 = arith.constant 0 : index
    %1082 = vector.load %arg8[%c0_697, %c3_698, %c0_699, %c0_700] : memref<1x4x16x16xf32, #tpu.memory_space<vmem>>, vector<1x1x16x16xf32>
    %1083 = vector.shape_cast %1082 : vector<1x1x16x16xf32> to vector<16x16xf32>
    %1084 = arith.addf %1083, %1081 : vector<16x16xf32>
    %c0_701 = arith.constant 0 : index
    %c3_702 = arith.constant 3 : index
    %c0_703 = arith.constant 0 : index
    %c0_704 = arith.constant 0 : index
    %1085 = vector.load %arg8[%c0_701, %c3_702, %c0_703, %c0_704] : memref<1x4x16x16xf32, #tpu.memory_space<vmem>>, vector<1x1x16x16xf32>
    %1086 = vector.shape_cast %1085 : vector<1x1x16x16xf32> to vector<16x16xf32>
    %1087 = vector.shape_cast %1084 : vector<16x16xf32> to vector<1x1x16x16xf32>
    tpu.vector_store %arg8[%c0_701, %c3_702, %c0_703, %c0_704], %1087 {strides = array<i32>} : memref<1x4x16x16xf32, #tpu.memory_space<vmem>>, vector<1x1x16x16xf32>,
    %c0_705 = arith.constant 0 : index
    %c2_706 = arith.constant 2 : index
    %c0_707 = arith.constant 0 : index
    %c0_708 = arith.constant 0 : index
    %1088 = vector.load %arg1[%c0_705, %c2_706, %c0_707, %c0_708] : memref<1x4x16x16xf32, #tpu.memory_space<vmem>>, vector<1x1x16x16xf32>
    %1089 = vector.shape_cast %1088 : vector<1x1x16x16xf32> to vector<16x16xf32>
    %c8_709 = arith.constant 8 : index
    %c128_710 = arith.constant 128 : index
    %1090 = vector.load %arg9[%c8_709, %c128_710] : memref<26x146xf32, #tpu.memory_space<vmem>>, vector<16x16xf32>
    tpu.vector_store %arg9[%c8_709, %c128_710], %1089 {strides = array<i32>} : memref<26x146xf32, #tpu.memory_space<vmem>>, vector<16x16xf32>,
    %c6_711 = arith.constant 6 : index
    %c126_712 = arith.constant 126 : index
    %1091 = vector.load %arg9[%c6_711, %c126_712] : memref<26x146xf32, #tpu.memory_space<vmem>>, vector<20x16xf32>
    %c0_713 = arith.constant 0 : index
    %c0_714 = arith.constant 0 : index
    %c0_715 = arith.constant 0 : index
    %1092 = vector.load %arg10[%c0_713, %c0_714, %c0_715] : memref<5x20x16xf32, #tpu.memory_space<vmem>>, vector<1x20x16xf32>
    %1093 = vector.shape_cast %1092 : vector<1x20x16xf32> to vector<20x16xf32>
    %1094 = vector.shape_cast %1091 : vector<20x16xf32> to vector<1x20x16xf32>
    tpu.vector_store %arg10[%c0_713, %c0_714, %c0_715], %1094 {strides = array<i32>} : memref<5x20x16xf32, #tpu.memory_space<vmem>>, vector<1x20x16xf32>,
    %c6_716 = arith.constant 6 : index
    %c127_717 = arith.constant 127 : index
    %1095 = vector.load %arg9[%c6_716, %c127_717] : memref<26x146xf32, #tpu.memory_space<vmem>>, vector<20x16xf32>
    %c1_718 = arith.constant 1 : index
    %c0_719 = arith.constant 0 : index
    %c0_720 = arith.constant 0 : index
    %1096 = vector.load %arg10[%c1_718, %c0_719, %c0_720] : memref<5x20x16xf32, #tpu.memory_space<vmem>>, vector<1x20x16xf32>
    %1097 = vector.shape_cast %1096 : vector<1x20x16xf32> to vector<20x16xf32>
    %1098 = vector.shape_cast %1095 : vector<20x16xf32> to vector<1x20x16xf32>
    tpu.vector_store %arg10[%c1_718, %c0_719, %c0_720], %1098 {strides = array<i32>} : memref<5x20x16xf32, #tpu.memory_space<vmem>>, vector<1x20x16xf32>,
    %c6_721 = arith.constant 6 : index
    %c128_722 = arith.constant 128 : index
    %1099 = vector.load %arg9[%c6_721, %c128_722] : memref<26x146xf32, #tpu.memory_space<vmem>>, vector<20x16xf32>
    %c2_723 = arith.constant 2 : index
    %c0_724 = arith.constant 0 : index
    %c0_725 = arith.constant 0 : index
    %1100 = vector.load %arg10[%c2_723, %c0_724, %c0_725] : memref<5x20x16xf32, #tpu.memory_space<vmem>>, vector<1x20x16xf32>
    %1101 = vector.shape_cast %1100 : vector<1x20x16xf32> to vector<20x16xf32>
    %1102 = vector.shape_cast %1099 : vector<20x16xf32> to vector<1x20x16xf32>
    tpu.vector_store %arg10[%c2_723, %c0_724, %c0_725], %1102 {strides = array<i32>} : memref<5x20x16xf32, #tpu.memory_space<vmem>>, vector<1x20x16xf32>,
    %c6_726 = arith.constant 6 : index
    %c129_727 = arith.constant 129 : index
    %1103 = vector.load %arg9[%c6_726, %c129_727] : memref<26x146xf32, #tpu.memory_space<vmem>>, vector<20x16xf32>
    %c3_728 = arith.constant 3 : index
    %c0_729 = arith.constant 0 : index
    %c0_730 = arith.constant 0 : index
    %1104 = vector.load %arg10[%c3_728, %c0_729, %c0_730] : memref<5x20x16xf32, #tpu.memory_space<vmem>>, vector<1x20x16xf32>
    %1105 = vector.shape_cast %1104 : vector<1x20x16xf32> to vector<20x16xf32>
    %1106 = vector.shape_cast %1103 : vector<20x16xf32> to vector<1x20x16xf32>
    tpu.vector_store %arg10[%c3_728, %c0_729, %c0_730], %1106 {strides = array<i32>} : memref<5x20x16xf32, #tpu.memory_space<vmem>>, vector<1x20x16xf32>,
    %c6_731 = arith.constant 6 : index
    %c130_732 = arith.constant 130 : index
    %1107 = vector.load %arg9[%c6_731, %c130_732] : memref<26x146xf32, #tpu.memory_space<vmem>>, vector<20x16xf32>
    %c4_733 = arith.constant 4 : index
    %c0_734 = arith.constant 0 : index
    %c0_735 = arith.constant 0 : index
    %1108 = vector.load %arg10[%c4_733, %c0_734, %c0_735] : memref<5x20x16xf32, #tpu.memory_space<vmem>>, vector<1x20x16xf32>
    %1109 = vector.shape_cast %1108 : vector<1x20x16xf32> to vector<20x16xf32>
    %1110 = vector.shape_cast %1107 : vector<20x16xf32> to vector<1x20x16xf32>
    tpu.vector_store %arg10[%c4_733, %c0_734, %c0_735], %1110 {strides = array<i32>} : memref<5x20x16xf32, #tpu.memory_space<vmem>>, vector<1x20x16xf32>,
    %c0_736 = arith.constant 0 : index
    %c0_737 = arith.constant 0 : index
    %c0_738 = arith.constant 0 : index
    %1111 = vector.load %arg10[%c0_736, %c0_737, %c0_738] : memref<5x20x16xf32, #tpu.memory_space<vmem>>, vector<1x16x16xf32>
    %1112 = vector.shape_cast %1111 : vector<1x16x16xf32> to vector<16x16xf32>
    %c50_739 = arith.constant 50 : index
    %1113 = memref.load %arg2[%c50_739] : memref<100xf32, #tpu.memory_space<smem>>
    %1114 = vector.broadcast %1113 : f32 to vector<16x16xf32>
    %1115 = arith.mulf %1112, %1114 : vector<16x16xf32>
    %c1_740 = arith.constant 1 : index
    %c0_741 = arith.constant 0 : index
    %c0_742 = arith.constant 0 : index
    %1116 = vector.load %arg10[%c1_740, %c0_741, %c0_742] : memref<5x20x16xf32, #tpu.memory_space<vmem>>, vector<1x16x16xf32>
    %1117 = vector.shape_cast %1116 : vector<1x16x16xf32> to vector<16x16xf32>
    %c51_743 = arith.constant 51 : index
    %1118 = memref.load %arg2[%c51_743] : memref<100xf32, #tpu.memory_space<smem>>
    %1119 = vector.broadcast %1118 : f32 to vector<16x16xf32>
    %1120 = arith.mulf %1117, %1119 : vector<16x16xf32>
    %c2_744 = arith.constant 2 : index
    %c0_745 = arith.constant 0 : index
    %c0_746 = arith.constant 0 : index
    %1121 = vector.load %arg10[%c2_744, %c0_745, %c0_746] : memref<5x20x16xf32, #tpu.memory_space<vmem>>, vector<1x16x16xf32>
    %1122 = vector.shape_cast %1121 : vector<1x16x16xf32> to vector<16x16xf32>
    %c52_747 = arith.constant 52 : index
    %1123 = memref.load %arg2[%c52_747] : memref<100xf32, #tpu.memory_space<smem>>
    %1124 = vector.broadcast %1123 : f32 to vector<16x16xf32>
    %1125 = arith.mulf %1122, %1124 : vector<16x16xf32>
    %c3_748 = arith.constant 3 : index
    %c0_749 = arith.constant 0 : index
    %c0_750 = arith.constant 0 : index
    %1126 = vector.load %arg10[%c3_748, %c0_749, %c0_750] : memref<5x20x16xf32, #tpu.memory_space<vmem>>, vector<1x16x16xf32>
    %1127 = vector.shape_cast %1126 : vector<1x16x16xf32> to vector<16x16xf32>
    %c53_751 = arith.constant 53 : index
    %1128 = memref.load %arg2[%c53_751] : memref<100xf32, #tpu.memory_space<smem>>
    %1129 = vector.broadcast %1128 : f32 to vector<16x16xf32>
    %1130 = arith.mulf %1127, %1129 : vector<16x16xf32>
    %c4_752 = arith.constant 4 : index
    %c0_753 = arith.constant 0 : index
    %c0_754 = arith.constant 0 : index
    %1131 = vector.load %arg10[%c4_752, %c0_753, %c0_754] : memref<5x20x16xf32, #tpu.memory_space<vmem>>, vector<1x16x16xf32>
    %1132 = vector.shape_cast %1131 : vector<1x16x16xf32> to vector<16x16xf32>
    %c54_755 = arith.constant 54 : index
    %1133 = memref.load %arg2[%c54_755] : memref<100xf32, #tpu.memory_space<smem>>
    %1134 = vector.broadcast %1133 : f32 to vector<16x16xf32>
    %1135 = arith.mulf %1132, %1134 : vector<16x16xf32>
    %1136 = arith.addf %1115, %1135 : vector<16x16xf32>
    %c0_756 = arith.constant 0 : index
    %c1_757 = arith.constant 1 : index
    %c0_758 = arith.constant 0 : index
    %1137 = vector.load %arg10[%c0_756, %c1_757, %c0_758] : memref<5x20x16xf32, #tpu.memory_space<vmem>>, vector<1x16x16xf32>
    %1138 = vector.shape_cast %1137 : vector<1x16x16xf32> to vector<16x16xf32>
    %c55_759 = arith.constant 55 : index
    %1139 = memref.load %arg2[%c55_759] : memref<100xf32, #tpu.memory_space<smem>>
    %1140 = vector.broadcast %1139 : f32 to vector<16x16xf32>
    %1141 = arith.mulf %1138, %1140 : vector<16x16xf32>
    %1142 = arith.addf %1120, %1141 : vector<16x16xf32>
    %c1_760 = arith.constant 1 : index
    %c1_761 = arith.constant 1 : index
    %c0_762 = arith.constant 0 : index
    %1143 = vector.load %arg10[%c1_760, %c1_761, %c0_762] : memref<5x20x16xf32, #tpu.memory_space<vmem>>, vector<1x16x16xf32>
    %1144 = vector.shape_cast %1143 : vector<1x16x16xf32> to vector<16x16xf32>
    %c56_763 = arith.constant 56 : index
    %1145 = memref.load %arg2[%c56_763] : memref<100xf32, #tpu.memory_space<smem>>
    %1146 = vector.broadcast %1145 : f32 to vector<16x16xf32>
    %1147 = arith.mulf %1144, %1146 : vector<16x16xf32>
    %1148 = arith.addf %1125, %1147 : vector<16x16xf32>
    %c2_764 = arith.constant 2 : index
    %c1_765 = arith.constant 1 : index
    %c0_766 = arith.constant 0 : index
    %1149 = vector.load %arg10[%c2_764, %c1_765, %c0_766] : memref<5x20x16xf32, #tpu.memory_space<vmem>>, vector<1x16x16xf32>
    %1150 = vector.shape_cast %1149 : vector<1x16x16xf32> to vector<16x16xf32>
    %c57_767 = arith.constant 57 : index
    %1151 = memref.load %arg2[%c57_767] : memref<100xf32, #tpu.memory_space<smem>>
    %1152 = vector.broadcast %1151 : f32 to vector<16x16xf32>
    %1153 = arith.mulf %1150, %1152 : vector<16x16xf32>
    %1154 = arith.addf %1130, %1153 : vector<16x16xf32>
    %c3_768 = arith.constant 3 : index
    %c1_769 = arith.constant 1 : index
    %c0_770 = arith.constant 0 : index
    %1155 = vector.load %arg10[%c3_768, %c1_769, %c0_770] : memref<5x20x16xf32, #tpu.memory_space<vmem>>, vector<1x16x16xf32>
    %1156 = vector.shape_cast %1155 : vector<1x16x16xf32> to vector<16x16xf32>
    %c58_771 = arith.constant 58 : index
    %1157 = memref.load %arg2[%c58_771] : memref<100xf32, #tpu.memory_space<smem>>
    %1158 = vector.broadcast %1157 : f32 to vector<16x16xf32>
    %1159 = arith.mulf %1156, %1158 : vector<16x16xf32>
    %1160 = arith.addf %1136, %1159 : vector<16x16xf32>
    %c4_772 = arith.constant 4 : index
    %c1_773 = arith.constant 1 : index
    %c0_774 = arith.constant 0 : index
    %1161 = vector.load %arg10[%c4_772, %c1_773, %c0_774] : memref<5x20x16xf32, #tpu.memory_space<vmem>>, vector<1x16x16xf32>
    %1162 = vector.shape_cast %1161 : vector<1x16x16xf32> to vector<16x16xf32>
    %c59_775 = arith.constant 59 : index
    %1163 = memref.load %arg2[%c59_775] : memref<100xf32, #tpu.memory_space<smem>>
    %1164 = vector.broadcast %1163 : f32 to vector<16x16xf32>
    %1165 = arith.mulf %1162, %1164 : vector<16x16xf32>
    %1166 = arith.addf %1142, %1165 : vector<16x16xf32>
    %c0_776 = arith.constant 0 : index
    %c2_777 = arith.constant 2 : index
    %c0_778 = arith.constant 0 : index
    %1167 = vector.load %arg10[%c0_776, %c2_777, %c0_778] : memref<5x20x16xf32, #tpu.memory_space<vmem>>, vector<1x16x16xf32>
    %1168 = vector.shape_cast %1167 : vector<1x16x16xf32> to vector<16x16xf32>
    %c60_779 = arith.constant 60 : index
    %1169 = memref.load %arg2[%c60_779] : memref<100xf32, #tpu.memory_space<smem>>
    %1170 = vector.broadcast %1169 : f32 to vector<16x16xf32>
    %1171 = arith.mulf %1168, %1170 : vector<16x16xf32>
    %1172 = arith.addf %1148, %1171 : vector<16x16xf32>
    %c1_780 = arith.constant 1 : index
    %c2_781 = arith.constant 2 : index
    %c0_782 = arith.constant 0 : index
    %1173 = vector.load %arg10[%c1_780, %c2_781, %c0_782] : memref<5x20x16xf32, #tpu.memory_space<vmem>>, vector<1x16x16xf32>
    %1174 = vector.shape_cast %1173 : vector<1x16x16xf32> to vector<16x16xf32>
    %c61_783 = arith.constant 61 : index
    %1175 = memref.load %arg2[%c61_783] : memref<100xf32, #tpu.memory_space<smem>>
    %1176 = vector.broadcast %1175 : f32 to vector<16x16xf32>
    %1177 = arith.mulf %1174, %1176 : vector<16x16xf32>
    %1178 = arith.addf %1154, %1177 : vector<16x16xf32>
    %c2_784 = arith.constant 2 : index
    %c2_785 = arith.constant 2 : index
    %c0_786 = arith.constant 0 : index
    %1179 = vector.load %arg10[%c2_784, %c2_785, %c0_786] : memref<5x20x16xf32, #tpu.memory_space<vmem>>, vector<1x16x16xf32>
    %1180 = vector.shape_cast %1179 : vector<1x16x16xf32> to vector<16x16xf32>
    %c62_787 = arith.constant 62 : index
    %1181 = memref.load %arg2[%c62_787] : memref<100xf32, #tpu.memory_space<smem>>
    %1182 = vector.broadcast %1181 : f32 to vector<16x16xf32>
    %1183 = arith.mulf %1180, %1182 : vector<16x16xf32>
    %1184 = arith.addf %1160, %1183 : vector<16x16xf32>
    %c3_788 = arith.constant 3 : index
    %c2_789 = arith.constant 2 : index
    %c0_790 = arith.constant 0 : index
    %1185 = vector.load %arg10[%c3_788, %c2_789, %c0_790] : memref<5x20x16xf32, #tpu.memory_space<vmem>>, vector<1x16x16xf32>
    %1186 = vector.shape_cast %1185 : vector<1x16x16xf32> to vector<16x16xf32>
    %c63_791 = arith.constant 63 : index
    %1187 = memref.load %arg2[%c63_791] : memref<100xf32, #tpu.memory_space<smem>>
    %1188 = vector.broadcast %1187 : f32 to vector<16x16xf32>
    %1189 = arith.mulf %1186, %1188 : vector<16x16xf32>
    %1190 = arith.addf %1166, %1189 : vector<16x16xf32>
    %c4_792 = arith.constant 4 : index
    %c2_793 = arith.constant 2 : index
    %c0_794 = arith.constant 0 : index
    %1191 = vector.load %arg10[%c4_792, %c2_793, %c0_794] : memref<5x20x16xf32, #tpu.memory_space<vmem>>, vector<1x16x16xf32>
    %1192 = vector.shape_cast %1191 : vector<1x16x16xf32> to vector<16x16xf32>
    %c64_795 = arith.constant 64 : index
    %1193 = memref.load %arg2[%c64_795] : memref<100xf32, #tpu.memory_space<smem>>
    %1194 = vector.broadcast %1193 : f32 to vector<16x16xf32>
    %1195 = arith.mulf %1192, %1194 : vector<16x16xf32>
    %1196 = arith.addf %1172, %1195 : vector<16x16xf32>
    %c0_796 = arith.constant 0 : index
    %c3_797 = arith.constant 3 : index
    %c0_798 = arith.constant 0 : index
    %1197 = vector.load %arg10[%c0_796, %c3_797, %c0_798] : memref<5x20x16xf32, #tpu.memory_space<vmem>>, vector<1x16x16xf32>
    %1198 = vector.shape_cast %1197 : vector<1x16x16xf32> to vector<16x16xf32>
    %c65_799 = arith.constant 65 : index
    %1199 = memref.load %arg2[%c65_799] : memref<100xf32, #tpu.memory_space<smem>>
    %1200 = vector.broadcast %1199 : f32 to vector<16x16xf32>
    %1201 = arith.mulf %1198, %1200 : vector<16x16xf32>
    %1202 = arith.addf %1178, %1201 : vector<16x16xf32>
    %c1_800 = arith.constant 1 : index
    %c3_801 = arith.constant 3 : index
    %c0_802 = arith.constant 0 : index
    %1203 = vector.load %arg10[%c1_800, %c3_801, %c0_802] : memref<5x20x16xf32, #tpu.memory_space<vmem>>, vector<1x16x16xf32>
    %1204 = vector.shape_cast %1203 : vector<1x16x16xf32> to vector<16x16xf32>
    %c66_803 = arith.constant 66 : index
    %1205 = memref.load %arg2[%c66_803] : memref<100xf32, #tpu.memory_space<smem>>
    %1206 = vector.broadcast %1205 : f32 to vector<16x16xf32>
    %1207 = arith.mulf %1204, %1206 : vector<16x16xf32>
    %1208 = arith.addf %1184, %1207 : vector<16x16xf32>
    %c2_804 = arith.constant 2 : index
    %c3_805 = arith.constant 3 : index
    %c0_806 = arith.constant 0 : index
    %1209 = vector.load %arg10[%c2_804, %c3_805, %c0_806] : memref<5x20x16xf32, #tpu.memory_space<vmem>>, vector<1x16x16xf32>
    %1210 = vector.shape_cast %1209 : vector<1x16x16xf32> to vector<16x16xf32>
    %c67_807 = arith.constant 67 : index
    %1211 = memref.load %arg2[%c67_807] : memref<100xf32, #tpu.memory_space<smem>>
    %1212 = vector.broadcast %1211 : f32 to vector<16x16xf32>
    %1213 = arith.mulf %1210, %1212 : vector<16x16xf32>
    %1214 = arith.addf %1190, %1213 : vector<16x16xf32>
    %c3_808 = arith.constant 3 : index
    %c3_809 = arith.constant 3 : index
    %c0_810 = arith.constant 0 : index
    %1215 = vector.load %arg10[%c3_808, %c3_809, %c0_810] : memref<5x20x16xf32, #tpu.memory_space<vmem>>, vector<1x16x16xf32>
    %1216 = vector.shape_cast %1215 : vector<1x16x16xf32> to vector<16x16xf32>
    %c68_811 = arith.constant 68 : index
    %1217 = memref.load %arg2[%c68_811] : memref<100xf32, #tpu.memory_space<smem>>
    %1218 = vector.broadcast %1217 : f32 to vector<16x16xf32>
    %1219 = arith.mulf %1216, %1218 : vector<16x16xf32>
    %1220 = arith.addf %1196, %1219 : vector<16x16xf32>
    %c4_812 = arith.constant 4 : index
    %c3_813 = arith.constant 3 : index
    %c0_814 = arith.constant 0 : index
    %1221 = vector.load %arg10[%c4_812, %c3_813, %c0_814] : memref<5x20x16xf32, #tpu.memory_space<vmem>>, vector<1x16x16xf32>
    %1222 = vector.shape_cast %1221 : vector<1x16x16xf32> to vector<16x16xf32>
    %c69_815 = arith.constant 69 : index
    %1223 = memref.load %arg2[%c69_815] : memref<100xf32, #tpu.memory_space<smem>>
    %1224 = vector.broadcast %1223 : f32 to vector<16x16xf32>
    %1225 = arith.mulf %1222, %1224 : vector<16x16xf32>
    %1226 = arith.addf %1202, %1225 : vector<16x16xf32>
    %c0_816 = arith.constant 0 : index
    %c4_817 = arith.constant 4 : index
    %c0_818 = arith.constant 0 : index
    %1227 = vector.load %arg10[%c0_816, %c4_817, %c0_818] : memref<5x20x16xf32, #tpu.memory_space<vmem>>, vector<1x16x16xf32>
    %1228 = vector.shape_cast %1227 : vector<1x16x16xf32> to vector<16x16xf32>
    %c70_819 = arith.constant 70 : index
    %1229 = memref.load %arg2[%c70_819] : memref<100xf32, #tpu.memory_space<smem>>
    %1230 = vector.broadcast %1229 : f32 to vector<16x16xf32>
    %1231 = arith.mulf %1228, %1230 : vector<16x16xf32>
    %1232 = arith.addf %1208, %1231 : vector<16x16xf32>
    %c1_820 = arith.constant 1 : index
    %c4_821 = arith.constant 4 : index
    %c0_822 = arith.constant 0 : index
    %1233 = vector.load %arg10[%c1_820, %c4_821, %c0_822] : memref<5x20x16xf32, #tpu.memory_space<vmem>>, vector<1x16x16xf32>
    %1234 = vector.shape_cast %1233 : vector<1x16x16xf32> to vector<16x16xf32>
    %c71_823 = arith.constant 71 : index
    %1235 = memref.load %arg2[%c71_823] : memref<100xf32, #tpu.memory_space<smem>>
    %1236 = vector.broadcast %1235 : f32 to vector<16x16xf32>
    %1237 = arith.mulf %1234, %1236 : vector<16x16xf32>
    %1238 = arith.addf %1214, %1237 : vector<16x16xf32>
    %c2_824 = arith.constant 2 : index
    %c4_825 = arith.constant 4 : index
    %c0_826 = arith.constant 0 : index
    %1239 = vector.load %arg10[%c2_824, %c4_825, %c0_826] : memref<5x20x16xf32, #tpu.memory_space<vmem>>, vector<1x16x16xf32>
    %1240 = vector.shape_cast %1239 : vector<1x16x16xf32> to vector<16x16xf32>
    %c72_827 = arith.constant 72 : index
    %1241 = memref.load %arg2[%c72_827] : memref<100xf32, #tpu.memory_space<smem>>
    %1242 = vector.broadcast %1241 : f32 to vector<16x16xf32>
    %1243 = arith.mulf %1240, %1242 : vector<16x16xf32>
    %1244 = arith.addf %1220, %1243 : vector<16x16xf32>
    %c3_828 = arith.constant 3 : index
    %c4_829 = arith.constant 4 : index
    %c0_830 = arith.constant 0 : index
    %1245 = vector.load %arg10[%c3_828, %c4_829, %c0_830] : memref<5x20x16xf32, #tpu.memory_space<vmem>>, vector<1x16x16xf32>
    %1246 = vector.shape_cast %1245 : vector<1x16x16xf32> to vector<16x16xf32>
    %c73_831 = arith.constant 73 : index
    %1247 = memref.load %arg2[%c73_831] : memref<100xf32, #tpu.memory_space<smem>>
    %1248 = vector.broadcast %1247 : f32 to vector<16x16xf32>
    %1249 = arith.mulf %1246, %1248 : vector<16x16xf32>
    %1250 = arith.addf %1226, %1249 : vector<16x16xf32>
    %c4_832 = arith.constant 4 : index
    %c4_833 = arith.constant 4 : index
    %c0_834 = arith.constant 0 : index
    %1251 = vector.load %arg10[%c4_832, %c4_833, %c0_834] : memref<5x20x16xf32, #tpu.memory_space<vmem>>, vector<1x16x16xf32>
    %1252 = vector.shape_cast %1251 : vector<1x16x16xf32> to vector<16x16xf32>
    %c74_835 = arith.constant 74 : index
    %1253 = memref.load %arg2[%c74_835] : memref<100xf32, #tpu.memory_space<smem>>
    %1254 = vector.broadcast %1253 : f32 to vector<16x16xf32>
    %1255 = arith.mulf %1252, %1254 : vector<16x16xf32>
    %1256 = arith.addf %1232, %1255 : vector<16x16xf32>
    %1257 = arith.addf %1256, %1238 : vector<16x16xf32>
    %1258 = arith.addf %1257, %1244 : vector<16x16xf32>
    %1259 = arith.addf %1258, %1250 : vector<16x16xf32>
    %c2_836 = arith.constant 2 : index
    %1260 = memref.load %arg3[%c2_836] : memref<4xf32, #tpu.memory_space<smem>>
    %1261 = vector.broadcast %1260 : f32 to vector<16x16xf32>
    %1262 = arith.addf %1259, %1261 : vector<16x16xf32>
    %c16_837 = arith.constant 16 : index
    %c128_838 = arith.constant 128 : index
    %1263 = vector.load %arg11[%c16_837, %c128_838] : memref<41x153xf32, #tpu.memory_space<vmem>>, vector<16x16xf32>
    tpu.vector_store %arg11[%c16_837, %c128_838], %1262 {strides = array<i32>} : memref<41x153xf32, #tpu.memory_space<vmem>>, vector<16x16xf32>,
    %c7_839 = arith.constant 7 : index
    %c119_840 = arith.constant 119 : index
    %1264 = vector.load %arg11[%c7_839, %c119_840] : memref<41x153xf32, #tpu.memory_space<vmem>>, vector<34x16xf32>
    %c0_841 = arith.constant 0 : index
    %c0_842 = arith.constant 0 : index
    %c0_843 = arith.constant 0 : index
    %1265 = vector.load %arg12[%c0_841, %c0_842, %c0_843] : memref<7x34x16xf32, #tpu.memory_space<vmem>>, vector<1x34x16xf32>
    %1266 = vector.shape_cast %1265 : vector<1x34x16xf32> to vector<34x16xf32>
    %1267 = vector.shape_cast %1264 : vector<34x16xf32> to vector<1x34x16xf32>
    tpu.vector_store %arg12[%c0_841, %c0_842, %c0_843], %1267 {strides = array<i32>} : memref<7x34x16xf32, #tpu.memory_space<vmem>>, vector<1x34x16xf32>,
    %c7_844 = arith.constant 7 : index
    %c122_845 = arith.constant 122 : index
    %1268 = vector.load %arg11[%c7_844, %c122_845] : memref<41x153xf32, #tpu.memory_space<vmem>>, vector<34x16xf32>
    %c1_846 = arith.constant 1 : index
    %c0_847 = arith.constant 0 : index
    %c0_848 = arith.constant 0 : index
    %1269 = vector.load %arg12[%c1_846, %c0_847, %c0_848] : memref<7x34x16xf32, #tpu.memory_space<vmem>>, vector<1x34x16xf32>
    %1270 = vector.shape_cast %1269 : vector<1x34x16xf32> to vector<34x16xf32>
    %1271 = vector.shape_cast %1268 : vector<34x16xf32> to vector<1x34x16xf32>
    tpu.vector_store %arg12[%c1_846, %c0_847, %c0_848], %1271 {strides = array<i32>} : memref<7x34x16xf32, #tpu.memory_space<vmem>>, vector<1x34x16xf32>,
    %c7_849 = arith.constant 7 : index
    %c125_850 = arith.constant 125 : index
    %1272 = vector.load %arg11[%c7_849, %c125_850] : memref<41x153xf32, #tpu.memory_space<vmem>>, vector<34x16xf32>
    %c2_851 = arith.constant 2 : index
    %c0_852 = arith.constant 0 : index
    %c0_853 = arith.constant 0 : index
    %1273 = vector.load %arg12[%c2_851, %c0_852, %c0_853] : memref<7x34x16xf32, #tpu.memory_space<vmem>>, vector<1x34x16xf32>
    %1274 = vector.shape_cast %1273 : vector<1x34x16xf32> to vector<34x16xf32>
    %1275 = vector.shape_cast %1272 : vector<34x16xf32> to vector<1x34x16xf32>
    tpu.vector_store %arg12[%c2_851, %c0_852, %c0_853], %1275 {strides = array<i32>} : memref<7x34x16xf32, #tpu.memory_space<vmem>>, vector<1x34x16xf32>,
    %c7_854 = arith.constant 7 : index
    %c128_855 = arith.constant 128 : index
    %1276 = vector.load %arg11[%c7_854, %c128_855] : memref<41x153xf32, #tpu.memory_space<vmem>>, vector<34x16xf32>
    %c3_856 = arith.constant 3 : index
    %c0_857 = arith.constant 0 : index
    %c0_858 = arith.constant 0 : index
    %1277 = vector.load %arg12[%c3_856, %c0_857, %c0_858] : memref<7x34x16xf32, #tpu.memory_space<vmem>>, vector<1x34x16xf32>
    %1278 = vector.shape_cast %1277 : vector<1x34x16xf32> to vector<34x16xf32>
    %1279 = vector.shape_cast %1276 : vector<34x16xf32> to vector<1x34x16xf32>
    tpu.vector_store %arg12[%c3_856, %c0_857, %c0_858], %1279 {strides = array<i32>} : memref<7x34x16xf32, #tpu.memory_space<vmem>>, vector<1x34x16xf32>,
    %c7_859 = arith.constant 7 : index
    %c131_860 = arith.constant 131 : index
    %1280 = vector.load %arg11[%c7_859, %c131_860] : memref<41x153xf32, #tpu.memory_space<vmem>>, vector<34x16xf32>
    %c4_861 = arith.constant 4 : index
    %c0_862 = arith.constant 0 : index
    %c0_863 = arith.constant 0 : index
    %1281 = vector.load %arg12[%c4_861, %c0_862, %c0_863] : memref<7x34x16xf32, #tpu.memory_space<vmem>>, vector<1x34x16xf32>
    %1282 = vector.shape_cast %1281 : vector<1x34x16xf32> to vector<34x16xf32>
    %1283 = vector.shape_cast %1280 : vector<34x16xf32> to vector<1x34x16xf32>
    tpu.vector_store %arg12[%c4_861, %c0_862, %c0_863], %1283 {strides = array<i32>} : memref<7x34x16xf32, #tpu.memory_space<vmem>>, vector<1x34x16xf32>,
    %c7_864 = arith.constant 7 : index
    %c134_865 = arith.constant 134 : index
    %1284 = vector.load %arg11[%c7_864, %c134_865] : memref<41x153xf32, #tpu.memory_space<vmem>>, vector<34x16xf32>
    %c5_866 = arith.constant 5 : index
    %c0_867 = arith.constant 0 : index
    %c0_868 = arith.constant 0 : index
    %1285 = vector.load %arg12[%c5_866, %c0_867, %c0_868] : memref<7x34x16xf32, #tpu.memory_space<vmem>>, vector<1x34x16xf32>
    %1286 = vector.shape_cast %1285 : vector<1x34x16xf32> to vector<34x16xf32>
    %1287 = vector.shape_cast %1284 : vector<34x16xf32> to vector<1x34x16xf32>
    tpu.vector_store %arg12[%c5_866, %c0_867, %c0_868], %1287 {strides = array<i32>} : memref<7x34x16xf32, #tpu.memory_space<vmem>>, vector<1x34x16xf32>,
    %c7_869 = arith.constant 7 : index
    %c137_870 = arith.constant 137 : index
    %1288 = vector.load %arg11[%c7_869, %c137_870] : memref<41x153xf32, #tpu.memory_space<vmem>>, vector<34x16xf32>
    %c6_871 = arith.constant 6 : index
    %c0_872 = arith.constant 0 : index
    %c0_873 = arith.constant 0 : index
    %1289 = vector.load %arg12[%c6_871, %c0_872, %c0_873] : memref<7x34x16xf32, #tpu.memory_space<vmem>>, vector<1x34x16xf32>
    %1290 = vector.shape_cast %1289 : vector<1x34x16xf32> to vector<34x16xf32>
    %1291 = vector.shape_cast %1288 : vector<34x16xf32> to vector<1x34x16xf32>
    tpu.vector_store %arg12[%c6_871, %c0_872, %c0_873], %1291 {strides = array<i32>} : memref<7x34x16xf32, #tpu.memory_space<vmem>>, vector<1x34x16xf32>,
    %c0_874 = arith.constant 0 : index
    %c0_875 = arith.constant 0 : index
    %c0_876 = arith.constant 0 : index
    %1292 = vector.load %arg12[%c0_874, %c0_875, %c0_876] : memref<7x34x16xf32, #tpu.memory_space<vmem>>, vector<1x16x16xf32>
    %1293 = vector.shape_cast %1292 : vector<1x16x16xf32> to vector<16x16xf32>
    %c98 = arith.constant 98 : index
    %1294 = memref.load %arg4[%c98] : memref<196xf32, #tpu.memory_space<smem>>
    %1295 = vector.broadcast %1294 : f32 to vector<16x16xf32>
    %1296 = arith.mulf %1293, %1295 : vector<16x16xf32>
    %c1_877 = arith.constant 1 : index
    %c0_878 = arith.constant 0 : index
    %c0_879 = arith.constant 0 : index
    %1297 = vector.load %arg12[%c1_877, %c0_878, %c0_879] : memref<7x34x16xf32, #tpu.memory_space<vmem>>, vector<1x16x16xf32>
    %1298 = vector.shape_cast %1297 : vector<1x16x16xf32> to vector<16x16xf32>
    %c99 = arith.constant 99 : index
    %1299 = memref.load %arg4[%c99] : memref<196xf32, #tpu.memory_space<smem>>
    %1300 = vector.broadcast %1299 : f32 to vector<16x16xf32>
    %1301 = arith.mulf %1298, %1300 : vector<16x16xf32>
    %c2_880 = arith.constant 2 : index
    %c0_881 = arith.constant 0 : index
    %c0_882 = arith.constant 0 : index
    %1302 = vector.load %arg12[%c2_880, %c0_881, %c0_882] : memref<7x34x16xf32, #tpu.memory_space<vmem>>, vector<1x16x16xf32>
    %1303 = vector.shape_cast %1302 : vector<1x16x16xf32> to vector<16x16xf32>
    %c100 = arith.constant 100 : index
    %1304 = memref.load %arg4[%c100] : memref<196xf32, #tpu.memory_space<smem>>
    %1305 = vector.broadcast %1304 : f32 to vector<16x16xf32>
    %1306 = arith.mulf %1303, %1305 : vector<16x16xf32>
    %c3_883 = arith.constant 3 : index
    %c0_884 = arith.constant 0 : index
    %c0_885 = arith.constant 0 : index
    %1307 = vector.load %arg12[%c3_883, %c0_884, %c0_885] : memref<7x34x16xf32, #tpu.memory_space<vmem>>, vector<1x16x16xf32>
    %1308 = vector.shape_cast %1307 : vector<1x16x16xf32> to vector<16x16xf32>
    %c101 = arith.constant 101 : index
    %1309 = memref.load %arg4[%c101] : memref<196xf32, #tpu.memory_space<smem>>
    %1310 = vector.broadcast %1309 : f32 to vector<16x16xf32>
    %1311 = arith.mulf %1308, %1310 : vector<16x16xf32>
    %c4_886 = arith.constant 4 : index
    %c0_887 = arith.constant 0 : index
    %c0_888 = arith.constant 0 : index
    %1312 = vector.load %arg12[%c4_886, %c0_887, %c0_888] : memref<7x34x16xf32, #tpu.memory_space<vmem>>, vector<1x16x16xf32>
    %1313 = vector.shape_cast %1312 : vector<1x16x16xf32> to vector<16x16xf32>
    %c102 = arith.constant 102 : index
    %1314 = memref.load %arg4[%c102] : memref<196xf32, #tpu.memory_space<smem>>
    %1315 = vector.broadcast %1314 : f32 to vector<16x16xf32>
    %1316 = arith.mulf %1313, %1315 : vector<16x16xf32>
    %1317 = arith.addf %1296, %1316 : vector<16x16xf32>
    %c5_889 = arith.constant 5 : index
    %c0_890 = arith.constant 0 : index
    %c0_891 = arith.constant 0 : index
    %1318 = vector.load %arg12[%c5_889, %c0_890, %c0_891] : memref<7x34x16xf32, #tpu.memory_space<vmem>>, vector<1x16x16xf32>
    %1319 = vector.shape_cast %1318 : vector<1x16x16xf32> to vector<16x16xf32>
    %c103 = arith.constant 103 : index
    %1320 = memref.load %arg4[%c103] : memref<196xf32, #tpu.memory_space<smem>>
    %1321 = vector.broadcast %1320 : f32 to vector<16x16xf32>
    %1322 = arith.mulf %1319, %1321 : vector<16x16xf32>
    %1323 = arith.addf %1301, %1322 : vector<16x16xf32>
    %c6_892 = arith.constant 6 : index
    %c0_893 = arith.constant 0 : index
    %c0_894 = arith.constant 0 : index
    %1324 = vector.load %arg12[%c6_892, %c0_893, %c0_894] : memref<7x34x16xf32, #tpu.memory_space<vmem>>, vector<1x16x16xf32>
    %1325 = vector.shape_cast %1324 : vector<1x16x16xf32> to vector<16x16xf32>
    %c104 = arith.constant 104 : index
    %1326 = memref.load %arg4[%c104] : memref<196xf32, #tpu.memory_space<smem>>
    %1327 = vector.broadcast %1326 : f32 to vector<16x16xf32>
    %1328 = arith.mulf %1325, %1327 : vector<16x16xf32>
    %1329 = arith.addf %1306, %1328 : vector<16x16xf32>
    %c0_895 = arith.constant 0 : index
    %c3_896 = arith.constant 3 : index
    %c0_897 = arith.constant 0 : index
    %1330 = vector.load %arg12[%c0_895, %c3_896, %c0_897] : memref<7x34x16xf32, #tpu.memory_space<vmem>>, vector<1x16x16xf32>
    %1331 = vector.shape_cast %1330 : vector<1x16x16xf32> to vector<16x16xf32>
    %c105 = arith.constant 105 : index
    %1332 = memref.load %arg4[%c105] : memref<196xf32, #tpu.memory_space<smem>>
    %1333 = vector.broadcast %1332 : f32 to vector<16x16xf32>
    %1334 = arith.mulf %1331, %1333 : vector<16x16xf32>
    %1335 = arith.addf %1311, %1334 : vector<16x16xf32>
    %c1_898 = arith.constant 1 : index
    %c3_899 = arith.constant 3 : index
    %c0_900 = arith.constant 0 : index
    %1336 = vector.load %arg12[%c1_898, %c3_899, %c0_900] : memref<7x34x16xf32, #tpu.memory_space<vmem>>, vector<1x16x16xf32>
    %1337 = vector.shape_cast %1336 : vector<1x16x16xf32> to vector<16x16xf32>
    %c106 = arith.constant 106 : index
    %1338 = memref.load %arg4[%c106] : memref<196xf32, #tpu.memory_space<smem>>
    %1339 = vector.broadcast %1338 : f32 to vector<16x16xf32>
    %1340 = arith.mulf %1337, %1339 : vector<16x16xf32>
    %1341 = arith.addf %1317, %1340 : vector<16x16xf32>
    %c2_901 = arith.constant 2 : index
    %c3_902 = arith.constant 3 : index
    %c0_903 = arith.constant 0 : index
    %1342 = vector.load %arg12[%c2_901, %c3_902, %c0_903] : memref<7x34x16xf32, #tpu.memory_space<vmem>>, vector<1x16x16xf32>
    %1343 = vector.shape_cast %1342 : vector<1x16x16xf32> to vector<16x16xf32>
    %c107 = arith.constant 107 : index
    %1344 = memref.load %arg4[%c107] : memref<196xf32, #tpu.memory_space<smem>>
    %1345 = vector.broadcast %1344 : f32 to vector<16x16xf32>
    %1346 = arith.mulf %1343, %1345 : vector<16x16xf32>
    %1347 = arith.addf %1323, %1346 : vector<16x16xf32>
    %c3_904 = arith.constant 3 : index
    %c3_905 = arith.constant 3 : index
    %c0_906 = arith.constant 0 : index
    %1348 = vector.load %arg12[%c3_904, %c3_905, %c0_906] : memref<7x34x16xf32, #tpu.memory_space<vmem>>, vector<1x16x16xf32>
    %1349 = vector.shape_cast %1348 : vector<1x16x16xf32> to vector<16x16xf32>
    %c108 = arith.constant 108 : index
    %1350 = memref.load %arg4[%c108] : memref<196xf32, #tpu.memory_space<smem>>
    %1351 = vector.broadcast %1350 : f32 to vector<16x16xf32>
    %1352 = arith.mulf %1349, %1351 : vector<16x16xf32>
    %1353 = arith.addf %1329, %1352 : vector<16x16xf32>
    %c4_907 = arith.constant 4 : index
    %c3_908 = arith.constant 3 : index
    %c0_909 = arith.constant 0 : index
    %1354 = vector.load %arg12[%c4_907, %c3_908, %c0_909] : memref<7x34x16xf32, #tpu.memory_space<vmem>>, vector<1x16x16xf32>
    %1355 = vector.shape_cast %1354 : vector<1x16x16xf32> to vector<16x16xf32>
    %c109 = arith.constant 109 : index
    %1356 = memref.load %arg4[%c109] : memref<196xf32, #tpu.memory_space<smem>>
    %1357 = vector.broadcast %1356 : f32 to vector<16x16xf32>
    %1358 = arith.mulf %1355, %1357 : vector<16x16xf32>
    %1359 = arith.addf %1335, %1358 : vector<16x16xf32>
    %c5_910 = arith.constant 5 : index
    %c3_911 = arith.constant 3 : index
    %c0_912 = arith.constant 0 : index
    %1360 = vector.load %arg12[%c5_910, %c3_911, %c0_912] : memref<7x34x16xf32, #tpu.memory_space<vmem>>, vector<1x16x16xf32>
    %1361 = vector.shape_cast %1360 : vector<1x16x16xf32> to vector<16x16xf32>
    %c110 = arith.constant 110 : index
    %1362 = memref.load %arg4[%c110] : memref<196xf32, #tpu.memory_space<smem>>
    %1363 = vector.broadcast %1362 : f32 to vector<16x16xf32>
    %1364 = arith.mulf %1361, %1363 : vector<16x16xf32>
    %1365 = arith.addf %1341, %1364 : vector<16x16xf32>
    %c6_913 = arith.constant 6 : index
    %c3_914 = arith.constant 3 : index
    %c0_915 = arith.constant 0 : index
    %1366 = vector.load %arg12[%c6_913, %c3_914, %c0_915] : memref<7x34x16xf32, #tpu.memory_space<vmem>>, vector<1x16x16xf32>
    %1367 = vector.shape_cast %1366 : vector<1x16x16xf32> to vector<16x16xf32>
    %c111 = arith.constant 111 : index
    %1368 = memref.load %arg4[%c111] : memref<196xf32, #tpu.memory_space<smem>>
    %1369 = vector.broadcast %1368 : f32 to vector<16x16xf32>
    %1370 = arith.mulf %1367, %1369 : vector<16x16xf32>
    %1371 = arith.addf %1347, %1370 : vector<16x16xf32>
    %c0_916 = arith.constant 0 : index
    %c6_917 = arith.constant 6 : index
    %c0_918 = arith.constant 0 : index
    %1372 = vector.load %arg12[%c0_916, %c6_917, %c0_918] : memref<7x34x16xf32, #tpu.memory_space<vmem>>, vector<1x16x16xf32>
    %1373 = vector.shape_cast %1372 : vector<1x16x16xf32> to vector<16x16xf32>
    %c112 = arith.constant 112 : index
    %1374 = memref.load %arg4[%c112] : memref<196xf32, #tpu.memory_space<smem>>
    %1375 = vector.broadcast %1374 : f32 to vector<16x16xf32>
    %1376 = arith.mulf %1373, %1375 : vector<16x16xf32>
    %1377 = arith.addf %1353, %1376 : vector<16x16xf32>
    %c1_919 = arith.constant 1 : index
    %c6_920 = arith.constant 6 : index
    %c0_921 = arith.constant 0 : index
    %1378 = vector.load %arg12[%c1_919, %c6_920, %c0_921] : memref<7x34x16xf32, #tpu.memory_space<vmem>>, vector<1x16x16xf32>
    %1379 = vector.shape_cast %1378 : vector<1x16x16xf32> to vector<16x16xf32>
    %c113 = arith.constant 113 : index
    %1380 = memref.load %arg4[%c113] : memref<196xf32, #tpu.memory_space<smem>>
    %1381 = vector.broadcast %1380 : f32 to vector<16x16xf32>
    %1382 = arith.mulf %1379, %1381 : vector<16x16xf32>
    %1383 = arith.addf %1359, %1382 : vector<16x16xf32>
    %c2_922 = arith.constant 2 : index
    %c6_923 = arith.constant 6 : index
    %c0_924 = arith.constant 0 : index
    %1384 = vector.load %arg12[%c2_922, %c6_923, %c0_924] : memref<7x34x16xf32, #tpu.memory_space<vmem>>, vector<1x16x16xf32>
    %1385 = vector.shape_cast %1384 : vector<1x16x16xf32> to vector<16x16xf32>
    %c114 = arith.constant 114 : index
    %1386 = memref.load %arg4[%c114] : memref<196xf32, #tpu.memory_space<smem>>
    %1387 = vector.broadcast %1386 : f32 to vector<16x16xf32>
    %1388 = arith.mulf %1385, %1387 : vector<16x16xf32>
    %1389 = arith.addf %1365, %1388 : vector<16x16xf32>
    %c3_925 = arith.constant 3 : index
    %c6_926 = arith.constant 6 : index
    %c0_927 = arith.constant 0 : index
    %1390 = vector.load %arg12[%c3_925, %c6_926, %c0_927] : memref<7x34x16xf32, #tpu.memory_space<vmem>>, vector<1x16x16xf32>
    %1391 = vector.shape_cast %1390 : vector<1x16x16xf32> to vector<16x16xf32>
    %c115 = arith.constant 115 : index
    %1392 = memref.load %arg4[%c115] : memref<196xf32, #tpu.memory_space<smem>>
    %1393 = vector.broadcast %1392 : f32 to vector<16x16xf32>
    %1394 = arith.mulf %1391, %1393 : vector<16x16xf32>
    %1395 = arith.addf %1371, %1394 : vector<16x16xf32>
    %c4_928 = arith.constant 4 : index
    %c6_929 = arith.constant 6 : index
    %c0_930 = arith.constant 0 : index
    %1396 = vector.load %arg12[%c4_928, %c6_929, %c0_930] : memref<7x34x16xf32, #tpu.memory_space<vmem>>, vector<1x16x16xf32>
    %1397 = vector.shape_cast %1396 : vector<1x16x16xf32> to vector<16x16xf32>
    %c116 = arith.constant 116 : index
    %1398 = memref.load %arg4[%c116] : memref<196xf32, #tpu.memory_space<smem>>
    %1399 = vector.broadcast %1398 : f32 to vector<16x16xf32>
    %1400 = arith.mulf %1397, %1399 : vector<16x16xf32>
    %1401 = arith.addf %1377, %1400 : vector<16x16xf32>
    %c5_931 = arith.constant 5 : index
    %c6_932 = arith.constant 6 : index
    %c0_933 = arith.constant 0 : index
    %1402 = vector.load %arg12[%c5_931, %c6_932, %c0_933] : memref<7x34x16xf32, #tpu.memory_space<vmem>>, vector<1x16x16xf32>
    %1403 = vector.shape_cast %1402 : vector<1x16x16xf32> to vector<16x16xf32>
    %c117 = arith.constant 117 : index
    %1404 = memref.load %arg4[%c117] : memref<196xf32, #tpu.memory_space<smem>>
    %1405 = vector.broadcast %1404 : f32 to vector<16x16xf32>
    %1406 = arith.mulf %1403, %1405 : vector<16x16xf32>
    %1407 = arith.addf %1383, %1406 : vector<16x16xf32>
    %c6_934 = arith.constant 6 : index
    %c6_935 = arith.constant 6 : index
    %c0_936 = arith.constant 0 : index
    %1408 = vector.load %arg12[%c6_934, %c6_935, %c0_936] : memref<7x34x16xf32, #tpu.memory_space<vmem>>, vector<1x16x16xf32>
    %1409 = vector.shape_cast %1408 : vector<1x16x16xf32> to vector<16x16xf32>
    %c118 = arith.constant 118 : index
    %1410 = memref.load %arg4[%c118] : memref<196xf32, #tpu.memory_space<smem>>
    %1411 = vector.broadcast %1410 : f32 to vector<16x16xf32>
    %1412 = arith.mulf %1409, %1411 : vector<16x16xf32>
    %1413 = arith.addf %1389, %1412 : vector<16x16xf32>
    %c0_937 = arith.constant 0 : index
    %c9_938 = arith.constant 9 : index
    %c0_939 = arith.constant 0 : index
    %1414 = vector.load %arg12[%c0_937, %c9_938, %c0_939] : memref<7x34x16xf32, #tpu.memory_space<vmem>>, vector<1x16x16xf32>
    %1415 = vector.shape_cast %1414 : vector<1x16x16xf32> to vector<16x16xf32>
    %c119_940 = arith.constant 119 : index
    %1416 = memref.load %arg4[%c119_940] : memref<196xf32, #tpu.memory_space<smem>>
    %1417 = vector.broadcast %1416 : f32 to vector<16x16xf32>
    %1418 = arith.mulf %1415, %1417 : vector<16x16xf32>
    %1419 = arith.addf %1395, %1418 : vector<16x16xf32>
    %c1_941 = arith.constant 1 : index
    %c9_942 = arith.constant 9 : index
    %c0_943 = arith.constant 0 : index
    %1420 = vector.load %arg12[%c1_941, %c9_942, %c0_943] : memref<7x34x16xf32, #tpu.memory_space<vmem>>, vector<1x16x16xf32>
    %1421 = vector.shape_cast %1420 : vector<1x16x16xf32> to vector<16x16xf32>
    %c120 = arith.constant 120 : index
    %1422 = memref.load %arg4[%c120] : memref<196xf32, #tpu.memory_space<smem>>
    %1423 = vector.broadcast %1422 : f32 to vector<16x16xf32>
    %1424 = arith.mulf %1421, %1423 : vector<16x16xf32>
    %1425 = arith.addf %1401, %1424 : vector<16x16xf32>
    %c2_944 = arith.constant 2 : index
    %c9_945 = arith.constant 9 : index
    %c0_946 = arith.constant 0 : index
    %1426 = vector.load %arg12[%c2_944, %c9_945, %c0_946] : memref<7x34x16xf32, #tpu.memory_space<vmem>>, vector<1x16x16xf32>
    %1427 = vector.shape_cast %1426 : vector<1x16x16xf32> to vector<16x16xf32>
    %c121 = arith.constant 121 : index
    %1428 = memref.load %arg4[%c121] : memref<196xf32, #tpu.memory_space<smem>>
    %1429 = vector.broadcast %1428 : f32 to vector<16x16xf32>
    %1430 = arith.mulf %1427, %1429 : vector<16x16xf32>
    %1431 = arith.addf %1407, %1430 : vector<16x16xf32>
    %c3_947 = arith.constant 3 : index
    %c9_948 = arith.constant 9 : index
    %c0_949 = arith.constant 0 : index
    %1432 = vector.load %arg12[%c3_947, %c9_948, %c0_949] : memref<7x34x16xf32, #tpu.memory_space<vmem>>, vector<1x16x16xf32>
    %1433 = vector.shape_cast %1432 : vector<1x16x16xf32> to vector<16x16xf32>
    %c122_950 = arith.constant 122 : index
    %1434 = memref.load %arg4[%c122_950] : memref<196xf32, #tpu.memory_space<smem>>
    %1435 = vector.broadcast %1434 : f32 to vector<16x16xf32>
    %1436 = arith.mulf %1433, %1435 : vector<16x16xf32>
    %1437 = arith.addf %1413, %1436 : vector<16x16xf32>
    %c4_951 = arith.constant 4 : index
    %c9_952 = arith.constant 9 : index
    %c0_953 = arith.constant 0 : index
    %1438 = vector.load %arg12[%c4_951, %c9_952, %c0_953] : memref<7x34x16xf32, #tpu.memory_space<vmem>>, vector<1x16x16xf32>
    %1439 = vector.shape_cast %1438 : vector<1x16x16xf32> to vector<16x16xf32>
    %c123 = arith.constant 123 : index
    %1440 = memref.load %arg4[%c123] : memref<196xf32, #tpu.memory_space<smem>>
    %1441 = vector.broadcast %1440 : f32 to vector<16x16xf32>
    %1442 = arith.mulf %1439, %1441 : vector<16x16xf32>
    %1443 = arith.addf %1419, %1442 : vector<16x16xf32>
    %c5_954 = arith.constant 5 : index
    %c9_955 = arith.constant 9 : index
    %c0_956 = arith.constant 0 : index
    %1444 = vector.load %arg12[%c5_954, %c9_955, %c0_956] : memref<7x34x16xf32, #tpu.memory_space<vmem>>, vector<1x16x16xf32>
    %1445 = vector.shape_cast %1444 : vector<1x16x16xf32> to vector<16x16xf32>
    %c124 = arith.constant 124 : index
    %1446 = memref.load %arg4[%c124] : memref<196xf32, #tpu.memory_space<smem>>
    %1447 = vector.broadcast %1446 : f32 to vector<16x16xf32>
    %1448 = arith.mulf %1445, %1447 : vector<16x16xf32>
    %1449 = arith.addf %1425, %1448 : vector<16x16xf32>
    %c6_957 = arith.constant 6 : index
    %c9_958 = arith.constant 9 : index
    %c0_959 = arith.constant 0 : index
    %1450 = vector.load %arg12[%c6_957, %c9_958, %c0_959] : memref<7x34x16xf32, #tpu.memory_space<vmem>>, vector<1x16x16xf32>
    %1451 = vector.shape_cast %1450 : vector<1x16x16xf32> to vector<16x16xf32>
    %c125_960 = arith.constant 125 : index
    %1452 = memref.load %arg4[%c125_960] : memref<196xf32, #tpu.memory_space<smem>>
    %1453 = vector.broadcast %1452 : f32 to vector<16x16xf32>
    %1454 = arith.mulf %1451, %1453 : vector<16x16xf32>
    %1455 = arith.addf %1431, %1454 : vector<16x16xf32>
    %c0_961 = arith.constant 0 : index
    %c12_962 = arith.constant 12 : index
    %c0_963 = arith.constant 0 : index
    %1456 = vector.load %arg12[%c0_961, %c12_962, %c0_963] : memref<7x34x16xf32, #tpu.memory_space<vmem>>, vector<1x16x16xf32>
    %1457 = vector.shape_cast %1456 : vector<1x16x16xf32> to vector<16x16xf32>
    %c126_964 = arith.constant 126 : index
    %1458 = memref.load %arg4[%c126_964] : memref<196xf32, #tpu.memory_space<smem>>
    %1459 = vector.broadcast %1458 : f32 to vector<16x16xf32>
    %1460 = arith.mulf %1457, %1459 : vector<16x16xf32>
    %1461 = arith.addf %1437, %1460 : vector<16x16xf32>
    %c1_965 = arith.constant 1 : index
    %c12_966 = arith.constant 12 : index
    %c0_967 = arith.constant 0 : index
    %1462 = vector.load %arg12[%c1_965, %c12_966, %c0_967] : memref<7x34x16xf32, #tpu.memory_space<vmem>>, vector<1x16x16xf32>
    %1463 = vector.shape_cast %1462 : vector<1x16x16xf32> to vector<16x16xf32>
    %c127_968 = arith.constant 127 : index
    %1464 = memref.load %arg4[%c127_968] : memref<196xf32, #tpu.memory_space<smem>>
    %1465 = vector.broadcast %1464 : f32 to vector<16x16xf32>
    %1466 = arith.mulf %1463, %1465 : vector<16x16xf32>
    %1467 = arith.addf %1443, %1466 : vector<16x16xf32>
    %c2_969 = arith.constant 2 : index
    %c12_970 = arith.constant 12 : index
    %c0_971 = arith.constant 0 : index
    %1468 = vector.load %arg12[%c2_969, %c12_970, %c0_971] : memref<7x34x16xf32, #tpu.memory_space<vmem>>, vector<1x16x16xf32>
    %1469 = vector.shape_cast %1468 : vector<1x16x16xf32> to vector<16x16xf32>
    %c128_972 = arith.constant 128 : index
    %1470 = memref.load %arg4[%c128_972] : memref<196xf32, #tpu.memory_space<smem>>
    %1471 = vector.broadcast %1470 : f32 to vector<16x16xf32>
    %1472 = arith.mulf %1469, %1471 : vector<16x16xf32>
    %1473 = arith.addf %1449, %1472 : vector<16x16xf32>
    %c3_973 = arith.constant 3 : index
    %c12_974 = arith.constant 12 : index
    %c0_975 = arith.constant 0 : index
    %1474 = vector.load %arg12[%c3_973, %c12_974, %c0_975] : memref<7x34x16xf32, #tpu.memory_space<vmem>>, vector<1x16x16xf32>
    %1475 = vector.shape_cast %1474 : vector<1x16x16xf32> to vector<16x16xf32>
    %c129_976 = arith.constant 129 : index
    %1476 = memref.load %arg4[%c129_976] : memref<196xf32, #tpu.memory_space<smem>>
    %1477 = vector.broadcast %1476 : f32 to vector<16x16xf32>
    %1478 = arith.mulf %1475, %1477 : vector<16x16xf32>
    %1479 = arith.addf %1455, %1478 : vector<16x16xf32>
    %c4_977 = arith.constant 4 : index
    %c12_978 = arith.constant 12 : index
    %c0_979 = arith.constant 0 : index
    %1480 = vector.load %arg12[%c4_977, %c12_978, %c0_979] : memref<7x34x16xf32, #tpu.memory_space<vmem>>, vector<1x16x16xf32>
    %1481 = vector.shape_cast %1480 : vector<1x16x16xf32> to vector<16x16xf32>
    %c130_980 = arith.constant 130 : index
    %1482 = memref.load %arg4[%c130_980] : memref<196xf32, #tpu.memory_space<smem>>
    %1483 = vector.broadcast %1482 : f32 to vector<16x16xf32>
    %1484 = arith.mulf %1481, %1483 : vector<16x16xf32>
    %1485 = arith.addf %1461, %1484 : vector<16x16xf32>
    %c5_981 = arith.constant 5 : index
    %c12_982 = arith.constant 12 : index
    %c0_983 = arith.constant 0 : index
    %1486 = vector.load %arg12[%c5_981, %c12_982, %c0_983] : memref<7x34x16xf32, #tpu.memory_space<vmem>>, vector<1x16x16xf32>
    %1487 = vector.shape_cast %1486 : vector<1x16x16xf32> to vector<16x16xf32>
    %c131_984 = arith.constant 131 : index
    %1488 = memref.load %arg4[%c131_984] : memref<196xf32, #tpu.memory_space<smem>>
    %1489 = vector.broadcast %1488 : f32 to vector<16x16xf32>
    %1490 = arith.mulf %1487, %1489 : vector<16x16xf32>
    %1491 = arith.addf %1467, %1490 : vector<16x16xf32>
    %c6_985 = arith.constant 6 : index
    %c12_986 = arith.constant 12 : index
    %c0_987 = arith.constant 0 : index
    %1492 = vector.load %arg12[%c6_985, %c12_986, %c0_987] : memref<7x34x16xf32, #tpu.memory_space<vmem>>, vector<1x16x16xf32>
    %1493 = vector.shape_cast %1492 : vector<1x16x16xf32> to vector<16x16xf32>
    %c132 = arith.constant 132 : index
    %1494 = memref.load %arg4[%c132] : memref<196xf32, #tpu.memory_space<smem>>
    %1495 = vector.broadcast %1494 : f32 to vector<16x16xf32>
    %1496 = arith.mulf %1493, %1495 : vector<16x16xf32>
    %1497 = arith.addf %1473, %1496 : vector<16x16xf32>
    %c0_988 = arith.constant 0 : index
    %c15_989 = arith.constant 15 : index
    %c0_990 = arith.constant 0 : index
    %1498 = vector.load %arg12[%c0_988, %c15_989, %c0_990] : memref<7x34x16xf32, #tpu.memory_space<vmem>>, vector<1x16x16xf32>
    %1499 = vector.shape_cast %1498 : vector<1x16x16xf32> to vector<16x16xf32>
    %c133 = arith.constant 133 : index
    %1500 = memref.load %arg4[%c133] : memref<196xf32, #tpu.memory_space<smem>>
    %1501 = vector.broadcast %1500 : f32 to vector<16x16xf32>
    %1502 = arith.mulf %1499, %1501 : vector<16x16xf32>
    %1503 = arith.addf %1479, %1502 : vector<16x16xf32>
    %c1_991 = arith.constant 1 : index
    %c15_992 = arith.constant 15 : index
    %c0_993 = arith.constant 0 : index
    %1504 = vector.load %arg12[%c1_991, %c15_992, %c0_993] : memref<7x34x16xf32, #tpu.memory_space<vmem>>, vector<1x16x16xf32>
    %1505 = vector.shape_cast %1504 : vector<1x16x16xf32> to vector<16x16xf32>
    %c134_994 = arith.constant 134 : index
    %1506 = memref.load %arg4[%c134_994] : memref<196xf32, #tpu.memory_space<smem>>
    %1507 = vector.broadcast %1506 : f32 to vector<16x16xf32>
    %1508 = arith.mulf %1505, %1507 : vector<16x16xf32>
    %1509 = arith.addf %1485, %1508 : vector<16x16xf32>
    %c2_995 = arith.constant 2 : index
    %c15_996 = arith.constant 15 : index
    %c0_997 = arith.constant 0 : index
    %1510 = vector.load %arg12[%c2_995, %c15_996, %c0_997] : memref<7x34x16xf32, #tpu.memory_space<vmem>>, vector<1x16x16xf32>
    %1511 = vector.shape_cast %1510 : vector<1x16x16xf32> to vector<16x16xf32>
    %c135 = arith.constant 135 : index
    %1512 = memref.load %arg4[%c135] : memref<196xf32, #tpu.memory_space<smem>>
    %1513 = vector.broadcast %1512 : f32 to vector<16x16xf32>
    %1514 = arith.mulf %1511, %1513 : vector<16x16xf32>
    %1515 = arith.addf %1491, %1514 : vector<16x16xf32>
    %c3_998 = arith.constant 3 : index
    %c15_999 = arith.constant 15 : index
    %c0_1000 = arith.constant 0 : index
    %1516 = vector.load %arg12[%c3_998, %c15_999, %c0_1000] : memref<7x34x16xf32, #tpu.memory_space<vmem>>, vector<1x16x16xf32>
    %1517 = vector.shape_cast %1516 : vector<1x16x16xf32> to vector<16x16xf32>
    %c136 = arith.constant 136 : index
    %1518 = memref.load %arg4[%c136] : memref<196xf32, #tpu.memory_space<smem>>
    %1519 = vector.broadcast %1518 : f32 to vector<16x16xf32>
    %1520 = arith.mulf %1517, %1519 : vector<16x16xf32>
    %1521 = arith.addf %1497, %1520 : vector<16x16xf32>
    %c4_1001 = arith.constant 4 : index
    %c15_1002 = arith.constant 15 : index
    %c0_1003 = arith.constant 0 : index
    %1522 = vector.load %arg12[%c4_1001, %c15_1002, %c0_1003] : memref<7x34x16xf32, #tpu.memory_space<vmem>>, vector<1x16x16xf32>
    %1523 = vector.shape_cast %1522 : vector<1x16x16xf32> to vector<16x16xf32>
    %c137_1004 = arith.constant 137 : index
    %1524 = memref.load %arg4[%c137_1004] : memref<196xf32, #tpu.memory_space<smem>>
    %1525 = vector.broadcast %1524 : f32 to vector<16x16xf32>
    %1526 = arith.mulf %1523, %1525 : vector<16x16xf32>
    %1527 = arith.addf %1503, %1526 : vector<16x16xf32>
    %c5_1005 = arith.constant 5 : index
    %c15_1006 = arith.constant 15 : index
    %c0_1007 = arith.constant 0 : index
    %1528 = vector.load %arg12[%c5_1005, %c15_1006, %c0_1007] : memref<7x34x16xf32, #tpu.memory_space<vmem>>, vector<1x16x16xf32>
    %1529 = vector.shape_cast %1528 : vector<1x16x16xf32> to vector<16x16xf32>
    %c138 = arith.constant 138 : index
    %1530 = memref.load %arg4[%c138] : memref<196xf32, #tpu.memory_space<smem>>
    %1531 = vector.broadcast %1530 : f32 to vector<16x16xf32>
    %1532 = arith.mulf %1529, %1531 : vector<16x16xf32>
    %1533 = arith.addf %1509, %1532 : vector<16x16xf32>
    %c6_1008 = arith.constant 6 : index
    %c15_1009 = arith.constant 15 : index
    %c0_1010 = arith.constant 0 : index
    %1534 = vector.load %arg12[%c6_1008, %c15_1009, %c0_1010] : memref<7x34x16xf32, #tpu.memory_space<vmem>>, vector<1x16x16xf32>
    %1535 = vector.shape_cast %1534 : vector<1x16x16xf32> to vector<16x16xf32>
    %c139 = arith.constant 139 : index
    %1536 = memref.load %arg4[%c139] : memref<196xf32, #tpu.memory_space<smem>>
    %1537 = vector.broadcast %1536 : f32 to vector<16x16xf32>
    %1538 = arith.mulf %1535, %1537 : vector<16x16xf32>
    %1539 = arith.addf %1515, %1538 : vector<16x16xf32>
    %c0_1011 = arith.constant 0 : index
    %c18_1012 = arith.constant 18 : index
    %c0_1013 = arith.constant 0 : index
    %1540 = vector.load %arg12[%c0_1011, %c18_1012, %c0_1013] : memref<7x34x16xf32, #tpu.memory_space<vmem>>, vector<1x16x16xf32>
    %1541 = vector.shape_cast %1540 : vector<1x16x16xf32> to vector<16x16xf32>
    %c140 = arith.constant 140 : index
    %1542 = memref.load %arg4[%c140] : memref<196xf32, #tpu.memory_space<smem>>
    %1543 = vector.broadcast %1542 : f32 to vector<16x16xf32>
    %1544 = arith.mulf %1541, %1543 : vector<16x16xf32>
    %1545 = arith.addf %1521, %1544 : vector<16x16xf32>
    %c1_1014 = arith.constant 1 : index
    %c18_1015 = arith.constant 18 : index
    %c0_1016 = arith.constant 0 : index
    %1546 = vector.load %arg12[%c1_1014, %c18_1015, %c0_1016] : memref<7x34x16xf32, #tpu.memory_space<vmem>>, vector<1x16x16xf32>
    %1547 = vector.shape_cast %1546 : vector<1x16x16xf32> to vector<16x16xf32>
    %c141 = arith.constant 141 : index
    %1548 = memref.load %arg4[%c141] : memref<196xf32, #tpu.memory_space<smem>>
    %1549 = vector.broadcast %1548 : f32 to vector<16x16xf32>
    %1550 = arith.mulf %1547, %1549 : vector<16x16xf32>
    %1551 = arith.addf %1527, %1550 : vector<16x16xf32>
    %c2_1017 = arith.constant 2 : index
    %c18_1018 = arith.constant 18 : index
    %c0_1019 = arith.constant 0 : index
    %1552 = vector.load %arg12[%c2_1017, %c18_1018, %c0_1019] : memref<7x34x16xf32, #tpu.memory_space<vmem>>, vector<1x16x16xf32>
    %1553 = vector.shape_cast %1552 : vector<1x16x16xf32> to vector<16x16xf32>
    %c142 = arith.constant 142 : index
    %1554 = memref.load %arg4[%c142] : memref<196xf32, #tpu.memory_space<smem>>
    %1555 = vector.broadcast %1554 : f32 to vector<16x16xf32>
    %1556 = arith.mulf %1553, %1555 : vector<16x16xf32>
    %1557 = arith.addf %1533, %1556 : vector<16x16xf32>
    %c3_1020 = arith.constant 3 : index
    %c18_1021 = arith.constant 18 : index
    %c0_1022 = arith.constant 0 : index
    %1558 = vector.load %arg12[%c3_1020, %c18_1021, %c0_1022] : memref<7x34x16xf32, #tpu.memory_space<vmem>>, vector<1x16x16xf32>
    %1559 = vector.shape_cast %1558 : vector<1x16x16xf32> to vector<16x16xf32>
    %c143 = arith.constant 143 : index
    %1560 = memref.load %arg4[%c143] : memref<196xf32, #tpu.memory_space<smem>>
    %1561 = vector.broadcast %1560 : f32 to vector<16x16xf32>
    %1562 = arith.mulf %1559, %1561 : vector<16x16xf32>
    %1563 = arith.addf %1539, %1562 : vector<16x16xf32>
    %c4_1023 = arith.constant 4 : index
    %c18_1024 = arith.constant 18 : index
    %c0_1025 = arith.constant 0 : index
    %1564 = vector.load %arg12[%c4_1023, %c18_1024, %c0_1025] : memref<7x34x16xf32, #tpu.memory_space<vmem>>, vector<1x16x16xf32>
    %1565 = vector.shape_cast %1564 : vector<1x16x16xf32> to vector<16x16xf32>
    %c144_1026 = arith.constant 144 : index
    %1566 = memref.load %arg4[%c144_1026] : memref<196xf32, #tpu.memory_space<smem>>
    %1567 = vector.broadcast %1566 : f32 to vector<16x16xf32>
    %1568 = arith.mulf %1565, %1567 : vector<16x16xf32>
    %1569 = arith.addf %1545, %1568 : vector<16x16xf32>
    %c5_1027 = arith.constant 5 : index
    %c18_1028 = arith.constant 18 : index
    %c0_1029 = arith.constant 0 : index
    %1570 = vector.load %arg12[%c5_1027, %c18_1028, %c0_1029] : memref<7x34x16xf32, #tpu.memory_space<vmem>>, vector<1x16x16xf32>
    %1571 = vector.shape_cast %1570 : vector<1x16x16xf32> to vector<16x16xf32>
    %c145 = arith.constant 145 : index
    %1572 = memref.load %arg4[%c145] : memref<196xf32, #tpu.memory_space<smem>>
    %1573 = vector.broadcast %1572 : f32 to vector<16x16xf32>
    %1574 = arith.mulf %1571, %1573 : vector<16x16xf32>
    %1575 = arith.addf %1551, %1574 : vector<16x16xf32>
    %c6_1030 = arith.constant 6 : index
    %c18_1031 = arith.constant 18 : index
    %c0_1032 = arith.constant 0 : index
    %1576 = vector.load %arg12[%c6_1030, %c18_1031, %c0_1032] : memref<7x34x16xf32, #tpu.memory_space<vmem>>, vector<1x16x16xf32>
    %1577 = vector.shape_cast %1576 : vector<1x16x16xf32> to vector<16x16xf32>
    %c146 = arith.constant 146 : index
    %1578 = memref.load %arg4[%c146] : memref<196xf32, #tpu.memory_space<smem>>
    %1579 = vector.broadcast %1578 : f32 to vector<16x16xf32>
    %1580 = arith.mulf %1577, %1579 : vector<16x16xf32>
    %1581 = arith.addf %1557, %1580 : vector<16x16xf32>
    %1582 = arith.addf %1581, %1563 : vector<16x16xf32>
    %1583 = arith.addf %1582, %1569 : vector<16x16xf32>
    %1584 = arith.addf %1583, %1575 : vector<16x16xf32>
    %c2_1033 = arith.constant 2 : index
    %1585 = memref.load %arg5[%c2_1033] : memref<4xf32, #tpu.memory_space<smem>>
    %1586 = vector.broadcast %1585 : f32 to vector<16x16xf32>
    %1587 = arith.addf %1584, %1586 : vector<16x16xf32>
    %c8_1034 = arith.constant 8 : index
    %1588 = memref.load %arg6[%c8_1034] : memref<16xf32, #tpu.memory_space<smem>>
    %1589 = vector.broadcast %1588 : f32 to vector<16x16xf32>
    %1590 = arith.mulf %1587, %1589 : vector<16x16xf32>
    %c0_1035 = arith.constant 0 : index
    %c0_1036 = arith.constant 0 : index
    %c0_1037 = arith.constant 0 : index
    %c0_1038 = arith.constant 0 : index
    %1591 = vector.load %arg8[%c0_1035, %c0_1036, %c0_1037, %c0_1038] : memref<1x4x16x16xf32, #tpu.memory_space<vmem>>, vector<1x1x16x16xf32>
    %1592 = vector.shape_cast %1591 : vector<1x1x16x16xf32> to vector<16x16xf32>
    %1593 = arith.addf %1592, %1590 : vector<16x16xf32>
    %c0_1039 = arith.constant 0 : index
    %c0_1040 = arith.constant 0 : index
    %c0_1041 = arith.constant 0 : index
    %c0_1042 = arith.constant 0 : index
    %1594 = vector.load %arg8[%c0_1039, %c0_1040, %c0_1041, %c0_1042] : memref<1x4x16x16xf32, #tpu.memory_space<vmem>>, vector<1x1x16x16xf32>
    %1595 = vector.shape_cast %1594 : vector<1x1x16x16xf32> to vector<16x16xf32>
    %1596 = vector.shape_cast %1593 : vector<16x16xf32> to vector<1x1x16x16xf32>
    tpu.vector_store %arg8[%c0_1039, %c0_1040, %c0_1041, %c0_1042], %1596 {strides = array<i32>} : memref<1x4x16x16xf32, #tpu.memory_space<vmem>>, vector<1x1x16x16xf32>,
    %c9_1043 = arith.constant 9 : index
    %1597 = memref.load %arg6[%c9_1043] : memref<16xf32, #tpu.memory_space<smem>>
    %1598 = vector.broadcast %1597 : f32 to vector<16x16xf32>
    %1599 = arith.mulf %1587, %1598 : vector<16x16xf32>
    %c0_1044 = arith.constant 0 : index
    %c1_1045 = arith.constant 1 : index
    %c0_1046 = arith.constant 0 : index
    %c0_1047 = arith.constant 0 : index
    %1600 = vector.load %arg8[%c0_1044, %c1_1045, %c0_1046, %c0_1047] : memref<1x4x16x16xf32, #tpu.memory_space<vmem>>, vector<1x1x16x16xf32>
    %1601 = vector.shape_cast %1600 : vector<1x1x16x16xf32> to vector<16x16xf32>
    %1602 = arith.addf %1601, %1599 : vector<16x16xf32>
    %c0_1048 = arith.constant 0 : index
    %c1_1049 = arith.constant 1 : index
    %c0_1050 = arith.constant 0 : index
    %c0_1051 = arith.constant 0 : index
    %1603 = vector.load %arg8[%c0_1048, %c1_1049, %c0_1050, %c0_1051] : memref<1x4x16x16xf32, #tpu.memory_space<vmem>>, vector<1x1x16x16xf32>
    %1604 = vector.shape_cast %1603 : vector<1x1x16x16xf32> to vector<16x16xf32>
    %1605 = vector.shape_cast %1602 : vector<16x16xf32> to vector<1x1x16x16xf32>
    tpu.vector_store %arg8[%c0_1048, %c1_1049, %c0_1050, %c0_1051], %1605 {strides = array<i32>} : memref<1x4x16x16xf32, #tpu.memory_space<vmem>>, vector<1x1x16x16xf32>,
    %c10_1052 = arith.constant 10 : index
    %1606 = memref.load %arg6[%c10_1052] : memref<16xf32, #tpu.memory_space<smem>>
    %1607 = vector.broadcast %1606 : f32 to vector<16x16xf32>
    %1608 = arith.mulf %1587, %1607 : vector<16x16xf32>
    %c0_1053 = arith.constant 0 : index
    %c2_1054 = arith.constant 2 : index
    %c0_1055 = arith.constant 0 : index
    %c0_1056 = arith.constant 0 : index
    %1609 = vector.load %arg8[%c0_1053, %c2_1054, %c0_1055, %c0_1056] : memref<1x4x16x16xf32, #tpu.memory_space<vmem>>, vector<1x1x16x16xf32>
    %1610 = vector.shape_cast %1609 : vector<1x1x16x16xf32> to vector<16x16xf32>
    %1611 = arith.addf %1610, %1608 : vector<16x16xf32>
    %c0_1057 = arith.constant 0 : index
    %c2_1058 = arith.constant 2 : index
    %c0_1059 = arith.constant 0 : index
    %c0_1060 = arith.constant 0 : index
    %1612 = vector.load %arg8[%c0_1057, %c2_1058, %c0_1059, %c0_1060] : memref<1x4x16x16xf32, #tpu.memory_space<vmem>>, vector<1x1x16x16xf32>
    %1613 = vector.shape_cast %1612 : vector<1x1x16x16xf32> to vector<16x16xf32>
    %1614 = vector.shape_cast %1611 : vector<16x16xf32> to vector<1x1x16x16xf32>
    tpu.vector_store %arg8[%c0_1057, %c2_1058, %c0_1059, %c0_1060], %1614 {strides = array<i32>} : memref<1x4x16x16xf32, #tpu.memory_space<vmem>>, vector<1x1x16x16xf32>,
    %c11_1061 = arith.constant 11 : index
    %1615 = memref.load %arg6[%c11_1061] : memref<16xf32, #tpu.memory_space<smem>>
    %1616 = vector.broadcast %1615 : f32 to vector<16x16xf32>
    %1617 = arith.mulf %1587, %1616 : vector<16x16xf32>
    %c0_1062 = arith.constant 0 : index
    %c3_1063 = arith.constant 3 : index
    %c0_1064 = arith.constant 0 : index
    %c0_1065 = arith.constant 0 : index
    %1618 = vector.load %arg8[%c0_1062, %c3_1063, %c0_1064, %c0_1065] : memref<1x4x16x16xf32, #tpu.memory_space<vmem>>, vector<1x1x16x16xf32>
    %1619 = vector.shape_cast %1618 : vector<1x1x16x16xf32> to vector<16x16xf32>
    %1620 = arith.addf %1619, %1617 : vector<16x16xf32>
    %c0_1066 = arith.constant 0 : index
    %c3_1067 = arith.constant 3 : index
    %c0_1068 = arith.constant 0 : index
    %c0_1069 = arith.constant 0 : index
    %1621 = vector.load %arg8[%c0_1066, %c3_1067, %c0_1068, %c0_1069] : memref<1x4x16x16xf32, #tpu.memory_space<vmem>>, vector<1x1x16x16xf32>
    %1622 = vector.shape_cast %1621 : vector<1x1x16x16xf32> to vector<16x16xf32>
    %1623 = vector.shape_cast %1620 : vector<16x16xf32> to vector<1x1x16x16xf32>
    tpu.vector_store %arg8[%c0_1066, %c3_1067, %c0_1068, %c0_1069], %1623 {strides = array<i32>} : memref<1x4x16x16xf32, #tpu.memory_space<vmem>>, vector<1x1x16x16xf32>,
    %c0_1070 = arith.constant 0 : index
    %c3_1071 = arith.constant 3 : index
    %c0_1072 = arith.constant 0 : index
    %c0_1073 = arith.constant 0 : index
    %1624 = vector.load %arg1[%c0_1070, %c3_1071, %c0_1072, %c0_1073] : memref<1x4x16x16xf32, #tpu.memory_space<vmem>>, vector<1x1x16x16xf32>
    %1625 = vector.shape_cast %1624 : vector<1x1x16x16xf32> to vector<16x16xf32>
    %c8_1074 = arith.constant 8 : index
    %c128_1075 = arith.constant 128 : index
    %1626 = vector.load %arg9[%c8_1074, %c128_1075] : memref<26x146xf32, #tpu.memory_space<vmem>>, vector<16x16xf32>
    tpu.vector_store %arg9[%c8_1074, %c128_1075], %1625 {strides = array<i32>} : memref<26x146xf32, #tpu.memory_space<vmem>>, vector<16x16xf32>,
    %c6_1076 = arith.constant 6 : index
    %c126_1077 = arith.constant 126 : index
    %1627 = vector.load %arg9[%c6_1076, %c126_1077] : memref<26x146xf32, #tpu.memory_space<vmem>>, vector<20x16xf32>
    %c0_1078 = arith.constant 0 : index
    %c0_1079 = arith.constant 0 : index
    %c0_1080 = arith.constant 0 : index
    %1628 = vector.load %arg10[%c0_1078, %c0_1079, %c0_1080] : memref<5x20x16xf32, #tpu.memory_space<vmem>>, vector<1x20x16xf32>
    %1629 = vector.shape_cast %1628 : vector<1x20x16xf32> to vector<20x16xf32>
    %1630 = vector.shape_cast %1627 : vector<20x16xf32> to vector<1x20x16xf32>
    tpu.vector_store %arg10[%c0_1078, %c0_1079, %c0_1080], %1630 {strides = array<i32>} : memref<5x20x16xf32, #tpu.memory_space<vmem>>, vector<1x20x16xf32>,
    %c6_1081 = arith.constant 6 : index
    %c127_1082 = arith.constant 127 : index
    %1631 = vector.load %arg9[%c6_1081, %c127_1082] : memref<26x146xf32, #tpu.memory_space<vmem>>, vector<20x16xf32>
    %c1_1083 = arith.constant 1 : index
    %c0_1084 = arith.constant 0 : index
    %c0_1085 = arith.constant 0 : index
    %1632 = vector.load %arg10[%c1_1083, %c0_1084, %c0_1085] : memref<5x20x16xf32, #tpu.memory_space<vmem>>, vector<1x20x16xf32>
    %1633 = vector.shape_cast %1632 : vector<1x20x16xf32> to vector<20x16xf32>
    %1634 = vector.shape_cast %1631 : vector<20x16xf32> to vector<1x20x16xf32>
    tpu.vector_store %arg10[%c1_1083, %c0_1084, %c0_1085], %1634 {strides = array<i32>} : memref<5x20x16xf32, #tpu.memory_space<vmem>>, vector<1x20x16xf32>,
    %c6_1086 = arith.constant 6 : index
    %c128_1087 = arith.constant 128 : index
    %1635 = vector.load %arg9[%c6_1086, %c128_1087] : memref<26x146xf32, #tpu.memory_space<vmem>>, vector<20x16xf32>
    %c2_1088 = arith.constant 2 : index
    %c0_1089 = arith.constant 0 : index
    %c0_1090 = arith.constant 0 : index
    %1636 = vector.load %arg10[%c2_1088, %c0_1089, %c0_1090] : memref<5x20x16xf32, #tpu.memory_space<vmem>>, vector<1x20x16xf32>
    %1637 = vector.shape_cast %1636 : vector<1x20x16xf32> to vector<20x16xf32>
    %1638 = vector.shape_cast %1635 : vector<20x16xf32> to vector<1x20x16xf32>
    tpu.vector_store %arg10[%c2_1088, %c0_1089, %c0_1090], %1638 {strides = array<i32>} : memref<5x20x16xf32, #tpu.memory_space<vmem>>, vector<1x20x16xf32>,
    %c6_1091 = arith.constant 6 : index
    %c129_1092 = arith.constant 129 : index
    %1639 = vector.load %arg9[%c6_1091, %c129_1092] : memref<26x146xf32, #tpu.memory_space<vmem>>, vector<20x16xf32>
    %c3_1093 = arith.constant 3 : index
    %c0_1094 = arith.constant 0 : index
    %c0_1095 = arith.constant 0 : index
    %1640 = vector.load %arg10[%c3_1093, %c0_1094, %c0_1095] : memref<5x20x16xf32, #tpu.memory_space<vmem>>, vector<1x20x16xf32>
    %1641 = vector.shape_cast %1640 : vector<1x20x16xf32> to vector<20x16xf32>
    %1642 = vector.shape_cast %1639 : vector<20x16xf32> to vector<1x20x16xf32>
    tpu.vector_store %arg10[%c3_1093, %c0_1094, %c0_1095], %1642 {strides = array<i32>} : memref<5x20x16xf32, #tpu.memory_space<vmem>>, vector<1x20x16xf32>,
    %c6_1096 = arith.constant 6 : index
    %c130_1097 = arith.constant 130 : index
    %1643 = vector.load %arg9[%c6_1096, %c130_1097] : memref<26x146xf32, #tpu.memory_space<vmem>>, vector<20x16xf32>
    %c4_1098 = arith.constant 4 : index
    %c0_1099 = arith.constant 0 : index
    %c0_1100 = arith.constant 0 : index
    %1644 = vector.load %arg10[%c4_1098, %c0_1099, %c0_1100] : memref<5x20x16xf32, #tpu.memory_space<vmem>>, vector<1x20x16xf32>
    %1645 = vector.shape_cast %1644 : vector<1x20x16xf32> to vector<20x16xf32>
    %1646 = vector.shape_cast %1643 : vector<20x16xf32> to vector<1x20x16xf32>
    tpu.vector_store %arg10[%c4_1098, %c0_1099, %c0_1100], %1646 {strides = array<i32>} : memref<5x20x16xf32, #tpu.memory_space<vmem>>, vector<1x20x16xf32>,
    %c0_1101 = arith.constant 0 : index
    %c0_1102 = arith.constant 0 : index
    %c0_1103 = arith.constant 0 : index
    %1647 = vector.load %arg10[%c0_1101, %c0_1102, %c0_1103] : memref<5x20x16xf32, #tpu.memory_space<vmem>>, vector<1x16x16xf32>
    %1648 = vector.shape_cast %1647 : vector<1x16x16xf32> to vector<16x16xf32>
    %c75_1104 = arith.constant 75 : index
    %1649 = memref.load %arg2[%c75_1104] : memref<100xf32, #tpu.memory_space<smem>>
    %1650 = vector.broadcast %1649 : f32 to vector<16x16xf32>
    %1651 = arith.mulf %1648, %1650 : vector<16x16xf32>
    %c1_1105 = arith.constant 1 : index
    %c0_1106 = arith.constant 0 : index
    %c0_1107 = arith.constant 0 : index
    %1652 = vector.load %arg10[%c1_1105, %c0_1106, %c0_1107] : memref<5x20x16xf32, #tpu.memory_space<vmem>>, vector<1x16x16xf32>
    %1653 = vector.shape_cast %1652 : vector<1x16x16xf32> to vector<16x16xf32>
    %c76_1108 = arith.constant 76 : index
    %1654 = memref.load %arg2[%c76_1108] : memref<100xf32, #tpu.memory_space<smem>>
    %1655 = vector.broadcast %1654 : f32 to vector<16x16xf32>
    %1656 = arith.mulf %1653, %1655 : vector<16x16xf32>
    %c2_1109 = arith.constant 2 : index
    %c0_1110 = arith.constant 0 : index
    %c0_1111 = arith.constant 0 : index
    %1657 = vector.load %arg10[%c2_1109, %c0_1110, %c0_1111] : memref<5x20x16xf32, #tpu.memory_space<vmem>>, vector<1x16x16xf32>
    %1658 = vector.shape_cast %1657 : vector<1x16x16xf32> to vector<16x16xf32>
    %c77_1112 = arith.constant 77 : index
    %1659 = memref.load %arg2[%c77_1112] : memref<100xf32, #tpu.memory_space<smem>>
    %1660 = vector.broadcast %1659 : f32 to vector<16x16xf32>
    %1661 = arith.mulf %1658, %1660 : vector<16x16xf32>
    %c3_1113 = arith.constant 3 : index
    %c0_1114 = arith.constant 0 : index
    %c0_1115 = arith.constant 0 : index
    %1662 = vector.load %arg10[%c3_1113, %c0_1114, %c0_1115] : memref<5x20x16xf32, #tpu.memory_space<vmem>>, vector<1x16x16xf32>
    %1663 = vector.shape_cast %1662 : vector<1x16x16xf32> to vector<16x16xf32>
    %c78_1116 = arith.constant 78 : index
    %1664 = memref.load %arg2[%c78_1116] : memref<100xf32, #tpu.memory_space<smem>>
    %1665 = vector.broadcast %1664 : f32 to vector<16x16xf32>
    %1666 = arith.mulf %1663, %1665 : vector<16x16xf32>
    %c4_1117 = arith.constant 4 : index
    %c0_1118 = arith.constant 0 : index
    %c0_1119 = arith.constant 0 : index
    %1667 = vector.load %arg10[%c4_1117, %c0_1118, %c0_1119] : memref<5x20x16xf32, #tpu.memory_space<vmem>>, vector<1x16x16xf32>
    %1668 = vector.shape_cast %1667 : vector<1x16x16xf32> to vector<16x16xf32>
    %c79_1120 = arith.constant 79 : index
    %1669 = memref.load %arg2[%c79_1120] : memref<100xf32, #tpu.memory_space<smem>>
    %1670 = vector.broadcast %1669 : f32 to vector<16x16xf32>
    %1671 = arith.mulf %1668, %1670 : vector<16x16xf32>
    %1672 = arith.addf %1651, %1671 : vector<16x16xf32>
    %c0_1121 = arith.constant 0 : index
    %c1_1122 = arith.constant 1 : index
    %c0_1123 = arith.constant 0 : index
    %1673 = vector.load %arg10[%c0_1121, %c1_1122, %c0_1123] : memref<5x20x16xf32, #tpu.memory_space<vmem>>, vector<1x16x16xf32>
    %1674 = vector.shape_cast %1673 : vector<1x16x16xf32> to vector<16x16xf32>
    %c80_1124 = arith.constant 80 : index
    %1675 = memref.load %arg2[%c80_1124] : memref<100xf32, #tpu.memory_space<smem>>
    %1676 = vector.broadcast %1675 : f32 to vector<16x16xf32>
    %1677 = arith.mulf %1674, %1676 : vector<16x16xf32>
    %1678 = arith.addf %1656, %1677 : vector<16x16xf32>
    %c1_1125 = arith.constant 1 : index
    %c1_1126 = arith.constant 1 : index
    %c0_1127 = arith.constant 0 : index
    %1679 = vector.load %arg10[%c1_1125, %c1_1126, %c0_1127] : memref<5x20x16xf32, #tpu.memory_space<vmem>>, vector<1x16x16xf32>
    %1680 = vector.shape_cast %1679 : vector<1x16x16xf32> to vector<16x16xf32>
    %c81_1128 = arith.constant 81 : index
    %1681 = memref.load %arg2[%c81_1128] : memref<100xf32, #tpu.memory_space<smem>>
    %1682 = vector.broadcast %1681 : f32 to vector<16x16xf32>
    %1683 = arith.mulf %1680, %1682 : vector<16x16xf32>
    %1684 = arith.addf %1661, %1683 : vector<16x16xf32>
    %c2_1129 = arith.constant 2 : index
    %c1_1130 = arith.constant 1 : index
    %c0_1131 = arith.constant 0 : index
    %1685 = vector.load %arg10[%c2_1129, %c1_1130, %c0_1131] : memref<5x20x16xf32, #tpu.memory_space<vmem>>, vector<1x16x16xf32>
    %1686 = vector.shape_cast %1685 : vector<1x16x16xf32> to vector<16x16xf32>
    %c82_1132 = arith.constant 82 : index
    %1687 = memref.load %arg2[%c82_1132] : memref<100xf32, #tpu.memory_space<smem>>
    %1688 = vector.broadcast %1687 : f32 to vector<16x16xf32>
    %1689 = arith.mulf %1686, %1688 : vector<16x16xf32>
    %1690 = arith.addf %1666, %1689 : vector<16x16xf32>
    %c3_1133 = arith.constant 3 : index
    %c1_1134 = arith.constant 1 : index
    %c0_1135 = arith.constant 0 : index
    %1691 = vector.load %arg10[%c3_1133, %c1_1134, %c0_1135] : memref<5x20x16xf32, #tpu.memory_space<vmem>>, vector<1x16x16xf32>
    %1692 = vector.shape_cast %1691 : vector<1x16x16xf32> to vector<16x16xf32>
    %c83_1136 = arith.constant 83 : index
    %1693 = memref.load %arg2[%c83_1136] : memref<100xf32, #tpu.memory_space<smem>>
    %1694 = vector.broadcast %1693 : f32 to vector<16x16xf32>
    %1695 = arith.mulf %1692, %1694 : vector<16x16xf32>
    %1696 = arith.addf %1672, %1695 : vector<16x16xf32>
    %c4_1137 = arith.constant 4 : index
    %c1_1138 = arith.constant 1 : index
    %c0_1139 = arith.constant 0 : index
    %1697 = vector.load %arg10[%c4_1137, %c1_1138, %c0_1139] : memref<5x20x16xf32, #tpu.memory_space<vmem>>, vector<1x16x16xf32>
    %1698 = vector.shape_cast %1697 : vector<1x16x16xf32> to vector<16x16xf32>
    %c84_1140 = arith.constant 84 : index
    %1699 = memref.load %arg2[%c84_1140] : memref<100xf32, #tpu.memory_space<smem>>
    %1700 = vector.broadcast %1699 : f32 to vector<16x16xf32>
    %1701 = arith.mulf %1698, %1700 : vector<16x16xf32>
    %1702 = arith.addf %1678, %1701 : vector<16x16xf32>
    %c0_1141 = arith.constant 0 : index
    %c2_1142 = arith.constant 2 : index
    %c0_1143 = arith.constant 0 : index
    %1703 = vector.load %arg10[%c0_1141, %c2_1142, %c0_1143] : memref<5x20x16xf32, #tpu.memory_space<vmem>>, vector<1x16x16xf32>
    %1704 = vector.shape_cast %1703 : vector<1x16x16xf32> to vector<16x16xf32>
    %c85_1144 = arith.constant 85 : index
    %1705 = memref.load %arg2[%c85_1144] : memref<100xf32, #tpu.memory_space<smem>>
    %1706 = vector.broadcast %1705 : f32 to vector<16x16xf32>
    %1707 = arith.mulf %1704, %1706 : vector<16x16xf32>
    %1708 = arith.addf %1684, %1707 : vector<16x16xf32>
    %c1_1145 = arith.constant 1 : index
    %c2_1146 = arith.constant 2 : index
    %c0_1147 = arith.constant 0 : index
    %1709 = vector.load %arg10[%c1_1145, %c2_1146, %c0_1147] : memref<5x20x16xf32, #tpu.memory_space<vmem>>, vector<1x16x16xf32>
    %1710 = vector.shape_cast %1709 : vector<1x16x16xf32> to vector<16x16xf32>
    %c86_1148 = arith.constant 86 : index
    %1711 = memref.load %arg2[%c86_1148] : memref<100xf32, #tpu.memory_space<smem>>
    %1712 = vector.broadcast %1711 : f32 to vector<16x16xf32>
    %1713 = arith.mulf %1710, %1712 : vector<16x16xf32>
    %1714 = arith.addf %1690, %1713 : vector<16x16xf32>
    %c2_1149 = arith.constant 2 : index
    %c2_1150 = arith.constant 2 : index
    %c0_1151 = arith.constant 0 : index
    %1715 = vector.load %arg10[%c2_1149, %c2_1150, %c0_1151] : memref<5x20x16xf32, #tpu.memory_space<vmem>>, vector<1x16x16xf32>
    %1716 = vector.shape_cast %1715 : vector<1x16x16xf32> to vector<16x16xf32>
    %c87_1152 = arith.constant 87 : index
    %1717 = memref.load %arg2[%c87_1152] : memref<100xf32, #tpu.memory_space<smem>>
    %1718 = vector.broadcast %1717 : f32 to vector<16x16xf32>
    %1719 = arith.mulf %1716, %1718 : vector<16x16xf32>
    %1720 = arith.addf %1696, %1719 : vector<16x16xf32>
    %c3_1153 = arith.constant 3 : index
    %c2_1154 = arith.constant 2 : index
    %c0_1155 = arith.constant 0 : index
    %1721 = vector.load %arg10[%c3_1153, %c2_1154, %c0_1155] : memref<5x20x16xf32, #tpu.memory_space<vmem>>, vector<1x16x16xf32>
    %1722 = vector.shape_cast %1721 : vector<1x16x16xf32> to vector<16x16xf32>
    %c88_1156 = arith.constant 88 : index
    %1723 = memref.load %arg2[%c88_1156] : memref<100xf32, #tpu.memory_space<smem>>
    %1724 = vector.broadcast %1723 : f32 to vector<16x16xf32>
    %1725 = arith.mulf %1722, %1724 : vector<16x16xf32>
    %1726 = arith.addf %1702, %1725 : vector<16x16xf32>
    %c4_1157 = arith.constant 4 : index
    %c2_1158 = arith.constant 2 : index
    %c0_1159 = arith.constant 0 : index
    %1727 = vector.load %arg10[%c4_1157, %c2_1158, %c0_1159] : memref<5x20x16xf32, #tpu.memory_space<vmem>>, vector<1x16x16xf32>
    %1728 = vector.shape_cast %1727 : vector<1x16x16xf32> to vector<16x16xf32>
    %c89_1160 = arith.constant 89 : index
    %1729 = memref.load %arg2[%c89_1160] : memref<100xf32, #tpu.memory_space<smem>>
    %1730 = vector.broadcast %1729 : f32 to vector<16x16xf32>
    %1731 = arith.mulf %1728, %1730 : vector<16x16xf32>
    %1732 = arith.addf %1708, %1731 : vector<16x16xf32>
    %c0_1161 = arith.constant 0 : index
    %c3_1162 = arith.constant 3 : index
    %c0_1163 = arith.constant 0 : index
    %1733 = vector.load %arg10[%c0_1161, %c3_1162, %c0_1163] : memref<5x20x16xf32, #tpu.memory_space<vmem>>, vector<1x16x16xf32>
    %1734 = vector.shape_cast %1733 : vector<1x16x16xf32> to vector<16x16xf32>
    %c90_1164 = arith.constant 90 : index
    %1735 = memref.load %arg2[%c90_1164] : memref<100xf32, #tpu.memory_space<smem>>
    %1736 = vector.broadcast %1735 : f32 to vector<16x16xf32>
    %1737 = arith.mulf %1734, %1736 : vector<16x16xf32>
    %1738 = arith.addf %1714, %1737 : vector<16x16xf32>
    %c1_1165 = arith.constant 1 : index
    %c3_1166 = arith.constant 3 : index
    %c0_1167 = arith.constant 0 : index
    %1739 = vector.load %arg10[%c1_1165, %c3_1166, %c0_1167] : memref<5x20x16xf32, #tpu.memory_space<vmem>>, vector<1x16x16xf32>
    %1740 = vector.shape_cast %1739 : vector<1x16x16xf32> to vector<16x16xf32>
    %c91_1168 = arith.constant 91 : index
    %1741 = memref.load %arg2[%c91_1168] : memref<100xf32, #tpu.memory_space<smem>>
    %1742 = vector.broadcast %1741 : f32 to vector<16x16xf32>
    %1743 = arith.mulf %1740, %1742 : vector<16x16xf32>
    %1744 = arith.addf %1720, %1743 : vector<16x16xf32>
    %c2_1169 = arith.constant 2 : index
    %c3_1170 = arith.constant 3 : index
    %c0_1171 = arith.constant 0 : index
    %1745 = vector.load %arg10[%c2_1169, %c3_1170, %c0_1171] : memref<5x20x16xf32, #tpu.memory_space<vmem>>, vector<1x16x16xf32>
    %1746 = vector.shape_cast %1745 : vector<1x16x16xf32> to vector<16x16xf32>
    %c92_1172 = arith.constant 92 : index
    %1747 = memref.load %arg2[%c92_1172] : memref<100xf32, #tpu.memory_space<smem>>
    %1748 = vector.broadcast %1747 : f32 to vector<16x16xf32>
    %1749 = arith.mulf %1746, %1748 : vector<16x16xf32>
    %1750 = arith.addf %1726, %1749 : vector<16x16xf32>
    %c3_1173 = arith.constant 3 : index
    %c3_1174 = arith.constant 3 : index
    %c0_1175 = arith.constant 0 : index
    %1751 = vector.load %arg10[%c3_1173, %c3_1174, %c0_1175] : memref<5x20x16xf32, #tpu.memory_space<vmem>>, vector<1x16x16xf32>
    %1752 = vector.shape_cast %1751 : vector<1x16x16xf32> to vector<16x16xf32>
    %c93_1176 = arith.constant 93 : index
    %1753 = memref.load %arg2[%c93_1176] : memref<100xf32, #tpu.memory_space<smem>>
    %1754 = vector.broadcast %1753 : f32 to vector<16x16xf32>
    %1755 = arith.mulf %1752, %1754 : vector<16x16xf32>
    %1756 = arith.addf %1732, %1755 : vector<16x16xf32>
    %c4_1177 = arith.constant 4 : index
    %c3_1178 = arith.constant 3 : index
    %c0_1179 = arith.constant 0 : index
    %1757 = vector.load %arg10[%c4_1177, %c3_1178, %c0_1179] : memref<5x20x16xf32, #tpu.memory_space<vmem>>, vector<1x16x16xf32>
    %1758 = vector.shape_cast %1757 : vector<1x16x16xf32> to vector<16x16xf32>
    %c94_1180 = arith.constant 94 : index
    %1759 = memref.load %arg2[%c94_1180] : memref<100xf32, #tpu.memory_space<smem>>
    %1760 = vector.broadcast %1759 : f32 to vector<16x16xf32>
    %1761 = arith.mulf %1758, %1760 : vector<16x16xf32>
    %1762 = arith.addf %1738, %1761 : vector<16x16xf32>
    %c0_1181 = arith.constant 0 : index
    %c4_1182 = arith.constant 4 : index
    %c0_1183 = arith.constant 0 : index
    %1763 = vector.load %arg10[%c0_1181, %c4_1182, %c0_1183] : memref<5x20x16xf32, #tpu.memory_space<vmem>>, vector<1x16x16xf32>
    %1764 = vector.shape_cast %1763 : vector<1x16x16xf32> to vector<16x16xf32>
    %c95_1184 = arith.constant 95 : index
    %1765 = memref.load %arg2[%c95_1184] : memref<100xf32, #tpu.memory_space<smem>>
    %1766 = vector.broadcast %1765 : f32 to vector<16x16xf32>
    %1767 = arith.mulf %1764, %1766 : vector<16x16xf32>
    %1768 = arith.addf %1744, %1767 : vector<16x16xf32>
    %c1_1185 = arith.constant 1 : index
    %c4_1186 = arith.constant 4 : index
    %c0_1187 = arith.constant 0 : index
    %1769 = vector.load %arg10[%c1_1185, %c4_1186, %c0_1187] : memref<5x20x16xf32, #tpu.memory_space<vmem>>, vector<1x16x16xf32>
    %1770 = vector.shape_cast %1769 : vector<1x16x16xf32> to vector<16x16xf32>
    %c96_1188 = arith.constant 96 : index
    %1771 = memref.load %arg2[%c96_1188] : memref<100xf32, #tpu.memory_space<smem>>
    %1772 = vector.broadcast %1771 : f32 to vector<16x16xf32>
    %1773 = arith.mulf %1770, %1772 : vector<16x16xf32>
    %1774 = arith.addf %1750, %1773 : vector<16x16xf32>
    %c2_1189 = arith.constant 2 : index
    %c4_1190 = arith.constant 4 : index
    %c0_1191 = arith.constant 0 : index
    %1775 = vector.load %arg10[%c2_1189, %c4_1190, %c0_1191] : memref<5x20x16xf32, #tpu.memory_space<vmem>>, vector<1x16x16xf32>
    %1776 = vector.shape_cast %1775 : vector<1x16x16xf32> to vector<16x16xf32>
    %c97_1192 = arith.constant 97 : index
    %1777 = memref.load %arg2[%c97_1192] : memref<100xf32, #tpu.memory_space<smem>>
    %1778 = vector.broadcast %1777 : f32 to vector<16x16xf32>
    %1779 = arith.mulf %1776, %1778 : vector<16x16xf32>
    %1780 = arith.addf %1756, %1779 : vector<16x16xf32>
    %c3_1193 = arith.constant 3 : index
    %c4_1194 = arith.constant 4 : index
    %c0_1195 = arith.constant 0 : index
    %1781 = vector.load %arg10[%c3_1193, %c4_1194, %c0_1195] : memref<5x20x16xf32, #tpu.memory_space<vmem>>, vector<1x16x16xf32>
    %1782 = vector.shape_cast %1781 : vector<1x16x16xf32> to vector<16x16xf32>
    %c98_1196 = arith.constant 98 : index
    %1783 = memref.load %arg2[%c98_1196] : memref<100xf32, #tpu.memory_space<smem>>
    %1784 = vector.broadcast %1783 : f32 to vector<16x16xf32>
    %1785 = arith.mulf %1782, %1784 : vector<16x16xf32>
    %1786 = arith.addf %1762, %1785 : vector<16x16xf32>
    %c4_1197 = arith.constant 4 : index
    %c4_1198 = arith.constant 4 : index
    %c0_1199 = arith.constant 0 : index
    %1787 = vector.load %arg10[%c4_1197, %c4_1198, %c0_1199] : memref<5x20x16xf32, #tpu.memory_space<vmem>>, vector<1x16x16xf32>
    %1788 = vector.shape_cast %1787 : vector<1x16x16xf32> to vector<16x16xf32>
    %c99_1200 = arith.constant 99 : index
    %1789 = memref.load %arg2[%c99_1200] : memref<100xf32, #tpu.memory_space<smem>>
    %1790 = vector.broadcast %1789 : f32 to vector<16x16xf32>
    %1791 = arith.mulf %1788, %1790 : vector<16x16xf32>
    %1792 = arith.addf %1768, %1791 : vector<16x16xf32>
    %1793 = arith.addf %1792, %1774 : vector<16x16xf32>
    %1794 = arith.addf %1793, %1780 : vector<16x16xf32>
    %1795 = arith.addf %1794, %1786 : vector<16x16xf32>
    %c3_1201 = arith.constant 3 : index
    %1796 = memref.load %arg3[%c3_1201] : memref<4xf32, #tpu.memory_space<smem>>
    %1797 = vector.broadcast %1796 : f32 to vector<16x16xf32>
    %1798 = arith.addf %1795, %1797 : vector<16x16xf32>
    %c16_1202 = arith.constant 16 : index
    %c128_1203 = arith.constant 128 : index
    %1799 = vector.load %arg11[%c16_1202, %c128_1203] : memref<41x153xf32, #tpu.memory_space<vmem>>, vector<16x16xf32>
    tpu.vector_store %arg11[%c16_1202, %c128_1203], %1798 {strides = array<i32>} : memref<41x153xf32, #tpu.memory_space<vmem>>, vector<16x16xf32>,
    %c7_1204 = arith.constant 7 : index
    %c119_1205 = arith.constant 119 : index
    %1800 = vector.load %arg11[%c7_1204, %c119_1205] : memref<41x153xf32, #tpu.memory_space<vmem>>, vector<34x16xf32>
    %c0_1206 = arith.constant 0 : index
    %c0_1207 = arith.constant 0 : index
    %c0_1208 = arith.constant 0 : index
    %1801 = vector.load %arg12[%c0_1206, %c0_1207, %c0_1208] : memref<7x34x16xf32, #tpu.memory_space<vmem>>, vector<1x34x16xf32>
    %1802 = vector.shape_cast %1801 : vector<1x34x16xf32> to vector<34x16xf32>
    %1803 = vector.shape_cast %1800 : vector<34x16xf32> to vector<1x34x16xf32>
    tpu.vector_store %arg12[%c0_1206, %c0_1207, %c0_1208], %1803 {strides = array<i32>} : memref<7x34x16xf32, #tpu.memory_space<vmem>>, vector<1x34x16xf32>,
    %c7_1209 = arith.constant 7 : index
    %c122_1210 = arith.constant 122 : index
    %1804 = vector.load %arg11[%c7_1209, %c122_1210] : memref<41x153xf32, #tpu.memory_space<vmem>>, vector<34x16xf32>
    %c1_1211 = arith.constant 1 : index
    %c0_1212 = arith.constant 0 : index
    %c0_1213 = arith.constant 0 : index
    %1805 = vector.load %arg12[%c1_1211, %c0_1212, %c0_1213] : memref<7x34x16xf32, #tpu.memory_space<vmem>>, vector<1x34x16xf32>
    %1806 = vector.shape_cast %1805 : vector<1x34x16xf32> to vector<34x16xf32>
    %1807 = vector.shape_cast %1804 : vector<34x16xf32> to vector<1x34x16xf32>
    tpu.vector_store %arg12[%c1_1211, %c0_1212, %c0_1213], %1807 {strides = array<i32>} : memref<7x34x16xf32, #tpu.memory_space<vmem>>, vector<1x34x16xf32>,
    %c7_1214 = arith.constant 7 : index
    %c125_1215 = arith.constant 125 : index
    %1808 = vector.load %arg11[%c7_1214, %c125_1215] : memref<41x153xf32, #tpu.memory_space<vmem>>, vector<34x16xf32>
    %c2_1216 = arith.constant 2 : index
    %c0_1217 = arith.constant 0 : index
    %c0_1218 = arith.constant 0 : index
    %1809 = vector.load %arg12[%c2_1216, %c0_1217, %c0_1218] : memref<7x34x16xf32, #tpu.memory_space<vmem>>, vector<1x34x16xf32>
    %1810 = vector.shape_cast %1809 : vector<1x34x16xf32> to vector<34x16xf32>
    %1811 = vector.shape_cast %1808 : vector<34x16xf32> to vector<1x34x16xf32>
    tpu.vector_store %arg12[%c2_1216, %c0_1217, %c0_1218], %1811 {strides = array<i32>} : memref<7x34x16xf32, #tpu.memory_space<vmem>>, vector<1x34x16xf32>,
    %c7_1219 = arith.constant 7 : index
    %c128_1220 = arith.constant 128 : index
    %1812 = vector.load %arg11[%c7_1219, %c128_1220] : memref<41x153xf32, #tpu.memory_space<vmem>>, vector<34x16xf32>
    %c3_1221 = arith.constant 3 : index
    %c0_1222 = arith.constant 0 : index
    %c0_1223 = arith.constant 0 : index
    %1813 = vector.load %arg12[%c3_1221, %c0_1222, %c0_1223] : memref<7x34x16xf32, #tpu.memory_space<vmem>>, vector<1x34x16xf32>
    %1814 = vector.shape_cast %1813 : vector<1x34x16xf32> to vector<34x16xf32>
    %1815 = vector.shape_cast %1812 : vector<34x16xf32> to vector<1x34x16xf32>
    tpu.vector_store %arg12[%c3_1221, %c0_1222, %c0_1223], %1815 {strides = array<i32>} : memref<7x34x16xf32, #tpu.memory_space<vmem>>, vector<1x34x16xf32>,
    %c7_1224 = arith.constant 7 : index
    %c131_1225 = arith.constant 131 : index
    %1816 = vector.load %arg11[%c7_1224, %c131_1225] : memref<41x153xf32, #tpu.memory_space<vmem>>, vector<34x16xf32>
    %c4_1226 = arith.constant 4 : index
    %c0_1227 = arith.constant 0 : index
    %c0_1228 = arith.constant 0 : index
    %1817 = vector.load %arg12[%c4_1226, %c0_1227, %c0_1228] : memref<7x34x16xf32, #tpu.memory_space<vmem>>, vector<1x34x16xf32>
    %1818 = vector.shape_cast %1817 : vector<1x34x16xf32> to vector<34x16xf32>
    %1819 = vector.shape_cast %1816 : vector<34x16xf32> to vector<1x34x16xf32>
    tpu.vector_store %arg12[%c4_1226, %c0_1227, %c0_1228], %1819 {strides = array<i32>} : memref<7x34x16xf32, #tpu.memory_space<vmem>>, vector<1x34x16xf32>,
    %c7_1229 = arith.constant 7 : index
    %c134_1230 = arith.constant 134 : index
    %1820 = vector.load %arg11[%c7_1229, %c134_1230] : memref<41x153xf32, #tpu.memory_space<vmem>>, vector<34x16xf32>
    %c5_1231 = arith.constant 5 : index
    %c0_1232 = arith.constant 0 : index
    %c0_1233 = arith.constant 0 : index
    %1821 = vector.load %arg12[%c5_1231, %c0_1232, %c0_1233] : memref<7x34x16xf32, #tpu.memory_space<vmem>>, vector<1x34x16xf32>
    %1822 = vector.shape_cast %1821 : vector<1x34x16xf32> to vector<34x16xf32>
    %1823 = vector.shape_cast %1820 : vector<34x16xf32> to vector<1x34x16xf32>
    tpu.vector_store %arg12[%c5_1231, %c0_1232, %c0_1233], %1823 {strides = array<i32>} : memref<7x34x16xf32, #tpu.memory_space<vmem>>, vector<1x34x16xf32>,
    %c7_1234 = arith.constant 7 : index
    %c137_1235 = arith.constant 137 : index
    %1824 = vector.load %arg11[%c7_1234, %c137_1235] : memref<41x153xf32, #tpu.memory_space<vmem>>, vector<34x16xf32>
    %c6_1236 = arith.constant 6 : index
    %c0_1237 = arith.constant 0 : index
    %c0_1238 = arith.constant 0 : index
    %1825 = vector.load %arg12[%c6_1236, %c0_1237, %c0_1238] : memref<7x34x16xf32, #tpu.memory_space<vmem>>, vector<1x34x16xf32>
    %1826 = vector.shape_cast %1825 : vector<1x34x16xf32> to vector<34x16xf32>
    %1827 = vector.shape_cast %1824 : vector<34x16xf32> to vector<1x34x16xf32>
    tpu.vector_store %arg12[%c6_1236, %c0_1237, %c0_1238], %1827 {strides = array<i32>} : memref<7x34x16xf32, #tpu.memory_space<vmem>>, vector<1x34x16xf32>,
    %c0_1239 = arith.constant 0 : index
    %c0_1240 = arith.constant 0 : index
    %c0_1241 = arith.constant 0 : index
    %1828 = vector.load %arg12[%c0_1239, %c0_1240, %c0_1241] : memref<7x34x16xf32, #tpu.memory_space<vmem>>, vector<1x16x16xf32>
    %1829 = vector.shape_cast %1828 : vector<1x16x16xf32> to vector<16x16xf32>
    %c147 = arith.constant 147 : index
    %1830 = memref.load %arg4[%c147] : memref<196xf32, #tpu.memory_space<smem>>
    %1831 = vector.broadcast %1830 : f32 to vector<16x16xf32>
    %1832 = arith.mulf %1829, %1831 : vector<16x16xf32>
    %c1_1242 = arith.constant 1 : index
    %c0_1243 = arith.constant 0 : index
    %c0_1244 = arith.constant 0 : index
    %1833 = vector.load %arg12[%c1_1242, %c0_1243, %c0_1244] : memref<7x34x16xf32, #tpu.memory_space<vmem>>, vector<1x16x16xf32>
    %1834 = vector.shape_cast %1833 : vector<1x16x16xf32> to vector<16x16xf32>
    %c148 = arith.constant 148 : index
    %1835 = memref.load %arg4[%c148] : memref<196xf32, #tpu.memory_space<smem>>
    %1836 = vector.broadcast %1835 : f32 to vector<16x16xf32>
    %1837 = arith.mulf %1834, %1836 : vector<16x16xf32>
    %c2_1245 = arith.constant 2 : index
    %c0_1246 = arith.constant 0 : index
    %c0_1247 = arith.constant 0 : index
    %1838 = vector.load %arg12[%c2_1245, %c0_1246, %c0_1247] : memref<7x34x16xf32, #tpu.memory_space<vmem>>, vector<1x16x16xf32>
    %1839 = vector.shape_cast %1838 : vector<1x16x16xf32> to vector<16x16xf32>
    %c149 = arith.constant 149 : index
    %1840 = memref.load %arg4[%c149] : memref<196xf32, #tpu.memory_space<smem>>
    %1841 = vector.broadcast %1840 : f32 to vector<16x16xf32>
    %1842 = arith.mulf %1839, %1841 : vector<16x16xf32>
    %c3_1248 = arith.constant 3 : index
    %c0_1249 = arith.constant 0 : index
    %c0_1250 = arith.constant 0 : index
    %1843 = vector.load %arg12[%c3_1248, %c0_1249, %c0_1250] : memref<7x34x16xf32, #tpu.memory_space<vmem>>, vector<1x16x16xf32>
    %1844 = vector.shape_cast %1843 : vector<1x16x16xf32> to vector<16x16xf32>
    %c150 = arith.constant 150 : index
    %1845 = memref.load %arg4[%c150] : memref<196xf32, #tpu.memory_space<smem>>
    %1846 = vector.broadcast %1845 : f32 to vector<16x16xf32>
    %1847 = arith.mulf %1844, %1846 : vector<16x16xf32>
    %c4_1251 = arith.constant 4 : index
    %c0_1252 = arith.constant 0 : index
    %c0_1253 = arith.constant 0 : index
    %1848 = vector.load %arg12[%c4_1251, %c0_1252, %c0_1253] : memref<7x34x16xf32, #tpu.memory_space<vmem>>, vector<1x16x16xf32>
    %1849 = vector.shape_cast %1848 : vector<1x16x16xf32> to vector<16x16xf32>
    %c151 = arith.constant 151 : index
    %1850 = memref.load %arg4[%c151] : memref<196xf32, #tpu.memory_space<smem>>
    %1851 = vector.broadcast %1850 : f32 to vector<16x16xf32>
    %1852 = arith.mulf %1849, %1851 : vector<16x16xf32>
    %1853 = arith.addf %1832, %1852 : vector<16x16xf32>
    %c5_1254 = arith.constant 5 : index
    %c0_1255 = arith.constant 0 : index
    %c0_1256 = arith.constant 0 : index
    %1854 = vector.load %arg12[%c5_1254, %c0_1255, %c0_1256] : memref<7x34x16xf32, #tpu.memory_space<vmem>>, vector<1x16x16xf32>
    %1855 = vector.shape_cast %1854 : vector<1x16x16xf32> to vector<16x16xf32>
    %c152 = arith.constant 152 : index
    %1856 = memref.load %arg4[%c152] : memref<196xf32, #tpu.memory_space<smem>>
    %1857 = vector.broadcast %1856 : f32 to vector<16x16xf32>
    %1858 = arith.mulf %1855, %1857 : vector<16x16xf32>
    %1859 = arith.addf %1837, %1858 : vector<16x16xf32>
    %c6_1257 = arith.constant 6 : index
    %c0_1258 = arith.constant 0 : index
    %c0_1259 = arith.constant 0 : index
    %1860 = vector.load %arg12[%c6_1257, %c0_1258, %c0_1259] : memref<7x34x16xf32, #tpu.memory_space<vmem>>, vector<1x16x16xf32>
    %1861 = vector.shape_cast %1860 : vector<1x16x16xf32> to vector<16x16xf32>
    %c153 = arith.constant 153 : index
    %1862 = memref.load %arg4[%c153] : memref<196xf32, #tpu.memory_space<smem>>
    %1863 = vector.broadcast %1862 : f32 to vector<16x16xf32>
    %1864 = arith.mulf %1861, %1863 : vector<16x16xf32>
    %1865 = arith.addf %1842, %1864 : vector<16x16xf32>
    %c0_1260 = arith.constant 0 : index
    %c3_1261 = arith.constant 3 : index
    %c0_1262 = arith.constant 0 : index
    %1866 = vector.load %arg12[%c0_1260, %c3_1261, %c0_1262] : memref<7x34x16xf32, #tpu.memory_space<vmem>>, vector<1x16x16xf32>
    %1867 = vector.shape_cast %1866 : vector<1x16x16xf32> to vector<16x16xf32>
    %c154 = arith.constant 154 : index
    %1868 = memref.load %arg4[%c154] : memref<196xf32, #tpu.memory_space<smem>>
    %1869 = vector.broadcast %1868 : f32 to vector<16x16xf32>
    %1870 = arith.mulf %1867, %1869 : vector<16x16xf32>
    %1871 = arith.addf %1847, %1870 : vector<16x16xf32>
    %c1_1263 = arith.constant 1 : index
    %c3_1264 = arith.constant 3 : index
    %c0_1265 = arith.constant 0 : index
    %1872 = vector.load %arg12[%c1_1263, %c3_1264, %c0_1265] : memref<7x34x16xf32, #tpu.memory_space<vmem>>, vector<1x16x16xf32>
    %1873 = vector.shape_cast %1872 : vector<1x16x16xf32> to vector<16x16xf32>
    %c155 = arith.constant 155 : index
    %1874 = memref.load %arg4[%c155] : memref<196xf32, #tpu.memory_space<smem>>
    %1875 = vector.broadcast %1874 : f32 to vector<16x16xf32>
    %1876 = arith.mulf %1873, %1875 : vector<16x16xf32>
    %1877 = arith.addf %1853, %1876 : vector<16x16xf32>
    %c2_1266 = arith.constant 2 : index
    %c3_1267 = arith.constant 3 : index
    %c0_1268 = arith.constant 0 : index
    %1878 = vector.load %arg12[%c2_1266, %c3_1267, %c0_1268] : memref<7x34x16xf32, #tpu.memory_space<vmem>>, vector<1x16x16xf32>
    %1879 = vector.shape_cast %1878 : vector<1x16x16xf32> to vector<16x16xf32>
    %c156 = arith.constant 156 : index
    %1880 = memref.load %arg4[%c156] : memref<196xf32, #tpu.memory_space<smem>>
    %1881 = vector.broadcast %1880 : f32 to vector<16x16xf32>
    %1882 = arith.mulf %1879, %1881 : vector<16x16xf32>
    %1883 = arith.addf %1859, %1882 : vector<16x16xf32>
    %c3_1269 = arith.constant 3 : index
    %c3_1270 = arith.constant 3 : index
    %c0_1271 = arith.constant 0 : index
    %1884 = vector.load %arg12[%c3_1269, %c3_1270, %c0_1271] : memref<7x34x16xf32, #tpu.memory_space<vmem>>, vector<1x16x16xf32>
    %1885 = vector.shape_cast %1884 : vector<1x16x16xf32> to vector<16x16xf32>
    %c157 = arith.constant 157 : index
    %1886 = memref.load %arg4[%c157] : memref<196xf32, #tpu.memory_space<smem>>
    %1887 = vector.broadcast %1886 : f32 to vector<16x16xf32>
    %1888 = arith.mulf %1885, %1887 : vector<16x16xf32>
    %1889 = arith.addf %1865, %1888 : vector<16x16xf32>
    %c4_1272 = arith.constant 4 : index
    %c3_1273 = arith.constant 3 : index
    %c0_1274 = arith.constant 0 : index
    %1890 = vector.load %arg12[%c4_1272, %c3_1273, %c0_1274] : memref<7x34x16xf32, #tpu.memory_space<vmem>>, vector<1x16x16xf32>
    %1891 = vector.shape_cast %1890 : vector<1x16x16xf32> to vector<16x16xf32>
    %c158 = arith.constant 158 : index
    %1892 = memref.load %arg4[%c158] : memref<196xf32, #tpu.memory_space<smem>>
    %1893 = vector.broadcast %1892 : f32 to vector<16x16xf32>
    %1894 = arith.mulf %1891, %1893 : vector<16x16xf32>
    %1895 = arith.addf %1871, %1894 : vector<16x16xf32>
    %c5_1275 = arith.constant 5 : index
    %c3_1276 = arith.constant 3 : index
    %c0_1277 = arith.constant 0 : index
    %1896 = vector.load %arg12[%c5_1275, %c3_1276, %c0_1277] : memref<7x34x16xf32, #tpu.memory_space<vmem>>, vector<1x16x16xf32>
    %1897 = vector.shape_cast %1896 : vector<1x16x16xf32> to vector<16x16xf32>
    %c159 = arith.constant 159 : index
    %1898 = memref.load %arg4[%c159] : memref<196xf32, #tpu.memory_space<smem>>
    %1899 = vector.broadcast %1898 : f32 to vector<16x16xf32>
    %1900 = arith.mulf %1897, %1899 : vector<16x16xf32>
    %1901 = arith.addf %1877, %1900 : vector<16x16xf32>
    %c6_1278 = arith.constant 6 : index
    %c3_1279 = arith.constant 3 : index
    %c0_1280 = arith.constant 0 : index
    %1902 = vector.load %arg12[%c6_1278, %c3_1279, %c0_1280] : memref<7x34x16xf32, #tpu.memory_space<vmem>>, vector<1x16x16xf32>
    %1903 = vector.shape_cast %1902 : vector<1x16x16xf32> to vector<16x16xf32>
    %c160 = arith.constant 160 : index
    %1904 = memref.load %arg4[%c160] : memref<196xf32, #tpu.memory_space<smem>>
    %1905 = vector.broadcast %1904 : f32 to vector<16x16xf32>
    %1906 = arith.mulf %1903, %1905 : vector<16x16xf32>
    %1907 = arith.addf %1883, %1906 : vector<16x16xf32>
    %c0_1281 = arith.constant 0 : index
    %c6_1282 = arith.constant 6 : index
    %c0_1283 = arith.constant 0 : index
    %1908 = vector.load %arg12[%c0_1281, %c6_1282, %c0_1283] : memref<7x34x16xf32, #tpu.memory_space<vmem>>, vector<1x16x16xf32>
    %1909 = vector.shape_cast %1908 : vector<1x16x16xf32> to vector<16x16xf32>
    %c161 = arith.constant 161 : index
    %1910 = memref.load %arg4[%c161] : memref<196xf32, #tpu.memory_space<smem>>
    %1911 = vector.broadcast %1910 : f32 to vector<16x16xf32>
    %1912 = arith.mulf %1909, %1911 : vector<16x16xf32>
    %1913 = arith.addf %1889, %1912 : vector<16x16xf32>
    %c1_1284 = arith.constant 1 : index
    %c6_1285 = arith.constant 6 : index
    %c0_1286 = arith.constant 0 : index
    %1914 = vector.load %arg12[%c1_1284, %c6_1285, %c0_1286] : memref<7x34x16xf32, #tpu.memory_space<vmem>>, vector<1x16x16xf32>
    %1915 = vector.shape_cast %1914 : vector<1x16x16xf32> to vector<16x16xf32>
    %c162 = arith.constant 162 : index
    %1916 = memref.load %arg4[%c162] : memref<196xf32, #tpu.memory_space<smem>>
    %1917 = vector.broadcast %1916 : f32 to vector<16x16xf32>
    %1918 = arith.mulf %1915, %1917 : vector<16x16xf32>
    %1919 = arith.addf %1895, %1918 : vector<16x16xf32>
    %c2_1287 = arith.constant 2 : index
    %c6_1288 = arith.constant 6 : index
    %c0_1289 = arith.constant 0 : index
    %1920 = vector.load %arg12[%c2_1287, %c6_1288, %c0_1289] : memref<7x34x16xf32, #tpu.memory_space<vmem>>, vector<1x16x16xf32>
    %1921 = vector.shape_cast %1920 : vector<1x16x16xf32> to vector<16x16xf32>
    %c163 = arith.constant 163 : index
    %1922 = memref.load %arg4[%c163] : memref<196xf32, #tpu.memory_space<smem>>
    %1923 = vector.broadcast %1922 : f32 to vector<16x16xf32>
    %1924 = arith.mulf %1921, %1923 : vector<16x16xf32>
    %1925 = arith.addf %1901, %1924 : vector<16x16xf32>
    %c3_1290 = arith.constant 3 : index
    %c6_1291 = arith.constant 6 : index
    %c0_1292 = arith.constant 0 : index
    %1926 = vector.load %arg12[%c3_1290, %c6_1291, %c0_1292] : memref<7x34x16xf32, #tpu.memory_space<vmem>>, vector<1x16x16xf32>
    %1927 = vector.shape_cast %1926 : vector<1x16x16xf32> to vector<16x16xf32>
    %c164 = arith.constant 164 : index
    %1928 = memref.load %arg4[%c164] : memref<196xf32, #tpu.memory_space<smem>>
    %1929 = vector.broadcast %1928 : f32 to vector<16x16xf32>
    %1930 = arith.mulf %1927, %1929 : vector<16x16xf32>
    %1931 = arith.addf %1907, %1930 : vector<16x16xf32>
    %c4_1293 = arith.constant 4 : index
    %c6_1294 = arith.constant 6 : index
    %c0_1295 = arith.constant 0 : index
    %1932 = vector.load %arg12[%c4_1293, %c6_1294, %c0_1295] : memref<7x34x16xf32, #tpu.memory_space<vmem>>, vector<1x16x16xf32>
    %1933 = vector.shape_cast %1932 : vector<1x16x16xf32> to vector<16x16xf32>
    %c165 = arith.constant 165 : index
    %1934 = memref.load %arg4[%c165] : memref<196xf32, #tpu.memory_space<smem>>
    %1935 = vector.broadcast %1934 : f32 to vector<16x16xf32>
    %1936 = arith.mulf %1933, %1935 : vector<16x16xf32>
    %1937 = arith.addf %1913, %1936 : vector<16x16xf32>
    %c5_1296 = arith.constant 5 : index
    %c6_1297 = arith.constant 6 : index
    %c0_1298 = arith.constant 0 : index
    %1938 = vector.load %arg12[%c5_1296, %c6_1297, %c0_1298] : memref<7x34x16xf32, #tpu.memory_space<vmem>>, vector<1x16x16xf32>
    %1939 = vector.shape_cast %1938 : vector<1x16x16xf32> to vector<16x16xf32>
    %c166 = arith.constant 166 : index
    %1940 = memref.load %arg4[%c166] : memref<196xf32, #tpu.memory_space<smem>>
    %1941 = vector.broadcast %1940 : f32 to vector<16x16xf32>
    %1942 = arith.mulf %1939, %1941 : vector<16x16xf32>
    %1943 = arith.addf %1919, %1942 : vector<16x16xf32>
    %c6_1299 = arith.constant 6 : index
    %c6_1300 = arith.constant 6 : index
    %c0_1301 = arith.constant 0 : index
    %1944 = vector.load %arg12[%c6_1299, %c6_1300, %c0_1301] : memref<7x34x16xf32, #tpu.memory_space<vmem>>, vector<1x16x16xf32>
    %1945 = vector.shape_cast %1944 : vector<1x16x16xf32> to vector<16x16xf32>
    %c167 = arith.constant 167 : index
    %1946 = memref.load %arg4[%c167] : memref<196xf32, #tpu.memory_space<smem>>
    %1947 = vector.broadcast %1946 : f32 to vector<16x16xf32>
    %1948 = arith.mulf %1945, %1947 : vector<16x16xf32>
    %1949 = arith.addf %1925, %1948 : vector<16x16xf32>
    %c0_1302 = arith.constant 0 : index
    %c9_1303 = arith.constant 9 : index
    %c0_1304 = arith.constant 0 : index
    %1950 = vector.load %arg12[%c0_1302, %c9_1303, %c0_1304] : memref<7x34x16xf32, #tpu.memory_space<vmem>>, vector<1x16x16xf32>
    %1951 = vector.shape_cast %1950 : vector<1x16x16xf32> to vector<16x16xf32>
    %c168 = arith.constant 168 : index
    %1952 = memref.load %arg4[%c168] : memref<196xf32, #tpu.memory_space<smem>>
    %1953 = vector.broadcast %1952 : f32 to vector<16x16xf32>
    %1954 = arith.mulf %1951, %1953 : vector<16x16xf32>
    %1955 = arith.addf %1931, %1954 : vector<16x16xf32>
    %c1_1305 = arith.constant 1 : index
    %c9_1306 = arith.constant 9 : index
    %c0_1307 = arith.constant 0 : index
    %1956 = vector.load %arg12[%c1_1305, %c9_1306, %c0_1307] : memref<7x34x16xf32, #tpu.memory_space<vmem>>, vector<1x16x16xf32>
    %1957 = vector.shape_cast %1956 : vector<1x16x16xf32> to vector<16x16xf32>
    %c169 = arith.constant 169 : index
    %1958 = memref.load %arg4[%c169] : memref<196xf32, #tpu.memory_space<smem>>
    %1959 = vector.broadcast %1958 : f32 to vector<16x16xf32>
    %1960 = arith.mulf %1957, %1959 : vector<16x16xf32>
    %1961 = arith.addf %1937, %1960 : vector<16x16xf32>
    %c2_1308 = arith.constant 2 : index
    %c9_1309 = arith.constant 9 : index
    %c0_1310 = arith.constant 0 : index
    %1962 = vector.load %arg12[%c2_1308, %c9_1309, %c0_1310] : memref<7x34x16xf32, #tpu.memory_space<vmem>>, vector<1x16x16xf32>
    %1963 = vector.shape_cast %1962 : vector<1x16x16xf32> to vector<16x16xf32>
    %c170 = arith.constant 170 : index
    %1964 = memref.load %arg4[%c170] : memref<196xf32, #tpu.memory_space<smem>>
    %1965 = vector.broadcast %1964 : f32 to vector<16x16xf32>
    %1966 = arith.mulf %1963, %1965 : vector<16x16xf32>
    %1967 = arith.addf %1943, %1966 : vector<16x16xf32>
    %c3_1311 = arith.constant 3 : index
    %c9_1312 = arith.constant 9 : index
    %c0_1313 = arith.constant 0 : index
    %1968 = vector.load %arg12[%c3_1311, %c9_1312, %c0_1313] : memref<7x34x16xf32, #tpu.memory_space<vmem>>, vector<1x16x16xf32>
    %1969 = vector.shape_cast %1968 : vector<1x16x16xf32> to vector<16x16xf32>
    %c171 = arith.constant 171 : index
    %1970 = memref.load %arg4[%c171] : memref<196xf32, #tpu.memory_space<smem>>
    %1971 = vector.broadcast %1970 : f32 to vector<16x16xf32>
    %1972 = arith.mulf %1969, %1971 : vector<16x16xf32>
    %1973 = arith.addf %1949, %1972 : vector<16x16xf32>
    %c4_1314 = arith.constant 4 : index
    %c9_1315 = arith.constant 9 : index
    %c0_1316 = arith.constant 0 : index
    %1974 = vector.load %arg12[%c4_1314, %c9_1315, %c0_1316] : memref<7x34x16xf32, #tpu.memory_space<vmem>>, vector<1x16x16xf32>
    %1975 = vector.shape_cast %1974 : vector<1x16x16xf32> to vector<16x16xf32>
    %c172 = arith.constant 172 : index
    %1976 = memref.load %arg4[%c172] : memref<196xf32, #tpu.memory_space<smem>>
    %1977 = vector.broadcast %1976 : f32 to vector<16x16xf32>
    %1978 = arith.mulf %1975, %1977 : vector<16x16xf32>
    %1979 = arith.addf %1955, %1978 : vector<16x16xf32>
    %c5_1317 = arith.constant 5 : index
    %c9_1318 = arith.constant 9 : index
    %c0_1319 = arith.constant 0 : index
    %1980 = vector.load %arg12[%c5_1317, %c9_1318, %c0_1319] : memref<7x34x16xf32, #tpu.memory_space<vmem>>, vector<1x16x16xf32>
    %1981 = vector.shape_cast %1980 : vector<1x16x16xf32> to vector<16x16xf32>
    %c173 = arith.constant 173 : index
    %1982 = memref.load %arg4[%c173] : memref<196xf32, #tpu.memory_space<smem>>
    %1983 = vector.broadcast %1982 : f32 to vector<16x16xf32>
    %1984 = arith.mulf %1981, %1983 : vector<16x16xf32>
    %1985 = arith.addf %1961, %1984 : vector<16x16xf32>
    %c6_1320 = arith.constant 6 : index
    %c9_1321 = arith.constant 9 : index
    %c0_1322 = arith.constant 0 : index
    %1986 = vector.load %arg12[%c6_1320, %c9_1321, %c0_1322] : memref<7x34x16xf32, #tpu.memory_space<vmem>>, vector<1x16x16xf32>
    %1987 = vector.shape_cast %1986 : vector<1x16x16xf32> to vector<16x16xf32>
    %c174 = arith.constant 174 : index
    %1988 = memref.load %arg4[%c174] : memref<196xf32, #tpu.memory_space<smem>>
    %1989 = vector.broadcast %1988 : f32 to vector<16x16xf32>
    %1990 = arith.mulf %1987, %1989 : vector<16x16xf32>
    %1991 = arith.addf %1967, %1990 : vector<16x16xf32>
    %c0_1323 = arith.constant 0 : index
    %c12_1324 = arith.constant 12 : index
    %c0_1325 = arith.constant 0 : index
    %1992 = vector.load %arg12[%c0_1323, %c12_1324, %c0_1325] : memref<7x34x16xf32, #tpu.memory_space<vmem>>, vector<1x16x16xf32>
    %1993 = vector.shape_cast %1992 : vector<1x16x16xf32> to vector<16x16xf32>
    %c175 = arith.constant 175 : index
    %1994 = memref.load %arg4[%c175] : memref<196xf32, #tpu.memory_space<smem>>
    %1995 = vector.broadcast %1994 : f32 to vector<16x16xf32>
    %1996 = arith.mulf %1993, %1995 : vector<16x16xf32>
    %1997 = arith.addf %1973, %1996 : vector<16x16xf32>
    %c1_1326 = arith.constant 1 : index
    %c12_1327 = arith.constant 12 : index
    %c0_1328 = arith.constant 0 : index
    %1998 = vector.load %arg12[%c1_1326, %c12_1327, %c0_1328] : memref<7x34x16xf32, #tpu.memory_space<vmem>>, vector<1x16x16xf32>
    %1999 = vector.shape_cast %1998 : vector<1x16x16xf32> to vector<16x16xf32>
    %c176 = arith.constant 176 : index
    %2000 = memref.load %arg4[%c176] : memref<196xf32, #tpu.memory_space<smem>>
    %2001 = vector.broadcast %2000 : f32 to vector<16x16xf32>
    %2002 = arith.mulf %1999, %2001 : vector<16x16xf32>
    %2003 = arith.addf %1979, %2002 : vector<16x16xf32>
    %c2_1329 = arith.constant 2 : index
    %c12_1330 = arith.constant 12 : index
    %c0_1331 = arith.constant 0 : index
    %2004 = vector.load %arg12[%c2_1329, %c12_1330, %c0_1331] : memref<7x34x16xf32, #tpu.memory_space<vmem>>, vector<1x16x16xf32>
    %2005 = vector.shape_cast %2004 : vector<1x16x16xf32> to vector<16x16xf32>
    %c177 = arith.constant 177 : index
    %2006 = memref.load %arg4[%c177] : memref<196xf32, #tpu.memory_space<smem>>
    %2007 = vector.broadcast %2006 : f32 to vector<16x16xf32>
    %2008 = arith.mulf %2005, %2007 : vector<16x16xf32>
    %2009 = arith.addf %1985, %2008 : vector<16x16xf32>
    %c3_1332 = arith.constant 3 : index
    %c12_1333 = arith.constant 12 : index
    %c0_1334 = arith.constant 0 : index
    %2010 = vector.load %arg12[%c3_1332, %c12_1333, %c0_1334] : memref<7x34x16xf32, #tpu.memory_space<vmem>>, vector<1x16x16xf32>
    %2011 = vector.shape_cast %2010 : vector<1x16x16xf32> to vector<16x16xf32>
    %c178 = arith.constant 178 : index
    %2012 = memref.load %arg4[%c178] : memref<196xf32, #tpu.memory_space<smem>>
    %2013 = vector.broadcast %2012 : f32 to vector<16x16xf32>
    %2014 = arith.mulf %2011, %2013 : vector<16x16xf32>
    %2015 = arith.addf %1991, %2014 : vector<16x16xf32>
    %c4_1335 = arith.constant 4 : index
    %c12_1336 = arith.constant 12 : index
    %c0_1337 = arith.constant 0 : index
    %2016 = vector.load %arg12[%c4_1335, %c12_1336, %c0_1337] : memref<7x34x16xf32, #tpu.memory_space<vmem>>, vector<1x16x16xf32>
    %2017 = vector.shape_cast %2016 : vector<1x16x16xf32> to vector<16x16xf32>
    %c179 = arith.constant 179 : index
    %2018 = memref.load %arg4[%c179] : memref<196xf32, #tpu.memory_space<smem>>
    %2019 = vector.broadcast %2018 : f32 to vector<16x16xf32>
    %2020 = arith.mulf %2017, %2019 : vector<16x16xf32>
    %2021 = arith.addf %1997, %2020 : vector<16x16xf32>
    %c5_1338 = arith.constant 5 : index
    %c12_1339 = arith.constant 12 : index
    %c0_1340 = arith.constant 0 : index
    %2022 = vector.load %arg12[%c5_1338, %c12_1339, %c0_1340] : memref<7x34x16xf32, #tpu.memory_space<vmem>>, vector<1x16x16xf32>
    %2023 = vector.shape_cast %2022 : vector<1x16x16xf32> to vector<16x16xf32>
    %c180 = arith.constant 180 : index
    %2024 = memref.load %arg4[%c180] : memref<196xf32, #tpu.memory_space<smem>>
    %2025 = vector.broadcast %2024 : f32 to vector<16x16xf32>
    %2026 = arith.mulf %2023, %2025 : vector<16x16xf32>
    %2027 = arith.addf %2003, %2026 : vector<16x16xf32>
    %c6_1341 = arith.constant 6 : index
    %c12_1342 = arith.constant 12 : index
    %c0_1343 = arith.constant 0 : index
    %2028 = vector.load %arg12[%c6_1341, %c12_1342, %c0_1343] : memref<7x34x16xf32, #tpu.memory_space<vmem>>, vector<1x16x16xf32>
    %2029 = vector.shape_cast %2028 : vector<1x16x16xf32> to vector<16x16xf32>
    %c181 = arith.constant 181 : index
    %2030 = memref.load %arg4[%c181] : memref<196xf32, #tpu.memory_space<smem>>
    %2031 = vector.broadcast %2030 : f32 to vector<16x16xf32>
    %2032 = arith.mulf %2029, %2031 : vector<16x16xf32>
    %2033 = arith.addf %2009, %2032 : vector<16x16xf32>
    %c0_1344 = arith.constant 0 : index
    %c15_1345 = arith.constant 15 : index
    %c0_1346 = arith.constant 0 : index
    %2034 = vector.load %arg12[%c0_1344, %c15_1345, %c0_1346] : memref<7x34x16xf32, #tpu.memory_space<vmem>>, vector<1x16x16xf32>
    %2035 = vector.shape_cast %2034 : vector<1x16x16xf32> to vector<16x16xf32>
    %c182 = arith.constant 182 : index
    %2036 = memref.load %arg4[%c182] : memref<196xf32, #tpu.memory_space<smem>>
    %2037 = vector.broadcast %2036 : f32 to vector<16x16xf32>
    %2038 = arith.mulf %2035, %2037 : vector<16x16xf32>
    %2039 = arith.addf %2015, %2038 : vector<16x16xf32>
    %c1_1347 = arith.constant 1 : index
    %c15_1348 = arith.constant 15 : index
    %c0_1349 = arith.constant 0 : index
    %2040 = vector.load %arg12[%c1_1347, %c15_1348, %c0_1349] : memref<7x34x16xf32, #tpu.memory_space<vmem>>, vector<1x16x16xf32>
    %2041 = vector.shape_cast %2040 : vector<1x16x16xf32> to vector<16x16xf32>
    %c183 = arith.constant 183 : index
    %2042 = memref.load %arg4[%c183] : memref<196xf32, #tpu.memory_space<smem>>
    %2043 = vector.broadcast %2042 : f32 to vector<16x16xf32>
    %2044 = arith.mulf %2041, %2043 : vector<16x16xf32>
    %2045 = arith.addf %2021, %2044 : vector<16x16xf32>
    %c2_1350 = arith.constant 2 : index
    %c15_1351 = arith.constant 15 : index
    %c0_1352 = arith.constant 0 : index
    %2046 = vector.load %arg12[%c2_1350, %c15_1351, %c0_1352] : memref<7x34x16xf32, #tpu.memory_space<vmem>>, vector<1x16x16xf32>
    %2047 = vector.shape_cast %2046 : vector<1x16x16xf32> to vector<16x16xf32>
    %c184 = arith.constant 184 : index
    %2048 = memref.load %arg4[%c184] : memref<196xf32, #tpu.memory_space<smem>>
    %2049 = vector.broadcast %2048 : f32 to vector<16x16xf32>
    %2050 = arith.mulf %2047, %2049 : vector<16x16xf32>
    %2051 = arith.addf %2027, %2050 : vector<16x16xf32>
    %c3_1353 = arith.constant 3 : index
    %c15_1354 = arith.constant 15 : index
    %c0_1355 = arith.constant 0 : index
    %2052 = vector.load %arg12[%c3_1353, %c15_1354, %c0_1355] : memref<7x34x16xf32, #tpu.memory_space<vmem>>, vector<1x16x16xf32>
    %2053 = vector.shape_cast %2052 : vector<1x16x16xf32> to vector<16x16xf32>
    %c185 = arith.constant 185 : index
    %2054 = memref.load %arg4[%c185] : memref<196xf32, #tpu.memory_space<smem>>
    %2055 = vector.broadcast %2054 : f32 to vector<16x16xf32>
    %2056 = arith.mulf %2053, %2055 : vector<16x16xf32>
    %2057 = arith.addf %2033, %2056 : vector<16x16xf32>
    %c4_1356 = arith.constant 4 : index
    %c15_1357 = arith.constant 15 : index
    %c0_1358 = arith.constant 0 : index
    %2058 = vector.load %arg12[%c4_1356, %c15_1357, %c0_1358] : memref<7x34x16xf32, #tpu.memory_space<vmem>>, vector<1x16x16xf32>
    %2059 = vector.shape_cast %2058 : vector<1x16x16xf32> to vector<16x16xf32>
    %c186 = arith.constant 186 : index
    %2060 = memref.load %arg4[%c186] : memref<196xf32, #tpu.memory_space<smem>>
    %2061 = vector.broadcast %2060 : f32 to vector<16x16xf32>
    %2062 = arith.mulf %2059, %2061 : vector<16x16xf32>
    %2063 = arith.addf %2039, %2062 : vector<16x16xf32>
    %c5_1359 = arith.constant 5 : index
    %c15_1360 = arith.constant 15 : index
    %c0_1361 = arith.constant 0 : index
    %2064 = vector.load %arg12[%c5_1359, %c15_1360, %c0_1361] : memref<7x34x16xf32, #tpu.memory_space<vmem>>, vector<1x16x16xf32>
    %2065 = vector.shape_cast %2064 : vector<1x16x16xf32> to vector<16x16xf32>
    %c187 = arith.constant 187 : index
    %2066 = memref.load %arg4[%c187] : memref<196xf32, #tpu.memory_space<smem>>
    %2067 = vector.broadcast %2066 : f32 to vector<16x16xf32>
    %2068 = arith.mulf %2065, %2067 : vector<16x16xf32>
    %2069 = arith.addf %2045, %2068 : vector<16x16xf32>
    %c6_1362 = arith.constant 6 : index
    %c15_1363 = arith.constant 15 : index
    %c0_1364 = arith.constant 0 : index
    %2070 = vector.load %arg12[%c6_1362, %c15_1363, %c0_1364] : memref<7x34x16xf32, #tpu.memory_space<vmem>>, vector<1x16x16xf32>
    %2071 = vector.shape_cast %2070 : vector<1x16x16xf32> to vector<16x16xf32>
    %c188 = arith.constant 188 : index
    %2072 = memref.load %arg4[%c188] : memref<196xf32, #tpu.memory_space<smem>>
    %2073 = vector.broadcast %2072 : f32 to vector<16x16xf32>
    %2074 = arith.mulf %2071, %2073 : vector<16x16xf32>
    %2075 = arith.addf %2051, %2074 : vector<16x16xf32>
    %c0_1365 = arith.constant 0 : index
    %c18_1366 = arith.constant 18 : index
    %c0_1367 = arith.constant 0 : index
    %2076 = vector.load %arg12[%c0_1365, %c18_1366, %c0_1367] : memref<7x34x16xf32, #tpu.memory_space<vmem>>, vector<1x16x16xf32>
    %2077 = vector.shape_cast %2076 : vector<1x16x16xf32> to vector<16x16xf32>
    %c189 = arith.constant 189 : index
    %2078 = memref.load %arg4[%c189] : memref<196xf32, #tpu.memory_space<smem>>
    %2079 = vector.broadcast %2078 : f32 to vector<16x16xf32>
    %2080 = arith.mulf %2077, %2079 : vector<16x16xf32>
    %2081 = arith.addf %2057, %2080 : vector<16x16xf32>
    %c1_1368 = arith.constant 1 : index
    %c18_1369 = arith.constant 18 : index
    %c0_1370 = arith.constant 0 : index
    %2082 = vector.load %arg12[%c1_1368, %c18_1369, %c0_1370] : memref<7x34x16xf32, #tpu.memory_space<vmem>>, vector<1x16x16xf32>
    %2083 = vector.shape_cast %2082 : vector<1x16x16xf32> to vector<16x16xf32>
    %c190 = arith.constant 190 : index
    %2084 = memref.load %arg4[%c190] : memref<196xf32, #tpu.memory_space<smem>>
    %2085 = vector.broadcast %2084 : f32 to vector<16x16xf32>
    %2086 = arith.mulf %2083, %2085 : vector<16x16xf32>
    %2087 = arith.addf %2063, %2086 : vector<16x16xf32>
    %c2_1371 = arith.constant 2 : index
    %c18_1372 = arith.constant 18 : index
    %c0_1373 = arith.constant 0 : index
    %2088 = vector.load %arg12[%c2_1371, %c18_1372, %c0_1373] : memref<7x34x16xf32, #tpu.memory_space<vmem>>, vector<1x16x16xf32>
    %2089 = vector.shape_cast %2088 : vector<1x16x16xf32> to vector<16x16xf32>
    %c191 = arith.constant 191 : index
    %2090 = memref.load %arg4[%c191] : memref<196xf32, #tpu.memory_space<smem>>
    %2091 = vector.broadcast %2090 : f32 to vector<16x16xf32>
    %2092 = arith.mulf %2089, %2091 : vector<16x16xf32>
    %2093 = arith.addf %2069, %2092 : vector<16x16xf32>
    %c3_1374 = arith.constant 3 : index
    %c18_1375 = arith.constant 18 : index
    %c0_1376 = arith.constant 0 : index
    %2094 = vector.load %arg12[%c3_1374, %c18_1375, %c0_1376] : memref<7x34x16xf32, #tpu.memory_space<vmem>>, vector<1x16x16xf32>
    %2095 = vector.shape_cast %2094 : vector<1x16x16xf32> to vector<16x16xf32>
    %c192 = arith.constant 192 : index
    %2096 = memref.load %arg4[%c192] : memref<196xf32, #tpu.memory_space<smem>>
    %2097 = vector.broadcast %2096 : f32 to vector<16x16xf32>
    %2098 = arith.mulf %2095, %2097 : vector<16x16xf32>
    %2099 = arith.addf %2075, %2098 : vector<16x16xf32>
    %c4_1377 = arith.constant 4 : index
    %c18_1378 = arith.constant 18 : index
    %c0_1379 = arith.constant 0 : index
    %2100 = vector.load %arg12[%c4_1377, %c18_1378, %c0_1379] : memref<7x34x16xf32, #tpu.memory_space<vmem>>, vector<1x16x16xf32>
    %2101 = vector.shape_cast %2100 : vector<1x16x16xf32> to vector<16x16xf32>
    %c193 = arith.constant 193 : index
    %2102 = memref.load %arg4[%c193] : memref<196xf32, #tpu.memory_space<smem>>
    %2103 = vector.broadcast %2102 : f32 to vector<16x16xf32>
    %2104 = arith.mulf %2101, %2103 : vector<16x16xf32>
    %2105 = arith.addf %2081, %2104 : vector<16x16xf32>
    %c5_1380 = arith.constant 5 : index
    %c18_1381 = arith.constant 18 : index
    %c0_1382 = arith.constant 0 : index
    %2106 = vector.load %arg12[%c5_1380, %c18_1381, %c0_1382] : memref<7x34x16xf32, #tpu.memory_space<vmem>>, vector<1x16x16xf32>
    %2107 = vector.shape_cast %2106 : vector<1x16x16xf32> to vector<16x16xf32>
    %c194 = arith.constant 194 : index
    %2108 = memref.load %arg4[%c194] : memref<196xf32, #tpu.memory_space<smem>>
    %2109 = vector.broadcast %2108 : f32 to vector<16x16xf32>
    %2110 = arith.mulf %2107, %2109 : vector<16x16xf32>
    %2111 = arith.addf %2087, %2110 : vector<16x16xf32>
    %c6_1383 = arith.constant 6 : index
    %c18_1384 = arith.constant 18 : index
    %c0_1385 = arith.constant 0 : index
    %2112 = vector.load %arg12[%c6_1383, %c18_1384, %c0_1385] : memref<7x34x16xf32, #tpu.memory_space<vmem>>, vector<1x16x16xf32>
    %2113 = vector.shape_cast %2112 : vector<1x16x16xf32> to vector<16x16xf32>
    %c195 = arith.constant 195 : index
    %2114 = memref.load %arg4[%c195] : memref<196xf32, #tpu.memory_space<smem>>
    %2115 = vector.broadcast %2114 : f32 to vector<16x16xf32>
    %2116 = arith.mulf %2113, %2115 : vector<16x16xf32>
    %2117 = arith.addf %2093, %2116 : vector<16x16xf32>
    %2118 = arith.addf %2117, %2099 : vector<16x16xf32>
    %2119 = arith.addf %2118, %2105 : vector<16x16xf32>
    %2120 = arith.addf %2119, %2111 : vector<16x16xf32>
    %c3_1386 = arith.constant 3 : index
    %2121 = memref.load %arg5[%c3_1386] : memref<4xf32, #tpu.memory_space<smem>>
    %2122 = vector.broadcast %2121 : f32 to vector<16x16xf32>
    %2123 = arith.addf %2120, %2122 : vector<16x16xf32>
    %c12_1387 = arith.constant 12 : index
    %2124 = memref.load %arg6[%c12_1387] : memref<16xf32, #tpu.memory_space<smem>>
    %2125 = vector.broadcast %2124 : f32 to vector<16x16xf32>
    %2126 = arith.mulf %2123, %2125 : vector<16x16xf32>
    %c0_1388 = arith.constant 0 : index
    %c0_1389 = arith.constant 0 : index
    %c0_1390 = arith.constant 0 : index
    %c0_1391 = arith.constant 0 : index
    %2127 = vector.load %arg8[%c0_1388, %c0_1389, %c0_1390, %c0_1391] : memref<1x4x16x16xf32, #tpu.memory_space<vmem>>, vector<1x1x16x16xf32>
    %2128 = vector.shape_cast %2127 : vector<1x1x16x16xf32> to vector<16x16xf32>
    %2129 = arith.addf %2128, %2126 : vector<16x16xf32>
    %c0_1392 = arith.constant 0 : index
    %c0_1393 = arith.constant 0 : index
    %c0_1394 = arith.constant 0 : index
    %c0_1395 = arith.constant 0 : index
    %2130 = vector.load %arg8[%c0_1392, %c0_1393, %c0_1394, %c0_1395] : memref<1x4x16x16xf32, #tpu.memory_space<vmem>>, vector<1x1x16x16xf32>
    %2131 = vector.shape_cast %2130 : vector<1x1x16x16xf32> to vector<16x16xf32>
    %2132 = vector.shape_cast %2129 : vector<16x16xf32> to vector<1x1x16x16xf32>
    tpu.vector_store %arg8[%c0_1392, %c0_1393, %c0_1394, %c0_1395], %2132 {strides = array<i32>} : memref<1x4x16x16xf32, #tpu.memory_space<vmem>>, vector<1x1x16x16xf32>,
    %c13_1396 = arith.constant 13 : index
    %2133 = memref.load %arg6[%c13_1396] : memref<16xf32, #tpu.memory_space<smem>>
    %2134 = vector.broadcast %2133 : f32 to vector<16x16xf32>
    %2135 = arith.mulf %2123, %2134 : vector<16x16xf32>
    %c0_1397 = arith.constant 0 : index
    %c1_1398 = arith.constant 1 : index
    %c0_1399 = arith.constant 0 : index
    %c0_1400 = arith.constant 0 : index
    %2136 = vector.load %arg8[%c0_1397, %c1_1398, %c0_1399, %c0_1400] : memref<1x4x16x16xf32, #tpu.memory_space<vmem>>, vector<1x1x16x16xf32>
    %2137 = vector.shape_cast %2136 : vector<1x1x16x16xf32> to vector<16x16xf32>
    %2138 = arith.addf %2137, %2135 : vector<16x16xf32>
    %c0_1401 = arith.constant 0 : index
    %c1_1402 = arith.constant 1 : index
    %c0_1403 = arith.constant 0 : index
    %c0_1404 = arith.constant 0 : index
    %2139 = vector.load %arg8[%c0_1401, %c1_1402, %c0_1403, %c0_1404] : memref<1x4x16x16xf32, #tpu.memory_space<vmem>>, vector<1x1x16x16xf32>
    %2140 = vector.shape_cast %2139 : vector<1x1x16x16xf32> to vector<16x16xf32>
    %2141 = vector.shape_cast %2138 : vector<16x16xf32> to vector<1x1x16x16xf32>
    tpu.vector_store %arg8[%c0_1401, %c1_1402, %c0_1403, %c0_1404], %2141 {strides = array<i32>} : memref<1x4x16x16xf32, #tpu.memory_space<vmem>>, vector<1x1x16x16xf32>,
    %c14_1405 = arith.constant 14 : index
    %2142 = memref.load %arg6[%c14_1405] : memref<16xf32, #tpu.memory_space<smem>>
    %2143 = vector.broadcast %2142 : f32 to vector<16x16xf32>
    %2144 = arith.mulf %2123, %2143 : vector<16x16xf32>
    %c0_1406 = arith.constant 0 : index
    %c2_1407 = arith.constant 2 : index
    %c0_1408 = arith.constant 0 : index
    %c0_1409 = arith.constant 0 : index
    %2145 = vector.load %arg8[%c0_1406, %c2_1407, %c0_1408, %c0_1409] : memref<1x4x16x16xf32, #tpu.memory_space<vmem>>, vector<1x1x16x16xf32>
    %2146 = vector.shape_cast %2145 : vector<1x1x16x16xf32> to vector<16x16xf32>
    %2147 = arith.addf %2146, %2144 : vector<16x16xf32>
    %c0_1410 = arith.constant 0 : index
    %c2_1411 = arith.constant 2 : index
    %c0_1412 = arith.constant 0 : index
    %c0_1413 = arith.constant 0 : index
    %2148 = vector.load %arg8[%c0_1410, %c2_1411, %c0_1412, %c0_1413] : memref<1x4x16x16xf32, #tpu.memory_space<vmem>>, vector<1x1x16x16xf32>
    %2149 = vector.shape_cast %2148 : vector<1x1x16x16xf32> to vector<16x16xf32>
    %2150 = vector.shape_cast %2147 : vector<16x16xf32> to vector<1x1x16x16xf32>
    tpu.vector_store %arg8[%c0_1410, %c2_1411, %c0_1412, %c0_1413], %2150 {strides = array<i32>} : memref<1x4x16x16xf32, #tpu.memory_space<vmem>>, vector<1x1x16x16xf32>,
    %c15_1414 = arith.constant 15 : index
    %2151 = memref.load %arg6[%c15_1414] : memref<16xf32, #tpu.memory_space<smem>>
    %2152 = vector.broadcast %2151 : f32 to vector<16x16xf32>
    %2153 = arith.mulf %2123, %2152 : vector<16x16xf32>
    %c0_1415 = arith.constant 0 : index
    %c3_1416 = arith.constant 3 : index
    %c0_1417 = arith.constant 0 : index
    %c0_1418 = arith.constant 0 : index
    %2154 = vector.load %arg8[%c0_1415, %c3_1416, %c0_1417, %c0_1418] : memref<1x4x16x16xf32, #tpu.memory_space<vmem>>, vector<1x1x16x16xf32>
    %2155 = vector.shape_cast %2154 : vector<1x1x16x16xf32> to vector<16x16xf32>
    %2156 = arith.addf %2155, %2153 : vector<16x16xf32>
    %c0_1419 = arith.constant 0 : index
    %c3_1420 = arith.constant 3 : index
    %c0_1421 = arith.constant 0 : index
    %c0_1422 = arith.constant 0 : index
    %2157 = vector.load %arg8[%c0_1419, %c3_1420, %c0_1421, %c0_1422] : memref<1x4x16x16xf32, #tpu.memory_space<vmem>>, vector<1x1x16x16xf32>
    %2158 = vector.shape_cast %2157 : vector<1x1x16x16xf32> to vector<16x16xf32>
    %2159 = vector.shape_cast %2156 : vector<16x16xf32> to vector<1x1x16x16xf32>
    tpu.vector_store %arg8[%c0_1419, %c3_1420, %c0_1421, %c0_1422], %2159 {strides = array<i32>} : memref<1x4x16x16xf32, #tpu.memory_space<vmem>>, vector<1x1x16x16xf32>,
    %c0_1423 = arith.constant 0 : index
    %c0_1424 = arith.constant 0 : index
    %c0_1425 = arith.constant 0 : index
    %c0_1426 = arith.constant 0 : index
    %2160 = vector.load %arg1[%c0_1423, %c0_1424, %c0_1425, %c0_1426] : memref<1x4x16x16xf32, #tpu.memory_space<vmem>>, vector<1x1x16x16xf32>
    %2161 = vector.shape_cast %2160 : vector<1x1x16x16xf32> to vector<16x16xf32>
    %c0_1427 = arith.constant 0 : index
    %c0_1428 = arith.constant 0 : index
    %c0_1429 = arith.constant 0 : index
    %c0_1430 = arith.constant 0 : index
    %2162 = vector.load %arg8[%c0_1427, %c0_1428, %c0_1429, %c0_1430] : memref<1x4x16x16xf32, #tpu.memory_space<vmem>>, vector<1x1x16x16xf32>
    %2163 = vector.shape_cast %2162 : vector<1x1x16x16xf32> to vector<16x16xf32>
    %2164 = arith.mulf %2161, %2163 : vector<16x16xf32>
    %c0_1431 = arith.constant 0 : index
    %c0_1432 = arith.constant 0 : index
    %c0_1433 = arith.constant 0 : index
    %c0_1434 = arith.constant 0 : index
    %2165 = vector.load %arg8[%c0_1431, %c0_1432, %c0_1433, %c0_1434] : memref<1x4x16x16xf32, #tpu.memory_space<vmem>>, vector<1x1x16x16xf32>
    %2166 = vector.shape_cast %2165 : vector<1x1x16x16xf32> to vector<16x16xf32>
    %2167 = vector.shape_cast %2164 : vector<16x16xf32> to vector<1x1x16x16xf32>
    tpu.vector_store %arg8[%c0_1431, %c0_1432, %c0_1433, %c0_1434], %2167 {strides = array<i32>} : memref<1x4x16x16xf32, #tpu.memory_space<vmem>>, vector<1x1x16x16xf32>,
    %c0_1435 = arith.constant 0 : index
    %c1_1436 = arith.constant 1 : index
    %c0_1437 = arith.constant 0 : index
    %c0_1438 = arith.constant 0 : index
    %2168 = vector.load %arg1[%c0_1435, %c1_1436, %c0_1437, %c0_1438] : memref<1x4x16x16xf32, #tpu.memory_space<vmem>>, vector<1x1x16x16xf32>
    %2169 = vector.shape_cast %2168 : vector<1x1x16x16xf32> to vector<16x16xf32>
    %c0_1439 = arith.constant 0 : index
    %c1_1440 = arith.constant 1 : index
    %c0_1441 = arith.constant 0 : index
    %c0_1442 = arith.constant 0 : index
    %2170 = vector.load %arg8[%c0_1439, %c1_1440, %c0_1441, %c0_1442] : memref<1x4x16x16xf32, #tpu.memory_space<vmem>>, vector<1x1x16x16xf32>
    %2171 = vector.shape_cast %2170 : vector<1x1x16x16xf32> to vector<16x16xf32>
    %2172 = arith.mulf %2169, %2171 : vector<16x16xf32>
    %c0_1443 = arith.constant 0 : index
    %c1_1444 = arith.constant 1 : index
    %c0_1445 = arith.constant 0 : index
    %c0_1446 = arith.constant 0 : index
    %2173 = vector.load %arg8[%c0_1443, %c1_1444, %c0_1445, %c0_1446] : memref<1x4x16x16xf32, #tpu.memory_space<vmem>>, vector<1x1x16x16xf32>
    %2174 = vector.shape_cast %2173 : vector<1x1x16x16xf32> to vector<16x16xf32>
    %2175 = vector.shape_cast %2172 : vector<16x16xf32> to vector<1x1x16x16xf32>
    tpu.vector_store %arg8[%c0_1443, %c1_1444, %c0_1445, %c0_1446], %2175 {strides = array<i32>} : memref<1x4x16x16xf32, #tpu.memory_space<vmem>>, vector<1x1x16x16xf32>,
    %c0_1447 = arith.constant 0 : index
    %c2_1448 = arith.constant 2 : index
    %c0_1449 = arith.constant 0 : index
    %c0_1450 = arith.constant 0 : index
    %2176 = vector.load %arg1[%c0_1447, %c2_1448, %c0_1449, %c0_1450] : memref<1x4x16x16xf32, #tpu.memory_space<vmem>>, vector<1x1x16x16xf32>
    %2177 = vector.shape_cast %2176 : vector<1x1x16x16xf32> to vector<16x16xf32>
    %c0_1451 = arith.constant 0 : index
    %c2_1452 = arith.constant 2 : index
    %c0_1453 = arith.constant 0 : index
    %c0_1454 = arith.constant 0 : index
    %2178 = vector.load %arg8[%c0_1451, %c2_1452, %c0_1453, %c0_1454] : memref<1x4x16x16xf32, #tpu.memory_space<vmem>>, vector<1x1x16x16xf32>
    %2179 = vector.shape_cast %2178 : vector<1x1x16x16xf32> to vector<16x16xf32>
    %2180 = arith.mulf %2177, %2179 : vector<16x16xf32>
    %c0_1455 = arith.constant 0 : index
    %c2_1456 = arith.constant 2 : index
    %c0_1457 = arith.constant 0 : index
    %c0_1458 = arith.constant 0 : index
    %2181 = vector.load %arg8[%c0_1455, %c2_1456, %c0_1457, %c0_1458] : memref<1x4x16x16xf32, #tpu.memory_space<vmem>>, vector<1x1x16x16xf32>
    %2182 = vector.shape_cast %2181 : vector<1x1x16x16xf32> to vector<16x16xf32>
    %2183 = vector.shape_cast %2180 : vector<16x16xf32> to vector<1x1x16x16xf32>
    tpu.vector_store %arg8[%c0_1455, %c2_1456, %c0_1457, %c0_1458], %2183 {strides = array<i32>} : memref<1x4x16x16xf32, #tpu.memory_space<vmem>>, vector<1x1x16x16xf32>,
    %c0_1459 = arith.constant 0 : index
    %c3_1460 = arith.constant 3 : index
    %c0_1461 = arith.constant 0 : index
    %c0_1462 = arith.constant 0 : index
    %2184 = vector.load %arg1[%c0_1459, %c3_1460, %c0_1461, %c0_1462] : memref<1x4x16x16xf32, #tpu.memory_space<vmem>>, vector<1x1x16x16xf32>
    %2185 = vector.shape_cast %2184 : vector<1x1x16x16xf32> to vector<16x16xf32>
    %c0_1463 = arith.constant 0 : index
    %c3_1464 = arith.constant 3 : index
    %c0_1465 = arith.constant 0 : index
    %c0_1466 = arith.constant 0 : index
    %2186 = vector.load %arg8[%c0_1463, %c3_1464, %c0_1465, %c0_1466] : memref<1x4x16x16xf32, #tpu.memory_space<vmem>>, vector<1x1x16x16xf32>
    %2187 = vector.shape_cast %2186 : vector<1x1x16x16xf32> to vector<16x16xf32>
    %2188 = arith.mulf %2185, %2187 : vector<16x16xf32>
    %c0_1467 = arith.constant 0 : index
    %c3_1468 = arith.constant 3 : index
    %c0_1469 = arith.constant 0 : index
    %c0_1470 = arith.constant 0 : index
    %2189 = vector.load %arg8[%c0_1467, %c3_1468, %c0_1469, %c0_1470] : memref<1x4x16x16xf32, #tpu.memory_space<vmem>>, vector<1x1x16x16xf32>
    %2190 = vector.shape_cast %2189 : vector<1x1x16x16xf32> to vector<16x16xf32>
    %2191 = vector.shape_cast %2188 : vector<16x16xf32> to vector<1x1x16x16xf32>
    tpu.vector_store %arg8[%c0_1467, %c3_1468, %c0_1469, %c0_1470], %2191 {strides = array<i32>} : memref<1x4x16x16xf32, #tpu.memory_space<vmem>>, vector<1x1x16x16xf32>,
    return
  }
  func.func @transform_0(%arg0: i32) -> (i32, i32, i32, i32) {
    %c0_i32 = arith.constant 0 : i32
    %c0_i32_0 = arith.constant 0 : i32
    %c0_i32_1 = arith.constant 0 : i32
    %c0_i32_2 = arith.constant 0 : i32
    return %arg0, %c0_i32, %c0_i32_0, %c0_i32_1 : i32, i32, i32, i32
  }
  func.func @transform_1(%arg0: i32) -> i32 {
    %c0_i32 = arith.constant 0 : i32
    %c0_i32_0 = arith.constant 0 : i32
    return %c0_i32 : i32
  }
  func.func @transform_2(%arg0: i32) -> i32 {
    %c0_i32 = arith.constant 0 : i32
    %c0_i32_0 = arith.constant 0 : i32
    return %c0_i32 : i32
  }
  func.func @transform_3(%arg0: i32) -> i32 {
    %c0_i32 = arith.constant 0 : i32
    %c0_i32_0 = arith.constant 0 : i32
    return %c0_i32 : i32
  }
  func.func @transform_4(%arg0: i32) -> i32 {
    %c0_i32 = arith.constant 0 : i32
    %c0_i32_0 = arith.constant 0 : i32
    return %c0_i32 : i32
  }
  func.func @transform_5(%arg0: i32) -> i32 {
    %c0_i32 = arith.constant 0 : i32
    %c0_i32_0 = arith.constant 0 : i32
    return %c0_i32 : i32
  }
  func.func @transform_6(%arg0: i32) -> i32 {
    %c0_i32 = arith.constant 0 : i32
    %c0_i32_0 = arith.constant 0 : i32
    return %c0_i32 : i32
  }
  func.func @transform_7(%arg0: i32) -> (i32, i32, i32, i32) {
    %c0_i32 = arith.constant 0 : i32
    %c0_i32_0 = arith.constant 0 : i32
    %c0_i32_1 = arith.constant 0 : i32
    %c0_i32_2 = arith.constant 0 : i32
    return %arg0, %c0_i32, %c0_i32_0, %c0_i32_1 : i32, i32, i32, i32
  }
}

</mosaic_0001>

<llo_original>
// kernel: tpu_custom_call.1
$region0: #{tpu_custom_call.1}
  #allocation0 [shape = 'u32[]', space=smem, size = 0x4, offset = 0x4, fixed_abs, tag = 'smem constant byte address 0x4 - core index']
  #allocation1 [shape = 'u32[144,128]{1,0:T(1,128)}', space=vmem, size = 0x12000, scoped, tag = 'internal scratch']
  #allocation2 [shape = 'f32[26,146]{1,0:T(8,128)}', space=vmem, size = 0x8000, scoped, tag = 'scratch operand']
  #allocation3 [shape = 'f32[5,20,16]{2,1,0:T(8,128)}', space=vmem, size = 0xf000, scoped, tag = 'scratch operand']
  #allocation4 [shape = 'f32[41,153]{1,0:T(8,128)}', space=vmem, size = 0xc000, scoped, tag = 'scratch operand']
  #allocation5 [shape = 'f32[7,34,16]{2,1,0:T(8,128)}', space=vmem, size = 0x23000, scoped, tag = 'scratch operand']
  %s0 = inlined_call_operand.hbm [shape: f32[2,4,16,16], index: 0, kind: input, shape index: {}]
  %s1 = inlined_call_operand.vmem [shape: f32[100], index: 1, kind: input, shape index: {}]
  %s2 = inlined_call_operand.vmem [shape: f32[4], index: 2, kind: input, shape index: {}]
  %s3 = inlined_call_operand.vmem [shape: f32[196], index: 3, kind: input, shape index: {}]
  %s4 = inlined_call_operand.vmem [shape: f32[4], index: 4, kind: input, shape index: {}]
  %s5 = inlined_call_operand.vmem [shape: f32[16], index: 5, kind: input, shape index: {}]
  %s6 = inlined_call_operand.vmem [shape: f32[4], index: 6, kind: input, shape index: {}]
  %s7 = inlined_call_operand.hbm [shape: f32[2,4,16,16], index: 7, kind: output, shape index: {}]
  %s8 = sld [smem:[#allocation0]]
  $region89: #{tpu_custom_call.1} parent=0
    _
  %s10 = ssub.s32 1, %s8
  %s11 = scalar_select 0, %s10, %s8
  $region1: #{tpu_custom_call.1} parent=0
    #allocation6 [shape = 'u8[65536]{0}', space=vmem, size = 0x10000, scoped, tag = 'input window, operand 0']
    #allocation7 [shape = 's32[2]{0}', space=sflag, size = 0x8, scoped, tag = 'scoped memory for tpu_custom_call.1']
    #allocation8 [shape = 's32[2]{0}', space=sflag, size = 0x8, scoped, tag = 'scoped memory for tpu_custom_call.1']
    #allocation9 [shape = 's32[2]{0}', space=sflag, size = 0x8, scoped, tag = 'scoped memory for tpu_custom_call.1']
    #allocation10 [shape = 'u8[512]{0}', space=smem, size = 0x200, scoped, tag = 'input window, operand 1, single buffered']
    #allocation11 [shape = 'u8[512]{0}', space=smem, size = 0x200, scoped, tag = 'input window, operand 2, single buffered']
    #allocation12 [shape = 's32[1]{0}', space=sflag, size = 0x4, scoped, tag = 'scoped memory for tpu_custom_call.1']
    #allocation13 [shape = 'u8[1024]{0}', space=smem, size = 0x400, scoped, tag = 'input window, operand 3, single buffered']
    #allocation14 [shape = 'u8[512]{0}', space=smem, size = 0x200, scoped, tag = 'input window, operand 4, single buffered']
    #allocation15 [shape = 's32[1]{0}', space=sflag, size = 0x4, scoped, tag = 'scoped memory for tpu_custom_call.1']
    #allocation16 [shape = 'u8[512]{0}', space=smem, size = 0x200, scoped, tag = 'input window, operand 5, single buffered']
    #allocation17 [shape = 'u8[512]{0}', space=smem, size = 0x200, scoped, tag = 'input window, operand 6, single buffered']
    #allocation18 [shape = 's32[1]{0}', space=sflag, size = 0x4, scoped, tag = 'scoped memory for tpu_custom_call.1']
    #allocation19 [shape = 'u8[65536]{0}', space=vmem, size = 0x10000, scoped, tag = 'output window, operand 0']
    %12 = vsyncpa [#allocation7], 0
    %s13 = scalar_lea.sflag [#allocation7], 1
    %14 = vsyncpa %s13, 0
    %15 = vsyncpa [#allocation9], 0
    %16 = vsyncpa [#allocation12], 0
    %17 = vsyncpa [#allocation15], 0
    %18 = vsyncpa [#allocation18], 0
    %19 = vsyncpa [#allocation8], 0
    %s20 = scalar_lea.sflag [#allocation8], 1
    %21 = vsyncpa %s20, 0
    loop: start=0, step=1, limit=4
    $region2: #{tpu_custom_call.1} parent=1 // loop_pre_header
      _
    $region3: #{tpu_custom_call.1} parent=1 // loop_header
      %s23 = sphi 0, %s27
      %p24 = scmp.ge.s32.totalorder %s23, 4
      %s33 = sphi 0, %s35
      %s36 = sphi 0, %s33
      %s37 = sphi 0, %s36
      %s53 = sphi 0, %s37
      %s57 = sphi 0, %s57
      %s59 = sphi 0, %s57
      %s60 = sphi 0, %s59
      %s74 = sphi 0, %s60
      %s78 = sphi 0, %s78
      %s80 = sphi 0, %s78
      %s81 = sphi 0, %s80
      %s95 = sphi 0, %s81
      %s99 = sphi 0, %s99
      %s101 = sphi 0, %s99
      %s102 = sphi 0, %s101
      %s116 = sphi 0, %s102
      %s120 = sphi 0, %s120
      %s122 = sphi 0, %s120
      %s123 = sphi 0, %s122
      %s137 = sphi 0, %s123
      %s141 = sphi 0, %s141
      %s143 = sphi 0, %s141
      %s144 = sphi 0, %s143
      %s158 = sphi 0, %s144
      %s162 = sphi 0, %s162
      %s164 = sphi 0, %s162
      %s165 = sphi 0, %s164
      %s179 = sphi 0, %s165
      %s185 = sphi 0, %s187
      %s188 = sphi 0, %s185
      %s189 = sphi 0, %s188
      %s205 = sphi 0, %s189
    $region4: #{tpu_custom_call.1} parent=1 // loop_header_branch
      %26 = sbr.rel (%p24) target = $region8
    $region5: #{tpu_custom_call.1} parent=1 // loop_body
      %s28 = ssub.s32 %s23, 1
      %s29 = ssub.s32 %s23, 2
      %s30 = sadd.s32 %s23, 1
      %s31 = ssub.s32 %s23, %s30
      %p32 = scmp.eq.s32.totalorder %s31, 0
      %s34 = sadd.s32 %s33, 1
      %s35 = scalar_select %p32, %s33, %s34
      %p38 = pneg %p32
      %p39 = scmp.eq.s32.totalorder %s23, 1
      %p40 = por %p38, %p39
      %p41 = scmp.ne.s32.totalorder %s33, %s36
      %p42 = scmp.eq.s32.totalorder %s23, 0
      %p43 = por %p41, %p42
      %p44 = scmp.ne.s32.totalorder %s33, %s36
      %p45 = scmp.eq.s32.totalorder %s28, 1
      %p46 = por %p44, %p45
      %p47 = scmp.ne.s32.totalorder %s36, %s37
      %p48 = scmp.eq.s32.totalorder %s28, 0
      %p49 = por %p47, %p48
      %p50 = scmp.ne.s32.totalorder %s36, %s37
      %p51 = scmp.eq.s32.totalorder %s29, 1
      %p52 = por %p50, %p51
      %p54 = scmp.ne.s32.totalorder %s37, %s53
      %p55 = scmp.eq.s32.totalorder %s29, 0
      %p56 = por %p54, %p55
      %s58 = sadd.s32 %s57, 1
      %p61 = scmp.eq.s32.totalorder %s23, 1
      %p62 = scmp.ne.s32.totalorder %s57, %s59
      %p63 = scmp.eq.s32.totalorder %s23, 0
      %p64 = por %p62, %p63
      %p65 = scmp.ne.s32.totalorder %s57, %s59
      %p66 = scmp.eq.s32.totalorder %s28, 1
      %p67 = por %p65, %p66
      %p68 = scmp.ne.s32.totalorder %s59, %s60
      %p69 = scmp.eq.s32.totalorder %s28, 0
      %p70 = por %p68, %p69
      %p71 = scmp.ne.s32.totalorder %s59, %s60
      %p72 = scmp.eq.s32.totalorder %s29, 1
      %p73 = por %p71, %p72
      %p75 = scmp.ne.s32.totalorder %s60, %s74
      %p76 = scmp.eq.s32.totalorder %s29, 0
      %p77 = por %p75, %p76
      %s79 = sadd.s32 %s78, 1
      %p82 = scmp.eq.s32.totalorder %s23, 1
      %p83 = scmp.ne.s32.totalorder %s78, %s80
      %p84 = scmp.eq.s32.totalorder %s23, 0
      %p85 = por %p83, %p84
      %p86 = scmp.ne.s32.totalorder %s78, %s80
      %p87 = scmp.eq.s32.totalorder %s28, 1
      %p88 = por %p86, %p87
      %p89 = scmp.ne.s32.totalorder %s80, %s81
      %p90 = scmp.eq.s32.totalorder %s28, 0
      %p91 = por %p89, %p90
      %p92 = scmp.ne.s32.totalorder %s80, %s81
      %p93 = scmp.eq.s32.totalorder %s29, 1
      %p94 = por %p92, %p93
      %p96 = scmp.ne.s32.totalorder %s81, %s95
      %p97 = scmp.eq.s32.totalorder %s29, 0
      %p98 = por %p96, %p97
      %s100 = sadd.s32 %s99, 1
      %p103 = scmp.eq.s32.totalorder %s23, 1
      %p104 = scmp.ne.s32.totalorder %s99, %s101
      %p105 = scmp.eq.s32.totalorder %s23, 0
      %p106 = por %p104, %p105
      %p107 = scmp.ne.s32.totalorder %s99, %s101
      %p108 = scmp.eq.s32.totalorder %s28, 1
      %p109 = por %p107, %p108
      %p110 = scmp.ne.s32.totalorder %s101, %s102
      %p111 = scmp.eq.s32.totalorder %s28, 0
      %p112 = por %p110, %p111
      %p113 = scmp.ne.s32.totalorder %s101, %s102
      %p114 = scmp.eq.s32.totalorder %s29, 1
      %p115 = por %p113, %p114
      %p117 = scmp.ne.s32.totalorder %s102, %s116
      %p118 = scmp.eq.s32.totalorder %s29, 0
      %p119 = por %p117, %p118
      %s121 = sadd.s32 %s120, 1
      %p124 = scmp.eq.s32.totalorder %s23, 1
      %p125 = scmp.ne.s32.totalorder %s120, %s122
      %p126 = scmp.eq.s32.totalorder %s23, 0
      %p127 = por %p125, %p126
      %p128 = scmp.ne.s32.totalorder %s120, %s122
      %p129 = scmp.eq.s32.totalorder %s28, 1
      %p130 = por %p128, %p129
      %p131 = scmp.ne.s32.totalorder %s122, %s123
      %p132 = scmp.eq.s32.totalorder %s28, 0
      %p133 = por %p131, %p132
      %p134 = scmp.ne.s32.totalorder %s122, %s123
      %p135 = scmp.eq.s32.totalorder %s29, 1
      %p136 = por %p134, %p135
      %p138 = scmp.ne.s32.totalorder %s123, %s137
      %p139 = scmp.eq.s32.totalorder %s29, 0
      %p140 = por %p138, %p139
      %s142 = sadd.s32 %s141, 1
      %p145 = scmp.eq.s32.totalorder %s23, 1
      %p146 = scmp.ne.s32.totalorder %s141, %s143
      %p147 = scmp.eq.s32.totalorder %s23, 0
      %p148 = por %p146, %p147
      %p149 = scmp.ne.s32.totalorder %s141, %s143
      %p150 = scmp.eq.s32.totalorder %s28, 1
      %p151 = por %p149, %p150
      %p152 = scmp.ne.s32.totalorder %s143, %s144
      %p153 = scmp.eq.s32.totalorder %s28, 0
      %p154 = por %p152, %p153
      %p155 = scmp.ne.s32.totalorder %s143, %s144
      %p156 = scmp.eq.s32.totalorder %s29, 1
      %p157 = por %p155, %p156
      %p159 = scmp.ne.s32.totalorder %s144, %s158
      %p160 = scmp.eq.s32.totalorder %s29, 0
      %p161 = por %p159, %p160
      %s163 = sadd.s32 %s162, 1
      %p166 = scmp.eq.s32.totalorder %s23, 1
      %p167 = scmp.ne.s32.totalorder %s162, %s164
      %p168 = scmp.eq.s32.totalorder %s23, 0
      %p169 = por %p167, %p168
      %p170 = scmp.ne.s32.totalorder %s162, %s164
      %p171 = scmp.eq.s32.totalorder %s28, 1
      %p172 = por %p170, %p171
      %p173 = scmp.ne.s32.totalorder %s164, %s165
      %p174 = scmp.eq.s32.totalorder %s28, 0
      %p175 = por %p173, %p174
      %p176 = scmp.ne.s32.totalorder %s164, %s165
      %p177 = scmp.eq.s32.totalorder %s29, 1
      %p178 = por %p176, %p177
      %p180 = scmp.ne.s32.totalorder %s165, %s179
      %p181 = scmp.eq.s32.totalorder %s29, 0
      %p182 = por %p180, %p181
      %s183 = ssub.s32 %s23, %s30
      %p184 = scmp.eq.s32.totalorder %s183, 0
      %s186 = sadd.s32 %s185, 1
      %s187 = scalar_select %p184, %s185, %s186
      %p190 = pneg %p184
      %p191 = scmp.eq.s32.totalorder %s23, 1
      %p192 = por %p190, %p191
      %p193 = scmp.ne.s32.totalorder %s185, %s188
      %p194 = scmp.eq.s32.totalorder %s23, 0
      %p195 = por %p193, %p194
      %p196 = scmp.ne.s32.totalorder %s185, %s188
      %p197 = scmp.eq.s32.totalorder %s28, 1
      %p198 = por %p196, %p197
      %p199 = scmp.ne.s32.totalorder %s188, %s189
      %p200 = scmp.eq.s32.totalorder %s28, 0
      %p201 = por %p199, %p200
      %p202 = scmp.ne.s32.totalorder %s188, %s189
      %p203 = scmp.eq.s32.totalorder %s29, 1
      %p204 = por %p202, %p203
      %p206 = scmp.ne.s32.totalorder %s189, %s205
      %p207 = scmp.eq.s32.totalorder %s29, 0
      %p208 = por %p206, %p207
      %p209 = scmp.le.s32.totalorder 1, %s23
      %p210 = scmp.lt.s32.totalorder %s23, 3
      %p211 = pnand %p209, %p210
      %p212 = pneg %p211
      // Predicated region
      $region9: #{tpu_custom_call.1} parent=5 // pred_check
        _
      $region10: #{tpu_custom_call.1} parent=5 // pred_check_branch
        %214 = sbr.rel (%p211) target = $region12
      $region11: #{tpu_custom_call.1} parent=5 // pred_region
        %s215 = ssub.s32 %s23, 1
        // Predicated region
        $region13: #{tpu_custom_call.1} parent=11 // pred_check
          %p216 = pneg %p70
        $region14: #{tpu_custom_call.1} parent=11 // pred_check_branch
          %218 = sbr.rel (%p216) target = $region16
        $region15: #{tpu_custom_call.1} parent=11 // pred_region
          %s220 = ssub.s32 16, 16
          %221 = vsyncadd [#allocation9], %s220
          %s223 = sshll.u32 %s1, 4
          %s224 = int_to_ptr.vmem [resolvable:$true] %s223
          %226 = dma.vmem_to_smem %s224, 16, [#allocation10], [#allocation9]
        $region16: #{tpu_custom_call.1} parent=11 // pred_fallthru
          _
        // Predicated region
        $region17: #{tpu_custom_call.1} parent=11 // pred_check
          %p227 = pneg %p91
        $region18: #{tpu_custom_call.1} parent=11 // pred_check_branch
          %229 = sbr.rel (%p227) target = $region20
        $region19: #{tpu_custom_call.1} parent=11 // pred_region
          %s231 = ssub.s32 16, 16
          %232 = vsyncadd [#allocation12], %s231
          %s234 = sshll.u32 %s2, 4
          %s235 = int_to_ptr.vmem [resolvable:$true] %s234
          %237 = dma.vmem_to_smem %s235, 16, [#allocation11], [#allocation12]
        $region20: #{tpu_custom_call.1} parent=11 // pred_fallthru
          _
        // Predicated region
        $region21: #{tpu_custom_call.1} parent=11 // pred_check
          %p238 = pneg %p112
        $region22: #{tpu_custom_call.1} parent=11 // pred_check_branch
          %240 = sbr.rel (%p238) target = $region24
        $region23: #{tpu_custom_call.1} parent=11 // pred_region
          %s242 = ssub.s32 32, 32
          %243 = vsyncadd [#allocation12], %s242
          %s245 = sshll.u32 %s3, 4
          %s246 = int_to_ptr.vmem [resolvable:$true] %s245
          %248 = dma.vmem_to_smem %s246, 32, [#allocation13], [#allocation12]
        $region24: #{tpu_custom_call.1} parent=11 // pred_fallthru
          _
        // Predicated region
        $region25: #{tpu_custom_call.1} parent=11 // pred_check
          %p249 = pneg %p133
        $region26: #{tpu_custom_call.1} parent=11 // pred_check_branch
          %251 = sbr.rel (%p249) target = $region28
        $region27: #{tpu_custom_call.1} parent=11 // pred_region
          %s253 = ssub.s32 16, 16
          %254 = vsyncadd [#allocation15], %s253
          %s256 = sshll.u32 %s4, 4
          %s257 = int_to_ptr.vmem [resolvable:$true] %s256
          %259 = dma.vmem_to_smem %s257, 16, [#allocation14], [#allocation15]
        $region28: #{tpu_custom_call.1} parent=11 // pred_fallthru
          _
        // Predicated region
        $region29: #{tpu_custom_call.1} parent=11 // pred_check
          %p260 = pneg %p154
        $region30: #{tpu_custom_call.1} parent=11 // pred_check_branch
          %262 = sbr.rel (%p260) target = $region32
        $region31: #{tpu_custom_call.1} parent=11 // pred_region
          %s264 = ssub.s32 16, 16
          %265 = vsyncadd [#allocation15], %s264
          %s267 = sshll.u32 %s5, 4
          %s268 = int_to_ptr.vmem [resolvable:$true] %s267
          %270 = dma.vmem_to_smem %s268, 16, [#allocation16], [#allocation15]
        $region32: #{tpu_custom_call.1} parent=11 // pred_fallthru
          _
        // Predicated region
        $region33: #{tpu_custom_call.1} parent=11 // pred_check
          %p271 = pneg %p175
        $region34: #{tpu_custom_call.1} parent=11 // pred_check_branch
          %273 = sbr.rel (%p271) target = $region36
        $region35: #{tpu_custom_call.1} parent=11 // pred_region
          %s275 = ssub.s32 16, 16
          %276 = vsyncadd [#allocation18], %s275
          %s278 = sshll.u32 %s6, 4
          %s279 = int_to_ptr.vmem [resolvable:$true] %s278
          %281 = dma.vmem_to_smem %s279, 16, [#allocation17], [#allocation18]
        $region36: #{tpu_custom_call.1} parent=11 // pred_fallthru
          _
      $region12: #{tpu_custom_call.1} parent=5 // pred_fallthru
        _
      %p282 = scmp.lt.s32.totalorder %s23, 2
      // Predicated region
      $region37: #{tpu_custom_call.1} parent=5 // pred_check
        %p283 = pneg %p282
      $region38: #{tpu_custom_call.1} parent=5 // pred_check_branch
        %285 = sbr.rel (%p283) target = $region40
      $region39: #{tpu_custom_call.1} parent=5 // pred_region
        // Predicated region
        $region41: #{tpu_custom_call.1} parent=39 // pred_check
          %p286 = pneg %p43
        $region42: #{tpu_custom_call.1} parent=39 // pred_check_branch
          %288 = sbr.rel (%p286) target = $region44
        $region43: #{tpu_custom_call.1} parent=39 // pred_region
          %s289 = sand.u32 %s33, 1
          %s290 = scalar_lea.sflag [#allocation7], %s289
          %s291 = sand.u32 %s33, 1
          %s292 = smul.addr %s291, 64
          %s293 = scalar_lea.vmem [#allocation6], %s292
          %s295 = ssub.s32 1024, 1024
          %296 = vsyncadd %s290, %s295
          %s297 = smul.addr %s23, 8
          %s298 = smul.addr %s297, 128
          %s299 = scalar_lea.hbm %s0, %s298
          %s300 = sshll.u32 %s293, 4
          %s301 = int_to_ptr.vmem [resolvable:$true] %s300
          %306 = dma.hbm_to_vmem [thread:$0]  %s299, 1024, %s301, %s290, 128, 128, 8
        $region44: #{tpu_custom_call.1} parent=39 // pred_fallthru
          _
      $region40: #{tpu_custom_call.1} parent=5 // pred_fallthru
        _
      %p307 = scmp.le.s32.totalorder 1, %s23
      %p308 = scmp.lt.s32.totalorder %s23, 3
      %p309 = pnand %p307, %p308
      %p310 = pneg %p309
      // Predicated region
      $region45: #{tpu_custom_call.1} parent=5 // pred_check
        _
      $region46: #{tpu_custom_call.1} parent=5 // pred_check_branch
        %312 = sbr.rel (%p309) target = $region48
      $region47: #{tpu_custom_call.1} parent=5 // pred_region
        %s313 = ssub.s32 %s23, 1
        %s314 = sand.u32 %s36, 1
        %s315 = scalar_lea.sflag [#allocation7], %s314
        %s316 = sand.u32 %s36, 1
        %s317 = smul.addr %s316, 64
        %s318 = scalar_lea.vmem [#allocation6], %s317
        // Predicated region
        $region49: #{tpu_custom_call.1} parent=47 // pred_check
          %p319 = pneg %p49
        $region50: #{tpu_custom_call.1} parent=47 // pred_check_branch
          %321 = sbr.rel (%p319) target = $region52
        $region51: #{tpu_custom_call.1} parent=47 // pred_region
          %322 = dma.done %s315, 1024
        $region52: #{tpu_custom_call.1} parent=47 // pred_fallthru
          _
        // Predicated region
        $region53: #{tpu_custom_call.1} parent=47 // pred_check
          %p323 = pneg %p70
        $region54: #{tpu_custom_call.1} parent=47 // pred_check_branch
          %325 = sbr.rel (%p323) target = $region56
        $region55: #{tpu_custom_call.1} parent=47 // pred_region
          %326 = dma.done [#allocation9], 16
        $region56: #{tpu_custom_call.1} parent=47 // pred_fallthru
          _
        // Predicated region
        $region57: #{tpu_custom_call.1} parent=47 // pred_check
          %p327 = pneg %p91
        $region58: #{tpu_custom_call.1} parent=47 // pred_check_branch
          %329 = sbr.rel (%p327) target = $region60
        $region59: #{tpu_custom_call.1} parent=47 // pred_region
          %330 = dma.done [#allocation12], 16
        $region60: #{tpu_custom_call.1} parent=47 // pred_fallthru
          _
        // Predicated region
        $region61: #{tpu_custom_call.1} parent=47 // pred_check
          %p331 = pneg %p112
        $region62: #{tpu_custom_call.1} parent=47 // pred_check_branch
          %333 = sbr.rel (%p331) target = $region64
        $region63: #{tpu_custom_call.1} parent=47 // pred_region
          %334 = dma.done [#allocation12], 32
        $region64: #{tpu_custom_call.1} parent=47 // pred_fallthru
          _
        // Predicated region
        $region65: #{tpu_custom_call.1} parent=47 // pred_check
          %p335 = pneg %p133
        $region66: #{tpu_custom_call.1} parent=47 // pred_check_branch
          %337 = sbr.rel (%p335) target = $region68
        $region67: #{tpu_custom_call.1} parent=47 // pred_region
          %338 = dma.done [#allocation15], 16
        $region68: #{tpu_custom_call.1} parent=47 // pred_fallthru
          _
        // Predicated region
        $region69: #{tpu_custom_call.1} parent=47 // pred_check
          %p339 = pneg %p154
        $region70: #{tpu_custom_call.1} parent=47 // pred_check_branch
          %341 = sbr.rel (%p339) target = $region72
        $region71: #{tpu_custom_call.1} parent=47 // pred_region
          %342 = dma.done [#allocation15], 16
        $region72: #{tpu_custom_call.1} parent=47 // pred_fallthru
          _
        // Predicated region
        $region73: #{tpu_custom_call.1} parent=47 // pred_check
          %p343 = pneg %p175
        $region74: #{tpu_custom_call.1} parent=47 // pred_check_branch
          %345 = sbr.rel (%p343) target = $region76
        $region75: #{tpu_custom_call.1} parent=47 // pred_region
          %346 = dma.done [#allocation18], 16
        $region76: #{tpu_custom_call.1} parent=47 // pred_fallthru
          _
        %347 = sfence
        %s348 = sand.u32 %s36, 1
        %s349 = scalar_lea.sflag [#allocation7], %s348
        %s350 = sand.u32 %s36, 1
        %s351 = smul.addr %s350, 64
        %s352 = scalar_lea.vmem [#allocation6], %s351
        %p353 = pneg %p49
        %p354 = pneg %p46
        %p355 = pneg %p70
        %p356 = pneg %p67
        %p357 = pneg %p91
        %p358 = pneg %p88
        %p359 = pneg %p112
        %p360 = pneg %p109
        %p361 = pneg %p133
        %p362 = pneg %p130
        %p363 = pneg %p154
        %p364 = pneg %p151
        %p365 = pneg %p175
        %p366 = pneg %p172
        %p367 = pneg %p201
        %p368 = pneg %p198
        %s369 = sand.u32 %s188, 1
        %s370 = scalar_lea.sflag [#allocation8], %s369
        %s371 = sand.u32 %s188, 1
        %s372 = smul.addr %s371, 64
        %s373 = scalar_lea.vmem [#allocation19], %s372
        %374 = vst [vmem:[#allocation2] sm:$0xc0] 0.0
        %vm375 = vcmask 146438
        %376 = vst.msk [vmem:[#allocation2 + $0x8] sm:$0xc0] %vm375, 0.0
        %377 = vst [vmem:[#allocation2 + $0x30] sm:$0x3] 0.0
        %vm378 = vcmask 140288
        %379 = vst.msk [vmem:[#allocation2 + $0x38] sm:$0x3] %vm378, 0.0
        %vm380 = vcmask 1048560
        %381 = vst.msk [vmem:[#allocation2 + $0x10] sm:$0xff] %vm380, 0.0
        %382 = vst.msk [vmem:[#allocation2 + $0x20] sm:$0xff] %vm380, 0.0
        %vm383 = vcmask 146560
        %384 = vst.msk [vmem:[#allocation2 + $0x18] sm:$0xff] %vm383, 0.0
        %385 = vst.msk [vmem:[#allocation2 + $0x28] sm:$0xff] %vm383, 0.0
        %386 = vst [vmem:[#allocation4] sm:$0x80] 0.0
        %vm387 = vcmask 203783
        %388 = vst.msk [vmem:[#allocation4 + $0x8] sm:$0x80] %vm387, 0.0
        %389 = vst [vmem:[#allocation4 + $0x10] sm:$0xff] 0.0
        %vm390 = vcmask 203776
        %391 = vst.msk [vmem:[#allocation4 + $0x18] sm:$0xff] %vm390, 0.0
        %392 = vst [vmem:[#allocation4 + $0x40] sm:$0xff] 0.0
        %393 = vst.msk [vmem:[#allocation4 + $0x48] sm:$0xff] %vm390, 0.0
        %394 = vst [vmem:[#allocation4 + $0x50] sm:$0x1] 0.0
        %vm395 = vcmask 196608
        %396 = vst.msk [vmem:[#allocation4 + $0x58] sm:$0x1] %vm395, 0.0
        %vm397 = vcmask 1048504
        %398 = vst.msk [vmem:[#allocation4 + $0x20] sm:$0xff] %vm397, 0.0
        %399 = vst.msk [vmem:[#allocation4 + $0x30] sm:$0xff] %vm397, 0.0
        %vm400 = vcmask 203904
        %401 = vst.msk [vmem:[#allocation4 + $0x28] sm:$0xff] %vm400, 0.0
        %402 = vst.msk [vmem:[#allocation4 + $0x38] sm:$0xff] %vm400, 0.0
        %v403 = vld [vmem:[%s318] sm:$0xff]
        %v404 = vld [vmem:[%s318 + $0x8] sm:$0xff]
        %vm405 = vcmask 130048
        %406 = vst.msk [vmem:[#allocation2 + $0x18] sm:$0xff] %vm405, %v403
        %407 = vst.msk [vmem:[#allocation2 + $0x28] sm:$0xff] %vm405, %v404
        %v408 = vld [vmem:[#allocation2] sm:$0xc0]
        %v409 = vld [vmem:[#allocation2 + $0x8] sm:$0xc0]
        %v410 = vld [vmem:[#allocation2 + $0x10] sm:$0xff]
        %v411 = vld [vmem:[#allocation2 + $0x18] sm:$0xff]
        %v412 = vld [vmem:[#allocation2 + $0x20] sm:$0xff]
        %v413 = vld [vmem:[#allocation2 + $0x28] sm:$0xff]
        %v414 = vld [vmem:[#allocation2 + $0x30] sm:$0x3]
        %v415 = vld [vmem:[#allocation2 + $0x38] sm:$0x3]
        %424 = vrot.lane.b32.xlu0 %v408, 2
        %v425 = vpop.permute.xlu0 %424
        %426 = vrot.lane.b32.xlu0 %v409, 2
        %v427 = vpop.permute.xlu0 %426
        %428 = vrot.lane.b32.xlu0 %v410, 2
        %v429 = vpop.permute.xlu0 %428
        %430 = vrot.lane.b32.xlu0 %v411, 2
        %v431 = vpop.permute.xlu0 %430
        %432 = vrot.lane.b32.xlu0 %v412, 2
        %v433 = vpop.permute.xlu0 %432
        %434 = vrot.lane.b32.xlu0 %v413, 2
        %v435 = vpop.permute.xlu0 %434
        %436 = vrot.lane.b32.xlu0 %v414, 2
        %v437 = vpop.permute.xlu0 %436
        %438 = vrot.lane.b32.xlu0 %v415, 2
        %v439 = vpop.permute.xlu0 %438
        %vm440 = vcmask 15360
        %v441 = vsel %vm440, %v425, %v427
        %v442 = vsel %vm440, %v429, %v431
        %v443 = vsel %vm440, %v433, %v435
        %v444 = vsel %vm440, %v437, %v439
        %vm449 = vcmask 130054
        %450 = vst.msk [vmem:[#allocation3 - $0x6] sm:$0xc0] %vm449, %v441
        %451 = vst.msk [vmem:[#allocation3 + $0x2] sm:$0xff] %vm405, %v442
        %452 = vst.msk [vmem:[#allocation3 + $0xa] sm:$0xff] %vm405, %v443
        %vm453 = vcmask 123904
        %454 = vst.msk [vmem:[#allocation3 + $0x12] sm:$0x3] %vm453, %v444
        %v455 = vld [vmem:[#allocation2] sm:$0xc0]
        %v456 = vld [vmem:[#allocation2 + $0x8] sm:$0xc0]
        %v457 = vld [vmem:[#allocation2 + $0x10] sm:$0xff]
        %v458 = vld [vmem:[#allocation2 + $0x18] sm:$0xff]
        %v459 = vld [vmem:[#allocation2 + $0x20] sm:$0xff]
        %v460 = vld [vmem:[#allocation2 + $0x28] sm:$0xff]
        %v461 = vld [vmem:[#allocation2 + $0x30] sm:$0x3]
        %v462 = vld [vmem:[#allocation2 + $0x38] sm:$0x3]
        %471 = vrot.lane.b32.xlu0 %v455, 1
        %v472 = vpop.permute.xlu0 %471
        %473 = vrot.lane.b32.xlu0 %v456, 1
        %v474 = vpop.permute.xlu0 %473
        %475 = vrot.lane.b32.xlu0 %v457, 1
        %v476 = vpop.permute.xlu0 %475
        %477 = vrot.lane.b32.xlu0 %v458, 1
        %v478 = vpop.permute.xlu0 %477
        %479 = vrot.lane.b32.xlu0 %v459, 1
        %v480 = vpop.permute.xlu0 %479
        %481 = vrot.lane.b32.xlu0 %v460, 1
        %v482 = vpop.permute.xlu0 %481
        %483 = vrot.lane.b32.xlu0 %v461, 1
        %v484 = vpop.permute.xlu0 %483
        %485 = vrot.lane.b32.xlu0 %v462, 1
        %v486 = vpop.permute.xlu0 %485
        %vm487 = vcmask 7168
        %v488 = vsel %vm487, %v472, %v474
        %v489 = vsel %vm487, %v476, %v478
        %v490 = vsel %vm487, %v480, %v482
        %v491 = vsel %vm487, %v484, %v486
        %s496 = scalar_lea.vmem [#allocation3], 24
        %497 = vst.msk [vmem:[%s496 - $0x6] sm:$0xc0] %vm449, %v488
        %498 = vst.msk [vmem:[%s496 + $0x2] sm:$0xff] %vm405, %v489
        %499 = vst.msk [vmem:[%s496 + $0xa] sm:$0xff] %vm405, %v490
        %500 = vst.msk [vmem:[%s496 + $0x12] sm:$0x3] %vm453, %v491
        %v501 = vld [vmem:[#allocation2 + $0x8] sm:$0xc0]
        %v502 = vld [vmem:[#allocation2 + $0x18] sm:$0xff]
        %v503 = vld [vmem:[#allocation2 + $0x28] sm:$0xff]
        %v504 = vld [vmem:[#allocation2 + $0x38] sm:$0x3]
        %s505 = scalar_lea.vmem [#allocation3], 48
        %506 = vst.msk [vmem:[%s505 - $0x6] sm:$0xc0] %vm449, %v501
        %507 = vst.msk [vmem:[%s505 + $0x2] sm:$0xff] %vm405, %v502
        %508 = vst.msk [vmem:[%s505 + $0xa] sm:$0xff] %vm405, %v503
        %509 = vst.msk [vmem:[%s505 + $0x12] sm:$0x3] %vm453, %v504
        %v510 = vld [vmem:[#allocation2 + $0x8] sm:$0xc0]
        %v511 = vld [vmem:[#allocation2 + $0x18] sm:$0xff]
        %v512 = vld [vmem:[#allocation2 + $0x28] sm:$0xff]
        %v513 = vld [vmem:[#allocation2 + $0x38] sm:$0x3]
        %518 = vrot.lane.b32.xlu0 %v510, 127
        %v519 = vpop.permute.xlu0 %518
        %520 = vrot.lane.b32.xlu0 %v511, 127
        %v521 = vpop.permute.xlu0 %520
        %522 = vrot.lane.b32.xlu0 %v512, 127
        %v523 = vpop.permute.xlu0 %522
        %524 = vrot.lane.b32.xlu0 %v513, 127
        %v525 = vpop.permute.xlu0 %524
        %s530 = scalar_lea.vmem [#allocation3], 72
        %531 = vst.msk [vmem:[%s530 - $0x6] sm:$0xc0] %vm449, %v519
        %532 = vst.msk [vmem:[%s530 + $0x2] sm:$0xff] %vm405, %v521
        %533 = vst.msk [vmem:[%s530 + $0xa] sm:$0xff] %vm405, %v523
        %534 = vst.msk [vmem:[%s530 + $0x12] sm:$0x3] %vm453, %v525
        %v535 = vld [vmem:[#allocation2 + $0x8] sm:$0xc0]
        %v536 = vld [vmem:[#allocation2 + $0x18] sm:$0xff]
        %v537 = vld [vmem:[#allocation2 + $0x28] sm:$0xff]
        %v538 = vld [vmem:[#allocation2 + $0x38] sm:$0x3]
        %543 = vrot.lane.b32.xlu0 %v535, 126
        %v544 = vpop.permute.xlu0 %543
        %545 = vrot.lane.b32.xlu0 %v536, 126
        %v546 = vpop.permute.xlu0 %545
        %547 = vrot.lane.b32.xlu0 %v537, 126
        %v548 = vpop.permute.xlu0 %547
        %549 = vrot.lane.b32.xlu0 %v538, 126
        %v550 = vpop.permute.xlu0 %549
        %s555 = scalar_lea.vmem [#allocation3], 96
        %556 = vst.msk [vmem:[%s555 - $0x6] sm:$0xc0] %vm449, %v544
        %557 = vst.msk [vmem:[%s555 + $0x2] sm:$0xff] %vm405, %v546
        %558 = vst.msk [vmem:[%s555 + $0xa] sm:$0xff] %vm405, %v548
        %559 = vst.msk [vmem:[%s555 + $0x12] sm:$0x3] %vm453, %v550
        %v560 = vld [vmem:[#allocation3] sm:$0xff]
        %v561 = vld [vmem:[#allocation3 + $0x8] sm:$0xff]
        %s562 = sld [smem:[#allocation10]]
        %v563 = vstv %s562
        %v564 = vmul.f32 %v560, %v563
        %v565 = vmul.f32 %v561, %v563
        %v566 = vld [vmem:[%s496] sm:$0xff]
        %v567 = vld [vmem:[%s496 + $0x8] sm:$0xff]
        %s568 = sld [smem:[#allocation10 + $0x1]]
        %v569 = vstv %s568
        %v570 = vmul.f32 %v566, %v569
        %v571 = vmul.f32 %v567, %v569
        %v572 = vld [vmem:[%s505] sm:$0xff]
        %v573 = vld [vmem:[%s505 + $0x8] sm:$0xff]
        %s574 = sld [smem:[#allocation10 + $0x2]]
        %v575 = vstv %s574
        %v576 = vmul.f32 %v572, %v575
        %v577 = vmul.f32 %v573, %v575
        %v578 = vld [vmem:[%s530] sm:$0xff]
        %v579 = vld [vmem:[%s530 + $0x8] sm:$0xff]
        %s580 = sld [smem:[#allocation10 + $0x3]]
        %v581 = vstv %s580
        %v582 = vmul.f32 %v578, %v581
        %v583 = vmul.f32 %v579, %v581
        %v584 = vld [vmem:[%s555] sm:$0xff]
        %v585 = vld [vmem:[%s555 + $0x8] sm:$0xff]
        %s586 = sld [smem:[#allocation10 + $0x4]]
        %v587 = vstv %s586
        %v588 = vmul.f32 %v584, %v587
        %v589 = vmul.f32 %v585, %v587
        %v590 = vadd.f32 %v564, %v588
        %v591 = vadd.f32 %v565, %v589
        %v592 = vld [vmem:[#allocation3 + $0x1] sm:$0xff]
        %v593 = vld [vmem:[#allocation3 + $0x9] sm:$0xff]
        %s594 = sld [smem:[#allocation10 + $0x5]]
        %v595 = vstv %s594
        %v596 = vmul.f32 %v592, %v595
        %v597 = vmul.f32 %v593, %v595
        %v598 = vadd.f32 %v570, %v596
        %v599 = vadd.f32 %v571, %v597
        %v600 = vld [vmem:[%s496 + $0x1] sm:$0xff]
        %v601 = vld [vmem:[%s496 + $0x9] sm:$0xff]
        %s602 = sld [smem:[#allocation10 + $0x6]]
        %v603 = vstv %s602
        %v604 = vmul.f32 %v600, %v603
        %v605 = vmul.f32 %v601, %v603
        %v606 = vadd.f32 %v576, %v604
        %v607 = vadd.f32 %v577, %v605
        %v608 = vld [vmem:[%s505 + $0x1] sm:$0xff]
        %v609 = vld [vmem:[%s505 + $0x9] sm:$0xff]
        %s610 = sld [smem:[#allocation10 + $0x7]]
        %v611 = vstv %s610
        %v612 = vmul.f32 %v608, %v611
        %v613 = vmul.f32 %v609, %v611
        %v614 = vadd.f32 %v582, %v612
        %v615 = vadd.f32 %v583, %v613
        %v616 = vld [vmem:[%s530 + $0x1] sm:$0xff]
        %v617 = vld [vmem:[%s530 + $0x9] sm:$0xff]
        %s618 = sld [smem:[#allocation10 + $0x8]]
        %v619 = vstv %s618
        %v620 = vmul.f32 %v616, %v619
        %v621 = vmul.f32 %v617, %v619
        %v622 = vadd.f32 %v590, %v620
        %v623 = vadd.f32 %v591, %v621
        %v624 = vld [vmem:[%s555 + $0x1] sm:$0xff]
        %v625 = vld [vmem:[%s555 + $0x9] sm:$0xff]
        %s626 = sld [smem:[#allocation10 + $0x9]]
        %v627 = vstv %s626
        %v628 = vmul.f32 %v624, %v627
        %v629 = vmul.f32 %v625, %v627
        %v630 = vadd.f32 %v598, %v628
        %v631 = vadd.f32 %v599, %v629
        %v632 = vld [vmem:[#allocation3 + $0x2] sm:$0xff]
        %v633 = vld [vmem:[#allocation3 + $0xa] sm:$0xff]
        %s634 = sld [smem:[#allocation10 + $0xa]]
        %v635 = vstv %s634
        %v636 = vmul.f32 %v632, %v635
        %v637 = vmul.f32 %v633, %v635
        %v638 = vadd.f32 %v606, %v636
        %v639 = vadd.f32 %v607, %v637
        %v640 = vld [vmem:[%s496 + $0x2] sm:$0xff]
        %v641 = vld [vmem:[%s496 + $0xa] sm:$0xff]
        %s642 = sld [smem:[#allocation10 + $0xb]]
        %v643 = vstv %s642
        %v644 = vmul.f32 %v640, %v643
        %v645 = vmul.f32 %v641, %v643
        %v646 = vadd.f32 %v614, %v644
        %v647 = vadd.f32 %v615, %v645
        %v648 = vld [vmem:[%s505 + $0x2] sm:$0xff]
        %v649 = vld [vmem:[%s505 + $0xa] sm:$0xff]
        %s650 = sld [smem:[#allocation10 + $0xc]]
        %v651 = vstv %s650
        %v652 = vmul.f32 %v648, %v651
        %v653 = vmul.f32 %v649, %v651
        %v654 = vadd.f32 %v622, %v652
        %v655 = vadd.f32 %v623, %v653
        %v656 = vld [vmem:[%s530 + $0x2] sm:$0xff]
        %v657 = vld [vmem:[%s530 + $0xa] sm:$0xff]
        %s658 = sld [smem:[#allocation10 + $0xd]]
        %v659 = vstv %s658
        %v660 = vmul.f32 %v656, %v659
        %v661 = vmul.f32 %v657, %v659
        %v662 = vadd.f32 %v630, %v660
        %v663 = vadd.f32 %v631, %v661
        %v664 = vld [vmem:[%s555 + $0x2] sm:$0xff]
        %v665 = vld [vmem:[%s555 + $0xa] sm:$0xff]
        %s666 = sld [smem:[#allocation10 + $0xe]]
        %v667 = vstv %s666
        %v668 = vmul.f32 %v664, %v667
        %v669 = vmul.f32 %v665, %v667
        %v670 = vadd.f32 %v638, %v668
        %v671 = vadd.f32 %v639, %v669
        %v672 = vld [vmem:[#allocation3 + $0x3] sm:$0xff]
        %v673 = vld [vmem:[#allocation3 + $0xb] sm:$0xff]
        %s674 = sld [smem:[#allocation10 + $0xf]]
        %v675 = vstv %s674
        %v676 = vmul.f32 %v672, %v675
        %v677 = vmul.f32 %v673, %v675
        %v678 = vadd.f32 %v646, %v676
        %v679 = vadd.f32 %v647, %v677
        %v680 = vld [vmem:[%s496 + $0x3] sm:$0xff]
        %v681 = vld [vmem:[%s496 + $0xb] sm:$0xff]
        %s682 = sld [smem:[#allocation10 + $0x10]]
        %v683 = vstv %s682
        %v684 = vmul.f32 %v680, %v683
        %v685 = vmul.f32 %v681, %v683
        %v686 = vadd.f32 %v654, %v684
        %v687 = vadd.f32 %v655, %v685
        %v688 = vld [vmem:[%s505 + $0x3] sm:$0xff]
        %v689 = vld [vmem:[%s505 + $0xb] sm:$0xff]
        %s690 = sld [smem:[#allocation10 + $0x11]]
        %v691 = vstv %s690
        %v692 = vmul.f32 %v688, %v691
        %v693 = vmul.f32 %v689, %v691
        %v694 = vadd.f32 %v662, %v692
        %v695 = vadd.f32 %v663, %v693
        %v696 = vld [vmem:[%s530 + $0x3] sm:$0xff]
        %v697 = vld [vmem:[%s530 + $0xb] sm:$0xff]
        %s698 = sld [smem:[#allocation10 + $0x12]]
        %v699 = vstv %s698
        %v700 = vmul.f32 %v696, %v699
        %v701 = vmul.f32 %v697, %v699
        %v702 = vadd.f32 %v670, %v700
        %v703 = vadd.f32 %v671, %v701
        %v704 = vld [vmem:[%s555 + $0x3] sm:$0xff]
        %v705 = vld [vmem:[%s555 + $0xb] sm:$0xff]
        %s706 = sld [smem:[#allocation10 + $0x13]]
        %v707 = vstv %s706
        %v708 = vmul.f32 %v704, %v707
        %v709 = vmul.f32 %v705, %v707
        %v710 = vadd.f32 %v678, %v708
        %v711 = vadd.f32 %v679, %v709
        %v712 = vld [vmem:[#allocation3 + $0x4] sm:$0xff]
        %v713 = vld [vmem:[#allocation3 + $0xc] sm:$0xff]
        %s714 = sld [smem:[#allocation10 + $0x14]]
        %v715 = vstv %s714
        %v716 = vmul.f32 %v712, %v715
        %v717 = vmul.f32 %v713, %v715
        %v718 = vadd.f32 %v686, %v716
        %v719 = vadd.f32 %v687, %v717
        %v720 = vld [vmem:[%s496 + $0x4] sm:$0xff]
        %v721 = vld [vmem:[%s496 + $0xc] sm:$0xff]
        %s722 = sld [smem:[#allocation10 + $0x15]]
        %v723 = vstv %s722
        %v724 = vmul.f32 %v720, %v723
        %v725 = vmul.f32 %v721, %v723
        %v726 = vadd.f32 %v694, %v724
        %v727 = vadd.f32 %v695, %v725
        %v728 = vld [vmem:[%s505 + $0x4] sm:$0xff]
        %v729 = vld [vmem:[%s505 + $0xc] sm:$0xff]
        %s730 = sld [smem:[#allocation10 + $0x16]]
        %v731 = vstv %s730
        %v732 = vmul.f32 %v728, %v731
        %v733 = vmul.f32 %v729, %v731
        %v734 = vadd.f32 %v702, %v732
        %v735 = vadd.f32 %v703, %v733
        %v736 = vld [vmem:[%s530 + $0x4] sm:$0xff]
        %v737 = vld [vmem:[%s530 + $0xc] sm:$0xff]
        %s738 = sld [smem:[#allocation10 + $0x17]]
        %v739 = vstv %s738
        %v740 = vmul.f32 %v736, %v739
        %v741 = vmul.f32 %v737, %v739
        %v742 = vadd.f32 %v710, %v740
        %v743 = vadd.f32 %v711, %v741
        %v744 = vld [vmem:[%s555 + $0x4] sm:$0xff]
        %v745 = vld [vmem:[%s555 + $0xc] sm:$0xff]
        %s746 = sld [smem:[#allocation10 + $0x18]]
        %v747 = vstv %s746
        %v748 = vmul.f32 %v744, %v747
        %v749 = vmul.f32 %v745, %v747
        %v750 = vadd.f32 %v718, %v748
        %v751 = vadd.f32 %v719, %v749
        %v752 = vadd.f32 %v750, %v726
        %v753 = vadd.f32 %v751, %v727
        %v754 = vadd.f32 %v752, %v734
        %v755 = vadd.f32 %v753, %v735
        %v756 = vadd.f32 %v754, %v742
        %v757 = vadd.f32 %v755, %v743
        %s758 = sld [smem:[#allocation11]]
        %v759 = vstv %s758
        %v760 = vadd.f32 %v756, %v759
        %v761 = vadd.f32 %v757, %v759
        %762 = vst.msk [vmem:[#allocation4 + $0x28] sm:$0xff] %vm405, %v760
        %763 = vst.msk [vmem:[#allocation4 + $0x38] sm:$0xff] %vm405, %v761
        %v764 = vld [vmem:[#allocation4] sm:$0x80]
        %v765 = vld [vmem:[#allocation4 + $0x8] sm:$0x80]
        %v766 = vld [vmem:[#allocation4 + $0x10] sm:$0xff]
        %v767 = vld [vmem:[#allocation4 + $0x18] sm:$0xff]
        %v768 = vld [vmem:[#allocation4 + $0x20] sm:$0xff]
        %v769 = vld [vmem:[#allocation4 + $0x28] sm:$0xff]
        %v770 = vld [vmem:[#allocation4 + $0x30] sm:$0xff]
        %v771 = vld [vmem:[#allocation4 + $0x38] sm:$0xff]
        %v772 = vld [vmem:[#allocation4 + $0x40] sm:$0xff]
        %v773 = vld [vmem:[#allocation4 + $0x48] sm:$0xff]
        %v774 = vld [vmem:[#allocation4 + $0x50] sm:$0x1]
        %v775 = vld [vmem:[#allocation4 + $0x58] sm:$0x1]
        %788 = vrot.lane.b32.xlu0 %v764, 9
        %v789 = vpop.permute.xlu0 %788
        %790 = vrot.lane.b32.xlu0 %v765, 9
        %v791 = vpop.permute.xlu0 %790
        %792 = vrot.lane.b32.xlu0 %v766, 9
        %v793 = vpop.permute.xlu0 %792
        %794 = vrot.lane.b32.xlu0 %v767, 9
        %v795 = vpop.permute.xlu0 %794
        %796 = vrot.lane.b32.xlu0 %v768, 9
        %v797 = vpop.permute.xlu0 %796
        %798 = vrot.lane.b32.xlu0 %v769, 9
        %v799 = vpop.permute.xlu0 %798
        %800 = vrot.lane.b32.xlu0 %v770, 9
        %v801 = vpop.permute.xlu0 %800
        %802 = vrot.lane.b32.xlu0 %v771, 9
        %v803 = vpop.permute.xlu0 %802
        %804 = vrot.lane.b32.xlu0 %v772, 9
        %v805 = vpop.permute.xlu0 %804
        %806 = vrot.lane.b32.xlu0 %v773, 9
        %v807 = vpop.permute.xlu0 %806
        %808 = vrot.lane.b32.xlu0 %v774, 9
        %v809 = vpop.permute.xlu0 %808
        %810 = vrot.lane.b32.xlu0 %v775, 9
        %v811 = vpop.permute.xlu0 %810
        %vm812 = vcmask 72704
        %v813 = vsel %vm812, %v789, %v791
        %v814 = vsel %vm812, %v793, %v795
        %v815 = vsel %vm812, %v797, %v799
        %v816 = vsel %vm812, %v801, %v803
        %v817 = vsel %vm812, %v805, %v807
        %v818 = vsel %vm812, %v809, %v811
        %vm825 = vcmask 130055
        %826 = vst.msk [vmem:[#allocation5 - $0x7] sm:$0x80] %vm825, %v813
        %827 = vst.msk [vmem:[#allocation5 + $0x1] sm:$0xff] %vm405, %v814
        %828 = vst.msk [vmem:[#allocation5 + $0x9] sm:$0xff] %vm405, %v815
        %829 = vst.msk [vmem:[#allocation5 + $0x11] sm:$0xff] %vm405, %v816
        %830 = vst.msk [vmem:[#allocation5 + $0x19] sm:$0xff] %vm405, %v817
        %vm831 = vcmask 122880
        %832 = vst.msk [vmem:[#allocation5 + $0x21] sm:$0x1] %vm831, %v818
        %v833 = vld [vmem:[#allocation4] sm:$0x80]
        %v834 = vld [vmem:[#allocation4 + $0x8] sm:$0x80]
        %v835 = vld [vmem:[#allocation4 + $0x10] sm:$0xff]
        %v836 = vld [vmem:[#allocation4 + $0x18] sm:$0xff]
        %v837 = vld [vmem:[#allocation4 + $0x20] sm:$0xff]
        %v838 = vld [vmem:[#allocation4 + $0x28] sm:$0xff]
        %v839 = vld [vmem:[#allocation4 + $0x30] sm:$0xff]
        %v840 = vld [vmem:[#allocation4 + $0x38] sm:$0xff]
        %v841 = vld [vmem:[#allocation4 + $0x40] sm:$0xff]
        %v842 = vld [vmem:[#allocation4 + $0x48] sm:$0xff]
        %v843 = vld [vmem:[#allocation4 + $0x50] sm:$0x1]
        %v844 = vld [vmem:[#allocation4 + $0x58] sm:$0x1]
        %857 = vrot.lane.b32.xlu0 %v833, 6
        %v858 = vpop.permute.xlu0 %857
        %859 = vrot.lane.b32.xlu0 %v834, 6
        %v860 = vpop.permute.xlu0 %859
        %861 = vrot.lane.b32.xlu0 %v835, 6
        %v862 = vpop.permute.xlu0 %861
        %863 = vrot.lane.b32.xlu0 %v836, 6
        %v864 = vpop.permute.xlu0 %863
        %865 = vrot.lane.b32.xlu0 %v837, 6
        %v866 = vpop.permute.xlu0 %865
        %867 = vrot.lane.b32.xlu0 %v838, 6
        %v868 = vpop.permute.xlu0 %867
        %869 = vrot.lane.b32.xlu0 %v839, 6
        %v870 = vpop.permute.xlu0 %869
        %871 = vrot.lane.b32.xlu0 %v840, 6
        %v872 = vpop.permute.xlu0 %871
        %873 = vrot.lane.b32.xlu0 %v841, 6
        %v874 = vpop.permute.xlu0 %873
        %875 = vrot.lane.b32.xlu0 %v842, 6
        %v876 = vpop.permute.xlu0 %875
        %877 = vrot.lane.b32.xlu0 %v843, 6
        %v878 = vpop.permute.xlu0 %877
        %879 = vrot.lane.b32.xlu0 %v844, 6
        %v880 = vpop.permute.xlu0 %879
        %vm881 = vcmask 48128
        %v882 = vsel %vm881, %v858, %v860
        %v883 = vsel %vm881, %v862, %v864
        %v884 = vsel %vm881, %v866, %v868
        %v885 = vsel %vm881, %v870, %v872
        %v886 = vsel %vm881, %v874, %v876
        %v887 = vsel %vm881, %v878, %v880
        %s894 = scalar_lea.vmem [#allocation5], 40
        %895 = vst.msk [vmem:[%s894 - $0x7] sm:$0x80] %vm825, %v882
        %896 = vst.msk [vmem:[%s894 + $0x1] sm:$0xff] %vm405, %v883
        %897 = vst.msk [vmem:[%s894 + $0x9] sm:$0xff] %vm405, %v884
        %898 = vst.msk [vmem:[%s894 + $0x11] sm:$0xff] %vm405, %v885
        %899 = vst.msk [vmem:[%s894 + $0x19] sm:$0xff] %vm405, %v886
        %900 = vst.msk [vmem:[%s894 + $0x21] sm:$0x1] %vm831, %v887
        %v901 = vld [vmem:[#allocation4] sm:$0x80]
        %v902 = vld [vmem:[#allocation4 + $0x8] sm:$0x80]
        %v903 = vld [vmem:[#allocation4 + $0x10] sm:$0xff]
        %v904 = vld [vmem:[#allocation4 + $0x18] sm:$0xff]
        %v905 = vld [vmem:[#allocation4 + $0x20] sm:$0xff]
        %v906 = vld [vmem:[#allocation4 + $0x28] sm:$0xff]
        %v907 = vld [vmem:[#allocation4 + $0x30] sm:$0xff]
        %v908 = vld [vmem:[#allocation4 + $0x38] sm:$0xff]
        %v909 = vld [vmem:[#allocation4 + $0x40] sm:$0xff]
        %v910 = vld [vmem:[#allocation4 + $0x48] sm:$0xff]
        %v911 = vld [vmem:[#allocation4 + $0x50] sm:$0x1]
        %v912 = vld [vmem:[#allocation4 + $0x58] sm:$0x1]
        %925 = vrot.lane.b32.xlu0 %v901, 3
        %v926 = vpop.permute.xlu0 %925
        %927 = vrot.lane.b32.xlu0 %v902, 3
        %v928 = vpop.permute.xlu0 %927
        %929 = vrot.lane.b32.xlu0 %v903, 3
        %v930 = vpop.permute.xlu0 %929
        %931 = vrot.lane.b32.xlu0 %v904, 3
        %v932 = vpop.permute.xlu0 %931
        %933 = vrot.lane.b32.xlu0 %v905, 3
        %v934 = vpop.permute.xlu0 %933
        %935 = vrot.lane.b32.xlu0 %v906, 3
        %v936 = vpop.permute.xlu0 %935
        %937 = vrot.lane.b32.xlu0 %v907, 3
        %v938 = vpop.permute.xlu0 %937
        %939 = vrot.lane.b32.xlu0 %v908, 3
        %v940 = vpop.permute.xlu0 %939
        %941 = vrot.lane.b32.xlu0 %v909, 3
        %v942 = vpop.permute.xlu0 %941
        %943 = vrot.lane.b32.xlu0 %v910, 3
        %v944 = vpop.permute.xlu0 %943
        %945 = vrot.lane.b32.xlu0 %v911, 3
        %v946 = vpop.permute.xlu0 %945
        %947 = vrot.lane.b32.xlu0 %v912, 3
        %v948 = vpop.permute.xlu0 %947
        %vm949 = vcmask 23552
        %v950 = vsel %vm949, %v926, %v928
        %v951 = vsel %vm949, %v930, %v932
        %v952 = vsel %vm949, %v934, %v936
        %v953 = vsel %vm949, %v938, %v940
        %v954 = vsel %vm949, %v942, %v944
        %v955 = vsel %vm949, %v946, %v948
        %s962 = scalar_lea.vmem [#allocation5], 80
        %963 = vst.msk [vmem:[%s962 - $0x7] sm:$0x80] %vm825, %v950
        %964 = vst.msk [vmem:[%s962 + $0x1] sm:$0xff] %vm405, %v951
        %965 = vst.msk [vmem:[%s962 + $0x9] sm:$0xff] %vm405, %v952
        %966 = vst.msk [vmem:[%s962 + $0x11] sm:$0xff] %vm405, %v953
        %967 = vst.msk [vmem:[%s962 + $0x19] sm:$0xff] %vm405, %v954
        %968 = vst.msk [vmem:[%s962 + $0x21] sm:$0x1] %vm831, %v955
        %v969 = vld [vmem:[#allocation4 + $0x8] sm:$0x80]
        %v970 = vld [vmem:[#allocation4 + $0x18] sm:$0xff]
        %v971 = vld [vmem:[#allocation4 + $0x28] sm:$0xff]
        %v972 = vld [vmem:[#allocation4 + $0x38] sm:$0xff]
        %v973 = vld [vmem:[#allocation4 + $0x48] sm:$0xff]
        %v974 = vld [vmem:[#allocation4 + $0x58] sm:$0x1]
        %s975 = scalar_lea.vmem [#allocation5], 120
        %976 = vst.msk [vmem:[%s975 - $0x7] sm:$0x80] %vm825, %v969
        %977 = vst.msk [vmem:[%s975 + $0x1] sm:$0xff] %vm405, %v970
        %978 = vst.msk [vmem:[%s975 + $0x9] sm:$0xff] %vm405, %v971
        %979 = vst.msk [vmem:[%s975 + $0x11] sm:$0xff] %vm405, %v972
        %980 = vst.msk [vmem:[%s975 + $0x19] sm:$0xff] %vm405, %v973
        %981 = vst.msk [vmem:[%s975 + $0x21] sm:$0x1] %vm831, %v974
        %v982 = vld [vmem:[#allocation4 + $0x8] sm:$0x80]
        %v983 = vld [vmem:[#allocation4 + $0x18] sm:$0xff]
        %v984 = vld [vmem:[#allocation4 + $0x28] sm:$0xff]
        %v985 = vld [vmem:[#allocation4 + $0x38] sm:$0xff]
        %v986 = vld [vmem:[#allocation4 + $0x48] sm:$0xff]
        %v987 = vld [vmem:[#allocation4 + $0x58] sm:$0x1]
        %994 = vrot.lane.b32.xlu0 %v982, 125
        %v995 = vpop.permute.xlu0 %994
        %996 = vrot.lane.b32.xlu0 %v983, 125
        %v997 = vpop.permute.xlu0 %996
        %998 = vrot.lane.b32.xlu0 %v984, 125
        %v999 = vpop.permute.xlu0 %998
        %1000 = vrot.lane.b32.xlu0 %v985, 125
        %v1001 = vpop.permute.xlu0 %1000
        %1002 = vrot.lane.b32.xlu0 %v986, 125
        %v1003 = vpop.permute.xlu0 %1002
        %1004 = vrot.lane.b32.xlu0 %v987, 125
        %v1005 = vpop.permute.xlu0 %1004
        %s1012 = scalar_lea.vmem [#allocation5], 160
        %1013 = vst.msk [vmem:[%s1012 - $0x7] sm:$0x80] %vm825, %v995
        %1014 = vst.msk [vmem:[%s1012 + $0x1] sm:$0xff] %vm405, %v997
        %1015 = vst.msk [vmem:[%s1012 + $0x9] sm:$0xff] %vm405, %v999
        %1016 = vst.msk [vmem:[%s1012 + $0x11] sm:$0xff] %vm405, %v1001
        %1017 = vst.msk [vmem:[%s1012 + $0x19] sm:$0xff] %vm405, %v1003
        %1018 = vst.msk [vmem:[%s1012 + $0x21] sm:$0x1] %vm831, %v1005
        %v1019 = vld [vmem:[#allocation4 + $0x8] sm:$0x80]
        %v1020 = vld [vmem:[#allocation4 + $0x18] sm:$0xff]
        %v1021 = vld [vmem:[#allocation4 + $0x28] sm:$0xff]
        %v1022 = vld [vmem:[#allocation4 + $0x38] sm:$0xff]
        %v1023 = vld [vmem:[#allocation4 + $0x48] sm:$0xff]
        %v1024 = vld [vmem:[#allocation4 + $0x58] sm:$0x1]
        %1031 = vrot.lane.b32.xlu0 %v1019, 122
        %v1032 = vpop.permute.xlu0 %1031
        %1033 = vrot.lane.b32.xlu0 %v1020, 122
        %v1034 = vpop.permute.xlu0 %1033
        %1035 = vrot.lane.b32.xlu0 %v1021, 122
        %v1036 = vpop.permute.xlu0 %1035
        %1037 = vrot.lane.b32.xlu0 %v1022, 122
        %v1038 = vpop.permute.xlu0 %1037
        %1039 = vrot.lane.b32.xlu0 %v1023, 122
        %v1040 = vpop.permute.xlu0 %1039
        %1041 = vrot.lane.b32.xlu0 %v1024, 122
        %v1042 = vpop.permute.xlu0 %1041
        %s1049 = scalar_lea.vmem [#allocation5], 200
        %1050 = vst.msk [vmem:[%s1049 - $0x7] sm:$0x80] %vm825, %v1032
        %1051 = vst.msk [vmem:[%s1049 + $0x1] sm:$0xff] %vm405, %v1034
        %1052 = vst.msk [vmem:[%s1049 + $0x9] sm:$0xff] %vm405, %v1036
        %1053 = vst.msk [vmem:[%s1049 + $0x11] sm:$0xff] %vm405, %v1038
        %1054 = vst.msk [vmem:[%s1049 + $0x19] sm:$0xff] %vm405, %v1040
        %1055 = vst.msk [vmem:[%s1049 + $0x21] sm:$0x1] %vm831, %v1042
        %v1056 = vld [vmem:[#allocation4 + $0x8] sm:$0x80]
        %v1057 = vld [vmem:[#allocation4 + $0x18] sm:$0xff]
        %v1058 = vld [vmem:[#allocation4 + $0x28] sm:$0xff]
        %v1059 = vld [vmem:[#allocation4 + $0x38] sm:$0xff]
        %v1060 = vld [vmem:[#allocation4 + $0x48] sm:$0xff]
        %v1061 = vld [vmem:[#allocation4 + $0x58] sm:$0x1]
        %1068 = vrot.lane.b32.xlu0 %v1056, 119
        %v1069 = vpop.permute.xlu0 %1068
        %1070 = vrot.lane.b32.xlu0 %v1057, 119
        %v1071 = vpop.permute.xlu0 %1070
        %1072 = vrot.lane.b32.xlu0 %v1058, 119
        %v1073 = vpop.permute.xlu0 %1072
        %1074 = vrot.lane.b32.xlu0 %v1059, 119
        %v1075 = vpop.permute.xlu0 %1074
        %1076 = vrot.lane.b32.xlu0 %v1060, 119
        %v1077 = vpop.permute.xlu0 %1076
        %1078 = vrot.lane.b32.xlu0 %v1061, 119
        %v1079 = vpop.permute.xlu0 %1078
        %s1086 = scalar_lea.vmem [#allocation5], 240
        %1087 = vst.msk [vmem:[%s1086 - $0x7] sm:$0x80] %vm825, %v1069
        %1088 = vst.msk [vmem:[%s1086 + $0x1] sm:$0xff] %vm405, %v1071
        %1089 = vst.msk [vmem:[%s1086 + $0x9] sm:$0xff] %vm405, %v1073
        %1090 = vst.msk [vmem:[%s1086 + $0x11] sm:$0xff] %vm405, %v1075
        %1091 = vst.msk [vmem:[%s1086 + $0x19] sm:$0xff] %vm405, %v1077
        %1092 = vst.msk [vmem:[%s1086 + $0x21] sm:$0x1] %vm831, %v1079
        %v1093 = vld [vmem:[#allocation5] sm:$0xff]
        %v1094 = vld [vmem:[#allocation5 + $0x8] sm:$0xff]
        %s1095 = sld [smem:[#allocation13]]
        %v1096 = vstv %s1095
        %v1097 = vmul.f32 %v1093, %v1096
        %v1098 = vmul.f32 %v1094, %v1096
        %v1099 = vld [vmem:[%s894] sm:$0xff]
        %v1100 = vld [vmem:[%s894 + $0x8] sm:$0xff]
        %s1101 = sld [smem:[#allocation13 + $0x1]]
        %v1102 = vstv %s1101
        %v1103 = vmul.f32 %v1099, %v1102
        %v1104 = vmul.f32 %v1100, %v1102
        %v1105 = vld [vmem:[%s962] sm:$0xff]
        %v1106 = vld [vmem:[%s962 + $0x8] sm:$0xff]
        %s1107 = sld [smem:[#allocation13 + $0x2]]
        %v1108 = vstv %s1107
        %v1109 = vmul.f32 %v1105, %v1108
        %v1110 = vmul.f32 %v1106, %v1108
        %v1111 = vld [vmem:[%s975] sm:$0xff]
        %v1112 = vld [vmem:[%s975 + $0x8] sm:$0xff]
        %s1113 = sld [smem:[#allocation13 + $0x3]]
        %v1114 = vstv %s1113
        %v1115 = vmul.f32 %v1111, %v1114
        %v1116 = vmul.f32 %v1112, %v1114
        %v1117 = vld [vmem:[%s1012] sm:$0xff]
        %v1118 = vld [vmem:[%s1012 + $0x8] sm:$0xff]
        %s1119 = sld [smem:[#allocation13 + $0x4]]
        %v1120 = vstv %s1119
        %v1121 = vmul.f32 %v1117, %v1120
        %v1122 = vmul.f32 %v1118, %v1120
        %v1123 = vadd.f32 %v1097, %v1121
        %v1124 = vadd.f32 %v1098, %v1122
        %v1125 = vld [vmem:[%s1049] sm:$0xff]
        %v1126 = vld [vmem:[%s1049 + $0x8] sm:$0xff]
        %s1127 = sld [smem:[#allocation13 + $0x5]]
        %v1128 = vstv %s1127
        %v1129 = vmul.f32 %v1125, %v1128
        %v1130 = vmul.f32 %v1126, %v1128
        %v1131 = vadd.f32 %v1103, %v1129
        %v1132 = vadd.f32 %v1104, %v1130
        %v1133 = vld [vmem:[%s1086] sm:$0xff]
        %v1134 = vld [vmem:[%s1086 + $0x8] sm:$0xff]
        %s1135 = sld [smem:[#allocation13 + $0x6]]
        %v1136 = vstv %s1135
        %v1137 = vmul.f32 %v1133, %v1136
        %v1138 = vmul.f32 %v1134, %v1136
        %v1139 = vadd.f32 %v1109, %v1137
        %v1140 = vadd.f32 %v1110, %v1138
        %v1141 = vld [vmem:[#allocation5 + $0x3] sm:$0xff]
        %v1142 = vld [vmem:[#allocation5 + $0xb] sm:$0xff]
        %s1143 = sld [smem:[#allocation13 + $0x7]]
        %v1144 = vstv %s1143
        %v1145 = vmul.f32 %v1141, %v1144
        %v1146 = vmul.f32 %v1142, %v1144
        %v1147 = vadd.f32 %v1115, %v1145
        %v1148 = vadd.f32 %v1116, %v1146
        %v1149 = vld [vmem:[%s894 + $0x3] sm:$0xff]
        %v1150 = vld [vmem:[%s894 + $0xb] sm:$0xff]
        %s1151 = sld [smem:[#allocation13 + $0x8]]
        %v1152 = vstv %s1151
        %v1153 = vmul.f32 %v1149, %v1152
        %v1154 = vmul.f32 %v1150, %v1152
        %v1155 = vadd.f32 %v1123, %v1153
        %v1156 = vadd.f32 %v1124, %v1154
        %v1157 = vld [vmem:[%s962 + $0x3] sm:$0xff]
        %v1158 = vld [vmem:[%s962 + $0xb] sm:$0xff]
        %s1159 = sld [smem:[#allocation13 + $0x9]]
        %v1160 = vstv %s1159
        %v1161 = vmul.f32 %v1157, %v1160
        %v1162 = vmul.f32 %v1158, %v1160
        %v1163 = vadd.f32 %v1131, %v1161
        %v1164 = vadd.f32 %v1132, %v1162
        %v1165 = vld [vmem:[%s975 + $0x3] sm:$0xff]
        %v1166 = vld [vmem:[%s975 + $0xb] sm:$0xff]
        %s1167 = sld [smem:[#allocation13 + $0xa]]
        %v1168 = vstv %s1167
        %v1169 = vmul.f32 %v1165, %v1168
        %v1170 = vmul.f32 %v1166, %v1168
        %v1171 = vadd.f32 %v1139, %v1169
        %v1172 = vadd.f32 %v1140, %v1170
        %v1173 = vld [vmem:[%s1012 + $0x3] sm:$0xff]
        %v1174 = vld [vmem:[%s1012 + $0xb] sm:$0xff]
        %s1175 = sld [smem:[#allocation13 + $0xb]]
        %v1176 = vstv %s1175
        %v1177 = vmul.f32 %v1173, %v1176
        %v1178 = vmul.f32 %v1174, %v1176
        %v1179 = vadd.f32 %v1147, %v1177
        %v1180 = vadd.f32 %v1148, %v1178
        %v1181 = vld [vmem:[%s1049 + $0x3] sm:$0xff]
        %v1182 = vld [vmem:[%s1049 + $0xb] sm:$0xff]
        %s1183 = sld [smem:[#allocation13 + $0xc]]
        %v1184 = vstv %s1183
        %v1185 = vmul.f32 %v1181, %v1184
        %v1186 = vmul.f32 %v1182, %v1184
        %v1187 = vadd.f32 %v1155, %v1185
        %v1188 = vadd.f32 %v1156, %v1186
        %v1189 = vld [vmem:[%s1086 + $0x3] sm:$0xff]
        %v1190 = vld [vmem:[%s1086 + $0xb] sm:$0xff]
        %s1191 = sld [smem:[#allocation13 + $0xd]]
        %v1192 = vstv %s1191
        %v1193 = vmul.f32 %v1189, %v1192
        %v1194 = vmul.f32 %v1190, %v1192
        %v1195 = vadd.f32 %v1163, %v1193
        %v1196 = vadd.f32 %v1164, %v1194
        %v1197 = vld [vmem:[#allocation5 + $0x6] sm:$0xff]
        %v1198 = vld [vmem:[#allocation5 + $0xe] sm:$0xff]
        %s1199 = sld [smem:[#allocation13 + $0xe]]
        %v1200 = vstv %s1199
        %v1201 = vmul.f32 %v1197, %v1200
        %v1202 = vmul.f32 %v1198, %v1200
        %v1203 = vadd.f32 %v1171, %v1201
        %v1204 = vadd.f32 %v1172, %v1202
        %v1205 = vld [vmem:[%s894 + $0x6] sm:$0xff]
        %v1206 = vld [vmem:[%s894 + $0xe] sm:$0xff]
        %s1207 = sld [smem:[#allocation13 + $0xf]]
        %v1208 = vstv %s1207
        %v1209 = vmul.f32 %v1205, %v1208
        %v1210 = vmul.f32 %v1206, %v1208
        %v1211 = vadd.f32 %v1179, %v1209
        %v1212 = vadd.f32 %v1180, %v1210
        %v1213 = vld [vmem:[%s962 + $0x6] sm:$0xff]
        %v1214 = vld [vmem:[%s962 + $0xe] sm:$0xff]
        %s1215 = sld [smem:[#allocation13 + $0x10]]
        %v1216 = vstv %s1215
        %v1217 = vmul.f32 %v1213, %v1216
        %v1218 = vmul.f32 %v1214, %v1216
        %v1219 = vadd.f32 %v1187, %v1217
        %v1220 = vadd.f32 %v1188, %v1218
        %v1221 = vld [vmem:[%s975 + $0x6] sm:$0xff]
        %v1222 = vld [vmem:[%s975 + $0xe] sm:$0xff]
        %s1223 = sld [smem:[#allocation13 + $0x11]]
        %v1224 = vstv %s1223
        %v1225 = vmul.f32 %v1221, %v1224
        %v1226 = vmul.f32 %v1222, %v1224
        %v1227 = vadd.f32 %v1195, %v1225
        %v1228 = vadd.f32 %v1196, %v1226
        %v1229 = vld [vmem:[%s1012 + $0x6] sm:$0xff]
        %v1230 = vld [vmem:[%s1012 + $0xe] sm:$0xff]
        %s1231 = sld [smem:[#allocation13 + $0x12]]
        %v1232 = vstv %s1231
        %v1233 = vmul.f32 %v1229, %v1232
        %v1234 = vmul.f32 %v1230, %v1232
        %v1235 = vadd.f32 %v1203, %v1233
        %v1236 = vadd.f32 %v1204, %v1234
        %v1237 = vld [vmem:[%s1049 + $0x6] sm:$0xff]
        %v1238 = vld [vmem:[%s1049 + $0xe] sm:$0xff]
        %s1239 = sld [smem:[#allocation13 + $0x13]]
        %v1240 = vstv %s1239
        %v1241 = vmul.f32 %v1237, %v1240
        %v1242 = vmul.f32 %v1238, %v1240
        %v1243 = vadd.f32 %v1211, %v1241
        %v1244 = vadd.f32 %v1212, %v1242
        %v1245 = vld [vmem:[%s1086 + $0x6] sm:$0xff]
        %v1246 = vld [vmem:[%s1086 + $0xe] sm:$0xff]
        %s1247 = sld [smem:[#allocation13 + $0x14]]
        %v1248 = vstv %s1247
        %v1249 = vmul.f32 %v1245, %v1248
        %v1250 = vmul.f32 %v1246, %v1248
        %v1251 = vadd.f32 %v1219, %v1249
        %v1252 = vadd.f32 %v1220, %v1250
        %v1253 = vld [vmem:[#allocation5 + $0x9] sm:$0xff]
        %v1254 = vld [vmem:[#allocation5 + $0x11] sm:$0xff]
        %s1255 = sld [smem:[#allocation13 + $0x15]]
        %v1256 = vstv %s1255
        %v1257 = vmul.f32 %v1253, %v1256
        %v1258 = vmul.f32 %v1254, %v1256
        %v1259 = vadd.f32 %v1227, %v1257
        %v1260 = vadd.f32 %v1228, %v1258
        %v1261 = vld [vmem:[%s894 + $0x9] sm:$0xff]
        %v1262 = vld [vmem:[%s894 + $0x11] sm:$0xff]
        %s1263 = sld [smem:[#allocation13 + $0x16]]
        %v1264 = vstv %s1263
        %v1265 = vmul.f32 %v1261, %v1264
        %v1266 = vmul.f32 %v1262, %v1264
        %v1267 = vadd.f32 %v1235, %v1265
        %v1268 = vadd.f32 %v1236, %v1266
        %v1269 = vld [vmem:[%s962 + $0x9] sm:$0xff]
        %v1270 = vld [vmem:[%s962 + $0x11] sm:$0xff]
        %s1271 = sld [smem:[#allocation13 + $0x17]]
        %v1272 = vstv %s1271
        %v1273 = vmul.f32 %v1269, %v1272
        %v1274 = vmul.f32 %v1270, %v1272
        %v1275 = vadd.f32 %v1243, %v1273
        %v1276 = vadd.f32 %v1244, %v1274
        %v1277 = vld [vmem:[%s975 + $0x9] sm:$0xff]
        %v1278 = vld [vmem:[%s975 + $0x11] sm:$0xff]
        %s1279 = sld [smem:[#allocation13 + $0x18]]
        %v1280 = vstv %s1279
        %v1281 = vmul.f32 %v1277, %v1280
        %v1282 = vmul.f32 %v1278, %v1280
        %v1283 = vadd.f32 %v1251, %v1281
        %v1284 = vadd.f32 %v1252, %v1282
        %v1285 = vld [vmem:[%s1012 + $0x9] sm:$0xff]
        %v1286 = vld [vmem:[%s1012 + $0x11] sm:$0xff]
        %s1287 = sld [smem:[#allocation13 + $0x19]]
        %v1288 = vstv %s1287
        %v1289 = vmul.f32 %v1285, %v1288
        %v1290 = vmul.f32 %v1286, %v1288
        %v1291 = vadd.f32 %v1259, %v1289
        %v1292 = vadd.f32 %v1260, %v1290
        %v1293 = vld [vmem:[%s1049 + $0x9] sm:$0xff]
        %v1294 = vld [vmem:[%s1049 + $0x11] sm:$0xff]
        %s1295 = sld [smem:[#allocation13 + $0x1a]]
        %v1296 = vstv %s1295
        %v1297 = vmul.f32 %v1293, %v1296
        %v1298 = vmul.f32 %v1294, %v1296
        %v1299 = vadd.f32 %v1267, %v1297
        %v1300 = vadd.f32 %v1268, %v1298
        %v1301 = vld [vmem:[%s1086 + $0x9] sm:$0xff]
        %v1302 = vld [vmem:[%s1086 + $0x11] sm:$0xff]
        %s1303 = sld [smem:[#allocation13 + $0x1b]]
        %v1304 = vstv %s1303
        %v1305 = vmul.f32 %v1301, %v1304
        %v1306 = vmul.f32 %v1302, %v1304
        %v1307 = vadd.f32 %v1275, %v1305
        %v1308 = vadd.f32 %v1276, %v1306
        %v1309 = vld [vmem:[#allocation5 + $0xc] sm:$0xff]
        %v1310 = vld [vmem:[#allocation5 + $0x14] sm:$0xff]
        %s1311 = sld [smem:[#allocation13 + $0x1c]]
        %v1312 = vstv %s1311
        %v1313 = vmul.f32 %v1309, %v1312
        %v1314 = vmul.f32 %v1310, %v1312
        %v1315 = vadd.f32 %v1283, %v1313
        %v1316 = vadd.f32 %v1284, %v1314
        %v1317 = vld [vmem:[%s894 + $0xc] sm:$0xff]
        %v1318 = vld [vmem:[%s894 + $0x14] sm:$0xff]
        %s1319 = sld [smem:[#allocation13 + $0x1d]]
        %v1320 = vstv %s1319
        %v1321 = vmul.f32 %v1317, %v1320
        %v1322 = vmul.f32 %v1318, %v1320
        %v1323 = vadd.f32 %v1291, %v1321
        %v1324 = vadd.f32 %v1292, %v1322
        %v1325 = vld [vmem:[%s962 + $0xc] sm:$0xff]
        %v1326 = vld [vmem:[%s962 + $0x14] sm:$0xff]
        %s1327 = sld [smem:[#allocation13 + $0x1e]]
        %v1328 = vstv %s1327
        %v1329 = vmul.f32 %v1325, %v1328
        %v1330 = vmul.f32 %v1326, %v1328
        %v1331 = vadd.f32 %v1299, %v1329
        %v1332 = vadd.f32 %v1300, %v1330
        %v1333 = vld [vmem:[%s975 + $0xc] sm:$0xff]
        %v1334 = vld [vmem:[%s975 + $0x14] sm:$0xff]
        %s1335 = sld [smem:[#allocation13 + $0x1f]]
        %v1336 = vstv %s1335
        %v1337 = vmul.f32 %v1333, %v1336
        %v1338 = vmul.f32 %v1334, %v1336
        %v1339 = vadd.f32 %v1307, %v1337
        %v1340 = vadd.f32 %v1308, %v1338
        %v1341 = vld [vmem:[%s1012 + $0xc] sm:$0xff]
        %v1342 = vld [vmem:[%s1012 + $0x14] sm:$0xff]
        %s1343 = sld [smem:[#allocation13 + $0x20]]
        %v1344 = vstv %s1343
        %v1345 = vmul.f32 %v1341, %v1344
        %v1346 = vmul.f32 %v1342, %v1344
        %v1347 = vadd.f32 %v1315, %v1345
        %v1348 = vadd.f32 %v1316, %v1346
        %v1349 = vld [vmem:[%s1049 + $0xc] sm:$0xff]
        %v1350 = vld [vmem:[%s1049 + $0x14] sm:$0xff]
        %s1351 = sld [smem:[#allocation13 + $0x21]]
        %v1352 = vstv %s1351
        %v1353 = vmul.f32 %v1349, %v1352
        %v1354 = vmul.f32 %v1350, %v1352
        %v1355 = vadd.f32 %v1323, %v1353
        %v1356 = vadd.f32 %v1324, %v1354
        %v1357 = vld [vmem:[%s1086 + $0xc] sm:$0xff]
        %v1358 = vld [vmem:[%s1086 + $0x14] sm:$0xff]
        %s1359 = sld [smem:[#allocation13 + $0x22]]
        %v1360 = vstv %s1359
        %v1361 = vmul.f32 %v1357, %v1360
        %v1362 = vmul.f32 %v1358, %v1360
        %v1363 = vadd.f32 %v1331, %v1361
        %v1364 = vadd.f32 %v1332, %v1362
        %v1365 = vld [vmem:[#allocation5 + $0xf] sm:$0xff]
        %v1366 = vld [vmem:[#allocation5 + $0x17] sm:$0xff]
        %s1367 = sld [smem:[#allocation13 + $0x23]]
        %v1368 = vstv %s1367
        %v1369 = vmul.f32 %v1365, %v1368
        %v1370 = vmul.f32 %v1366, %v1368
        %v1371 = vadd.f32 %v1339, %v1369
        %v1372 = vadd.f32 %v1340, %v1370
        %v1373 = vld [vmem:[%s894 + $0xf] sm:$0xff]
        %v1374 = vld [vmem:[%s894 + $0x17] sm:$0xff]
        %s1375 = sld [smem:[#allocation13 + $0x24]]
        %v1376 = vstv %s1375
        %v1377 = vmul.f32 %v1373, %v1376
        %v1378 = vmul.f32 %v1374, %v1376
        %v1379 = vadd.f32 %v1347, %v1377
        %v1380 = vadd.f32 %v1348, %v1378
        %v1381 = vld [vmem:[%s962 + $0xf] sm:$0xff]
        %v1382 = vld [vmem:[%s962 + $0x17] sm:$0xff]
        %s1383 = sld [smem:[#allocation13 + $0x25]]
        %v1384 = vstv %s1383
        %v1385 = vmul.f32 %v1381, %v1384
        %v1386 = vmul.f32 %v1382, %v1384
        %v1387 = vadd.f32 %v1355, %v1385
        %v1388 = vadd.f32 %v1356, %v1386
        %v1389 = vld [vmem:[%s975 + $0xf] sm:$0xff]
        %v1390 = vld [vmem:[%s975 + $0x17] sm:$0xff]
        %s1391 = sld [smem:[#allocation13 + $0x26]]
        %v1392 = vstv %s1391
        %v1393 = vmul.f32 %v1389, %v1392
        %v1394 = vmul.f32 %v1390, %v1392
        %v1395 = vadd.f32 %v1363, %v1393
        %v1396 = vadd.f32 %v1364, %v1394
        %v1397 = vld [vmem:[%s1012 + $0xf] sm:$0xff]
        %v1398 = vld [vmem:[%s1012 + $0x17] sm:$0xff]
        %s1399 = sld [smem:[#allocation13 + $0x27]]
        %v1400 = vstv %s1399
        %v1401 = vmul.f32 %v1397, %v1400
        %v1402 = vmul.f32 %v1398, %v1400
        %v1403 = vadd.f32 %v1371, %v1401
        %v1404 = vadd.f32 %v1372, %v1402
        %v1405 = vld [vmem:[%s1049 + $0xf] sm:$0xff]
        %v1406 = vld [vmem:[%s1049 + $0x17] sm:$0xff]
        %s1407 = sld [smem:[#allocation13 + $0x28]]
        %v1408 = vstv %s1407
        %v1409 = vmul.f32 %v1405, %v1408
        %v1410 = vmul.f32 %v1406, %v1408
        %v1411 = vadd.f32 %v1379, %v1409
        %v1412 = vadd.f32 %v1380, %v1410
        %v1413 = vld [vmem:[%s1086 + $0xf] sm:$0xff]
        %v1414 = vld [vmem:[%s1086 + $0x17] sm:$0xff]
        %s1415 = sld [smem:[#allocation13 + $0x29]]
        %v1416 = vstv %s1415
        %v1417 = vmul.f32 %v1413, %v1416
        %v1418 = vmul.f32 %v1414, %v1416
        %v1419 = vadd.f32 %v1387, %v1417
        %v1420 = vadd.f32 %v1388, %v1418
        %v1421 = vld [vmem:[#allocation5 + $0x12] sm:$0xff]
        %v1422 = vld [vmem:[#allocation5 + $0x1a] sm:$0xff]
        %s1423 = sld [smem:[#allocation13 + $0x2a]]
        %v1424 = vstv %s1423
        %v1425 = vmul.f32 %v1421, %v1424
        %v1426 = vmul.f32 %v1422, %v1424
        %v1427 = vadd.f32 %v1395, %v1425
        %v1428 = vadd.f32 %v1396, %v1426
        %v1429 = vld [vmem:[%s894 + $0x12] sm:$0xff]
        %v1430 = vld [vmem:[%s894 + $0x1a] sm:$0xff]
        %s1431 = sld [smem:[#allocation13 + $0x2b]]
        %v1432 = vstv %s1431
        %v1433 = vmul.f32 %v1429, %v1432
        %v1434 = vmul.f32 %v1430, %v1432
        %v1435 = vadd.f32 %v1403, %v1433
        %v1436 = vadd.f32 %v1404, %v1434
        %v1437 = vld [vmem:[%s962 + $0x12] sm:$0xff]
        %v1438 = vld [vmem:[%s962 + $0x1a] sm:$0xff]
        %s1439 = sld [smem:[#allocation13 + $0x2c]]
        %v1440 = vstv %s1439
        %v1441 = vmul.f32 %v1437, %v1440
        %v1442 = vmul.f32 %v1438, %v1440
        %v1443 = vadd.f32 %v1411, %v1441
        %v1444 = vadd.f32 %v1412, %v1442
        %v1445 = vld [vmem:[%s975 + $0x12] sm:$0xff]
        %v1446 = vld [vmem:[%s975 + $0x1a] sm:$0xff]
        %s1447 = sld [smem:[#allocation13 + $0x2d]]
        %v1448 = vstv %s1447
        %v1449 = vmul.f32 %v1445, %v1448
        %v1450 = vmul.f32 %v1446, %v1448
        %v1451 = vadd.f32 %v1419, %v1449
        %v1452 = vadd.f32 %v1420, %v1450
        %v1453 = vld [vmem:[%s1012 + $0x12] sm:$0xff]
        %v1454 = vld [vmem:[%s1012 + $0x1a] sm:$0xff]
        %s1455 = sld [smem:[#allocation13 + $0x2e]]
        %v1456 = vstv %s1455
        %v1457 = vmul.f32 %v1453, %v1456
        %v1458 = vmul.f32 %v1454, %v1456
        %v1459 = vadd.f32 %v1427, %v1457
        %v1460 = vadd.f32 %v1428, %v1458
        %v1461 = vld [vmem:[%s1049 + $0x12] sm:$0xff]
        %v1462 = vld [vmem:[%s1049 + $0x1a] sm:$0xff]
        %s1463 = sld [smem:[#allocation13 + $0x2f]]
        %v1464 = vstv %s1463
        %v1465 = vmul.f32 %v1461, %v1464
        %v1466 = vmul.f32 %v1462, %v1464
        %v1467 = vadd.f32 %v1435, %v1465
        %v1468 = vadd.f32 %v1436, %v1466
        %v1469 = vld [vmem:[%s1086 + $0x12] sm:$0xff]
        %v1470 = vld [vmem:[%s1086 + $0x1a] sm:$0xff]
        %s1471 = sld [smem:[#allocation13 + $0x30]]
        %v1472 = vstv %s1471
        %v1473 = vmul.f32 %v1469, %v1472
        %v1474 = vmul.f32 %v1470, %v1472
        %v1475 = vadd.f32 %v1443, %v1473
        %v1476 = vadd.f32 %v1444, %v1474
        %v1477 = vadd.f32 %v1475, %v1451
        %v1478 = vadd.f32 %v1476, %v1452
        %v1479 = vadd.f32 %v1477, %v1459
        %v1480 = vadd.f32 %v1478, %v1460
        %v1481 = vadd.f32 %v1479, %v1467
        %v1482 = vadd.f32 %v1480, %v1468
        %s1483 = sld [smem:[#allocation14]]
        %v1484 = vstv %s1483
        %v1485 = vadd.f32 %v1481, %v1484
        %v1486 = vadd.f32 %v1482, %v1484
        %s1487 = sld [smem:[#allocation16]]
        %v1488 = vstv %s1487
        %v1489 = vmul.f32 %v1485, %v1488
        %v1490 = vmul.f32 %v1486, %v1488
        %s1491 = sld [smem:[#allocation17]]
        %v1492 = vstv %s1491
        %v1493 = vadd.f32 %v1489, %v1492
        %v1494 = vadd.f32 %v1490, %v1492
        %1495 = vst.msk [vmem:[%s373] sm:$0xff] %vm405, %v1493
        %1496 = vst.msk [vmem:[%s373 + $0x8] sm:$0xff] %vm405, %v1494
        %s1497 = sld [smem:[#allocation16 + $0x1]]
        %v1498 = vstv %s1497
        %v1499 = vmul.f32 %v1485, %v1498
        %v1500 = vmul.f32 %v1486, %v1498
        %s1501 = sld [smem:[#allocation17 + $0x1]]
        %v1502 = vstv %s1501
        %v1503 = vadd.f32 %v1499, %v1502
        %v1504 = vadd.f32 %v1500, %v1502
        %s1505 = scalar_lea.vmem %s373, 16 [#allocation19]
        %1506 = vst.msk [vmem:[%s1505] sm:$0xff] %vm405, %v1503
        %1507 = vst.msk [vmem:[%s1505 + $0x8] sm:$0xff] %vm405, %v1504
        %s1508 = sld [smem:[#allocation16 + $0x2]]
        %v1509 = vstv %s1508
        %v1510 = vmul.f32 %v1485, %v1509
        %v1511 = vmul.f32 %v1486, %v1509
        %s1512 = sld [smem:[#allocation17 + $0x2]]
        %v1513 = vstv %s1512
        %v1514 = vadd.f32 %v1510, %v1513
        %v1515 = vadd.f32 %v1511, %v1513
        %s1516 = scalar_lea.vmem %s373, 32 [#allocation19]
        %1517 = vst.msk [vmem:[%s1516] sm:$0xff] %vm405, %v1514
        %1518 = vst.msk [vmem:[%s1516 + $0x8] sm:$0xff] %vm405, %v1515
        %s1519 = sld [smem:[#allocation16 + $0x3]]
        %v1520 = vstv %s1519
        %v1521 = vmul.f32 %v1485, %v1520
        %v1522 = vmul.f32 %v1486, %v1520
        %s1523 = sld [smem:[#allocation17 + $0x3]]
        %v1524 = vstv %s1523
        %v1525 = vadd.f32 %v1521, %v1524
        %v1526 = vadd.f32 %v1522, %v1524
        %s1527 = scalar_lea.vmem %s373, 48 [#allocation19]
        %1528 = vst.msk [vmem:[%s1527] sm:$0xff] %vm405, %v1525
        %1529 = vst.msk [vmem:[%s1527 + $0x8] sm:$0xff] %vm405, %v1526
        %s1530 = scalar_lea.vmem %s318, 16 [#allocation6]
        %v1531 = vld [vmem:[%s1530] sm:$0xff]
        %v1532 = vld [vmem:[%s1530 + $0x8] sm:$0xff]
        %1533 = vst.msk [vmem:[#allocation2 + $0x18] sm:$0xff] %vm405, %v1531
        %1534 = vst.msk [vmem:[#allocation2 + $0x28] sm:$0xff] %vm405, %v1532
        %v1535 = vld [vmem:[#allocation2] sm:$0xc0]
        %v1536 = vld [vmem:[#allocation2 + $0x8] sm:$0xc0]
        %v1537 = vld [vmem:[#allocation2 + $0x10] sm:$0xff]
        %v1538 = vld [vmem:[#allocation2 + $0x18] sm:$0xff]
        %v1539 = vld [vmem:[#allocation2 + $0x20] sm:$0xff]
        %v1540 = vld [vmem:[#allocation2 + $0x28] sm:$0xff]
        %v1541 = vld [vmem:[#allocation2 + $0x30] sm:$0x3]
        %v1542 = vld [vmem:[#allocation2 + $0x38] sm:$0x3]
        %1551 = vrot.lane.b32.xlu0 %v1535, 2
        %v1552 = vpop.permute.xlu0 %1551
        %1553 = vrot.lane.b32.xlu0 %v1536, 2
        %v1554 = vpop.permute.xlu0 %1553
        %1555 = vrot.lane.b32.xlu0 %v1537, 2
        %v1556 = vpop.permute.xlu0 %1555
        %1557 = vrot.lane.b32.xlu0 %v1538, 2
        %v1558 = vpop.permute.xlu0 %1557
        %1559 = vrot.lane.b32.xlu0 %v1539, 2
        %v1560 = vpop.permute.xlu0 %1559
        %1561 = vrot.lane.b32.xlu0 %v1540, 2
        %v1562 = vpop.permute.xlu0 %1561
        %1563 = vrot.lane.b32.xlu0 %v1541, 2
        %v1564 = vpop.permute.xlu0 %1563
        %1565 = vrot.lane.b32.xlu0 %v1542, 2
        %v1566 = vpop.permute.xlu0 %1565
        %v1567 = vsel %vm440, %v1552, %v1554
        %v1568 = vsel %vm440, %v1556, %v1558
        %v1569 = vsel %vm440, %v1560, %v1562
        %v1570 = vsel %vm440, %v1564, %v1566
        %1575 = vst.msk [vmem:[#allocation3 - $0x6] sm:$0xc0] %vm449, %v1567
        %1576 = vst.msk [vmem:[#allocation3 + $0x2] sm:$0xff] %vm405, %v1568
        %1577 = vst.msk [vmem:[#allocation3 + $0xa] sm:$0xff] %vm405, %v1569
        %1578 = vst.msk [vmem:[#allocation3 + $0x12] sm:$0x3] %vm453, %v1570
        %v1579 = vld [vmem:[#allocation2] sm:$0xc0]
        %v1580 = vld [vmem:[#allocation2 + $0x8] sm:$0xc0]
        %v1581 = vld [vmem:[#allocation2 + $0x10] sm:$0xff]
        %v1582 = vld [vmem:[#allocation2 + $0x18] sm:$0xff]
        %v1583 = vld [vmem:[#allocation2 + $0x20] sm:$0xff]
        %v1584 = vld [vmem:[#allocation2 + $0x28] sm:$0xff]
        %v1585 = vld [vmem:[#allocation2 + $0x30] sm:$0x3]
        %v1586 = vld [vmem:[#allocation2 + $0x38] sm:$0x3]
        %1595 = vrot.lane.b32.xlu0 %v1579, 1
        %v1596 = vpop.permute.xlu0 %1595
        %1597 = vrot.lane.b32.xlu0 %v1580, 1
        %v1598 = vpop.permute.xlu0 %1597
        %1599 = vrot.lane.b32.xlu0 %v1581, 1
        %v1600 = vpop.permute.xlu0 %1599
        %1601 = vrot.lane.b32.xlu0 %v1582, 1
        %v1602 = vpop.permute.xlu0 %1601
        %1603 = vrot.lane.b32.xlu0 %v1583, 1
        %v1604 = vpop.permute.xlu0 %1603
        %1605 = vrot.lane.b32.xlu0 %v1584, 1
        %v1606 = vpop.permute.xlu0 %1605
        %1607 = vrot.lane.b32.xlu0 %v1585, 1
        %v1608 = vpop.permute.xlu0 %1607
        %1609 = vrot.lane.b32.xlu0 %v1586, 1
        %v1610 = vpop.permute.xlu0 %1609
        %v1611 = vsel %vm487, %v1596, %v1598
        %v1612 = vsel %vm487, %v1600, %v1602
        %v1613 = vsel %vm487, %v1604, %v1606
        %v1614 = vsel %vm487, %v1608, %v1610
        %1619 = vst.msk [vmem:[%s496 - $0x6] sm:$0xc0] %vm449, %v1611
        %1620 = vst.msk [vmem:[%s496 + $0x2] sm:$0xff] %vm405, %v1612
        %1621 = vst.msk [vmem:[%s496 + $0xa] sm:$0xff] %vm405, %v1613
        %1622 = vst.msk [vmem:[%s496 + $0x12] sm:$0x3] %vm453, %v1614
        %v1623 = vld [vmem:[#allocation2 + $0x8] sm:$0xc0]
        %v1624 = vld [vmem:[#allocation2 + $0x18] sm:$0xff]
        %v1625 = vld [vmem:[#allocation2 + $0x28] sm:$0xff]
        %v1626 = vld [vmem:[#allocation2 + $0x38] sm:$0x3]
        %1627 = vst.msk [vmem:[%s505 - $0x6] sm:$0xc0] %vm449, %v1623
        %1628 = vst.msk [vmem:[%s505 + $0x2] sm:$0xff] %vm405, %v1624
        %1629 = vst.msk [vmem:[%s505 + $0xa] sm:$0xff] %vm405, %v1625
        %1630 = vst.msk [vmem:[%s505 + $0x12] sm:$0x3] %vm453, %v1626
        %v1631 = vld [vmem:[#allocation2 + $0x8] sm:$0xc0]
        %v1632 = vld [vmem:[#allocation2 + $0x18] sm:$0xff]
        %v1633 = vld [vmem:[#allocation2 + $0x28] sm:$0xff]
        %v1634 = vld [vmem:[#allocation2 + $0x38] sm:$0x3]
        %1639 = vrot.lane.b32.xlu0 %v1631, 127
        %v1640 = vpop.permute.xlu0 %1639
        %1641 = vrot.lane.b32.xlu0 %v1632, 127
        %v1642 = vpop.permute.xlu0 %1641
        %1643 = vrot.lane.b32.xlu0 %v1633, 127
        %v1644 = vpop.permute.xlu0 %1643
        %1645 = vrot.lane.b32.xlu0 %v1634, 127
        %v1646 = vpop.permute.xlu0 %1645
        %1651 = vst.msk [vmem:[%s530 - $0x6] sm:$0xc0] %vm449, %v1640
        %1652 = vst.msk [vmem:[%s530 + $0x2] sm:$0xff] %vm405, %v1642
        %1653 = vst.msk [vmem:[%s530 + $0xa] sm:$0xff] %vm405, %v1644
        %1654 = vst.msk [vmem:[%s530 + $0x12] sm:$0x3] %vm453, %v1646
        %v1655 = vld [vmem:[#allocation2 + $0x8] sm:$0xc0]
        %v1656 = vld [vmem:[#allocation2 + $0x18] sm:$0xff]
        %v1657 = vld [vmem:[#allocation2 + $0x28] sm:$0xff]
        %v1658 = vld [vmem:[#allocation2 + $0x38] sm:$0x3]
        %1663 = vrot.lane.b32.xlu0 %v1655, 126
        %v1664 = vpop.permute.xlu0 %1663
        %1665 = vrot.lane.b32.xlu0 %v1656, 126
        %v1666 = vpop.permute.xlu0 %1665
        %1667 = vrot.lane.b32.xlu0 %v1657, 126
        %v1668 = vpop.permute.xlu0 %1667
        %1669 = vrot.lane.b32.xlu0 %v1658, 126
        %v1670 = vpop.permute.xlu0 %1669
        %1675 = vst.msk [vmem:[%s555 - $0x6] sm:$0xc0] %vm449, %v1664
        %1676 = vst.msk [vmem:[%s555 + $0x2] sm:$0xff] %vm405, %v1666
        %1677 = vst.msk [vmem:[%s555 + $0xa] sm:$0xff] %vm405, %v1668
        %1678 = vst.msk [vmem:[%s555 + $0x12] sm:$0x3] %vm453, %v1670
        %v1679 = vld [vmem:[#allocation3] sm:$0xff]
        %v1680 = vld [vmem:[#allocation3 + $0x8] sm:$0xff]
        %s1681 = sld [smem:[#allocation10 + $0x19]]
        %v1682 = vstv %s1681
        %v1683 = vmul.f32 %v1679, %v1682
        %v1684 = vmul.f32 %v1680, %v1682
        %v1685 = vld [vmem:[%s496] sm:$0xff]
        %v1686 = vld [vmem:[%s496 + $0x8] sm:$0xff]
        %s1687 = sld [smem:[#allocation10 + $0x1a]]
        %v1688 = vstv %s1687
        %v1689 = vmul.f32 %v1685, %v1688
        %v1690 = vmul.f32 %v1686, %v1688
        %v1691 = vld [vmem:[%s505] sm:$0xff]
        %v1692 = vld [vmem:[%s505 + $0x8] sm:$0xff]
        %s1693 = sld [smem:[#allocation10 + $0x1b]]
        %v1694 = vstv %s1693
        %v1695 = vmul.f32 %v1691, %v1694
        %v1696 = vmul.f32 %v1692, %v1694
        %v1697 = vld [vmem:[%s530] sm:$0xff]
        %v1698 = vld [vmem:[%s530 + $0x8] sm:$0xff]
        %s1699 = sld [smem:[#allocation10 + $0x1c]]
        %v1700 = vstv %s1699
        %v1701 = vmul.f32 %v1697, %v1700
        %v1702 = vmul.f32 %v1698, %v1700
        %v1703 = vld [vmem:[%s555] sm:$0xff]
        %v1704 = vld [vmem:[%s555 + $0x8] sm:$0xff]
        %s1705 = sld [smem:[#allocation10 + $0x1d]]
        %v1706 = vstv %s1705
        %v1707 = vmul.f32 %v1703, %v1706
        %v1708 = vmul.f32 %v1704, %v1706
        %v1709 = vadd.f32 %v1683, %v1707
        %v1710 = vadd.f32 %v1684, %v1708
        %v1711 = vld [vmem:[#allocation3 + $0x1] sm:$0xff]
        %v1712 = vld [vmem:[#allocation3 + $0x9] sm:$0xff]
        %s1713 = sld [smem:[#allocation10 + $0x1e]]
        %v1714 = vstv %s1713
        %v1715 = vmul.f32 %v1711, %v1714
        %v1716 = vmul.f32 %v1712, %v1714
        %v1717 = vadd.f32 %v1689, %v1715
        %v1718 = vadd.f32 %v1690, %v1716
        %v1719 = vld [vmem:[%s496 + $0x1] sm:$0xff]
        %v1720 = vld [vmem:[%s496 + $0x9] sm:$0xff]
        %s1721 = sld [smem:[#allocation10 + $0x1f]]
        %v1722 = vstv %s1721
        %v1723 = vmul.f32 %v1719, %v1722
        %v1724 = vmul.f32 %v1720, %v1722
        %v1725 = vadd.f32 %v1695, %v1723
        %v1726 = vadd.f32 %v1696, %v1724
        %v1727 = vld [vmem:[%s505 + $0x1] sm:$0xff]
        %v1728 = vld [vmem:[%s505 + $0x9] sm:$0xff]
        %s1729 = sld [smem:[#allocation10 + $0x20]]
        %v1730 = vstv %s1729
        %v1731 = vmul.f32 %v1727, %v1730
        %v1732 = vmul.f32 %v1728, %v1730
        %v1733 = vadd.f32 %v1701, %v1731
        %v1734 = vadd.f32 %v1702, %v1732
        %v1735 = vld [vmem:[%s530 + $0x1] sm:$0xff]
        %v1736 = vld [vmem:[%s530 + $0x9] sm:$0xff]
        %s1737 = sld [smem:[#allocation10 + $0x21]]
        %v1738 = vstv %s1737
        %v1739 = vmul.f32 %v1735, %v1738
        %v1740 = vmul.f32 %v1736, %v1738
        %v1741 = vadd.f32 %v1709, %v1739
        %v1742 = vadd.f32 %v1710, %v1740
        %v1743 = vld [vmem:[%s555 + $0x1] sm:$0xff]
        %v1744 = vld [vmem:[%s555 + $0x9] sm:$0xff]
        %s1745 = sld [smem:[#allocation10 + $0x22]]
        %v1746 = vstv %s1745
        %v1747 = vmul.f32 %v1743, %v1746
        %v1748 = vmul.f32 %v1744, %v1746
        %v1749 = vadd.f32 %v1717, %v1747
        %v1750 = vadd.f32 %v1718, %v1748
        %v1751 = vld [vmem:[#allocation3 + $0x2] sm:$0xff]
        %v1752 = vld [vmem:[#allocation3 + $0xa] sm:$0xff]
        %s1753 = sld [smem:[#allocation10 + $0x23]]
        %v1754 = vstv %s1753
        %v1755 = vmul.f32 %v1751, %v1754
        %v1756 = vmul.f32 %v1752, %v1754
        %v1757 = vadd.f32 %v1725, %v1755
        %v1758 = vadd.f32 %v1726, %v1756
        %v1759 = vld [vmem:[%s496 + $0x2] sm:$0xff]
        %v1760 = vld [vmem:[%s496 + $0xa] sm:$0xff]
        %s1761 = sld [smem:[#allocation10 + $0x24]]
        %v1762 = vstv %s1761
        %v1763 = vmul.f32 %v1759, %v1762
        %v1764 = vmul.f32 %v1760, %v1762
        %v1765 = vadd.f32 %v1733, %v1763
        %v1766 = vadd.f32 %v1734, %v1764
        %v1767 = vld [vmem:[%s505 + $0x2] sm:$0xff]
        %v1768 = vld [vmem:[%s505 + $0xa] sm:$0xff]
        %s1769 = sld [smem:[#allocation10 + $0x25]]
        %v1770 = vstv %s1769
        %v1771 = vmul.f32 %v1767, %v1770
        %v1772 = vmul.f32 %v1768, %v1770
        %v1773 = vadd.f32 %v1741, %v1771
        %v1774 = vadd.f32 %v1742, %v1772
        %v1775 = vld [vmem:[%s530 + $0x2] sm:$0xff]
        %v1776 = vld [vmem:[%s530 + $0xa] sm:$0xff]
        %s1777 = sld [smem:[#allocation10 + $0x26]]
        %v1778 = vstv %s1777
        %v1779 = vmul.f32 %v1775, %v1778
        %v1780 = vmul.f32 %v1776, %v1778
        %v1781 = vadd.f32 %v1749, %v1779
        %v1782 = vadd.f32 %v1750, %v1780
        %v1783 = vld [vmem:[%s555 + $0x2] sm:$0xff]
        %v1784 = vld [vmem:[%s555 + $0xa] sm:$0xff]
        %s1785 = sld [smem:[#allocation10 + $0x27]]
        %v1786 = vstv %s1785
        %v1787 = vmul.f32 %v1783, %v1786
        %v1788 = vmul.f32 %v1784, %v1786
        %v1789 = vadd.f32 %v1757, %v1787
        %v1790 = vadd.f32 %v1758, %v1788
        %v1791 = vld [vmem:[#allocation3 + $0x3] sm:$0xff]
        %v1792 = vld [vmem:[#allocation3 + $0xb] sm:$0xff]
        %s1793 = sld [smem:[#allocation10 + $0x28]]
        %v1794 = vstv %s1793
        %v1795 = vmul.f32 %v1791, %v1794
        %v1796 = vmul.f32 %v1792, %v1794
        %v1797 = vadd.f32 %v1765, %v1795
        %v1798 = vadd.f32 %v1766, %v1796
        %v1799 = vld [vmem:[%s496 + $0x3] sm:$0xff]
        %v1800 = vld [vmem:[%s496 + $0xb] sm:$0xff]
        %s1801 = sld [smem:[#allocation10 + $0x29]]
        %v1802 = vstv %s1801
        %v1803 = vmul.f32 %v1799, %v1802
        %v1804 = vmul.f32 %v1800, %v1802
        %v1805 = vadd.f32 %v1773, %v1803
        %v1806 = vadd.f32 %v1774, %v1804
        %v1807 = vld [vmem:[%s505 + $0x3] sm:$0xff]
        %v1808 = vld [vmem:[%s505 + $0xb] sm:$0xff]
        %s1809 = sld [smem:[#allocation10 + $0x2a]]
        %v1810 = vstv %s1809
        %v1811 = vmul.f32 %v1807, %v1810
        %v1812 = vmul.f32 %v1808, %v1810
        %v1813 = vadd.f32 %v1781, %v1811
        %v1814 = vadd.f32 %v1782, %v1812
        %v1815 = vld [vmem:[%s530 + $0x3] sm:$0xff]
        %v1816 = vld [vmem:[%s530 + $0xb] sm:$0xff]
        %s1817 = sld [smem:[#allocation10 + $0x2b]]
        %v1818 = vstv %s1817
        %v1819 = vmul.f32 %v1815, %v1818
        %v1820 = vmul.f32 %v1816, %v1818
        %v1821 = vadd.f32 %v1789, %v1819
        %v1822 = vadd.f32 %v1790, %v1820
        %v1823 = vld [vmem:[%s555 + $0x3] sm:$0xff]
        %v1824 = vld [vmem:[%s555 + $0xb] sm:$0xff]
        %s1825 = sld [smem:[#allocation10 + $0x2c]]
        %v1826 = vstv %s1825
        %v1827 = vmul.f32 %v1823, %v1826
        %v1828 = vmul.f32 %v1824, %v1826
        %v1829 = vadd.f32 %v1797, %v1827
        %v1830 = vadd.f32 %v1798, %v1828
        %v1831 = vld [vmem:[#allocation3 + $0x4] sm:$0xff]
        %v1832 = vld [vmem:[#allocation3 + $0xc] sm:$0xff]
        %s1833 = sld [smem:[#allocation10 + $0x2d]]
        %v1834 = vstv %s1833
        %v1835 = vmul.f32 %v1831, %v1834
        %v1836 = vmul.f32 %v1832, %v1834
        %v1837 = vadd.f32 %v1805, %v1835
        %v1838 = vadd.f32 %v1806, %v1836
        %v1839 = vld [vmem:[%s496 + $0x4] sm:$0xff]
        %v1840 = vld [vmem:[%s496 + $0xc] sm:$0xff]
        %s1841 = sld [smem:[#allocation10 + $0x2e]]
        %v1842 = vstv %s1841
        %v1843 = vmul.f32 %v1839, %v1842
        %v1844 = vmul.f32 %v1840, %v1842
        %v1845 = vadd.f32 %v1813, %v1843
        %v1846 = vadd.f32 %v1814, %v1844
        %v1847 = vld [vmem:[%s505 + $0x4] sm:$0xff]
        %v1848 = vld [vmem:[%s505 + $0xc] sm:$0xff]
        %s1849 = sld [smem:[#allocation10 + $0x2f]]
        %v1850 = vstv %s1849
        %v1851 = vmul.f32 %v1847, %v1850
        %v1852 = vmul.f32 %v1848, %v1850
        %v1853 = vadd.f32 %v1821, %v1851
        %v1854 = vadd.f32 %v1822, %v1852
        %v1855 = vld [vmem:[%s530 + $0x4] sm:$0xff]
        %v1856 = vld [vmem:[%s530 + $0xc] sm:$0xff]
        %s1857 = sld [smem:[#allocation10 + $0x30]]
        %v1858 = vstv %s1857
        %v1859 = vmul.f32 %v1855, %v1858
        %v1860 = vmul.f32 %v1856, %v1858
        %v1861 = vadd.f32 %v1829, %v1859
        %v1862 = vadd.f32 %v1830, %v1860
        %v1863 = vld [vmem:[%s555 + $0x4] sm:$0xff]
        %v1864 = vld [vmem:[%s555 + $0xc] sm:$0xff]
        %s1865 = sld [smem:[#allocation10 + $0x31]]
        %v1866 = vstv %s1865
        %v1867 = vmul.f32 %v1863, %v1866
        %v1868 = vmul.f32 %v1864, %v1866
        %v1869 = vadd.f32 %v1837, %v1867
        %v1870 = vadd.f32 %v1838, %v1868
        %v1871 = vadd.f32 %v1869, %v1845
        %v1872 = vadd.f32 %v1870, %v1846
        %v1873 = vadd.f32 %v1871, %v1853
        %v1874 = vadd.f32 %v1872, %v1854
        %v1875 = vadd.f32 %v1873, %v1861
        %v1876 = vadd.f32 %v1874, %v1862
        %s1877 = sld [smem:[#allocation11 + $0x1]]
        %v1878 = vstv %s1877
        %v1879 = vadd.f32 %v1875, %v1878
        %v1880 = vadd.f32 %v1876, %v1878
        %1881 = vst.msk [vmem:[#allocation4 + $0x28] sm:$0xff] %vm405, %v1879
        %1882 = vst.msk [vmem:[#allocation4 + $0x38] sm:$0xff] %vm405, %v1880
        %v1883 = vld [vmem:[#allocation4] sm:$0x80]
        %v1884 = vld [vmem:[#allocation4 + $0x8] sm:$0x80]
        %v1885 = vld [vmem:[#allocation4 + $0x10] sm:$0xff]
        %v1886 = vld [vmem:[#allocation4 + $0x18] sm:$0xff]
        %v1887 = vld [vmem:[#allocation4 + $0x20] sm:$0xff]
        %v1888 = vld [vmem:[#allocation4 + $0x28] sm:$0xff]
        %v1889 = vld [vmem:[#allocation4 + $0x30] sm:$0xff]
        %v1890 = vld [vmem:[#allocation4 + $0x38] sm:$0xff]
        %v1891 = vld [vmem:[#allocation4 + $0x40] sm:$0xff]
        %v1892 = vld [vmem:[#allocation4 + $0x48] sm:$0xff]
        %v1893 = vld [vmem:[#allocation4 + $0x50] sm:$0x1]
        %v1894 = vld [vmem:[#allocation4 + $0x58] sm:$0x1]
        %1907 = vrot.lane.b32.xlu0 %v1883, 9
        %v1908 = vpop.permute.xlu0 %1907
        %1909 = vrot.lane.b32.xlu0 %v1884, 9
        %v1910 = vpop.permute.xlu0 %1909
        %1911 = vrot.lane.b32.xlu0 %v1885, 9
        %v1912 = vpop.permute.xlu0 %1911
        %1913 = vrot.lane.b32.xlu0 %v1886, 9
        %v1914 = vpop.permute.xlu0 %1913
        %1915 = vrot.lane.b32.xlu0 %v1887, 9
        %v1916 = vpop.permute.xlu0 %1915
        %1917 = vrot.lane.b32.xlu0 %v1888, 9
        %v1918 = vpop.permute.xlu0 %1917
        %1919 = vrot.lane.b32.xlu0 %v1889, 9
        %v1920 = vpop.permute.xlu0 %1919
        %1921 = vrot.lane.b32.xlu0 %v1890, 9
        %v1922 = vpop.permute.xlu0 %1921
        %1923 = vrot.lane.b32.xlu0 %v1891, 9
        %v1924 = vpop.permute.xlu0 %1923
        %1925 = vrot.lane.b32.xlu0 %v1892, 9
        %v1926 = vpop.permute.xlu0 %1925
        %1927 = vrot.lane.b32.xlu0 %v1893, 9
        %v1928 = vpop.permute.xlu0 %1927
        %1929 = vrot.lane.b32.xlu0 %v1894, 9
        %v1930 = vpop.permute.xlu0 %1929
        %v1931 = vsel %vm812, %v1908, %v1910
        %v1932 = vsel %vm812, %v1912, %v1914
        %v1933 = vsel %vm812, %v1916, %v1918
        %v1934 = vsel %vm812, %v1920, %v1922
        %v1935 = vsel %vm812, %v1924, %v1926
        %v1936 = vsel %vm812, %v1928, %v1930
        %1943 = vst.msk [vmem:[#allocation5 - $0x7] sm:$0x80] %vm825, %v1931
        %1944 = vst.msk [vmem:[#allocation5 + $0x1] sm:$0xff] %vm405, %v1932
        %1945 = vst.msk [vmem:[#allocation5 + $0x9] sm:$0xff] %vm405, %v1933
        %1946 = vst.msk [vmem:[#allocation5 + $0x11] sm:$0xff] %vm405, %v1934
        %1947 = vst.msk [vmem:[#allocation5 + $0x19] sm:$0xff] %vm405, %v1935
        %1948 = vst.msk [vmem:[#allocation5 + $0x21] sm:$0x1] %vm831, %v1936
        %v1949 = vld [vmem:[#allocation4] sm:$0x80]
        %v1950 = vld [vmem:[#allocation4 + $0x8] sm:$0x80]
        %v1951 = vld [vmem:[#allocation4 + $0x10] sm:$0xff]
        %v1952 = vld [vmem:[#allocation4 + $0x18] sm:$0xff]
        %v1953 = vld [vmem:[#allocation4 + $0x20] sm:$0xff]
        %v1954 = vld [vmem:[#allocation4 + $0x28] sm:$0xff]
        %v1955 = vld [vmem:[#allocation4 + $0x30] sm:$0xff]
        %v1956 = vld [vmem:[#allocation4 + $0x38] sm:$0xff]
        %v1957 = vld [vmem:[#allocation4 + $0x40] sm:$0xff]
        %v1958 = vld [vmem:[#allocation4 + $0x48] sm:$0xff]
        %v1959 = vld [vmem:[#allocation4 + $0x50] sm:$0x1]
        %v1960 = vld [vmem:[#allocation4 + $0x58] sm:$0x1]
        %1973 = vrot.lane.b32.xlu0 %v1949, 6
        %v1974 = vpop.permute.xlu0 %1973
        %1975 = vrot.lane.b32.xlu0 %v1950, 6
        %v1976 = vpop.permute.xlu0 %1975
        %1977 = vrot.lane.b32.xlu0 %v1951, 6
        %v1978 = vpop.permute.xlu0 %1977
        %1979 = vrot.lane.b32.xlu0 %v1952, 6
        %v1980 = vpop.permute.xlu0 %1979
        %1981 = vrot.lane.b32.xlu0 %v1953, 6
        %v1982 = vpop.permute.xlu0 %1981
        %1983 = vrot.lane.b32.xlu0 %v1954, 6
        %v1984 = vpop.permute.xlu0 %1983
        %1985 = vrot.lane.b32.xlu0 %v1955, 6
        %v1986 = vpop.permute.xlu0 %1985
        %1987 = vrot.lane.b32.xlu0 %v1956, 6
        %v1988 = vpop.permute.xlu0 %1987
        %1989 = vrot.lane.b32.xlu0 %v1957, 6
        %v1990 = vpop.permute.xlu0 %1989
        %1991 = vrot.lane.b32.xlu0 %v1958, 6
        %v1992 = vpop.permute.xlu0 %1991
        %1993 = vrot.lane.b32.xlu0 %v1959, 6
        %v1994 = vpop.permute.xlu0 %1993
        %1995 = vrot.lane.b32.xlu0 %v1960, 6
        %v1996 = vpop.permute.xlu0 %1995
        %v1997 = vsel %vm881, %v1974, %v1976
        %v1998 = vsel %vm881, %v1978, %v1980
        %v1999 = vsel %vm881, %v1982, %v1984
        %v2000 = vsel %vm881, %v1986, %v1988
        %v2001 = vsel %vm881, %v1990, %v1992
        %v2002 = vsel %vm881, %v1994, %v1996
        %2009 = vst.msk [vmem:[%s894 - $0x7] sm:$0x80] %vm825, %v1997
        %2010 = vst.msk [vmem:[%s894 + $0x1] sm:$0xff] %vm405, %v1998
        %2011 = vst.msk [vmem:[%s894 + $0x9] sm:$0xff] %vm405, %v1999
        %2012 = vst.msk [vmem:[%s894 + $0x11] sm:$0xff] %vm405, %v2000
        %2013 = vst.msk [vmem:[%s894 + $0x19] sm:$0xff] %vm405, %v2001
        %2014 = vst.msk [vmem:[%s894 + $0x21] sm:$0x1] %vm831, %v2002
        %v2015 = vld [vmem:[#allocation4] sm:$0x80]
        %v2016 = vld [vmem:[#allocation4 + $0x8] sm:$0x80]
        %v2017 = vld [vmem:[#allocation4 + $0x10] sm:$0xff]
        %v2018 = vld [vmem:[#allocation4 + $0x18] sm:$0xff]
        %v2019 = vld [vmem:[#allocation4 + $0x20] sm:$0xff]
        %v2020 = vld [vmem:[#allocation4 + $0x28] sm:$0xff]
        %v2021 = vld [vmem:[#allocation4 + $0x30] sm:$0xff]
        %v2022 = vld [vmem:[#allocation4 + $0x38] sm:$0xff]
        %v2023 = vld [vmem:[#allocation4 + $0x40] sm:$0xff]
        %v2024 = vld [vmem:[#allocation4 + $0x48] sm:$0xff]
        %v2025 = vld [vmem:[#allocation4 + $0x50] sm:$0x1]
        %v2026 = vld [vmem:[#allocation4 + $0x58] sm:$0x1]
        %2039 = vrot.lane.b32.xlu0 %v2015, 3
        %v2040 = vpop.permute.xlu0 %2039
        %2041 = vrot.lane.b32.xlu0 %v2016, 3
        %v2042 = vpop.permute.xlu0 %2041
        %2043 = vrot.lane.b32.xlu0 %v2017, 3
        %v2044 = vpop.permute.xlu0 %2043
        %2045 = vrot.lane.b32.xlu0 %v2018, 3
        %v2046 = vpop.permute.xlu0 %2045
        %2047 = vrot.lane.b32.xlu0 %v2019, 3
        %v2048 = vpop.permute.xlu0 %2047
        %2049 = vrot.lane.b32.xlu0 %v2020, 3
        %v2050 = vpop.permute.xlu0 %2049
        %2051 = vrot.lane.b32.xlu0 %v2021, 3
        %v2052 = vpop.permute.xlu0 %2051
        %2053 = vrot.lane.b32.xlu0 %v2022, 3
        %v2054 = vpop.permute.xlu0 %2053
        %2055 = vrot.lane.b32.xlu0 %v2023, 3
        %v2056 = vpop.permute.xlu0 %2055
        %2057 = vrot.lane.b32.xlu0 %v2024, 3
        %v2058 = vpop.permute.xlu0 %2057
        %2059 = vrot.lane.b32.xlu0 %v2025, 3
        %v2060 = vpop.permute.xlu0 %2059
        %2061 = vrot.lane.b32.xlu0 %v2026, 3
        %v2062 = vpop.permute.xlu0 %2061
        %v2063 = vsel %vm949, %v2040, %v2042
        %v2064 = vsel %vm949, %v2044, %v2046
        %v2065 = vsel %vm949, %v2048, %v2050
        %v2066 = vsel %vm949, %v2052, %v2054
        %v2067 = vsel %vm949, %v2056, %v2058
        %v2068 = vsel %vm949, %v2060, %v2062
        %2075 = vst.msk [vmem:[%s962 - $0x7] sm:$0x80] %vm825, %v2063
        %2076 = vst.msk [vmem:[%s962 + $0x1] sm:$0xff] %vm405, %v2064
        %2077 = vst.msk [vmem:[%s962 + $0x9] sm:$0xff] %vm405, %v2065
        %2078 = vst.msk [vmem:[%s962 + $0x11] sm:$0xff] %vm405, %v2066
        %2079 = vst.msk [vmem:[%s962 + $0x19] sm:$0xff] %vm405, %v2067
        %2080 = vst.msk [vmem:[%s962 + $0x21] sm:$0x1] %vm831, %v2068
        %v2081 = vld [vmem:[#allocation4 + $0x8] sm:$0x80]
        %v2082 = vld [vmem:[#allocation4 + $0x18] sm:$0xff]
        %v2083 = vld [vmem:[#allocation4 + $0x28] sm:$0xff]
        %v2084 = vld [vmem:[#allocation4 + $0x38] sm:$0xff]
        %v2085 = vld [vmem:[#allocation4 + $0x48] sm:$0xff]
        %v2086 = vld [vmem:[#allocation4 + $0x58] sm:$0x1]
        %2087 = vst.msk [vmem:[%s975 - $0x7] sm:$0x80] %vm825, %v2081
        %2088 = vst.msk [vmem:[%s975 + $0x1] sm:$0xff] %vm405, %v2082
        %2089 = vst.msk [vmem:[%s975 + $0x9] sm:$0xff] %vm405, %v2083
        %2090 = vst.msk [vmem:[%s975 + $0x11] sm:$0xff] %vm405, %v2084
        %2091 = vst.msk [vmem:[%s975 + $0x19] sm:$0xff] %vm405, %v2085
        %2092 = vst.msk [vmem:[%s975 + $0x21] sm:$0x1] %vm831, %v2086
        %v2093 = vld [vmem:[#allocation4 + $0x8] sm:$0x80]
        %v2094 = vld [vmem:[#allocation4 + $0x18] sm:$0xff]
        %v2095 = vld [vmem:[#allocation4 + $0x28] sm:$0xff]
        %v2096 = vld [vmem:[#allocation4 + $0x38] sm:$0xff]
        %v2097 = vld [vmem:[#allocation4 + $0x48] sm:$0xff]
        %v2098 = vld [vmem:[#allocation4 + $0x58] sm:$0x1]
        %2105 = vrot.lane.b32.xlu0 %v2093, 125
        %v2106 = vpop.permute.xlu0 %2105
        %2107 = vrot.lane.b32.xlu0 %v2094, 125
        %v2108 = vpop.permute.xlu0 %2107
        %2109 = vrot.lane.b32.xlu0 %v2095, 125
        %v2110 = vpop.permute.xlu0 %2109
        %2111 = vrot.lane.b32.xlu0 %v2096, 125
        %v2112 = vpop.permute.xlu0 %2111
        %2113 = vrot.lane.b32.xlu0 %v2097, 125
        %v2114 = vpop.permute.xlu0 %2113
        %2115 = vrot.lane.b32.xlu0 %v2098, 125
        %v2116 = vpop.permute.xlu0 %2115
        %2123 = vst.msk [vmem:[%s1012 - $0x7] sm:$0x80] %vm825, %v2106
        %2124 = vst.msk [vmem:[%s1012 + $0x1] sm:$0xff] %vm405, %v2108
        %2125 = vst.msk [vmem:[%s1012 + $0x9] sm:$0xff] %vm405, %v2110
        %2126 = vst.msk [vmem:[%s1012 + $0x11] sm:$0xff] %vm405, %v2112
        %2127 = vst.msk [vmem:[%s1012 + $0x19] sm:$0xff] %vm405, %v2114
        %2128 = vst.msk [vmem:[%s1012 + $0x21] sm:$0x1] %vm831, %v2116
        %v2129 = vld [vmem:[#allocation4 + $0x8] sm:$0x80]
        %v2130 = vld [vmem:[#allocation4 + $0x18] sm:$0xff]
        %v2131 = vld [vmem:[#allocation4 + $0x28] sm:$0xff]
        %v2132 = vld [vmem:[#allocation4 + $0x38] sm:$0xff]
        %v2133 = vld [vmem:[#allocation4 + $0x48] sm:$0xff]
        %v2134 = vld [vmem:[#allocation4 + $0x58] sm:$0x1]
        %2141 = vrot.lane.b32.xlu0 %v2129, 122
        %v2142 = vpop.permute.xlu0 %2141
        %2143 = vrot.lane.b32.xlu0 %v2130, 122
        %v2144 = vpop.permute.xlu0 %2143
        %2145 = vrot.lane.b32.xlu0 %v2131, 122
        %v2146 = vpop.permute.xlu0 %2145
        %2147 = vrot.lane.b32.xlu0 %v2132, 122
        %v2148 = vpop.permute.xlu0 %2147
        %2149 = vrot.lane.b32.xlu0 %v2133, 122
        %v2150 = vpop.permute.xlu0 %2149
        %2151 = vrot.lane.b32.xlu0 %v2134, 122
        %v2152 = vpop.permute.xlu0 %2151
        %2159 = vst.msk [vmem:[%s1049 - $0x7] sm:$0x80] %vm825, %v2142
        %2160 = vst.msk [vmem:[%s1049 + $0x1] sm:$0xff] %vm405, %v2144
        %2161 = vst.msk [vmem:[%s1049 + $0x9] sm:$0xff] %vm405, %v2146
        %2162 = vst.msk [vmem:[%s1049 + $0x11] sm:$0xff] %vm405, %v2148
        %2163 = vst.msk [vmem:[%s1049 + $0x19] sm:$0xff] %vm405, %v2150
        %2164 = vst.msk [vmem:[%s1049 + $0x21] sm:$0x1] %vm831, %v2152
        %v2165 = vld [vmem:[#allocation4 + $0x8] sm:$0x80]
        %v2166 = vld [vmem:[#allocation4 + $0x18] sm:$0xff]
        %v2167 = vld [vmem:[#allocation4 + $0x28] sm:$0xff]
        %v2168 = vld [vmem:[#allocation4 + $0x38] sm:$0xff]
        %v2169 = vld [vmem:[#allocation4 + $0x48] sm:$0xff]
        %v2170 = vld [vmem:[#allocation4 + $0x58] sm:$0x1]
        %2177 = vrot.lane.b32.xlu0 %v2165, 119
        %v2178 = vpop.permute.xlu0 %2177
        %2179 = vrot.lane.b32.xlu0 %v2166, 119
        %v2180 = vpop.permute.xlu0 %2179
        %2181 = vrot.lane.b32.xlu0 %v2167, 119
        %v2182 = vpop.permute.xlu0 %2181
        %2183 = vrot.lane.b32.xlu0 %v2168, 119
        %v2184 = vpop.permute.xlu0 %2183
        %2185 = vrot.lane.b32.xlu0 %v2169, 119
        %v2186 = vpop.permute.xlu0 %2185
        %2187 = vrot.lane.b32.xlu0 %v2170, 119
        %v2188 = vpop.permute.xlu0 %2187
        %2195 = vst.msk [vmem:[%s1086 - $0x7] sm:$0x80] %vm825, %v2178
        %2196 = vst.msk [vmem:[%s1086 + $0x1] sm:$0xff] %vm405, %v2180
        %2197 = vst.msk [vmem:[%s1086 + $0x9] sm:$0xff] %vm405, %v2182
        %2198 = vst.msk [vmem:[%s1086 + $0x11] sm:$0xff] %vm405, %v2184
        %2199 = vst.msk [vmem:[%s1086 + $0x19] sm:$0xff] %vm405, %v2186
        %2200 = vst.msk [vmem:[%s1086 + $0x21] sm:$0x1] %vm831, %v2188
        %v2201 = vld [vmem:[#allocation5] sm:$0xff]
        %v2202 = vld [vmem:[#allocation5 + $0x8] sm:$0xff]
        %s2203 = sld [smem:[#allocation13 + $0x31]]
        %v2204 = vstv %s2203
        %v2205 = vmul.f32 %v2201, %v2204
        %v2206 = vmul.f32 %v2202, %v2204
        %v2207 = vld [vmem:[%s894] sm:$0xff]
        %v2208 = vld [vmem:[%s894 + $0x8] sm:$0xff]
        %s2209 = sld [smem:[#allocation13 + $0x32]]
        %v2210 = vstv %s2209
        %v2211 = vmul.f32 %v2207, %v2210
        %v2212 = vmul.f32 %v2208, %v2210
        %v2213 = vld [vmem:[%s962] sm:$0xff]
        %v2214 = vld [vmem:[%s962 + $0x8] sm:$0xff]
        %s2215 = sld [smem:[#allocation13 + $0x33]]
        %v2216 = vstv %s2215
        %v2217 = vmul.f32 %v2213, %v2216
        %v2218 = vmul.f32 %v2214, %v2216
        %v2219 = vld [vmem:[%s975] sm:$0xff]
        %v2220 = vld [vmem:[%s975 + $0x8] sm:$0xff]
        %s2221 = sld [smem:[#allocation13 + $0x34]]
        %v2222 = vstv %s2221
        %v2223 = vmul.f32 %v2219, %v2222
        %v2224 = vmul.f32 %v2220, %v2222
        %v2225 = vld [vmem:[%s1012] sm:$0xff]
        %v2226 = vld [vmem:[%s1012 + $0x8] sm:$0xff]
        %s2227 = sld [smem:[#allocation13 + $0x35]]
        %v2228 = vstv %s2227
        %v2229 = vmul.f32 %v2225, %v2228
        %v2230 = vmul.f32 %v2226, %v2228
        %v2231 = vadd.f32 %v2205, %v2229
        %v2232 = vadd.f32 %v2206, %v2230
        %v2233 = vld [vmem:[%s1049] sm:$0xff]
        %v2234 = vld [vmem:[%s1049 + $0x8] sm:$0xff]
        %s2235 = sld [smem:[#allocation13 + $0x36]]
        %v2236 = vstv %s2235
        %v2237 = vmul.f32 %v2233, %v2236
        %v2238 = vmul.f32 %v2234, %v2236
        %v2239 = vadd.f32 %v2211, %v2237
        %v2240 = vadd.f32 %v2212, %v2238
        %v2241 = vld [vmem:[%s1086] sm:$0xff]
        %v2242 = vld [vmem:[%s1086 + $0x8] sm:$0xff]
        %s2243 = sld [smem:[#allocation13 + $0x37]]
        %v2244 = vstv %s2243
        %v2245 = vmul.f32 %v2241, %v2244
        %v2246 = vmul.f32 %v2242, %v2244
        %v2247 = vadd.f32 %v2217, %v2245
        %v2248 = vadd.f32 %v2218, %v2246
        %v2249 = vld [vmem:[#allocation5 + $0x3] sm:$0xff]
        %v2250 = vld [vmem:[#allocation5 + $0xb] sm:$0xff]
        %s2251 = sld [smem:[#allocation13 + $0x38]]
        %v2252 = vstv %s2251
        %v2253 = vmul.f32 %v2249, %v2252
        %v2254 = vmul.f32 %v2250, %v2252
        %v2255 = vadd.f32 %v2223, %v2253
        %v2256 = vadd.f32 %v2224, %v2254
        %v2257 = vld [vmem:[%s894 + $0x3] sm:$0xff]
        %v2258 = vld [vmem:[%s894 + $0xb] sm:$0xff]
        %s2259 = sld [smem:[#allocation13 + $0x39]]
        %v2260 = vstv %s2259
        %v2261 = vmul.f32 %v2257, %v2260
        %v2262 = vmul.f32 %v2258, %v2260
        %v2263 = vadd.f32 %v2231, %v2261
        %v2264 = vadd.f32 %v2232, %v2262
        %v2265 = vld [vmem:[%s962 + $0x3] sm:$0xff]
        %v2266 = vld [vmem:[%s962 + $0xb] sm:$0xff]
        %s2267 = sld [smem:[#allocation13 + $0x3a]]
        %v2268 = vstv %s2267
        %v2269 = vmul.f32 %v2265, %v2268
        %v2270 = vmul.f32 %v2266, %v2268
        %v2271 = vadd.f32 %v2239, %v2269
        %v2272 = vadd.f32 %v2240, %v2270
        %v2273 = vld [vmem:[%s975 + $0x3] sm:$0xff]
        %v2274 = vld [vmem:[%s975 + $0xb] sm:$0xff]
        %s2275 = sld [smem:[#allocation13 + $0x3b]]
        %v2276 = vstv %s2275
        %v2277 = vmul.f32 %v2273, %v2276
        %v2278 = vmul.f32 %v2274, %v2276
        %v2279 = vadd.f32 %v2247, %v2277
        %v2280 = vadd.f32 %v2248, %v2278
        %v2281 = vld [vmem:[%s1012 + $0x3] sm:$0xff]
        %v2282 = vld [vmem:[%s1012 + $0xb] sm:$0xff]
        %s2283 = sld [smem:[#allocation13 + $0x3c]]
        %v2284 = vstv %s2283
        %v2285 = vmul.f32 %v2281, %v2284
        %v2286 = vmul.f32 %v2282, %v2284
        %v2287 = vadd.f32 %v2255, %v2285
        %v2288 = vadd.f32 %v2256, %v2286
        %v2289 = vld [vmem:[%s1049 + $0x3] sm:$0xff]
        %v2290 = vld [vmem:[%s1049 + $0xb] sm:$0xff]
        %s2291 = sld [smem:[#allocation13 + $0x3d]]
        %v2292 = vstv %s2291
        %v2293 = vmul.f32 %v2289, %v2292
        %v2294 = vmul.f32 %v2290, %v2292
        %v2295 = vadd.f32 %v2263, %v2293
        %v2296 = vadd.f32 %v2264, %v2294
        %v2297 = vld [vmem:[%s1086 + $0x3] sm:$0xff]
        %v2298 = vld [vmem:[%s1086 + $0xb] sm:$0xff]
        %s2299 = sld [smem:[#allocation13 + $0x3e]]
        %v2300 = vstv %s2299
        %v2301 = vmul.f32 %v2297, %v2300
        %v2302 = vmul.f32 %v2298, %v2300
        %v2303 = vadd.f32 %v2271, %v2301
        %v2304 = vadd.f32 %v2272, %v2302
        %v2305 = vld [vmem:[#allocation5 + $0x6] sm:$0xff]
        %v2306 = vld [vmem:[#allocation5 + $0xe] sm:$0xff]
        %s2307 = sld [smem:[#allocation13 + $0x3f]]
        %v2308 = vstv %s2307
        %v2309 = vmul.f32 %v2305, %v2308
        %v2310 = vmul.f32 %v2306, %v2308
        %v2311 = vadd.f32 %v2279, %v2309
        %v2312 = vadd.f32 %v2280, %v2310
        %v2313 = vld [vmem:[%s894 + $0x6] sm:$0xff]
        %v2314 = vld [vmem:[%s894 + $0xe] sm:$0xff]
        %s2315 = sld [smem:[#allocation13 + $0x40]]
        %v2316 = vstv %s2315
        %v2317 = vmul.f32 %v2313, %v2316
        %v2318 = vmul.f32 %v2314, %v2316
        %v2319 = vadd.f32 %v2287, %v2317
        %v2320 = vadd.f32 %v2288, %v2318
        %v2321 = vld [vmem:[%s962 + $0x6] sm:$0xff]
        %v2322 = vld [vmem:[%s962 + $0xe] sm:$0xff]
        %s2323 = sld [smem:[#allocation13 + $0x41]]
        %v2324 = vstv %s2323
        %v2325 = vmul.f32 %v2321, %v2324
        %v2326 = vmul.f32 %v2322, %v2324
        %v2327 = vadd.f32 %v2295, %v2325
        %v2328 = vadd.f32 %v2296, %v2326
        %v2329 = vld [vmem:[%s975 + $0x6] sm:$0xff]
        %v2330 = vld [vmem:[%s975 + $0xe] sm:$0xff]
        %s2331 = sld [smem:[#allocation13 + $0x42]]
        %v2332 = vstv %s2331
        %v2333 = vmul.f32 %v2329, %v2332
        %v2334 = vmul.f32 %v2330, %v2332
        %v2335 = vadd.f32 %v2303, %v2333
        %v2336 = vadd.f32 %v2304, %v2334
        %v2337 = vld [vmem:[%s1012 + $0x6] sm:$0xff]
        %v2338 = vld [vmem:[%s1012 + $0xe] sm:$0xff]
        %s2339 = sld [smem:[#allocation13 + $0x43]]
        %v2340 = vstv %s2339
        %v2341 = vmul.f32 %v2337, %v2340
        %v2342 = vmul.f32 %v2338, %v2340
        %v2343 = vadd.f32 %v2311, %v2341
        %v2344 = vadd.f32 %v2312, %v2342
        %v2345 = vld [vmem:[%s1049 + $0x6] sm:$0xff]
        %v2346 = vld [vmem:[%s1049 + $0xe] sm:$0xff]
        %s2347 = sld [smem:[#allocation13 + $0x44]]
        %v2348 = vstv %s2347
        %v2349 = vmul.f32 %v2345, %v2348
        %v2350 = vmul.f32 %v2346, %v2348
        %v2351 = vadd.f32 %v2319, %v2349
        %v2352 = vadd.f32 %v2320, %v2350
        %v2353 = vld [vmem:[%s1086 + $0x6] sm:$0xff]
        %v2354 = vld [vmem:[%s1086 + $0xe] sm:$0xff]
        %s2355 = sld [smem:[#allocation13 + $0x45]]
        %v2356 = vstv %s2355
        %v2357 = vmul.f32 %v2353, %v2356
        %v2358 = vmul.f32 %v2354, %v2356
        %v2359 = vadd.f32 %v2327, %v2357
        %v2360 = vadd.f32 %v2328, %v2358
        %v2361 = vld [vmem:[#allocation5 + $0x9] sm:$0xff]
        %v2362 = vld [vmem:[#allocation5 + $0x11] sm:$0xff]
        %s2363 = sld [smem:[#allocation13 + $0x46]]
        %v2364 = vstv %s2363
        %v2365 = vmul.f32 %v2361, %v2364
        %v2366 = vmul.f32 %v2362, %v2364
        %v2367 = vadd.f32 %v2335, %v2365
        %v2368 = vadd.f32 %v2336, %v2366
        %v2369 = vld [vmem:[%s894 + $0x9] sm:$0xff]
        %v2370 = vld [vmem:[%s894 + $0x11] sm:$0xff]
        %s2371 = sld [smem:[#allocation13 + $0x47]]
        %v2372 = vstv %s2371
        %v2373 = vmul.f32 %v2369, %v2372
        %v2374 = vmul.f32 %v2370, %v2372
        %v2375 = vadd.f32 %v2343, %v2373
        %v2376 = vadd.f32 %v2344, %v2374
        %v2377 = vld [vmem:[%s962 + $0x9] sm:$0xff]
        %v2378 = vld [vmem:[%s962 + $0x11] sm:$0xff]
        %s2379 = sld [smem:[#allocation13 + $0x48]]
        %v2380 = vstv %s2379
        %v2381 = vmul.f32 %v2377, %v2380
        %v2382 = vmul.f32 %v2378, %v2380
        %v2383 = vadd.f32 %v2351, %v2381
        %v2384 = vadd.f32 %v2352, %v2382
        %v2385 = vld [vmem:[%s975 + $0x9] sm:$0xff]
        %v2386 = vld [vmem:[%s975 + $0x11] sm:$0xff]
        %s2387 = sld [smem:[#allocation13 + $0x49]]
        %v2388 = vstv %s2387
        %v2389 = vmul.f32 %v2385, %v2388
        %v2390 = vmul.f32 %v2386, %v2388
        %v2391 = vadd.f32 %v2359, %v2389
        %v2392 = vadd.f32 %v2360, %v2390
        %v2393 = vld [vmem:[%s1012 + $0x9] sm:$0xff]
        %v2394 = vld [vmem:[%s1012 + $0x11] sm:$0xff]
        %s2395 = sld [smem:[#allocation13 + $0x4a]]
        %v2396 = vstv %s2395
        %v2397 = vmul.f32 %v2393, %v2396
        %v2398 = vmul.f32 %v2394, %v2396
        %v2399 = vadd.f32 %v2367, %v2397
        %v2400 = vadd.f32 %v2368, %v2398
        %v2401 = vld [vmem:[%s1049 + $0x9] sm:$0xff]
        %v2402 = vld [vmem:[%s1049 + $0x11] sm:$0xff]
        %s2403 = sld [smem:[#allocation13 + $0x4b]]
        %v2404 = vstv %s2403
        %v2405 = vmul.f32 %v2401, %v2404
        %v2406 = vmul.f32 %v2402, %v2404
        %v2407 = vadd.f32 %v2375, %v2405
        %v2408 = vadd.f32 %v2376, %v2406
        %v2409 = vld [vmem:[%s1086 + $0x9] sm:$0xff]
        %v2410 = vld [vmem:[%s1086 + $0x11] sm:$0xff]
        %s2411 = sld [smem:[#allocation13 + $0x4c]]
        %v2412 = vstv %s2411
        %v2413 = vmul.f32 %v2409, %v2412
        %v2414 = vmul.f32 %v2410, %v2412
        %v2415 = vadd.f32 %v2383, %v2413
        %v2416 = vadd.f32 %v2384, %v2414
        %v2417 = vld [vmem:[#allocation5 + $0xc] sm:$0xff]
        %v2418 = vld [vmem:[#allocation5 + $0x14] sm:$0xff]
        %s2419 = sld [smem:[#allocation13 + $0x4d]]
        %v2420 = vstv %s2419
        %v2421 = vmul.f32 %v2417, %v2420
        %v2422 = vmul.f32 %v2418, %v2420
        %v2423 = vadd.f32 %v2391, %v2421
        %v2424 = vadd.f32 %v2392, %v2422
        %v2425 = vld [vmem:[%s894 + $0xc] sm:$0xff]
        %v2426 = vld [vmem:[%s894 + $0x14] sm:$0xff]
        %s2427 = sld [smem:[#allocation13 + $0x4e]]
        %v2428 = vstv %s2427
        %v2429 = vmul.f32 %v2425, %v2428
        %v2430 = vmul.f32 %v2426, %v2428
        %v2431 = vadd.f32 %v2399, %v2429
        %v2432 = vadd.f32 %v2400, %v2430
        %v2433 = vld [vmem:[%s962 + $0xc] sm:$0xff]
        %v2434 = vld [vmem:[%s962 + $0x14] sm:$0xff]
        %s2435 = sld [smem:[#allocation13 + $0x4f]]
        %v2436 = vstv %s2435
        %v2437 = vmul.f32 %v2433, %v2436
        %v2438 = vmul.f32 %v2434, %v2436
        %v2439 = vadd.f32 %v2407, %v2437
        %v2440 = vadd.f32 %v2408, %v2438
        %v2441 = vld [vmem:[%s975 + $0xc] sm:$0xff]
        %v2442 = vld [vmem:[%s975 + $0x14] sm:$0xff]
        %s2443 = sld [smem:[#allocation13 + $0x50]]
        %v2444 = vstv %s2443
        %v2445 = vmul.f32 %v2441, %v2444
        %v2446 = vmul.f32 %v2442, %v2444
        %v2447 = vadd.f32 %v2415, %v2445
        %v2448 = vadd.f32 %v2416, %v2446
        %v2449 = vld [vmem:[%s1012 + $0xc] sm:$0xff]
        %v2450 = vld [vmem:[%s1012 + $0x14] sm:$0xff]
        %s2451 = sld [smem:[#allocation13 + $0x51]]
        %v2452 = vstv %s2451
        %v2453 = vmul.f32 %v2449, %v2452
        %v2454 = vmul.f32 %v2450, %v2452
        %v2455 = vadd.f32 %v2423, %v2453
        %v2456 = vadd.f32 %v2424, %v2454
        %v2457 = vld [vmem:[%s1049 + $0xc] sm:$0xff]
        %v2458 = vld [vmem:[%s1049 + $0x14] sm:$0xff]
        %s2459 = sld [smem:[#allocation13 + $0x52]]
        %v2460 = vstv %s2459
        %v2461 = vmul.f32 %v2457, %v2460
        %v2462 = vmul.f32 %v2458, %v2460
        %v2463 = vadd.f32 %v2431, %v2461
        %v2464 = vadd.f32 %v2432, %v2462
        %v2465 = vld [vmem:[%s1086 + $0xc] sm:$0xff]
        %v2466 = vld [vmem:[%s1086 + $0x14] sm:$0xff]
        %s2467 = sld [smem:[#allocation13 + $0x53]]
        %v2468 = vstv %s2467
        %v2469 = vmul.f32 %v2465, %v2468
        %v2470 = vmul.f32 %v2466, %v2468
        %v2471 = vadd.f32 %v2439, %v2469
        %v2472 = vadd.f32 %v2440, %v2470
        %v2473 = vld [vmem:[#allocation5 + $0xf] sm:$0xff]
        %v2474 = vld [vmem:[#allocation5 + $0x17] sm:$0xff]
        %s2475 = sld [smem:[#allocation13 + $0x54]]
        %v2476 = vstv %s2475
        %v2477 = vmul.f32 %v2473, %v2476
        %v2478 = vmul.f32 %v2474, %v2476
        %v2479 = vadd.f32 %v2447, %v2477
        %v2480 = vadd.f32 %v2448, %v2478
        %v2481 = vld [vmem:[%s894 + $0xf] sm:$0xff]
        %v2482 = vld [vmem:[%s894 + $0x17] sm:$0xff]
        %s2483 = sld [smem:[#allocation13 + $0x55]]
        %v2484 = vstv %s2483
        %v2485 = vmul.f32 %v2481, %v2484
        %v2486 = vmul.f32 %v2482, %v2484
        %v2487 = vadd.f32 %v2455, %v2485
        %v2488 = vadd.f32 %v2456, %v2486
        %v2489 = vld [vmem:[%s962 + $0xf] sm:$0xff]
        %v2490 = vld [vmem:[%s962 + $0x17] sm:$0xff]
        %s2491 = sld [smem:[#allocation13 + $0x56]]
        %v2492 = vstv %s2491
        %v2493 = vmul.f32 %v2489, %v2492
        %v2494 = vmul.f32 %v2490, %v2492
        %v2495 = vadd.f32 %v2463, %v2493
        %v2496 = vadd.f32 %v2464, %v2494
        %v2497 = vld [vmem:[%s975 + $0xf] sm:$0xff]
        %v2498 = vld [vmem:[%s975 + $0x17] sm:$0xff]
        %s2499 = sld [smem:[#allocation13 + $0x57]]
        %v2500 = vstv %s2499
        %v2501 = vmul.f32 %v2497, %v2500
        %v2502 = vmul.f32 %v2498, %v2500
        %v2503 = vadd.f32 %v2471, %v2501
        %v2504 = vadd.f32 %v2472, %v2502
        %v2505 = vld [vmem:[%s1012 + $0xf] sm:$0xff]
        %v2506 = vld [vmem:[%s1012 + $0x17] sm:$0xff]
        %s2507 = sld [smem:[#allocation13 + $0x58]]
        %v2508 = vstv %s2507
        %v2509 = vmul.f32 %v2505, %v2508
        %v2510 = vmul.f32 %v2506, %v2508
        %v2511 = vadd.f32 %v2479, %v2509
        %v2512 = vadd.f32 %v2480, %v2510
        %v2513 = vld [vmem:[%s1049 + $0xf] sm:$0xff]
        %v2514 = vld [vmem:[%s1049 + $0x17] sm:$0xff]
        %s2515 = sld [smem:[#allocation13 + $0x59]]
        %v2516 = vstv %s2515
        %v2517 = vmul.f32 %v2513, %v2516
        %v2518 = vmul.f32 %v2514, %v2516
        %v2519 = vadd.f32 %v2487, %v2517
        %v2520 = vadd.f32 %v2488, %v2518
        %v2521 = vld [vmem:[%s1086 + $0xf] sm:$0xff]
        %v2522 = vld [vmem:[%s1086 + $0x17] sm:$0xff]
        %s2523 = sld [smem:[#allocation13 + $0x5a]]
        %v2524 = vstv %s2523
        %v2525 = vmul.f32 %v2521, %v2524
        %v2526 = vmul.f32 %v2522, %v2524
        %v2527 = vadd.f32 %v2495, %v2525
        %v2528 = vadd.f32 %v2496, %v2526
        %v2529 = vld [vmem:[#allocation5 + $0x12] sm:$0xff]
        %v2530 = vld [vmem:[#allocation5 + $0x1a] sm:$0xff]
        %s2531 = sld [smem:[#allocation13 + $0x5b]]
        %v2532 = vstv %s2531
        %v2533 = vmul.f32 %v2529, %v2532
        %v2534 = vmul.f32 %v2530, %v2532
        %v2535 = vadd.f32 %v2503, %v2533
        %v2536 = vadd.f32 %v2504, %v2534
        %v2537 = vld [vmem:[%s894 + $0x12] sm:$0xff]
        %v2538 = vld [vmem:[%s894 + $0x1a] sm:$0xff]
        %s2539 = sld [smem:[#allocation13 + $0x5c]]
        %v2540 = vstv %s2539
        %v2541 = vmul.f32 %v2537, %v2540
        %v2542 = vmul.f32 %v2538, %v2540
        %v2543 = vadd.f32 %v2511, %v2541
        %v2544 = vadd.f32 %v2512, %v2542
        %v2545 = vld [vmem:[%s962 + $0x12] sm:$0xff]
        %v2546 = vld [vmem:[%s962 + $0x1a] sm:$0xff]
        %s2547 = sld [smem:[#allocation13 + $0x5d]]
        %v2548 = vstv %s2547
        %v2549 = vmul.f32 %v2545, %v2548
        %v2550 = vmul.f32 %v2546, %v2548
        %v2551 = vadd.f32 %v2519, %v2549
        %v2552 = vadd.f32 %v2520, %v2550
        %v2553 = vld [vmem:[%s975 + $0x12] sm:$0xff]
        %v2554 = vld [vmem:[%s975 + $0x1a] sm:$0xff]
        %s2555 = sld [smem:[#allocation13 + $0x5e]]
        %v2556 = vstv %s2555
        %v2557 = vmul.f32 %v2553, %v2556
        %v2558 = vmul.f32 %v2554, %v2556
        %v2559 = vadd.f32 %v2527, %v2557
        %v2560 = vadd.f32 %v2528, %v2558
        %v2561 = vld [vmem:[%s1012 + $0x12] sm:$0xff]
        %v2562 = vld [vmem:[%s1012 + $0x1a] sm:$0xff]
        %s2563 = sld [smem:[#allocation13 + $0x5f]]
        %v2564 = vstv %s2563
        %v2565 = vmul.f32 %v2561, %v2564
        %v2566 = vmul.f32 %v2562, %v2564
        %v2567 = vadd.f32 %v2535, %v2565
        %v2568 = vadd.f32 %v2536, %v2566
        %v2569 = vld [vmem:[%s1049 + $0x12] sm:$0xff]
        %v2570 = vld [vmem:[%s1049 + $0x1a] sm:$0xff]
        %s2571 = sld [smem:[#allocation13 + $0x60]]
        %v2572 = vstv %s2571
        %v2573 = vmul.f32 %v2569, %v2572
        %v2574 = vmul.f32 %v2570, %v2572
        %v2575 = vadd.f32 %v2543, %v2573
        %v2576 = vadd.f32 %v2544, %v2574
        %v2577 = vld [vmem:[%s1086 + $0x12] sm:$0xff]
        %v2578 = vld [vmem:[%s1086 + $0x1a] sm:$0xff]
        %s2579 = sld [smem:[#allocation13 + $0x61]]
        %v2580 = vstv %s2579
        %v2581 = vmul.f32 %v2577, %v2580
        %v2582 = vmul.f32 %v2578, %v2580
        %v2583 = vadd.f32 %v2551, %v2581
        %v2584 = vadd.f32 %v2552, %v2582
        %v2585 = vadd.f32 %v2583, %v2559
        %v2586 = vadd.f32 %v2584, %v2560
        %v2587 = vadd.f32 %v2585, %v2567
        %v2588 = vadd.f32 %v2586, %v2568
        %v2589 = vadd.f32 %v2587, %v2575
        %v2590 = vadd.f32 %v2588, %v2576
        %s2591 = sld [smem:[#allocation14 + $0x1]]
        %v2592 = vstv %s2591
        %v2593 = vadd.f32 %v2589, %v2592
        %v2594 = vadd.f32 %v2590, %v2592
        %s2595 = sld [smem:[#allocation16 + $0x4]]
        %v2596 = vstv %s2595
        %v2597 = vmul.f32 %v2593, %v2596
        %v2598 = vmul.f32 %v2594, %v2596
        %v2599 = vld [vmem:[%s373] sm:$0xff]
        %v2600 = vld [vmem:[%s373 + $0x8] sm:$0xff]
        %v2601 = vadd.f32 %v2599, %v2597
        %v2602 = vadd.f32 %v2600, %v2598
        %2603 = vst.msk [vmem:[%s373] sm:$0xff] %vm405, %v2601
        %2604 = vst.msk [vmem:[%s373 + $0x8] sm:$0xff] %vm405, %v2602
        %s2605 = sld [smem:[#allocation16 + $0x5]]
        %v2606 = vstv %s2605
        %v2607 = vmul.f32 %v2593, %v2606
        %v2608 = vmul.f32 %v2594, %v2606
        %v2609 = vld [vmem:[%s1505] sm:$0xff]
        %v2610 = vld [vmem:[%s1505 + $0x8] sm:$0xff]
        %v2611 = vadd.f32 %v2609, %v2607
        %v2612 = vadd.f32 %v2610, %v2608
        %2613 = vst.msk [vmem:[%s1505] sm:$0xff] %vm405, %v2611
        %2614 = vst.msk [vmem:[%s1505 + $0x8] sm:$0xff] %vm405, %v2612
        %s2615 = sld [smem:[#allocation16 + $0x6]]
        %v2616 = vstv %s2615
        %v2617 = vmul.f32 %v2593, %v2616
        %v2618 = vmul.f32 %v2594, %v2616
        %v2619 = vld [vmem:[%s1516] sm:$0xff]
        %v2620 = vld [vmem:[%s1516 + $0x8] sm:$0xff]
        %v2621 = vadd.f32 %v2619, %v2617
        %v2622 = vadd.f32 %v2620, %v2618
        %2623 = vst.msk [vmem:[%s1516] sm:$0xff] %vm405, %v2621
        %2624 = vst.msk [vmem:[%s1516 + $0x8] sm:$0xff] %vm405, %v2622
        %s2625 = sld [smem:[#allocation16 + $0x7]]
        %v2626 = vstv %s2625
        %v2627 = vmul.f32 %v2593, %v2626
        %v2628 = vmul.f32 %v2594, %v2626
        %v2629 = vld [vmem:[%s1527] sm:$0xff]
        %v2630 = vld [vmem:[%s1527 + $0x8] sm:$0xff]
        %v2631 = vadd.f32 %v2629, %v2627
        %v2632 = vadd.f32 %v2630, %v2628
        %2633 = vst.msk [vmem:[%s1527] sm:$0xff] %vm405, %v2631
        %2634 = vst.msk [vmem:[%s1527 + $0x8] sm:$0xff] %vm405, %v2632
        %s2635 = scalar_lea.vmem %s318, 32 [#allocation6]
        %v2636 = vld [vmem:[%s2635] sm:$0xff]
        %v2637 = vld [vmem:[%s2635 + $0x8] sm:$0xff]
        %2638 = vst.msk [vmem:[#allocation2 + $0x18] sm:$0xff] %vm405, %v2636
        %2639 = vst.msk [vmem:[#allocation2 + $0x28] sm:$0xff] %vm405, %v2637
        %v2640 = vld [vmem:[#allocation2] sm:$0xc0]
        %v2641 = vld [vmem:[#allocation2 + $0x8] sm:$0xc0]
        %v2642 = vld [vmem:[#allocation2 + $0x10] sm:$0xff]
        %v2643 = vld [vmem:[#allocation2 + $0x18] sm:$0xff]
        %v2644 = vld [vmem:[#allocation2 + $0x20] sm:$0xff]
        %v2645 = vld [vmem:[#allocation2 + $0x28] sm:$0xff]
        %v2646 = vld [vmem:[#allocation2 + $0x30] sm:$0x3]
        %v2647 = vld [vmem:[#allocation2 + $0x38] sm:$0x3]
        %2656 = vrot.lane.b32.xlu0 %v2640, 2
        %v2657 = vpop.permute.xlu0 %2656
        %2658 = vrot.lane.b32.xlu0 %v2641, 2
        %v2659 = vpop.permute.xlu0 %2658
        %2660 = vrot.lane.b32.xlu0 %v2642, 2
        %v2661 = vpop.permute.xlu0 %2660
        %2662 = vrot.lane.b32.xlu0 %v2643, 2
        %v2663 = vpop.permute.xlu0 %2662
        %2664 = vrot.lane.b32.xlu0 %v2644, 2
        %v2665 = vpop.permute.xlu0 %2664
        %2666 = vrot.lane.b32.xlu0 %v2645, 2
        %v2667 = vpop.permute.xlu0 %2666
        %2668 = vrot.lane.b32.xlu0 %v2646, 2
        %v2669 = vpop.permute.xlu0 %2668
        %2670 = vrot.lane.b32.xlu0 %v2647, 2
        %v2671 = vpop.permute.xlu0 %2670
        %v2672 = vsel %vm440, %v2657, %v2659
        %v2673 = vsel %vm440, %v2661, %v2663
        %v2674 = vsel %vm440, %v2665, %v2667
        %v2675 = vsel %vm440, %v2669, %v2671
        %2680 = vst.msk [vmem:[#allocation3 - $0x6] sm:$0xc0] %vm449, %v2672
        %2681 = vst.msk [vmem:[#allocation3 + $0x2] sm:$0xff] %vm405, %v2673
        %2682 = vst.msk [vmem:[#allocation3 + $0xa] sm:$0xff] %vm405, %v2674
        %2683 = vst.msk [vmem:[#allocation3 + $0x12] sm:$0x3] %vm453, %v2675
        %v2684 = vld [vmem:[#allocation2] sm:$0xc0]
        %v2685 = vld [vmem:[#allocation2 + $0x8] sm:$0xc0]
        %v2686 = vld [vmem:[#allocation2 + $0x10] sm:$0xff]
        %v2687 = vld [vmem:[#allocation2 + $0x18] sm:$0xff]
        %v2688 = vld [vmem:[#allocation2 + $0x20] sm:$0xff]
        %v2689 = vld [vmem:[#allocation2 + $0x28] sm:$0xff]
        %v2690 = vld [vmem:[#allocation2 + $0x30] sm:$0x3]
        %v2691 = vld [vmem:[#allocation2 + $0x38] sm:$0x3]
        %2700 = vrot.lane.b32.xlu0 %v2684, 1
        %v2701 = vpop.permute.xlu0 %2700
        %2702 = vrot.lane.b32.xlu0 %v2685, 1
        %v2703 = vpop.permute.xlu0 %2702
        %2704 = vrot.lane.b32.xlu0 %v2686, 1
        %v2705 = vpop.permute.xlu0 %2704
        %2706 = vrot.lane.b32.xlu0 %v2687, 1
        %v2707 = vpop.permute.xlu0 %2706
        %2708 = vrot.lane.b32.xlu0 %v2688, 1
        %v2709 = vpop.permute.xlu0 %2708
        %2710 = vrot.lane.b32.xlu0 %v2689, 1
        %v2711 = vpop.permute.xlu0 %2710
        %2712 = vrot.lane.b32.xlu0 %v2690, 1
        %v2713 = vpop.permute.xlu0 %2712
        %2714 = vrot.lane.b32.xlu0 %v2691, 1
        %v2715 = vpop.permute.xlu0 %2714
        %v2716 = vsel %vm487, %v2701, %v2703
        %v2717 = vsel %vm487, %v2705, %v2707
        %v2718 = vsel %vm487, %v2709, %v2711
        %v2719 = vsel %vm487, %v2713, %v2715
        %2724 = vst.msk [vmem:[%s496 - $0x6] sm:$0xc0] %vm449, %v2716
        %2725 = vst.msk [vmem:[%s496 + $0x2] sm:$0xff] %vm405, %v2717
        %2726 = vst.msk [vmem:[%s496 + $0xa] sm:$0xff] %vm405, %v2718
        %2727 = vst.msk [vmem:[%s496 + $0x12] sm:$0x3] %vm453, %v2719
        %v2728 = vld [vmem:[#allocation2 + $0x8] sm:$0xc0]
        %v2729 = vld [vmem:[#allocation2 + $0x18] sm:$0xff]
        %v2730 = vld [vmem:[#allocation2 + $0x28] sm:$0xff]
        %v2731 = vld [vmem:[#allocation2 + $0x38] sm:$0x3]
        %2732 = vst.msk [vmem:[%s505 - $0x6] sm:$0xc0] %vm449, %v2728
        %2733 = vst.msk [vmem:[%s505 + $0x2] sm:$0xff] %vm405, %v2729
        %2734 = vst.msk [vmem:[%s505 + $0xa] sm:$0xff] %vm405, %v2730
        %2735 = vst.msk [vmem:[%s505 + $0x12] sm:$0x3] %vm453, %v2731
        %v2736 = vld [vmem:[#allocation2 + $0x8] sm:$0xc0]
        %v2737 = vld [vmem:[#allocation2 + $0x18] sm:$0xff]
        %v2738 = vld [vmem:[#allocation2 + $0x28] sm:$0xff]
        %v2739 = vld [vmem:[#allocation2 + $0x38] sm:$0x3]
        %2744 = vrot.lane.b32.xlu0 %v2736, 127
        %v2745 = vpop.permute.xlu0 %2744
        %2746 = vrot.lane.b32.xlu0 %v2737, 127
        %v2747 = vpop.permute.xlu0 %2746
        %2748 = vrot.lane.b32.xlu0 %v2738, 127
        %v2749 = vpop.permute.xlu0 %2748
        %2750 = vrot.lane.b32.xlu0 %v2739, 127
        %v2751 = vpop.permute.xlu0 %2750
        %2756 = vst.msk [vmem:[%s530 - $0x6] sm:$0xc0] %vm449, %v2745
        %2757 = vst.msk [vmem:[%s530 + $0x2] sm:$0xff] %vm405, %v2747
        %2758 = vst.msk [vmem:[%s530 + $0xa] sm:$0xff] %vm405, %v2749
        %2759 = vst.msk [vmem:[%s530 + $0x12] sm:$0x3] %vm453, %v2751
        %v2760 = vld [vmem:[#allocation2 + $0x8] sm:$0xc0]
        %v2761 = vld [vmem:[#allocation2 + $0x18] sm:$0xff]
        %v2762 = vld [vmem:[#allocation2 + $0x28] sm:$0xff]
        %v2763 = vld [vmem:[#allocation2 + $0x38] sm:$0x3]
        %2768 = vrot.lane.b32.xlu0 %v2760, 126
        %v2769 = vpop.permute.xlu0 %2768
        %2770 = vrot.lane.b32.xlu0 %v2761, 126
        %v2771 = vpop.permute.xlu0 %2770
        %2772 = vrot.lane.b32.xlu0 %v2762, 126
        %v2773 = vpop.permute.xlu0 %2772
        %2774 = vrot.lane.b32.xlu0 %v2763, 126
        %v2775 = vpop.permute.xlu0 %2774
        %2780 = vst.msk [vmem:[%s555 - $0x6] sm:$0xc0] %vm449, %v2769
        %2781 = vst.msk [vmem:[%s555 + $0x2] sm:$0xff] %vm405, %v2771
        %2782 = vst.msk [vmem:[%s555 + $0xa] sm:$0xff] %vm405, %v2773
        %2783 = vst.msk [vmem:[%s555 + $0x12] sm:$0x3] %vm453, %v2775
        %v2784 = vld [vmem:[#allocation3] sm:$0xff]
        %v2785 = vld [vmem:[#allocation3 + $0x8] sm:$0xff]
        %s2786 = sld [smem:[#allocation10 + $0x32]]
        %v2787 = vstv %s2786
        %v2788 = vmul.f32 %v2784, %v2787
        %v2789 = vmul.f32 %v2785, %v2787
        %v2790 = vld [vmem:[%s496] sm:$0xff]
        %v2791 = vld [vmem:[%s496 + $0x8] sm:$0xff]
        %s2792 = sld [smem:[#allocation10 + $0x33]]
        %v2793 = vstv %s2792
        %v2794 = vmul.f32 %v2790, %v2793
        %v2795 = vmul.f32 %v2791, %v2793
        %v2796 = vld [vmem:[%s505] sm:$0xff]
        %v2797 = vld [vmem:[%s505 + $0x8] sm:$0xff]
        %s2798 = sld [smem:[#allocation10 + $0x34]]
        %v2799 = vstv %s2798
        %v2800 = vmul.f32 %v2796, %v2799
        %v2801 = vmul.f32 %v2797, %v2799
        %v2802 = vld [vmem:[%s530] sm:$0xff]
        %v2803 = vld [vmem:[%s530 + $0x8] sm:$0xff]
        %s2804 = sld [smem:[#allocation10 + $0x35]]
        %v2805 = vstv %s2804
        %v2806 = vmul.f32 %v2802, %v2805
        %v2807 = vmul.f32 %v2803, %v2805
        %v2808 = vld [vmem:[%s555] sm:$0xff]
        %v2809 = vld [vmem:[%s555 + $0x8] sm:$0xff]
        %s2810 = sld [smem:[#allocation10 + $0x36]]
        %v2811 = vstv %s2810
        %v2812 = vmul.f32 %v2808, %v2811
        %v2813 = vmul.f32 %v2809, %v2811
        %v2814 = vadd.f32 %v2788, %v2812
        %v2815 = vadd.f32 %v2789, %v2813
        %v2816 = vld [vmem:[#allocation3 + $0x1] sm:$0xff]
        %v2817 = vld [vmem:[#allocation3 + $0x9] sm:$0xff]
        %s2818 = sld [smem:[#allocation10 + $0x37]]
        %v2819 = vstv %s2818
        %v2820 = vmul.f32 %v2816, %v2819
        %v2821 = vmul.f32 %v2817, %v2819
        %v2822 = vadd.f32 %v2794, %v2820
        %v2823 = vadd.f32 %v2795, %v2821
        %v2824 = vld [vmem:[%s496 + $0x1] sm:$0xff]
        %v2825 = vld [vmem:[%s496 + $0x9] sm:$0xff]
        %s2826 = sld [smem:[#allocation10 + $0x38]]
        %v2827 = vstv %s2826
        %v2828 = vmul.f32 %v2824, %v2827
        %v2829 = vmul.f32 %v2825, %v2827
        %v2830 = vadd.f32 %v2800, %v2828
        %v2831 = vadd.f32 %v2801, %v2829
        %v2832 = vld [vmem:[%s505 + $0x1] sm:$0xff]
        %v2833 = vld [vmem:[%s505 + $0x9] sm:$0xff]
        %s2834 = sld [smem:[#allocation10 + $0x39]]
        %v2835 = vstv %s2834
        %v2836 = vmul.f32 %v2832, %v2835
        %v2837 = vmul.f32 %v2833, %v2835
        %v2838 = vadd.f32 %v2806, %v2836
        %v2839 = vadd.f32 %v2807, %v2837
        %v2840 = vld [vmem:[%s530 + $0x1] sm:$0xff]
        %v2841 = vld [vmem:[%s530 + $0x9] sm:$0xff]
        %s2842 = sld [smem:[#allocation10 + $0x3a]]
        %v2843 = vstv %s2842
        %v2844 = vmul.f32 %v2840, %v2843
        %v2845 = vmul.f32 %v2841, %v2843
        %v2846 = vadd.f32 %v2814, %v2844
        %v2847 = vadd.f32 %v2815, %v2845
        %v2848 = vld [vmem:[%s555 + $0x1] sm:$0xff]
        %v2849 = vld [vmem:[%s555 + $0x9] sm:$0xff]
        %s2850 = sld [smem:[#allocation10 + $0x3b]]
        %v2851 = vstv %s2850
        %v2852 = vmul.f32 %v2848, %v2851
        %v2853 = vmul.f32 %v2849, %v2851
        %v2854 = vadd.f32 %v2822, %v2852
        %v2855 = vadd.f32 %v2823, %v2853
        %v2856 = vld [vmem:[#allocation3 + $0x2] sm:$0xff]
        %v2857 = vld [vmem:[#allocation3 + $0xa] sm:$0xff]
        %s2858 = sld [smem:[#allocation10 + $0x3c]]
        %v2859 = vstv %s2858
        %v2860 = vmul.f32 %v2856, %v2859
        %v2861 = vmul.f32 %v2857, %v2859
        %v2862 = vadd.f32 %v2830, %v2860
        %v2863 = vadd.f32 %v2831, %v2861
        %v2864 = vld [vmem:[%s496 + $0x2] sm:$0xff]
        %v2865 = vld [vmem:[%s496 + $0xa] sm:$0xff]
        %s2866 = sld [smem:[#allocation10 + $0x3d]]
        %v2867 = vstv %s2866
        %v2868 = vmul.f32 %v2864, %v2867
        %v2869 = vmul.f32 %v2865, %v2867
        %v2870 = vadd.f32 %v2838, %v2868
        %v2871 = vadd.f32 %v2839, %v2869
        %v2872 = vld [vmem:[%s505 + $0x2] sm:$0xff]
        %v2873 = vld [vmem:[%s505 + $0xa] sm:$0xff]
        %s2874 = sld [smem:[#allocation10 + $0x3e]]
        %v2875 = vstv %s2874
        %v2876 = vmul.f32 %v2872, %v2875
        %v2877 = vmul.f32 %v2873, %v2875
        %v2878 = vadd.f32 %v2846, %v2876
        %v2879 = vadd.f32 %v2847, %v2877
        %v2880 = vld [vmem:[%s530 + $0x2] sm:$0xff]
        %v2881 = vld [vmem:[%s530 + $0xa] sm:$0xff]
        %s2882 = sld [smem:[#allocation10 + $0x3f]]
        %v2883 = vstv %s2882
        %v2884 = vmul.f32 %v2880, %v2883
        %v2885 = vmul.f32 %v2881, %v2883
        %v2886 = vadd.f32 %v2854, %v2884
        %v2887 = vadd.f32 %v2855, %v2885
        %v2888 = vld [vmem:[%s555 + $0x2] sm:$0xff]
        %v2889 = vld [vmem:[%s555 + $0xa] sm:$0xff]
        %s2890 = sld [smem:[#allocation10 + $0x40]]
        %v2891 = vstv %s2890
        %v2892 = vmul.f32 %v2888, %v2891
        %v2893 = vmul.f32 %v2889, %v2891
        %v2894 = vadd.f32 %v2862, %v2892
        %v2895 = vadd.f32 %v2863, %v2893
        %v2896 = vld [vmem:[#allocation3 + $0x3] sm:$0xff]
        %v2897 = vld [vmem:[#allocation3 + $0xb] sm:$0xff]
        %s2898 = sld [smem:[#allocation10 + $0x41]]
        %v2899 = vstv %s2898
        %v2900 = vmul.f32 %v2896, %v2899
        %v2901 = vmul.f32 %v2897, %v2899
        %v2902 = vadd.f32 %v2870, %v2900
        %v2903 = vadd.f32 %v2871, %v2901
        %v2904 = vld [vmem:[%s496 + $0x3] sm:$0xff]
        %v2905 = vld [vmem:[%s496 + $0xb] sm:$0xff]
        %s2906 = sld [smem:[#allocation10 + $0x42]]
        %v2907 = vstv %s2906
        %v2908 = vmul.f32 %v2904, %v2907
        %v2909 = vmul.f32 %v2905, %v2907
        %v2910 = vadd.f32 %v2878, %v2908
        %v2911 = vadd.f32 %v2879, %v2909
        %v2912 = vld [vmem:[%s505 + $0x3] sm:$0xff]
        %v2913 = vld [vmem:[%s505 + $0xb] sm:$0xff]
        %s2914 = sld [smem:[#allocation10 + $0x43]]
        %v2915 = vstv %s2914
        %v2916 = vmul.f32 %v2912, %v2915
        %v2917 = vmul.f32 %v2913, %v2915
        %v2918 = vadd.f32 %v2886, %v2916
        %v2919 = vadd.f32 %v2887, %v2917
        %v2920 = vld [vmem:[%s530 + $0x3] sm:$0xff]
        %v2921 = vld [vmem:[%s530 + $0xb] sm:$0xff]
        %s2922 = sld [smem:[#allocation10 + $0x44]]
        %v2923 = vstv %s2922
        %v2924 = vmul.f32 %v2920, %v2923
        %v2925 = vmul.f32 %v2921, %v2923
        %v2926 = vadd.f32 %v2894, %v2924
        %v2927 = vadd.f32 %v2895, %v2925
        %v2928 = vld [vmem:[%s555 + $0x3] sm:$0xff]
        %v2929 = vld [vmem:[%s555 + $0xb] sm:$0xff]
        %s2930 = sld [smem:[#allocation10 + $0x45]]
        %v2931 = vstv %s2930
        %v2932 = vmul.f32 %v2928, %v2931
        %v2933 = vmul.f32 %v2929, %v2931
        %v2934 = vadd.f32 %v2902, %v2932
        %v2935 = vadd.f32 %v2903, %v2933
        %v2936 = vld [vmem:[#allocation3 + $0x4] sm:$0xff]
        %v2937 = vld [vmem:[#allocation3 + $0xc] sm:$0xff]
        %s2938 = sld [smem:[#allocation10 + $0x46]]
        %v2939 = vstv %s2938
        %v2940 = vmul.f32 %v2936, %v2939
        %v2941 = vmul.f32 %v2937, %v2939
        %v2942 = vadd.f32 %v2910, %v2940
        %v2943 = vadd.f32 %v2911, %v2941
        %v2944 = vld [vmem:[%s496 + $0x4] sm:$0xff]
        %v2945 = vld [vmem:[%s496 + $0xc] sm:$0xff]
        %s2946 = sld [smem:[#allocation10 + $0x47]]
        %v2947 = vstv %s2946
        %v2948 = vmul.f32 %v2944, %v2947
        %v2949 = vmul.f32 %v2945, %v2947
        %v2950 = vadd.f32 %v2918, %v2948
        %v2951 = vadd.f32 %v2919, %v2949
        %v2952 = vld [vmem:[%s505 + $0x4] sm:$0xff]
        %v2953 = vld [vmem:[%s505 + $0xc] sm:$0xff]
        %s2954 = sld [smem:[#allocation10 + $0x48]]
        %v2955 = vstv %s2954
        %v2956 = vmul.f32 %v2952, %v2955
        %v2957 = vmul.f32 %v2953, %v2955
        %v2958 = vadd.f32 %v2926, %v2956
        %v2959 = vadd.f32 %v2927, %v2957
        %v2960 = vld [vmem:[%s530 + $0x4] sm:$0xff]
        %v2961 = vld [vmem:[%s530 + $0xc] sm:$0xff]
        %s2962 = sld [smem:[#allocation10 + $0x49]]
        %v2963 = vstv %s2962
        %v2964 = vmul.f32 %v2960, %v2963
        %v2965 = vmul.f32 %v2961, %v2963
        %v2966 = vadd.f32 %v2934, %v2964
        %v2967 = vadd.f32 %v2935, %v2965
        %v2968 = vld [vmem:[%s555 + $0x4] sm:$0xff]
        %v2969 = vld [vmem:[%s555 + $0xc] sm:$0xff]
        %s2970 = sld [smem:[#allocation10 + $0x4a]]
        %v2971 = vstv %s2970
        %v2972 = vmul.f32 %v2968, %v2971
        %v2973 = vmul.f32 %v2969, %v2971
        %v2974 = vadd.f32 %v2942, %v2972
        %v2975 = vadd.f32 %v2943, %v2973
        %v2976 = vadd.f32 %v2974, %v2950
        %v2977 = vadd.f32 %v2975, %v2951
        %v2978 = vadd.f32 %v2976, %v2958
        %v2979 = vadd.f32 %v2977, %v2959
        %v2980 = vadd.f32 %v2978, %v2966
        %v2981 = vadd.f32 %v2979, %v2967
        %s2982 = sld [smem:[#allocation11 + $0x2]]
        %v2983 = vstv %s2982
        %v2984 = vadd.f32 %v2980, %v2983
        %v2985 = vadd.f32 %v2981, %v2983
        %2986 = vst.msk [vmem:[#allocation4 + $0x28] sm:$0xff] %vm405, %v2984
        %2987 = vst.msk [vmem:[#allocation4 + $0x38] sm:$0xff] %vm405, %v2985
        %v2988 = vld [vmem:[#allocation4] sm:$0x80]
        %v2989 = vld [vmem:[#allocation4 + $0x8] sm:$0x80]
        %v2990 = vld [vmem:[#allocation4 + $0x10] sm:$0xff]
        %v2991 = vld [vmem:[#allocation4 + $0x18] sm:$0xff]
        %v2992 = vld [vmem:[#allocation4 + $0x20] sm:$0xff]
        %v2993 = vld [vmem:[#allocation4 + $0x28] sm:$0xff]
        %v2994 = vld [vmem:[#allocation4 + $0x30] sm:$0xff]
        %v2995 = vld [vmem:[#allocation4 + $0x38] sm:$0xff]
        %v2996 = vld [vmem:[#allocation4 + $0x40] sm:$0xff]
        %v2997 = vld [vmem:[#allocation4 + $0x48] sm:$0xff]
        %v2998 = vld [vmem:[#allocation4 + $0x50] sm:$0x1]
        %v2999 = vld [vmem:[#allocation4 + $0x58] sm:$0x1]
        %3012 = vrot.lane.b32.xlu0 %v2988, 9
        %v3013 = vpop.permute.xlu0 %3012
        %3014 = vrot.lane.b32.xlu0 %v2989, 9
        %v3015 = vpop.permute.xlu0 %3014
        %3016 = vrot.lane.b32.xlu0 %v2990, 9
        %v3017 = vpop.permute.xlu0 %3016
        %3018 = vrot.lane.b32.xlu0 %v2991, 9
        %v3019 = vpop.permute.xlu0 %3018
        %3020 = vrot.lane.b32.xlu0 %v2992, 9
        %v3021 = vpop.permute.xlu0 %3020
        %3022 = vrot.lane.b32.xlu0 %v2993, 9
        %v3023 = vpop.permute.xlu0 %3022
        %3024 = vrot.lane.b32.xlu0 %v2994, 9
        %v3025 = vpop.permute.xlu0 %3024
        %3026 = vrot.lane.b32.xlu0 %v2995, 9
        %v3027 = vpop.permute.xlu0 %3026
        %3028 = vrot.lane.b32.xlu0 %v2996, 9
        %v3029 = vpop.permute.xlu0 %3028
        %3030 = vrot.lane.b32.xlu0 %v2997, 9
        %v3031 = vpop.permute.xlu0 %3030
        %3032 = vrot.lane.b32.xlu0 %v2998, 9
        %v3033 = vpop.permute.xlu0 %3032
        %3034 = vrot.lane.b32.xlu0 %v2999, 9
        %v3035 = vpop.permute.xlu0 %3034
        %v3036 = vsel %vm812, %v3013, %v3015
        %v3037 = vsel %vm812, %v3017, %v3019
        %v3038 = vsel %vm812, %v3021, %v3023
        %v3039 = vsel %vm812, %v3025, %v3027
        %v3040 = vsel %vm812, %v3029, %v3031
        %v3041 = vsel %vm812, %v3033, %v3035
        %3048 = vst.msk [vmem:[#allocation5 - $0x7] sm:$0x80] %vm825, %v3036
        %3049 = vst.msk [vmem:[#allocation5 + $0x1] sm:$0xff] %vm405, %v3037
        %3050 = vst.msk [vmem:[#allocation5 + $0x9] sm:$0xff] %vm405, %v3038
        %3051 = vst.msk [vmem:[#allocation5 + $0x11] sm:$0xff] %vm405, %v3039
        %3052 = vst.msk [vmem:[#allocation5 + $0x19] sm:$0xff] %vm405, %v3040
        %3053 = vst.msk [vmem:[#allocation5 + $0x21] sm:$0x1] %vm831, %v3041
        %v3054 = vld [vmem:[#allocation4] sm:$0x80]
        %v3055 = vld [vmem:[#allocation4 + $0x8] sm:$0x80]
        %v3056 = vld [vmem:[#allocation4 + $0x10] sm:$0xff]
        %v3057 = vld [vmem:[#allocation4 + $0x18] sm:$0xff]
        %v3058 = vld [vmem:[#allocation4 + $0x20] sm:$0xff]
        %v3059 = vld [vmem:[#allocation4 + $0x28] sm:$0xff]
        %v3060 = vld [vmem:[#allocation4 + $0x30] sm:$0xff]
        %v3061 = vld [vmem:[#allocation4 + $0x38] sm:$0xff]
        %v3062 = vld [vmem:[#allocation4 + $0x40] sm:$0xff]
        %v3063 = vld [vmem:[#allocation4 + $0x48] sm:$0xff]
        %v3064 = vld [vmem:[#allocation4 + $0x50] sm:$0x1]
        %v3065 = vld [vmem:[#allocation4 + $0x58] sm:$0x1]
        %3078 = vrot.lane.b32.xlu0 %v3054, 6
        %v3079 = vpop.permute.xlu0 %3078
        %3080 = vrot.lane.b32.xlu0 %v3055, 6
        %v3081 = vpop.permute.xlu0 %3080
        %3082 = vrot.lane.b32.xlu0 %v3056, 6
        %v3083 = vpop.permute.xlu0 %3082
        %3084 = vrot.lane.b32.xlu0 %v3057, 6
        %v3085 = vpop.permute.xlu0 %3084
        %3086 = vrot.lane.b32.xlu0 %v3058, 6
        %v3087 = vpop.permute.xlu0 %3086
        %3088 = vrot.lane.b32.xlu0 %v3059, 6
        %v3089 = vpop.permute.xlu0 %3088
        %3090 = vrot.lane.b32.xlu0 %v3060, 6
        %v3091 = vpop.permute.xlu0 %3090
        %3092 = vrot.lane.b32.xlu0 %v3061, 6
        %v3093 = vpop.permute.xlu0 %3092
        %3094 = vrot.lane.b32.xlu0 %v3062, 6
        %v3095 = vpop.permute.xlu0 %3094
        %3096 = vrot.lane.b32.xlu0 %v3063, 6
        %v3097 = vpop.permute.xlu0 %3096
        %3098 = vrot.lane.b32.xlu0 %v3064, 6
        %v3099 = vpop.permute.xlu0 %3098
        %3100 = vrot.lane.b32.xlu0 %v3065, 6
        %v3101 = vpop.permute.xlu0 %3100
        %v3102 = vsel %vm881, %v3079, %v3081
        %v3103 = vsel %vm881, %v3083, %v3085
        %v3104 = vsel %vm881, %v3087, %v3089
        %v3105 = vsel %vm881, %v3091, %v3093
        %v3106 = vsel %vm881, %v3095, %v3097
        %v3107 = vsel %vm881, %v3099, %v3101
        %3114 = vst.msk [vmem:[%s894 - $0x7] sm:$0x80] %vm825, %v3102
        %3115 = vst.msk [vmem:[%s894 + $0x1] sm:$0xff] %vm405, %v3103
        %3116 = vst.msk [vmem:[%s894 + $0x9] sm:$0xff] %vm405, %v3104
        %3117 = vst.msk [vmem:[%s894 + $0x11] sm:$0xff] %vm405, %v3105
        %3118 = vst.msk [vmem:[%s894 + $0x19] sm:$0xff] %vm405, %v3106
        %3119 = vst.msk [vmem:[%s894 + $0x21] sm:$0x1] %vm831, %v3107
        %v3120 = vld [vmem:[#allocation4] sm:$0x80]
        %v3121 = vld [vmem:[#allocation4 + $0x8] sm:$0x80]
        %v3122 = vld [vmem:[#allocation4 + $0x10] sm:$0xff]
        %v3123 = vld [vmem:[#allocation4 + $0x18] sm:$0xff]
        %v3124 = vld [vmem:[#allocation4 + $0x20] sm:$0xff]
        %v3125 = vld [vmem:[#allocation4 + $0x28] sm:$0xff]
        %v3126 = vld [vmem:[#allocation4 + $0x30] sm:$0xff]
        %v3127 = vld [vmem:[#allocation4 + $0x38] sm:$0xff]
        %v3128 = vld [vmem:[#allocation4 + $0x40] sm:$0xff]
        %v3129 = vld [vmem:[#allocation4 + $0x48] sm:$0xff]
        %v3130 = vld [vmem:[#allocation4 + $0x50] sm:$0x1]
        %v3131 = vld [vmem:[#allocation4 + $0x58] sm:$0x1]
        %3144 = vrot.lane.b32.xlu0 %v3120, 3
        %v3145 = vpop.permute.xlu0 %3144
        %3146 = vrot.lane.b32.xlu0 %v3121, 3
        %v3147 = vpop.permute.xlu0 %3146
        %3148 = vrot.lane.b32.xlu0 %v3122, 3
        %v3149 = vpop.permute.xlu0 %3148
        %3150 = vrot.lane.b32.xlu0 %v3123, 3
        %v3151 = vpop.permute.xlu0 %3150
        %3152 = vrot.lane.b32.xlu0 %v3124, 3
        %v3153 = vpop.permute.xlu0 %3152
        %3154 = vrot.lane.b32.xlu0 %v3125, 3
        %v3155 = vpop.permute.xlu0 %3154
        %3156 = vrot.lane.b32.xlu0 %v3126, 3
        %v3157 = vpop.permute.xlu0 %3156
        %3158 = vrot.lane.b32.xlu0 %v3127, 3
        %v3159 = vpop.permute.xlu0 %3158
        %3160 = vrot.lane.b32.xlu0 %v3128, 3
        %v3161 = vpop.permute.xlu0 %3160
        %3162 = vrot.lane.b32.xlu0 %v3129, 3
        %v3163 = vpop.permute.xlu0 %3162
        %3164 = vrot.lane.b32.xlu0 %v3130, 3
        %v3165 = vpop.permute.xlu0 %3164
        %3166 = vrot.lane.b32.xlu0 %v3131, 3
        %v3167 = vpop.permute.xlu0 %3166
        %v3168 = vsel %vm949, %v3145, %v3147
        %v3169 = vsel %vm949, %v3149, %v3151
        %v3170 = vsel %vm949, %v3153, %v3155
        %v3171 = vsel %vm949, %v3157, %v3159
        %v3172 = vsel %vm949, %v3161, %v3163
        %v3173 = vsel %vm949, %v3165, %v3167
        %3180 = vst.msk [vmem:[%s962 - $0x7] sm:$0x80] %vm825, %v3168
        %3181 = vst.msk [vmem:[%s962 + $0x1] sm:$0xff] %vm405, %v3169
        %3182 = vst.msk [vmem:[%s962 + $0x9] sm:$0xff] %vm405, %v3170
        %3183 = vst.msk [vmem:[%s962 + $0x11] sm:$0xff] %vm405, %v3171
        %3184 = vst.msk [vmem:[%s962 + $0x19] sm:$0xff] %vm405, %v3172
        %3185 = vst.msk [vmem:[%s962 + $0x21] sm:$0x1] %vm831, %v3173
        %v3186 = vld [vmem:[#allocation4 + $0x8] sm:$0x80]
        %v3187 = vld [vmem:[#allocation4 + $0x18] sm:$0xff]
        %v3188 = vld [vmem:[#allocation4 + $0x28] sm:$0xff]
        %v3189 = vld [vmem:[#allocation4 + $0x38] sm:$0xff]
        %v3190 = vld [vmem:[#allocation4 + $0x48] sm:$0xff]
        %v3191 = vld [vmem:[#allocation4 + $0x58] sm:$0x1]
        %3192 = vst.msk [vmem:[%s975 - $0x7] sm:$0x80] %vm825, %v3186
        %3193 = vst.msk [vmem:[%s975 + $0x1] sm:$0xff] %vm405, %v3187
        %3194 = vst.msk [vmem:[%s975 + $0x9] sm:$0xff] %vm405, %v3188
        %3195 = vst.msk [vmem:[%s975 + $0x11] sm:$0xff] %vm405, %v3189
        %3196 = vst.msk [vmem:[%s975 + $0x19] sm:$0xff] %vm405, %v3190
        %3197 = vst.msk [vmem:[%s975 + $0x21] sm:$0x1] %vm831, %v3191
        %v3198 = vld [vmem:[#allocation4 + $0x8] sm:$0x80]
        %v3199 = vld [vmem:[#allocation4 + $0x18] sm:$0xff]
        %v3200 = vld [vmem:[#allocation4 + $0x28] sm:$0xff]
        %v3201 = vld [vmem:[#allocation4 + $0x38] sm:$0xff]
        %v3202 = vld [vmem:[#allocation4 + $0x48] sm:$0xff]
        %v3203 = vld [vmem:[#allocation4 + $0x58] sm:$0x1]
        %3210 = vrot.lane.b32.xlu0 %v3198, 125
        %v3211 = vpop.permute.xlu0 %3210
        %3212 = vrot.lane.b32.xlu0 %v3199, 125
        %v3213 = vpop.permute.xlu0 %3212
        %3214 = vrot.lane.b32.xlu0 %v3200, 125
        %v3215 = vpop.permute.xlu0 %3214
        %3216 = vrot.lane.b32.xlu0 %v3201, 125
        %v3217 = vpop.permute.xlu0 %3216
        %3218 = vrot.lane.b32.xlu0 %v3202, 125
        %v3219 = vpop.permute.xlu0 %3218
        %3220 = vrot.lane.b32.xlu0 %v3203, 125
        %v3221 = vpop.permute.xlu0 %3220
        %3228 = vst.msk [vmem:[%s1012 - $0x7] sm:$0x80] %vm825, %v3211
        %3229 = vst.msk [vmem:[%s1012 + $0x1] sm:$0xff] %vm405, %v3213
        %3230 = vst.msk [vmem:[%s1012 + $0x9] sm:$0xff] %vm405, %v3215
        %3231 = vst.msk [vmem:[%s1012 + $0x11] sm:$0xff] %vm405, %v3217
        %3232 = vst.msk [vmem:[%s1012 + $0x19] sm:$0xff] %vm405, %v3219
        %3233 = vst.msk [vmem:[%s1012 + $0x21] sm:$0x1] %vm831, %v3221
        %v3234 = vld [vmem:[#allocation4 + $0x8] sm:$0x80]
        %v3235 = vld [vmem:[#allocation4 + $0x18] sm:$0xff]
        %v3236 = vld [vmem:[#allocation4 + $0x28] sm:$0xff]
        %v3237 = vld [vmem:[#allocation4 + $0x38] sm:$0xff]
        %v3238 = vld [vmem:[#allocation4 + $0x48] sm:$0xff]
        %v3239 = vld [vmem:[#allocation4 + $0x58] sm:$0x1]
        %3246 = vrot.lane.b32.xlu0 %v3234, 122
        %v3247 = vpop.permute.xlu0 %3246
        %3248 = vrot.lane.b32.xlu0 %v3235, 122
        %v3249 = vpop.permute.xlu0 %3248
        %3250 = vrot.lane.b32.xlu0 %v3236, 122
        %v3251 = vpop.permute.xlu0 %3250
        %3252 = vrot.lane.b32.xlu0 %v3237, 122
        %v3253 = vpop.permute.xlu0 %3252
        %3254 = vrot.lane.b32.xlu0 %v3238, 122
        %v3255 = vpop.permute.xlu0 %3254
        %3256 = vrot.lane.b32.xlu0 %v3239, 122
        %v3257 = vpop.permute.xlu0 %3256
        %3264 = vst.msk [vmem:[%s1049 - $0x7] sm:$0x80] %vm825, %v3247
        %3265 = vst.msk [vmem:[%s1049 + $0x1] sm:$0xff] %vm405, %v3249
        %3266 = vst.msk [vmem:[%s1049 + $0x9] sm:$0xff] %vm405, %v3251
        %3267 = vst.msk [vmem:[%s1049 + $0x11] sm:$0xff] %vm405, %v3253
        %3268 = vst.msk [vmem:[%s1049 + $0x19] sm:$0xff] %vm405, %v3255
        %3269 = vst.msk [vmem:[%s1049 + $0x21] sm:$0x1] %vm831, %v3257
        %v3270 = vld [vmem:[#allocation4 + $0x8] sm:$0x80]
        %v3271 = vld [vmem:[#allocation4 + $0x18] sm:$0xff]
        %v3272 = vld [vmem:[#allocation4 + $0x28] sm:$0xff]
        %v3273 = vld [vmem:[#allocation4 + $0x38] sm:$0xff]
        %v3274 = vld [vmem:[#allocation4 + $0x48] sm:$0xff]
        %v3275 = vld [vmem:[#allocation4 + $0x58] sm:$0x1]
        %3282 = vrot.lane.b32.xlu0 %v3270, 119
        %v3283 = vpop.permute.xlu0 %3282
        %3284 = vrot.lane.b32.xlu0 %v3271, 119
        %v3285 = vpop.permute.xlu0 %3284
        %3286 = vrot.lane.b32.xlu0 %v3272, 119
        %v3287 = vpop.permute.xlu0 %3286
        %3288 = vrot.lane.b32.xlu0 %v3273, 119
        %v3289 = vpop.permute.xlu0 %3288
        %3290 = vrot.lane.b32.xlu0 %v3274, 119
        %v3291 = vpop.permute.xlu0 %3290
        %3292 = vrot.lane.b32.xlu0 %v3275, 119
        %v3293 = vpop.permute.xlu0 %3292
        %3300 = vst.msk [vmem:[%s1086 - $0x7] sm:$0x80] %vm825, %v3283
        %3301 = vst.msk [vmem:[%s1086 + $0x1] sm:$0xff] %vm405, %v3285
        %3302 = vst.msk [vmem:[%s1086 + $0x9] sm:$0xff] %vm405, %v3287
        %3303 = vst.msk [vmem:[%s1086 + $0x11] sm:$0xff] %vm405, %v3289
        %3304 = vst.msk [vmem:[%s1086 + $0x19] sm:$0xff] %vm405, %v3291
        %3305 = vst.msk [vmem:[%s1086 + $0x21] sm:$0x1] %vm831, %v3293
        %v3306 = vld [vmem:[#allocation5] sm:$0xff]
        %v3307 = vld [vmem:[#allocation5 + $0x8] sm:$0xff]
        %s3308 = sld [smem:[#allocation13 + $0x62]]
        %v3309 = vstv %s3308
        %v3310 = vmul.f32 %v3306, %v3309
        %v3311 = vmul.f32 %v3307, %v3309
        %v3312 = vld [vmem:[%s894] sm:$0xff]
        %v3313 = vld [vmem:[%s894 + $0x8] sm:$0xff]
        %s3314 = sld [smem:[#allocation13 + $0x63]]
        %v3315 = vstv %s3314
        %v3316 = vmul.f32 %v3312, %v3315
        %v3317 = vmul.f32 %v3313, %v3315
        %v3318 = vld [vmem:[%s962] sm:$0xff]
        %v3319 = vld [vmem:[%s962 + $0x8] sm:$0xff]
        %s3320 = sld [smem:[#allocation13 + $0x64]]
        %v3321 = vstv %s3320
        %v3322 = vmul.f32 %v3318, %v3321
        %v3323 = vmul.f32 %v3319, %v3321
        %v3324 = vld [vmem:[%s975] sm:$0xff]
        %v3325 = vld [vmem:[%s975 + $0x8] sm:$0xff]
        %s3326 = sld [smem:[#allocation13 + $0x65]]
        %v3327 = vstv %s3326
        %v3328 = vmul.f32 %v3324, %v3327
        %v3329 = vmul.f32 %v3325, %v3327
        %v3330 = vld [vmem:[%s1012] sm:$0xff]
        %v3331 = vld [vmem:[%s1012 + $0x8] sm:$0xff]
        %s3332 = sld [smem:[#allocation13 + $0x66]]
        %v3333 = vstv %s3332
        %v3334 = vmul.f32 %v3330, %v3333
        %v3335 = vmul.f32 %v3331, %v3333
        %v3336 = vadd.f32 %v3310, %v3334
        %v3337 = vadd.f32 %v3311, %v3335
        %v3338 = vld [vmem:[%s1049] sm:$0xff]
        %v3339 = vld [vmem:[%s1049 + $0x8] sm:$0xff]
        %s3340 = sld [smem:[#allocation13 + $0x67]]
        %v3341 = vstv %s3340
        %v3342 = vmul.f32 %v3338, %v3341
        %v3343 = vmul.f32 %v3339, %v3341
        %v3344 = vadd.f32 %v3316, %v3342
        %v3345 = vadd.f32 %v3317, %v3343
        %v3346 = vld [vmem:[%s1086] sm:$0xff]
        %v3347 = vld [vmem:[%s1086 + $0x8] sm:$0xff]
        %s3348 = sld [smem:[#allocation13 + $0x68]]
        %v3349 = vstv %s3348
        %v3350 = vmul.f32 %v3346, %v3349
        %v3351 = vmul.f32 %v3347, %v3349
        %v3352 = vadd.f32 %v3322, %v3350
        %v3353 = vadd.f32 %v3323, %v3351
        %v3354 = vld [vmem:[#allocation5 + $0x3] sm:$0xff]
        %v3355 = vld [vmem:[#allocation5 + $0xb] sm:$0xff]
        %s3356 = sld [smem:[#allocation13 + $0x69]]
        %v3357 = vstv %s3356
        %v3358 = vmul.f32 %v3354, %v3357
        %v3359 = vmul.f32 %v3355, %v3357
        %v3360 = vadd.f32 %v3328, %v3358
        %v3361 = vadd.f32 %v3329, %v3359
        %v3362 = vld [vmem:[%s894 + $0x3] sm:$0xff]
        %v3363 = vld [vmem:[%s894 + $0xb] sm:$0xff]
        %s3364 = sld [smem:[#allocation13 + $0x6a]]
        %v3365 = vstv %s3364
        %v3366 = vmul.f32 %v3362, %v3365
        %v3367 = vmul.f32 %v3363, %v3365
        %v3368 = vadd.f32 %v3336, %v3366
        %v3369 = vadd.f32 %v3337, %v3367
        %v3370 = vld [vmem:[%s962 + $0x3] sm:$0xff]
        %v3371 = vld [vmem:[%s962 + $0xb] sm:$0xff]
        %s3372 = sld [smem:[#allocation13 + $0x6b]]
        %v3373 = vstv %s3372
        %v3374 = vmul.f32 %v3370, %v3373
        %v3375 = vmul.f32 %v3371, %v3373
        %v3376 = vadd.f32 %v3344, %v3374
        %v3377 = vadd.f32 %v3345, %v3375
        %v3378 = vld [vmem:[%s975 + $0x3] sm:$0xff]
        %v3379 = vld [vmem:[%s975 + $0xb] sm:$0xff]
        %s3380 = sld [smem:[#allocation13 + $0x6c]]
        %v3381 = vstv %s3380
        %v3382 = vmul.f32 %v3378, %v3381
        %v3383 = vmul.f32 %v3379, %v3381
        %v3384 = vadd.f32 %v3352, %v3382
        %v3385 = vadd.f32 %v3353, %v3383
        %v3386 = vld [vmem:[%s1012 + $0x3] sm:$0xff]
        %v3387 = vld [vmem:[%s1012 + $0xb] sm:$0xff]
        %s3388 = sld [smem:[#allocation13 + $0x6d]]
        %v3389 = vstv %s3388
        %v3390 = vmul.f32 %v3386, %v3389
        %v3391 = vmul.f32 %v3387, %v3389
        %v3392 = vadd.f32 %v3360, %v3390
        %v3393 = vadd.f32 %v3361, %v3391
        %v3394 = vld [vmem:[%s1049 + $0x3] sm:$0xff]
        %v3395 = vld [vmem:[%s1049 + $0xb] sm:$0xff]
        %s3396 = sld [smem:[#allocation13 + $0x6e]]
        %v3397 = vstv %s3396
        %v3398 = vmul.f32 %v3394, %v3397
        %v3399 = vmul.f32 %v3395, %v3397
        %v3400 = vadd.f32 %v3368, %v3398
        %v3401 = vadd.f32 %v3369, %v3399
        %v3402 = vld [vmem:[%s1086 + $0x3] sm:$0xff]
        %v3403 = vld [vmem:[%s1086 + $0xb] sm:$0xff]
        %s3404 = sld [smem:[#allocation13 + $0x6f]]
        %v3405 = vstv %s3404
        %v3406 = vmul.f32 %v3402, %v3405
        %v3407 = vmul.f32 %v3403, %v3405
        %v3408 = vadd.f32 %v3376, %v3406
        %v3409 = vadd.f32 %v3377, %v3407
        %v3410 = vld [vmem:[#allocation5 + $0x6] sm:$0xff]
        %v3411 = vld [vmem:[#allocation5 + $0xe] sm:$0xff]
        %s3412 = sld [smem:[#allocation13 + $0x70]]
        %v3413 = vstv %s3412
        %v3414 = vmul.f32 %v3410, %v3413
        %v3415 = vmul.f32 %v3411, %v3413
        %v3416 = vadd.f32 %v3384, %v3414
        %v3417 = vadd.f32 %v3385, %v3415
        %v3418 = vld [vmem:[%s894 + $0x6] sm:$0xff]
        %v3419 = vld [vmem:[%s894 + $0xe] sm:$0xff]
        %s3420 = sld [smem:[#allocation13 + $0x71]]
        %v3421 = vstv %s3420
        %v3422 = vmul.f32 %v3418, %v3421
        %v3423 = vmul.f32 %v3419, %v3421
        %v3424 = vadd.f32 %v3392, %v3422
        %v3425 = vadd.f32 %v3393, %v3423
        %v3426 = vld [vmem:[%s962 + $0x6] sm:$0xff]
        %v3427 = vld [vmem:[%s962 + $0xe] sm:$0xff]
        %s3428 = sld [smem:[#allocation13 + $0x72]]
        %v3429 = vstv %s3428
        %v3430 = vmul.f32 %v3426, %v3429
        %v3431 = vmul.f32 %v3427, %v3429
        %v3432 = vadd.f32 %v3400, %v3430
        %v3433 = vadd.f32 %v3401, %v3431
        %v3434 = vld [vmem:[%s975 + $0x6] sm:$0xff]
        %v3435 = vld [vmem:[%s975 + $0xe] sm:$0xff]
        %s3436 = sld [smem:[#allocation13 + $0x73]]
        %v3437 = vstv %s3436
        %v3438 = vmul.f32 %v3434, %v3437
        %v3439 = vmul.f32 %v3435, %v3437
        %v3440 = vadd.f32 %v3408, %v3438
        %v3441 = vadd.f32 %v3409, %v3439
        %v3442 = vld [vmem:[%s1012 + $0x6] sm:$0xff]
        %v3443 = vld [vmem:[%s1012 + $0xe] sm:$0xff]
        %s3444 = sld [smem:[#allocation13 + $0x74]]
        %v3445 = vstv %s3444
        %v3446 = vmul.f32 %v3442, %v3445
        %v3447 = vmul.f32 %v3443, %v3445
        %v3448 = vadd.f32 %v3416, %v3446
        %v3449 = vadd.f32 %v3417, %v3447
        %v3450 = vld [vmem:[%s1049 + $0x6] sm:$0xff]
        %v3451 = vld [vmem:[%s1049 + $0xe] sm:$0xff]
        %s3452 = sld [smem:[#allocation13 + $0x75]]
        %v3453 = vstv %s3452
        %v3454 = vmul.f32 %v3450, %v3453
        %v3455 = vmul.f32 %v3451, %v3453
        %v3456 = vadd.f32 %v3424, %v3454
        %v3457 = vadd.f32 %v3425, %v3455
        %v3458 = vld [vmem:[%s1086 + $0x6] sm:$0xff]
        %v3459 = vld [vmem:[%s1086 + $0xe] sm:$0xff]
        %s3460 = sld [smem:[#allocation13 + $0x76]]
        %v3461 = vstv %s3460
        %v3462 = vmul.f32 %v3458, %v3461
        %v3463 = vmul.f32 %v3459, %v3461
        %v3464 = vadd.f32 %v3432, %v3462
        %v3465 = vadd.f32 %v3433, %v3463
        %v3466 = vld [vmem:[#allocation5 + $0x9] sm:$0xff]
        %v3467 = vld [vmem:[#allocation5 + $0x11] sm:$0xff]
        %s3468 = sld [smem:[#allocation13 + $0x77]]
        %v3469 = vstv %s3468
        %v3470 = vmul.f32 %v3466, %v3469
        %v3471 = vmul.f32 %v3467, %v3469
        %v3472 = vadd.f32 %v3440, %v3470
        %v3473 = vadd.f32 %v3441, %v3471
        %v3474 = vld [vmem:[%s894 + $0x9] sm:$0xff]
        %v3475 = vld [vmem:[%s894 + $0x11] sm:$0xff]
        %s3476 = sld [smem:[#allocation13 + $0x78]]
        %v3477 = vstv %s3476
        %v3478 = vmul.f32 %v3474, %v3477
        %v3479 = vmul.f32 %v3475, %v3477
        %v3480 = vadd.f32 %v3448, %v3478
        %v3481 = vadd.f32 %v3449, %v3479
        %v3482 = vld [vmem:[%s962 + $0x9] sm:$0xff]
        %v3483 = vld [vmem:[%s962 + $0x11] sm:$0xff]
        %s3484 = sld [smem:[#allocation13 + $0x79]]
        %v3485 = vstv %s3484
        %v3486 = vmul.f32 %v3482, %v3485
        %v3487 = vmul.f32 %v3483, %v3485
        %v3488 = vadd.f32 %v3456, %v3486
        %v3489 = vadd.f32 %v3457, %v3487
        %v3490 = vld [vmem:[%s975 + $0x9] sm:$0xff]
        %v3491 = vld [vmem:[%s975 + $0x11] sm:$0xff]
        %s3492 = sld [smem:[#allocation13 + $0x7a]]
        %v3493 = vstv %s3492
        %v3494 = vmul.f32 %v3490, %v3493
        %v3495 = vmul.f32 %v3491, %v3493
        %v3496 = vadd.f32 %v3464, %v3494
        %v3497 = vadd.f32 %v3465, %v3495
        %v3498 = vld [vmem:[%s1012 + $0x9] sm:$0xff]
        %v3499 = vld [vmem:[%s1012 + $0x11] sm:$0xff]
        %s3500 = sld [smem:[#allocation13 + $0x7b]]
        %v3501 = vstv %s3500
        %v3502 = vmul.f32 %v3498, %v3501
        %v3503 = vmul.f32 %v3499, %v3501
        %v3504 = vadd.f32 %v3472, %v3502
        %v3505 = vadd.f32 %v3473, %v3503
        %v3506 = vld [vmem:[%s1049 + $0x9] sm:$0xff]
        %v3507 = vld [vmem:[%s1049 + $0x11] sm:$0xff]
        %s3508 = sld [smem:[#allocation13 + $0x7c]]
        %v3509 = vstv %s3508
        %v3510 = vmul.f32 %v3506, %v3509
        %v3511 = vmul.f32 %v3507, %v3509
        %v3512 = vadd.f32 %v3480, %v3510
        %v3513 = vadd.f32 %v3481, %v3511
        %v3514 = vld [vmem:[%s1086 + $0x9] sm:$0xff]
        %v3515 = vld [vmem:[%s1086 + $0x11] sm:$0xff]
        %s3516 = sld [smem:[#allocation13 + $0x7d]]
        %v3517 = vstv %s3516
        %v3518 = vmul.f32 %v3514, %v3517
        %v3519 = vmul.f32 %v3515, %v3517
        %v3520 = vadd.f32 %v3488, %v3518
        %v3521 = vadd.f32 %v3489, %v3519
        %v3522 = vld [vmem:[#allocation5 + $0xc] sm:$0xff]
        %v3523 = vld [vmem:[#allocation5 + $0x14] sm:$0xff]
        %s3524 = sld [smem:[#allocation13 + $0x7e]]
        %v3525 = vstv %s3524
        %v3526 = vmul.f32 %v3522, %v3525
        %v3527 = vmul.f32 %v3523, %v3525
        %v3528 = vadd.f32 %v3496, %v3526
        %v3529 = vadd.f32 %v3497, %v3527
        %v3530 = vld [vmem:[%s894 + $0xc] sm:$0xff]
        %v3531 = vld [vmem:[%s894 + $0x14] sm:$0xff]
        %s3532 = sld [smem:[#allocation13 + $0x7f]]
        %v3533 = vstv %s3532
        %v3534 = vmul.f32 %v3530, %v3533
        %v3535 = vmul.f32 %v3531, %v3533
        %v3536 = vadd.f32 %v3504, %v3534
        %v3537 = vadd.f32 %v3505, %v3535
        %v3538 = vld [vmem:[%s962 + $0xc] sm:$0xff]
        %v3539 = vld [vmem:[%s962 + $0x14] sm:$0xff]
        %s3540 = sld [smem:[#allocation13 + $0x80]]
        %v3541 = vstv %s3540
        %v3542 = vmul.f32 %v3538, %v3541
        %v3543 = vmul.f32 %v3539, %v3541
        %v3544 = vadd.f32 %v3512, %v3542
        %v3545 = vadd.f32 %v3513, %v3543
        %v3546 = vld [vmem:[%s975 + $0xc] sm:$0xff]
        %v3547 = vld [vmem:[%s975 + $0x14] sm:$0xff]
        %s3548 = sld [smem:[#allocation13 + $0x81]]
        %v3549 = vstv %s3548
        %v3550 = vmul.f32 %v3546, %v3549
        %v3551 = vmul.f32 %v3547, %v3549
        %v3552 = vadd.f32 %v3520, %v3550
        %v3553 = vadd.f32 %v3521, %v3551
        %v3554 = vld [vmem:[%s1012 + $0xc] sm:$0xff]
        %v3555 = vld [vmem:[%s1012 + $0x14] sm:$0xff]
        %s3556 = sld [smem:[#allocation13 + $0x82]]
        %v3557 = vstv %s3556
        %v3558 = vmul.f32 %v3554, %v3557
        %v3559 = vmul.f32 %v3555, %v3557
        %v3560 = vadd.f32 %v3528, %v3558
        %v3561 = vadd.f32 %v3529, %v3559
        %v3562 = vld [vmem:[%s1049 + $0xc] sm:$0xff]
        %v3563 = vld [vmem:[%s1049 + $0x14] sm:$0xff]
        %s3564 = sld [smem:[#allocation13 + $0x83]]
        %v3565 = vstv %s3564
        %v3566 = vmul.f32 %v3562, %v3565
        %v3567 = vmul.f32 %v3563, %v3565
        %v3568 = vadd.f32 %v3536, %v3566
        %v3569 = vadd.f32 %v3537, %v3567
        %v3570 = vld [vmem:[%s1086 + $0xc] sm:$0xff]
        %v3571 = vld [vmem:[%s1086 + $0x14] sm:$0xff]
        %s3572 = sld [smem:[#allocation13 + $0x84]]
        %v3573 = vstv %s3572
        %v3574 = vmul.f32 %v3570, %v3573
        %v3575 = vmul.f32 %v3571, %v3573
        %v3576 = vadd.f32 %v3544, %v3574
        %v3577 = vadd.f32 %v3545, %v3575
        %v3578 = vld [vmem:[#allocation5 + $0xf] sm:$0xff]
        %v3579 = vld [vmem:[#allocation5 + $0x17] sm:$0xff]
        %s3580 = sld [smem:[#allocation13 + $0x85]]
        %v3581 = vstv %s3580
        %v3582 = vmul.f32 %v3578, %v3581
        %v3583 = vmul.f32 %v3579, %v3581
        %v3584 = vadd.f32 %v3552, %v3582
        %v3585 = vadd.f32 %v3553, %v3583
        %v3586 = vld [vmem:[%s894 + $0xf] sm:$0xff]
        %v3587 = vld [vmem:[%s894 + $0x17] sm:$0xff]
        %s3588 = sld [smem:[#allocation13 + $0x86]]
        %v3589 = vstv %s3588
        %v3590 = vmul.f32 %v3586, %v3589
        %v3591 = vmul.f32 %v3587, %v3589
        %v3592 = vadd.f32 %v3560, %v3590
        %v3593 = vadd.f32 %v3561, %v3591
        %v3594 = vld [vmem:[%s962 + $0xf] sm:$0xff]
        %v3595 = vld [vmem:[%s962 + $0x17] sm:$0xff]
        %s3596 = sld [smem:[#allocation13 + $0x87]]
        %v3597 = vstv %s3596
        %v3598 = vmul.f32 %v3594, %v3597
        %v3599 = vmul.f32 %v3595, %v3597
        %v3600 = vadd.f32 %v3568, %v3598
        %v3601 = vadd.f32 %v3569, %v3599
        %v3602 = vld [vmem:[%s975 + $0xf] sm:$0xff]
        %v3603 = vld [vmem:[%s975 + $0x17] sm:$0xff]
        %s3604 = sld [smem:[#allocation13 + $0x88]]
        %v3605 = vstv %s3604
        %v3606 = vmul.f32 %v3602, %v3605
        %v3607 = vmul.f32 %v3603, %v3605
        %v3608 = vadd.f32 %v3576, %v3606
        %v3609 = vadd.f32 %v3577, %v3607
        %v3610 = vld [vmem:[%s1012 + $0xf] sm:$0xff]
        %v3611 = vld [vmem:[%s1012 + $0x17] sm:$0xff]
        %s3612 = sld [smem:[#allocation13 + $0x89]]
        %v3613 = vstv %s3612
        %v3614 = vmul.f32 %v3610, %v3613
        %v3615 = vmul.f32 %v3611, %v3613
        %v3616 = vadd.f32 %v3584, %v3614
        %v3617 = vadd.f32 %v3585, %v3615
        %v3618 = vld [vmem:[%s1049 + $0xf] sm:$0xff]
        %v3619 = vld [vmem:[%s1049 + $0x17] sm:$0xff]
        %s3620 = sld [smem:[#allocation13 + $0x8a]]
        %v3621 = vstv %s3620
        %v3622 = vmul.f32 %v3618, %v3621
        %v3623 = vmul.f32 %v3619, %v3621
        %v3624 = vadd.f32 %v3592, %v3622
        %v3625 = vadd.f32 %v3593, %v3623
        %v3626 = vld [vmem:[%s1086 + $0xf] sm:$0xff]
        %v3627 = vld [vmem:[%s1086 + $0x17] sm:$0xff]
        %s3628 = sld [smem:[#allocation13 + $0x8b]]
        %v3629 = vstv %s3628
        %v3630 = vmul.f32 %v3626, %v3629
        %v3631 = vmul.f32 %v3627, %v3629
        %v3632 = vadd.f32 %v3600, %v3630
        %v3633 = vadd.f32 %v3601, %v3631
        %v3634 = vld [vmem:[#allocation5 + $0x12] sm:$0xff]
        %v3635 = vld [vmem:[#allocation5 + $0x1a] sm:$0xff]
        %s3636 = sld [smem:[#allocation13 + $0x8c]]
        %v3637 = vstv %s3636
        %v3638 = vmul.f32 %v3634, %v3637
        %v3639 = vmul.f32 %v3635, %v3637
        %v3640 = vadd.f32 %v3608, %v3638
        %v3641 = vadd.f32 %v3609, %v3639
        %v3642 = vld [vmem:[%s894 + $0x12] sm:$0xff]
        %v3643 = vld [vmem:[%s894 + $0x1a] sm:$0xff]
        %s3644 = sld [smem:[#allocation13 + $0x8d]]
        %v3645 = vstv %s3644
        %v3646 = vmul.f32 %v3642, %v3645
        %v3647 = vmul.f32 %v3643, %v3645
        %v3648 = vadd.f32 %v3616, %v3646
        %v3649 = vadd.f32 %v3617, %v3647
        %v3650 = vld [vmem:[%s962 + $0x12] sm:$0xff]
        %v3651 = vld [vmem:[%s962 + $0x1a] sm:$0xff]
        %s3652 = sld [smem:[#allocation13 + $0x8e]]
        %v3653 = vstv %s3652
        %v3654 = vmul.f32 %v3650, %v3653
        %v3655 = vmul.f32 %v3651, %v3653
        %v3656 = vadd.f32 %v3624, %v3654
        %v3657 = vadd.f32 %v3625, %v3655
        %v3658 = vld [vmem:[%s975 + $0x12] sm:$0xff]
        %v3659 = vld [vmem:[%s975 + $0x1a] sm:$0xff]
        %s3660 = sld [smem:[#allocation13 + $0x8f]]
        %v3661 = vstv %s3660
        %v3662 = vmul.f32 %v3658, %v3661
        %v3663 = vmul.f32 %v3659, %v3661
        %v3664 = vadd.f32 %v3632, %v3662
        %v3665 = vadd.f32 %v3633, %v3663
        %v3666 = vld [vmem:[%s1012 + $0x12] sm:$0xff]
        %v3667 = vld [vmem:[%s1012 + $0x1a] sm:$0xff]
        %s3668 = sld [smem:[#allocation13 + $0x90]]
        %v3669 = vstv %s3668
        %v3670 = vmul.f32 %v3666, %v3669
        %v3671 = vmul.f32 %v3667, %v3669
        %v3672 = vadd.f32 %v3640, %v3670
        %v3673 = vadd.f32 %v3641, %v3671
        %v3674 = vld [vmem:[%s1049 + $0x12] sm:$0xff]
        %v3675 = vld [vmem:[%s1049 + $0x1a] sm:$0xff]
        %s3676 = sld [smem:[#allocation13 + $0x91]]
        %v3677 = vstv %s3676
        %v3678 = vmul.f32 %v3674, %v3677
        %v3679 = vmul.f32 %v3675, %v3677
        %v3680 = vadd.f32 %v3648, %v3678
        %v3681 = vadd.f32 %v3649, %v3679
        %v3682 = vld [vmem:[%s1086 + $0x12] sm:$0xff]
        %v3683 = vld [vmem:[%s1086 + $0x1a] sm:$0xff]
        %s3684 = sld [smem:[#allocation13 + $0x92]]
        %v3685 = vstv %s3684
        %v3686 = vmul.f32 %v3682, %v3685
        %v3687 = vmul.f32 %v3683, %v3685
        %v3688 = vadd.f32 %v3656, %v3686
        %v3689 = vadd.f32 %v3657, %v3687
        %v3690 = vadd.f32 %v3688, %v3664
        %v3691 = vadd.f32 %v3689, %v3665
        %v3692 = vadd.f32 %v3690, %v3672
        %v3693 = vadd.f32 %v3691, %v3673
        %v3694 = vadd.f32 %v3692, %v3680
        %v3695 = vadd.f32 %v3693, %v3681
        %s3696 = sld [smem:[#allocation14 + $0x2]]
        %v3697 = vstv %s3696
        %v3698 = vadd.f32 %v3694, %v3697
        %v3699 = vadd.f32 %v3695, %v3697
        %s3700 = sld [smem:[#allocation16 + $0x8]]
        %v3701 = vstv %s3700
        %v3702 = vmul.f32 %v3698, %v3701
        %v3703 = vmul.f32 %v3699, %v3701
        %v3704 = vld [vmem:[%s373] sm:$0xff]
        %v3705 = vld [vmem:[%s373 + $0x8] sm:$0xff]
        %v3706 = vadd.f32 %v3704, %v3702
        %v3707 = vadd.f32 %v3705, %v3703
        %3708 = vst.msk [vmem:[%s373] sm:$0xff] %vm405, %v3706
        %3709 = vst.msk [vmem:[%s373 + $0x8] sm:$0xff] %vm405, %v3707
        %s3710 = sld [smem:[#allocation16 + $0x9]]
        %v3711 = vstv %s3710
        %v3712 = vmul.f32 %v3698, %v3711
        %v3713 = vmul.f32 %v3699, %v3711
        %v3714 = vld [vmem:[%s1505] sm:$0xff]
        %v3715 = vld [vmem:[%s1505 + $0x8] sm:$0xff]
        %v3716 = vadd.f32 %v3714, %v3712
        %v3717 = vadd.f32 %v3715, %v3713
        %3718 = vst.msk [vmem:[%s1505] sm:$0xff] %vm405, %v3716
        %3719 = vst.msk [vmem:[%s1505 + $0x8] sm:$0xff] %vm405, %v3717
        %s3720 = sld [smem:[#allocation16 + $0xa]]
        %v3721 = vstv %s3720
        %v3722 = vmul.f32 %v3698, %v3721
        %v3723 = vmul.f32 %v3699, %v3721
        %v3724 = vld [vmem:[%s1516] sm:$0xff]
        %v3725 = vld [vmem:[%s1516 + $0x8] sm:$0xff]
        %v3726 = vadd.f32 %v3724, %v3722
        %v3727 = vadd.f32 %v3725, %v3723
        %3728 = vst.msk [vmem:[%s1516] sm:$0xff] %vm405, %v3726
        %3729 = vst.msk [vmem:[%s1516 + $0x8] sm:$0xff] %vm405, %v3727
        %s3730 = sld [smem:[#allocation16 + $0xb]]
        %v3731 = vstv %s3730
        %v3732 = vmul.f32 %v3698, %v3731
        %v3733 = vmul.f32 %v3699, %v3731
        %v3734 = vld [vmem:[%s1527] sm:$0xff]
        %v3735 = vld [vmem:[%s1527 + $0x8] sm:$0xff]
        %v3736 = vadd.f32 %v3734, %v3732
        %v3737 = vadd.f32 %v3735, %v3733
        %3738 = vst.msk [vmem:[%s1527] sm:$0xff] %vm405, %v3736
        %3739 = vst.msk [vmem:[%s1527 + $0x8] sm:$0xff] %vm405, %v3737
        %s3740 = scalar_lea.vmem %s318, 48 [#allocation6]
        %v3741 = vld [vmem:[%s3740] sm:$0xff]
        %v3742 = vld [vmem:[%s3740 + $0x8] sm:$0xff]
        %3743 = vst.msk [vmem:[#allocation2 + $0x18] sm:$0xff] %vm405, %v3741
        %3744 = vst.msk [vmem:[#allocation2 + $0x28] sm:$0xff] %vm405, %v3742
        %v3745 = vld [vmem:[#allocation2] sm:$0xc0]
        %v3746 = vld [vmem:[#allocation2 + $0x8] sm:$0xc0]
        %v3747 = vld [vmem:[#allocation2 + $0x10] sm:$0xff]
        %v3748 = vld [vmem:[#allocation2 + $0x18] sm:$0xff]
        %v3749 = vld [vmem:[#allocation2 + $0x20] sm:$0xff]
        %v3750 = vld [vmem:[#allocation2 + $0x28] sm:$0xff]
        %v3751 = vld [vmem:[#allocation2 + $0x30] sm:$0x3]
        %v3752 = vld [vmem:[#allocation2 + $0x38] sm:$0x3]
        %3761 = vrot.lane.b32.xlu0 %v3745, 2
        %v3762 = vpop.permute.xlu0 %3761
        %3763 = vrot.lane.b32.xlu0 %v3746, 2
        %v3764 = vpop.permute.xlu0 %3763
        %3765 = vrot.lane.b32.xlu0 %v3747, 2
        %v3766 = vpop.permute.xlu0 %3765
        %3767 = vrot.lane.b32.xlu0 %v3748, 2
        %v3768 = vpop.permute.xlu0 %3767
        %3769 = vrot.lane.b32.xlu0 %v3749, 2
        %v3770 = vpop.permute.xlu0 %3769
        %3771 = vrot.lane.b32.xlu0 %v3750, 2
        %v3772 = vpop.permute.xlu0 %3771
        %3773 = vrot.lane.b32.xlu0 %v3751, 2
        %v3774 = vpop.permute.xlu0 %3773
        %3775 = vrot.lane.b32.xlu0 %v3752, 2
        %v3776 = vpop.permute.xlu0 %3775
        %v3777 = vsel %vm440, %v3762, %v3764
        %v3778 = vsel %vm440, %v3766, %v3768
        %v3779 = vsel %vm440, %v3770, %v3772
        %v3780 = vsel %vm440, %v3774, %v3776
        %3785 = vst.msk [vmem:[#allocation3 - $0x6] sm:$0xc0] %vm449, %v3777
        %3786 = vst.msk [vmem:[#allocation3 + $0x2] sm:$0xff] %vm405, %v3778
        %3787 = vst.msk [vmem:[#allocation3 + $0xa] sm:$0xff] %vm405, %v3779
        %3788 = vst.msk [vmem:[#allocation3 + $0x12] sm:$0x3] %vm453, %v3780
        %v3789 = vld [vmem:[#allocation2] sm:$0xc0]
        %v3790 = vld [vmem:[#allocation2 + $0x8] sm:$0xc0]
        %v3791 = vld [vmem:[#allocation2 + $0x10] sm:$0xff]
        %v3792 = vld [vmem:[#allocation2 + $0x18] sm:$0xff]
        %v3793 = vld [vmem:[#allocation2 + $0x20] sm:$0xff]
        %v3794 = vld [vmem:[#allocation2 + $0x28] sm:$0xff]
        %v3795 = vld [vmem:[#allocation2 + $0x30] sm:$0x3]
        %v3796 = vld [vmem:[#allocation2 + $0x38] sm:$0x3]
        %3805 = vrot.lane.b32.xlu0 %v3789, 1
        %v3806 = vpop.permute.xlu0 %3805
        %3807 = vrot.lane.b32.xlu0 %v3790, 1
        %v3808 = vpop.permute.xlu0 %3807
        %3809 = vrot.lane.b32.xlu0 %v3791, 1
        %v3810 = vpop.permute.xlu0 %3809
        %3811 = vrot.lane.b32.xlu0 %v3792, 1
        %v3812 = vpop.permute.xlu0 %3811
        %3813 = vrot.lane.b32.xlu0 %v3793, 1
        %v3814 = vpop.permute.xlu0 %3813
        %3815 = vrot.lane.b32.xlu0 %v3794, 1
        %v3816 = vpop.permute.xlu0 %3815
        %3817 = vrot.lane.b32.xlu0 %v3795, 1
        %v3818 = vpop.permute.xlu0 %3817
        %3819 = vrot.lane.b32.xlu0 %v3796, 1
        %v3820 = vpop.permute.xlu0 %3819
        %v3821 = vsel %vm487, %v3806, %v3808
        %v3822 = vsel %vm487, %v3810, %v3812
        %v3823 = vsel %vm487, %v3814, %v3816
        %v3824 = vsel %vm487, %v3818, %v3820
        %3829 = vst.msk [vmem:[%s496 - $0x6] sm:$0xc0] %vm449, %v3821
        %3830 = vst.msk [vmem:[%s496 + $0x2] sm:$0xff] %vm405, %v3822
        %3831 = vst.msk [vmem:[%s496 + $0xa] sm:$0xff] %vm405, %v3823
        %3832 = vst.msk [vmem:[%s496 + $0x12] sm:$0x3] %vm453, %v3824
        %v3833 = vld [vmem:[#allocation2 + $0x8] sm:$0xc0]
        %v3834 = vld [vmem:[#allocation2 + $0x18] sm:$0xff]
        %v3835 = vld [vmem:[#allocation2 + $0x28] sm:$0xff]
        %v3836 = vld [vmem:[#allocation2 + $0x38] sm:$0x3]
        %3837 = vst.msk [vmem:[%s505 - $0x6] sm:$0xc0] %vm449, %v3833
        %3838 = vst.msk [vmem:[%s505 + $0x2] sm:$0xff] %vm405, %v3834
        %3839 = vst.msk [vmem:[%s505 + $0xa] sm:$0xff] %vm405, %v3835
        %3840 = vst.msk [vmem:[%s505 + $0x12] sm:$0x3] %vm453, %v3836
        %v3841 = vld [vmem:[#allocation2 + $0x8] sm:$0xc0]
        %v3842 = vld [vmem:[#allocation2 + $0x18] sm:$0xff]
        %v3843 = vld [vmem:[#allocation2 + $0x28] sm:$0xff]
        %v3844 = vld [vmem:[#allocation2 + $0x38] sm:$0x3]
        %3849 = vrot.lane.b32.xlu0 %v3841, 127
        %v3850 = vpop.permute.xlu0 %3849
        %3851 = vrot.lane.b32.xlu0 %v3842, 127
        %v3852 = vpop.permute.xlu0 %3851
        %3853 = vrot.lane.b32.xlu0 %v3843, 127
        %v3854 = vpop.permute.xlu0 %3853
        %3855 = vrot.lane.b32.xlu0 %v3844, 127
        %v3856 = vpop.permute.xlu0 %3855
        %3861 = vst.msk [vmem:[%s530 - $0x6] sm:$0xc0] %vm449, %v3850
        %3862 = vst.msk [vmem:[%s530 + $0x2] sm:$0xff] %vm405, %v3852
        %3863 = vst.msk [vmem:[%s530 + $0xa] sm:$0xff] %vm405, %v3854
        %3864 = vst.msk [vmem:[%s530 + $0x12] sm:$0x3] %vm453, %v3856
        %v3865 = vld [vmem:[#allocation2 + $0x8] sm:$0xc0]
        %v3866 = vld [vmem:[#allocation2 + $0x18] sm:$0xff]
        %v3867 = vld [vmem:[#allocation2 + $0x28] sm:$0xff]
        %v3868 = vld [vmem:[#allocation2 + $0x38] sm:$0x3]
        %3873 = vrot.lane.b32.xlu0 %v3865, 126
        %v3874 = vpop.permute.xlu0 %3873
        %3875 = vrot.lane.b32.xlu0 %v3866, 126
        %v3876 = vpop.permute.xlu0 %3875
        %3877 = vrot.lane.b32.xlu0 %v3867, 126
        %v3878 = vpop.permute.xlu0 %3877
        %3879 = vrot.lane.b32.xlu0 %v3868, 126
        %v3880 = vpop.permute.xlu0 %3879
        %3885 = vst.msk [vmem:[%s555 - $0x6] sm:$0xc0] %vm449, %v3874
        %3886 = vst.msk [vmem:[%s555 + $0x2] sm:$0xff] %vm405, %v3876
        %3887 = vst.msk [vmem:[%s555 + $0xa] sm:$0xff] %vm405, %v3878
        %3888 = vst.msk [vmem:[%s555 + $0x12] sm:$0x3] %vm453, %v3880
        %v3889 = vld [vmem:[#allocation3] sm:$0xff]
        %v3890 = vld [vmem:[#allocation3 + $0x8] sm:$0xff]
        %s3891 = sld [smem:[#allocation10 + $0x4b]]
        %v3892 = vstv %s3891
        %v3893 = vmul.f32 %v3889, %v3892
        %v3894 = vmul.f32 %v3890, %v3892
        %v3895 = vld [vmem:[%s496] sm:$0xff]
        %v3896 = vld [vmem:[%s496 + $0x8] sm:$0xff]
        %s3897 = sld [smem:[#allocation10 + $0x4c]]
        %v3898 = vstv %s3897
        %v3899 = vmul.f32 %v3895, %v3898
        %v3900 = vmul.f32 %v3896, %v3898
        %v3901 = vld [vmem:[%s505] sm:$0xff]
        %v3902 = vld [vmem:[%s505 + $0x8] sm:$0xff]
        %s3903 = sld [smem:[#allocation10 + $0x4d]]
        %v3904 = vstv %s3903
        %v3905 = vmul.f32 %v3901, %v3904
        %v3906 = vmul.f32 %v3902, %v3904
        %v3907 = vld [vmem:[%s530] sm:$0xff]
        %v3908 = vld [vmem:[%s530 + $0x8] sm:$0xff]
        %s3909 = sld [smem:[#allocation10 + $0x4e]]
        %v3910 = vstv %s3909
        %v3911 = vmul.f32 %v3907, %v3910
        %v3912 = vmul.f32 %v3908, %v3910
        %v3913 = vld [vmem:[%s555] sm:$0xff]
        %v3914 = vld [vmem:[%s555 + $0x8] sm:$0xff]
        %s3915 = sld [smem:[#allocation10 + $0x4f]]
        %v3916 = vstv %s3915
        %v3917 = vmul.f32 %v3913, %v3916
        %v3918 = vmul.f32 %v3914, %v3916
        %v3919 = vadd.f32 %v3893, %v3917
        %v3920 = vadd.f32 %v3894, %v3918
        %v3921 = vld [vmem:[#allocation3 + $0x1] sm:$0xff]
        %v3922 = vld [vmem:[#allocation3 + $0x9] sm:$0xff]
        %s3923 = sld [smem:[#allocation10 + $0x50]]
        %v3924 = vstv %s3923
        %v3925 = vmul.f32 %v3921, %v3924
        %v3926 = vmul.f32 %v3922, %v3924
        %v3927 = vadd.f32 %v3899, %v3925
        %v3928 = vadd.f32 %v3900, %v3926
        %v3929 = vld [vmem:[%s496 + $0x1] sm:$0xff]
        %v3930 = vld [vmem:[%s496 + $0x9] sm:$0xff]
        %s3931 = sld [smem:[#allocation10 + $0x51]]
        %v3932 = vstv %s3931
        %v3933 = vmul.f32 %v3929, %v3932
        %v3934 = vmul.f32 %v3930, %v3932
        %v3935 = vadd.f32 %v3905, %v3933
        %v3936 = vadd.f32 %v3906, %v3934
        %v3937 = vld [vmem:[%s505 + $0x1] sm:$0xff]
        %v3938 = vld [vmem:[%s505 + $0x9] sm:$0xff]
        %s3939 = sld [smem:[#allocation10 + $0x52]]
        %v3940 = vstv %s3939
        %v3941 = vmul.f32 %v3937, %v3940
        %v3942 = vmul.f32 %v3938, %v3940
        %v3943 = vadd.f32 %v3911, %v3941
        %v3944 = vadd.f32 %v3912, %v3942
        %v3945 = vld [vmem:[%s530 + $0x1] sm:$0xff]
        %v3946 = vld [vmem:[%s530 + $0x9] sm:$0xff]
        %s3947 = sld [smem:[#allocation10 + $0x53]]
        %v3948 = vstv %s3947
        %v3949 = vmul.f32 %v3945, %v3948
        %v3950 = vmul.f32 %v3946, %v3948
        %v3951 = vadd.f32 %v3919, %v3949
        %v3952 = vadd.f32 %v3920, %v3950
        %v3953 = vld [vmem:[%s555 + $0x1] sm:$0xff]
        %v3954 = vld [vmem:[%s555 + $0x9] sm:$0xff]
        %s3955 = sld [smem:[#allocation10 + $0x54]]
        %v3956 = vstv %s3955
        %v3957 = vmul.f32 %v3953, %v3956
        %v3958 = vmul.f32 %v3954, %v3956
        %v3959 = vadd.f32 %v3927, %v3957
        %v3960 = vadd.f32 %v3928, %v3958
        %v3961 = vld [vmem:[#allocation3 + $0x2] sm:$0xff]
        %v3962 = vld [vmem:[#allocation3 + $0xa] sm:$0xff]
        %s3963 = sld [smem:[#allocation10 + $0x55]]
        %v3964 = vstv %s3963
        %v3965 = vmul.f32 %v3961, %v3964
        %v3966 = vmul.f32 %v3962, %v3964
        %v3967 = vadd.f32 %v3935, %v3965
        %v3968 = vadd.f32 %v3936, %v3966
        %v3969 = vld [vmem:[%s496 + $0x2] sm:$0xff]
        %v3970 = vld [vmem:[%s496 + $0xa] sm:$0xff]
        %s3971 = sld [smem:[#allocation10 + $0x56]]
        %v3972 = vstv %s3971
        %v3973 = vmul.f32 %v3969, %v3972
        %v3974 = vmul.f32 %v3970, %v3972
        %v3975 = vadd.f32 %v3943, %v3973
        %v3976 = vadd.f32 %v3944, %v3974
        %v3977 = vld [vmem:[%s505 + $0x2] sm:$0xff]
        %v3978 = vld [vmem:[%s505 + $0xa] sm:$0xff]
        %s3979 = sld [smem:[#allocation10 + $0x57]]
        %v3980 = vstv %s3979
        %v3981 = vmul.f32 %v3977, %v3980
        %v3982 = vmul.f32 %v3978, %v3980
        %v3983 = vadd.f32 %v3951, %v3981
        %v3984 = vadd.f32 %v3952, %v3982
        %v3985 = vld [vmem:[%s530 + $0x2] sm:$0xff]
        %v3986 = vld [vmem:[%s530 + $0xa] sm:$0xff]
        %s3987 = sld [smem:[#allocation10 + $0x58]]
        %v3988 = vstv %s3987
        %v3989 = vmul.f32 %v3985, %v3988
        %v3990 = vmul.f32 %v3986, %v3988
        %v3991 = vadd.f32 %v3959, %v3989
        %v3992 = vadd.f32 %v3960, %v3990
        %v3993 = vld [vmem:[%s555 + $0x2] sm:$0xff]
        %v3994 = vld [vmem:[%s555 + $0xa] sm:$0xff]
        %s3995 = sld [smem:[#allocation10 + $0x59]]
        %v3996 = vstv %s3995
        %v3997 = vmul.f32 %v3993, %v3996
        %v3998 = vmul.f32 %v3994, %v3996
        %v3999 = vadd.f32 %v3967, %v3997
        %v4000 = vadd.f32 %v3968, %v3998
        %v4001 = vld [vmem:[#allocation3 + $0x3] sm:$0xff]
        %v4002 = vld [vmem:[#allocation3 + $0xb] sm:$0xff]
        %s4003 = sld [smem:[#allocation10 + $0x5a]]
        %v4004 = vstv %s4003
        %v4005 = vmul.f32 %v4001, %v4004
        %v4006 = vmul.f32 %v4002, %v4004
        %v4007 = vadd.f32 %v3975, %v4005
        %v4008 = vadd.f32 %v3976, %v4006
        %v4009 = vld [vmem:[%s496 + $0x3] sm:$0xff]
        %v4010 = vld [vmem:[%s496 + $0xb] sm:$0xff]
        %s4011 = sld [smem:[#allocation10 + $0x5b]]
        %v4012 = vstv %s4011
        %v4013 = vmul.f32 %v4009, %v4012
        %v4014 = vmul.f32 %v4010, %v4012
        %v4015 = vadd.f32 %v3983, %v4013
        %v4016 = vadd.f32 %v3984, %v4014
        %v4017 = vld [vmem:[%s505 + $0x3] sm:$0xff]
        %v4018 = vld [vmem:[%s505 + $0xb] sm:$0xff]
        %s4019 = sld [smem:[#allocation10 + $0x5c]]
        %v4020 = vstv %s4019
        %v4021 = vmul.f32 %v4017, %v4020
        %v4022 = vmul.f32 %v4018, %v4020
        %v4023 = vadd.f32 %v3991, %v4021
        %v4024 = vadd.f32 %v3992, %v4022
        %v4025 = vld [vmem:[%s530 + $0x3] sm:$0xff]
        %v4026 = vld [vmem:[%s530 + $0xb] sm:$0xff]
        %s4027 = sld [smem:[#allocation10 + $0x5d]]
        %v4028 = vstv %s4027
        %v4029 = vmul.f32 %v4025, %v4028
        %v4030 = vmul.f32 %v4026, %v4028
        %v4031 = vadd.f32 %v3999, %v4029
        %v4032 = vadd.f32 %v4000, %v4030
        %v4033 = vld [vmem:[%s555 + $0x3] sm:$0xff]
        %v4034 = vld [vmem:[%s555 + $0xb] sm:$0xff]
        %s4035 = sld [smem:[#allocation10 + $0x5e]]
        %v4036 = vstv %s4035
        %v4037 = vmul.f32 %v4033, %v4036
        %v4038 = vmul.f32 %v4034, %v4036
        %v4039 = vadd.f32 %v4007, %v4037
        %v4040 = vadd.f32 %v4008, %v4038
        %v4041 = vld [vmem:[#allocation3 + $0x4] sm:$0xff]
        %v4042 = vld [vmem:[#allocation3 + $0xc] sm:$0xff]
        %s4043 = sld [smem:[#allocation10 + $0x5f]]
        %v4044 = vstv %s4043
        %v4045 = vmul.f32 %v4041, %v4044
        %v4046 = vmul.f32 %v4042, %v4044
        %v4047 = vadd.f32 %v4015, %v4045
        %v4048 = vadd.f32 %v4016, %v4046
        %v4049 = vld [vmem:[%s496 + $0x4] sm:$0xff]
        %v4050 = vld [vmem:[%s496 + $0xc] sm:$0xff]
        %s4051 = sld [smem:[#allocation10 + $0x60]]
        %v4052 = vstv %s4051
        %v4053 = vmul.f32 %v4049, %v4052
        %v4054 = vmul.f32 %v4050, %v4052
        %v4055 = vadd.f32 %v4023, %v4053
        %v4056 = vadd.f32 %v4024, %v4054
        %v4057 = vld [vmem:[%s505 + $0x4] sm:$0xff]
        %v4058 = vld [vmem:[%s505 + $0xc] sm:$0xff]
        %s4059 = sld [smem:[#allocation10 + $0x61]]
        %v4060 = vstv %s4059
        %v4061 = vmul.f32 %v4057, %v4060
        %v4062 = vmul.f32 %v4058, %v4060
        %v4063 = vadd.f32 %v4031, %v4061
        %v4064 = vadd.f32 %v4032, %v4062
        %v4065 = vld [vmem:[%s530 + $0x4] sm:$0xff]
        %v4066 = vld [vmem:[%s530 + $0xc] sm:$0xff]
        %s4067 = sld [smem:[#allocation10 + $0x62]]
        %v4068 = vstv %s4067
        %v4069 = vmul.f32 %v4065, %v4068
        %v4070 = vmul.f32 %v4066, %v4068
        %v4071 = vadd.f32 %v4039, %v4069
        %v4072 = vadd.f32 %v4040, %v4070
        %v4073 = vld [vmem:[%s555 + $0x4] sm:$0xff]
        %v4074 = vld [vmem:[%s555 + $0xc] sm:$0xff]
        %s4075 = sld [smem:[#allocation10 + $0x63]]
        %v4076 = vstv %s4075
        %v4077 = vmul.f32 %v4073, %v4076
        %v4078 = vmul.f32 %v4074, %v4076
        %v4079 = vadd.f32 %v4047, %v4077
        %v4080 = vadd.f32 %v4048, %v4078
        %v4081 = vadd.f32 %v4079, %v4055
        %v4082 = vadd.f32 %v4080, %v4056
        %v4083 = vadd.f32 %v4081, %v4063
        %v4084 = vadd.f32 %v4082, %v4064
        %v4085 = vadd.f32 %v4083, %v4071
        %v4086 = vadd.f32 %v4084, %v4072
        %s4087 = sld [smem:[#allocation11 + $0x3]]
        %v4088 = vstv %s4087
        %v4089 = vadd.f32 %v4085, %v4088
        %v4090 = vadd.f32 %v4086, %v4088
        %4091 = vst.msk [vmem:[#allocation4 + $0x28] sm:$0xff] %vm405, %v4089
        %4092 = vst.msk [vmem:[#allocation4 + $0x38] sm:$0xff] %vm405, %v4090
        %v4093 = vld [vmem:[#allocation4] sm:$0x80]
        %v4094 = vld [vmem:[#allocation4 + $0x8] sm:$0x80]
        %v4095 = vld [vmem:[#allocation4 + $0x10] sm:$0xff]
        %v4096 = vld [vmem:[#allocation4 + $0x18] sm:$0xff]
        %v4097 = vld [vmem:[#allocation4 + $0x20] sm:$0xff]
        %v4098 = vld [vmem:[#allocation4 + $0x28] sm:$0xff]
        %v4099 = vld [vmem:[#allocation4 + $0x30] sm:$0xff]
        %v4100 = vld [vmem:[#allocation4 + $0x38] sm:$0xff]
        %v4101 = vld [vmem:[#allocation4 + $0x40] sm:$0xff]
        %v4102 = vld [vmem:[#allocation4 + $0x48] sm:$0xff]
        %v4103 = vld [vmem:[#allocation4 + $0x50] sm:$0x1]
        %v4104 = vld [vmem:[#allocation4 + $0x58] sm:$0x1]
        %4117 = vrot.lane.b32.xlu0 %v4093, 9
        %v4118 = vpop.permute.xlu0 %4117
        %4119 = vrot.lane.b32.xlu0 %v4094, 9
        %v4120 = vpop.permute.xlu0 %4119
        %4121 = vrot.lane.b32.xlu0 %v4095, 9
        %v4122 = vpop.permute.xlu0 %4121
        %4123 = vrot.lane.b32.xlu0 %v4096, 9
        %v4124 = vpop.permute.xlu0 %4123
        %4125 = vrot.lane.b32.xlu0 %v4097, 9
        %v4126 = vpop.permute.xlu0 %4125
        %4127 = vrot.lane.b32.xlu0 %v4098, 9
        %v4128 = vpop.permute.xlu0 %4127
        %4129 = vrot.lane.b32.xlu0 %v4099, 9
        %v4130 = vpop.permute.xlu0 %4129
        %4131 = vrot.lane.b32.xlu0 %v4100, 9
        %v4132 = vpop.permute.xlu0 %4131
        %4133 = vrot.lane.b32.xlu0 %v4101, 9
        %v4134 = vpop.permute.xlu0 %4133
        %4135 = vrot.lane.b32.xlu0 %v4102, 9
        %v4136 = vpop.permute.xlu0 %4135
        %4137 = vrot.lane.b32.xlu0 %v4103, 9
        %v4138 = vpop.permute.xlu0 %4137
        %4139 = vrot.lane.b32.xlu0 %v4104, 9
        %v4140 = vpop.permute.xlu0 %4139
        %v4141 = vsel %vm812, %v4118, %v4120
        %v4142 = vsel %vm812, %v4122, %v4124
        %v4143 = vsel %vm812, %v4126, %v4128
        %v4144 = vsel %vm812, %v4130, %v4132
        %v4145 = vsel %vm812, %v4134, %v4136
        %v4146 = vsel %vm812, %v4138, %v4140
        %4153 = vst.msk [vmem:[#allocation5 - $0x7] sm:$0x80] %vm825, %v4141
        %4154 = vst.msk [vmem:[#allocation5 + $0x1] sm:$0xff] %vm405, %v4142
        %4155 = vst.msk [vmem:[#allocation5 + $0x9] sm:$0xff] %vm405, %v4143
        %4156 = vst.msk [vmem:[#allocation5 + $0x11] sm:$0xff] %vm405, %v4144
        %4157 = vst.msk [vmem:[#allocation5 + $0x19] sm:$0xff] %vm405, %v4145
        %4158 = vst.msk [vmem:[#allocation5 + $0x21] sm:$0x1] %vm831, %v4146
        %v4159 = vld [vmem:[#allocation4] sm:$0x80]
        %v4160 = vld [vmem:[#allocation4 + $0x8] sm:$0x80]
        %v4161 = vld [vmem:[#allocation4 + $0x10] sm:$0xff]
        %v4162 = vld [vmem:[#allocation4 + $0x18] sm:$0xff]
        %v4163 = vld [vmem:[#allocation4 + $0x20] sm:$0xff]
        %v4164 = vld [vmem:[#allocation4 + $0x28] sm:$0xff]
        %v4165 = vld [vmem:[#allocation4 + $0x30] sm:$0xff]
        %v4166 = vld [vmem:[#allocation4 + $0x38] sm:$0xff]
        %v4167 = vld [vmem:[#allocation4 + $0x40] sm:$0xff]
        %v4168 = vld [vmem:[#allocation4 + $0x48] sm:$0xff]
        %v4169 = vld [vmem:[#allocation4 + $0x50] sm:$0x1]
        %v4170 = vld [vmem:[#allocation4 + $0x58] sm:$0x1]
        %4183 = vrot.lane.b32.xlu0 %v4159, 6
        %v4184 = vpop.permute.xlu0 %4183
        %4185 = vrot.lane.b32.xlu0 %v4160, 6
        %v4186 = vpop.permute.xlu0 %4185
        %4187 = vrot.lane.b32.xlu0 %v4161, 6
        %v4188 = vpop.permute.xlu0 %4187
        %4189 = vrot.lane.b32.xlu0 %v4162, 6
        %v4190 = vpop.permute.xlu0 %4189
        %4191 = vrot.lane.b32.xlu0 %v4163, 6
        %v4192 = vpop.permute.xlu0 %4191
        %4193 = vrot.lane.b32.xlu0 %v4164, 6
        %v4194 = vpop.permute.xlu0 %4193
        %4195 = vrot.lane.b32.xlu0 %v4165, 6
        %v4196 = vpop.permute.xlu0 %4195
        %4197 = vrot.lane.b32.xlu0 %v4166, 6
        %v4198 = vpop.permute.xlu0 %4197
        %4199 = vrot.lane.b32.xlu0 %v4167, 6
        %v4200 = vpop.permute.xlu0 %4199
        %4201 = vrot.lane.b32.xlu0 %v4168, 6
        %v4202 = vpop.permute.xlu0 %4201
        %4203 = vrot.lane.b32.xlu0 %v4169, 6
        %v4204 = vpop.permute.xlu0 %4203
        %4205 = vrot.lane.b32.xlu0 %v4170, 6
        %v4206 = vpop.permute.xlu0 %4205
        %v4207 = vsel %vm881, %v4184, %v4186
        %v4208 = vsel %vm881, %v4188, %v4190
        %v4209 = vsel %vm881, %v4192, %v4194
        %v4210 = vsel %vm881, %v4196, %v4198
        %v4211 = vsel %vm881, %v4200, %v4202
        %v4212 = vsel %vm881, %v4204, %v4206
        %4219 = vst.msk [vmem:[%s894 - $0x7] sm:$0x80] %vm825, %v4207
        %4220 = vst.msk [vmem:[%s894 + $0x1] sm:$0xff] %vm405, %v4208
        %4221 = vst.msk [vmem:[%s894 + $0x9] sm:$0xff] %vm405, %v4209
        %4222 = vst.msk [vmem:[%s894 + $0x11] sm:$0xff] %vm405, %v4210
        %4223 = vst.msk [vmem:[%s894 + $0x19] sm:$0xff] %vm405, %v4211
        %4224 = vst.msk [vmem:[%s894 + $0x21] sm:$0x1] %vm831, %v4212
        %v4225 = vld [vmem:[#allocation4] sm:$0x80]
        %v4226 = vld [vmem:[#allocation4 + $0x8] sm:$0x80]
        %v4227 = vld [vmem:[#allocation4 + $0x10] sm:$0xff]
        %v4228 = vld [vmem:[#allocation4 + $0x18] sm:$0xff]
        %v4229 = vld [vmem:[#allocation4 + $0x20] sm:$0xff]
        %v4230 = vld [vmem:[#allocation4 + $0x28] sm:$0xff]
        %v4231 = vld [vmem:[#allocation4 + $0x30] sm:$0xff]
        %v4232 = vld [vmem:[#allocation4 + $0x38] sm:$0xff]
        %v4233 = vld [vmem:[#allocation4 + $0x40] sm:$0xff]
        %v4234 = vld [vmem:[#allocation4 + $0x48] sm:$0xff]
        %v4235 = vld [vmem:[#allocation4 + $0x50] sm:$0x1]
        %v4236 = vld [vmem:[#allocation4 + $0x58] sm:$0x1]
        %4249 = vrot.lane.b32.xlu0 %v4225, 3
        %v4250 = vpop.permute.xlu0 %4249
        %4251 = vrot.lane.b32.xlu0 %v4226, 3
        %v4252 = vpop.permute.xlu0 %4251
        %4253 = vrot.lane.b32.xlu0 %v4227, 3
        %v4254 = vpop.permute.xlu0 %4253
        %4255 = vrot.lane.b32.xlu0 %v4228, 3
        %v4256 = vpop.permute.xlu0 %4255
        %4257 = vrot.lane.b32.xlu0 %v4229, 3
        %v4258 = vpop.permute.xlu0 %4257
        %4259 = vrot.lane.b32.xlu0 %v4230, 3
        %v4260 = vpop.permute.xlu0 %4259
        %4261 = vrot.lane.b32.xlu0 %v4231, 3
        %v4262 = vpop.permute.xlu0 %4261
        %4263 = vrot.lane.b32.xlu0 %v4232, 3
        %v4264 = vpop.permute.xlu0 %4263
        %4265 = vrot.lane.b32.xlu0 %v4233, 3
        %v4266 = vpop.permute.xlu0 %4265
        %4267 = vrot.lane.b32.xlu0 %v4234, 3
        %v4268 = vpop.permute.xlu0 %4267
        %4269 = vrot.lane.b32.xlu0 %v4235, 3
        %v4270 = vpop.permute.xlu0 %4269
        %4271 = vrot.lane.b32.xlu0 %v4236, 3
        %v4272 = vpop.permute.xlu0 %4271
        %v4273 = vsel %vm949, %v4250, %v4252
        %v4274 = vsel %vm949, %v4254, %v4256
        %v4275 = vsel %vm949, %v4258, %v4260
        %v4276 = vsel %vm949, %v4262, %v4264
        %v4277 = vsel %vm949, %v4266, %v4268
        %v4278 = vsel %vm949, %v4270, %v4272
        %4285 = vst.msk [vmem:[%s962 - $0x7] sm:$0x80] %vm825, %v4273
        %4286 = vst.msk [vmem:[%s962 + $0x1] sm:$0xff] %vm405, %v4274
        %4287 = vst.msk [vmem:[%s962 + $0x9] sm:$0xff] %vm405, %v4275
        %4288 = vst.msk [vmem:[%s962 + $0x11] sm:$0xff] %vm405, %v4276
        %4289 = vst.msk [vmem:[%s962 + $0x19] sm:$0xff] %vm405, %v4277
        %4290 = vst.msk [vmem:[%s962 + $0x21] sm:$0x1] %vm831, %v4278
        %v4291 = vld [vmem:[#allocation4 + $0x8] sm:$0x80]
        %v4292 = vld [vmem:[#allocation4 + $0x18] sm:$0xff]
        %v4293 = vld [vmem:[#allocation4 + $0x28] sm:$0xff]
        %v4294 = vld [vmem:[#allocation4 + $0x38] sm:$0xff]
        %v4295 = vld [vmem:[#allocation4 + $0x48] sm:$0xff]
        %v4296 = vld [vmem:[#allocation4 + $0x58] sm:$0x1]
        %4297 = vst.msk [vmem:[%s975 - $0x7] sm:$0x80] %vm825, %v4291
        %4298 = vst.msk [vmem:[%s975 + $0x1] sm:$0xff] %vm405, %v4292
        %4299 = vst.msk [vmem:[%s975 + $0x9] sm:$0xff] %vm405, %v4293
        %4300 = vst.msk [vmem:[%s975 + $0x11] sm:$0xff] %vm405, %v4294
        %4301 = vst.msk [vmem:[%s975 + $0x19] sm:$0xff] %vm405, %v4295
        %4302 = vst.msk [vmem:[%s975 + $0x21] sm:$0x1] %vm831, %v4296
        %v4303 = vld [vmem:[#allocation4 + $0x8] sm:$0x80]
        %v4304 = vld [vmem:[#allocation4 + $0x18] sm:$0xff]
        %v4305 = vld [vmem:[#allocation4 + $0x28] sm:$0xff]
        %v4306 = vld [vmem:[#allocation4 + $0x38] sm:$0xff]
        %v4307 = vld [vmem:[#allocation4 + $0x48] sm:$0xff]
        %v4308 = vld [vmem:[#allocation4 + $0x58] sm:$0x1]
        %4315 = vrot.lane.b32.xlu0 %v4303, 125
        %v4316 = vpop.permute.xlu0 %4315
        %4317 = vrot.lane.b32.xlu0 %v4304, 125
        %v4318 = vpop.permute.xlu0 %4317
        %4319 = vrot.lane.b32.xlu0 %v4305, 125
        %v4320 = vpop.permute.xlu0 %4319
        %4321 = vrot.lane.b32.xlu0 %v4306, 125
        %v4322 = vpop.permute.xlu0 %4321
        %4323 = vrot.lane.b32.xlu0 %v4307, 125
        %v4324 = vpop.permute.xlu0 %4323
        %4325 = vrot.lane.b32.xlu0 %v4308, 125
        %v4326 = vpop.permute.xlu0 %4325
        %4333 = vst.msk [vmem:[%s1012 - $0x7] sm:$0x80] %vm825, %v4316
        %4334 = vst.msk [vmem:[%s1012 + $0x1] sm:$0xff] %vm405, %v4318
        %4335 = vst.msk [vmem:[%s1012 + $0x9] sm:$0xff] %vm405, %v4320
        %4336 = vst.msk [vmem:[%s1012 + $0x11] sm:$0xff] %vm405, %v4322
        %4337 = vst.msk [vmem:[%s1012 + $0x19] sm:$0xff] %vm405, %v4324
        %4338 = vst.msk [vmem:[%s1012 + $0x21] sm:$0x1] %vm831, %v4326
        %v4339 = vld [vmem:[#allocation4 + $0x8] sm:$0x80]
        %v4340 = vld [vmem:[#allocation4 + $0x18] sm:$0xff]
        %v4341 = vld [vmem:[#allocation4 + $0x28] sm:$0xff]
        %v4342 = vld [vmem:[#allocation4 + $0x38] sm:$0xff]
        %v4343 = vld [vmem:[#allocation4 + $0x48] sm:$0xff]
        %v4344 = vld [vmem:[#allocation4 + $0x58] sm:$0x1]
        %4351 = vrot.lane.b32.xlu0 %v4339, 122
        %v4352 = vpop.permute.xlu0 %4351
        %4353 = vrot.lane.b32.xlu0 %v4340, 122
        %v4354 = vpop.permute.xlu0 %4353
        %4355 = vrot.lane.b32.xlu0 %v4341, 122
        %v4356 = vpop.permute.xlu0 %4355
        %4357 = vrot.lane.b32.xlu0 %v4342, 122
        %v4358 = vpop.permute.xlu0 %4357
        %4359 = vrot.lane.b32.xlu0 %v4343, 122
        %v4360 = vpop.permute.xlu0 %4359
        %4361 = vrot.lane.b32.xlu0 %v4344, 122
        %v4362 = vpop.permute.xlu0 %4361
        %4369 = vst.msk [vmem:[%s1049 - $0x7] sm:$0x80] %vm825, %v4352
        %4370 = vst.msk [vmem:[%s1049 + $0x1] sm:$0xff] %vm405, %v4354
        %4371 = vst.msk [vmem:[%s1049 + $0x9] sm:$0xff] %vm405, %v4356
        %4372 = vst.msk [vmem:[%s1049 + $0x11] sm:$0xff] %vm405, %v4358
        %4373 = vst.msk [vmem:[%s1049 + $0x19] sm:$0xff] %vm405, %v4360
        %4374 = vst.msk [vmem:[%s1049 + $0x21] sm:$0x1] %vm831, %v4362
        %v4375 = vld [vmem:[#allocation4 + $0x8] sm:$0x80]
        %v4376 = vld [vmem:[#allocation4 + $0x18] sm:$0xff]
        %v4377 = vld [vmem:[#allocation4 + $0x28] sm:$0xff]
        %v4378 = vld [vmem:[#allocation4 + $0x38] sm:$0xff]
        %v4379 = vld [vmem:[#allocation4 + $0x48] sm:$0xff]
        %v4380 = vld [vmem:[#allocation4 + $0x58] sm:$0x1]
        %4387 = vrot.lane.b32.xlu0 %v4375, 119
        %v4388 = vpop.permute.xlu0 %4387
        %4389 = vrot.lane.b32.xlu0 %v4376, 119
        %v4390 = vpop.permute.xlu0 %4389
        %4391 = vrot.lane.b32.xlu0 %v4377, 119
        %v4392 = vpop.permute.xlu0 %4391
        %4393 = vrot.lane.b32.xlu0 %v4378, 119
        %v4394 = vpop.permute.xlu0 %4393
        %4395 = vrot.lane.b32.xlu0 %v4379, 119
        %v4396 = vpop.permute.xlu0 %4395
        %4397 = vrot.lane.b32.xlu0 %v4380, 119
        %v4398 = vpop.permute.xlu0 %4397
        %4405 = vst.msk [vmem:[%s1086 - $0x7] sm:$0x80] %vm825, %v4388
        %4406 = vst.msk [vmem:[%s1086 + $0x1] sm:$0xff] %vm405, %v4390
        %4407 = vst.msk [vmem:[%s1086 + $0x9] sm:$0xff] %vm405, %v4392
        %4408 = vst.msk [vmem:[%s1086 + $0x11] sm:$0xff] %vm405, %v4394
        %4409 = vst.msk [vmem:[%s1086 + $0x19] sm:$0xff] %vm405, %v4396
        %4410 = vst.msk [vmem:[%s1086 + $0x21] sm:$0x1] %vm831, %v4398
        %v4411 = vld [vmem:[#allocation5] sm:$0xff]
        %v4412 = vld [vmem:[#allocation5 + $0x8] sm:$0xff]
        %s4413 = sld [smem:[#allocation13 + $0x93]]
        %v4414 = vstv %s4413
        %v4415 = vmul.f32 %v4411, %v4414
        %v4416 = vmul.f32 %v4412, %v4414
        %v4417 = vld [vmem:[%s894] sm:$0xff]
        %v4418 = vld [vmem:[%s894 + $0x8] sm:$0xff]
        %s4419 = sld [smem:[#allocation13 + $0x94]]
        %v4420 = vstv %s4419
        %v4421 = vmul.f32 %v4417, %v4420
        %v4422 = vmul.f32 %v4418, %v4420
        %v4423 = vld [vmem:[%s962] sm:$0xff]
        %v4424 = vld [vmem:[%s962 + $0x8] sm:$0xff]
        %s4425 = sld [smem:[#allocation13 + $0x95]]
        %v4426 = vstv %s4425
        %v4427 = vmul.f32 %v4423, %v4426
        %v4428 = vmul.f32 %v4424, %v4426
        %v4429 = vld [vmem:[%s975] sm:$0xff]
        %v4430 = vld [vmem:[%s975 + $0x8] sm:$0xff]
        %s4431 = sld [smem:[#allocation13 + $0x96]]
        %v4432 = vstv %s4431
        %v4433 = vmul.f32 %v4429, %v4432
        %v4434 = vmul.f32 %v4430, %v4432
        %v4435 = vld [vmem:[%s1012] sm:$0xff]
        %v4436 = vld [vmem:[%s1012 + $0x8] sm:$0xff]
        %s4437 = sld [smem:[#allocation13 + $0x97]]
        %v4438 = vstv %s4437
        %v4439 = vmul.f32 %v4435, %v4438
        %v4440 = vmul.f32 %v4436, %v4438
        %v4441 = vadd.f32 %v4415, %v4439
        %v4442 = vadd.f32 %v4416, %v4440
        %v4443 = vld [vmem:[%s1049] sm:$0xff]
        %v4444 = vld [vmem:[%s1049 + $0x8] sm:$0xff]
        %s4445 = sld [smem:[#allocation13 + $0x98]]
        %v4446 = vstv %s4445
        %v4447 = vmul.f32 %v4443, %v4446
        %v4448 = vmul.f32 %v4444, %v4446
        %v4449 = vadd.f32 %v4421, %v4447
        %v4450 = vadd.f32 %v4422, %v4448
        %v4451 = vld [vmem:[%s1086] sm:$0xff]
        %v4452 = vld [vmem:[%s1086 + $0x8] sm:$0xff]
        %s4453 = sld [smem:[#allocation13 + $0x99]]
        %v4454 = vstv %s4453
        %v4455 = vmul.f32 %v4451, %v4454
        %v4456 = vmul.f32 %v4452, %v4454
        %v4457 = vadd.f32 %v4427, %v4455
        %v4458 = vadd.f32 %v4428, %v4456
        %v4459 = vld [vmem:[#allocation5 + $0x3] sm:$0xff]
        %v4460 = vld [vmem:[#allocation5 + $0xb] sm:$0xff]
        %s4461 = sld [smem:[#allocation13 + $0x9a]]
        %v4462 = vstv %s4461
        %v4463 = vmul.f32 %v4459, %v4462
        %v4464 = vmul.f32 %v4460, %v4462
        %v4465 = vadd.f32 %v4433, %v4463
        %v4466 = vadd.f32 %v4434, %v4464
        %v4467 = vld [vmem:[%s894 + $0x3] sm:$0xff]
        %v4468 = vld [vmem:[%s894 + $0xb] sm:$0xff]
        %s4469 = sld [smem:[#allocation13 + $0x9b]]
        %v4470 = vstv %s4469
        %v4471 = vmul.f32 %v4467, %v4470
        %v4472 = vmul.f32 %v4468, %v4470
        %v4473 = vadd.f32 %v4441, %v4471
        %v4474 = vadd.f32 %v4442, %v4472
        %v4475 = vld [vmem:[%s962 + $0x3] sm:$0xff]
        %v4476 = vld [vmem:[%s962 + $0xb] sm:$0xff]
        %s4477 = sld [smem:[#allocation13 + $0x9c]]
        %v4478 = vstv %s4477
        %v4479 = vmul.f32 %v4475, %v4478
        %v4480 = vmul.f32 %v4476, %v4478
        %v4481 = vadd.f32 %v4449, %v4479
        %v4482 = vadd.f32 %v4450, %v4480
        %v4483 = vld [vmem:[%s975 + $0x3] sm:$0xff]
        %v4484 = vld [vmem:[%s975 + $0xb] sm:$0xff]
        %s4485 = sld [smem:[#allocation13 + $0x9d]]
        %v4486 = vstv %s4485
        %v4487 = vmul.f32 %v4483, %v4486
        %v4488 = vmul.f32 %v4484, %v4486
        %v4489 = vadd.f32 %v4457, %v4487
        %v4490 = vadd.f32 %v4458, %v4488
        %v4491 = vld [vmem:[%s1012 + $0x3] sm:$0xff]
        %v4492 = vld [vmem:[%s1012 + $0xb] sm:$0xff]
        %s4493 = sld [smem:[#allocation13 + $0x9e]]
        %v4494 = vstv %s4493
        %v4495 = vmul.f32 %v4491, %v4494
        %v4496 = vmul.f32 %v4492, %v4494
        %v4497 = vadd.f32 %v4465, %v4495
        %v4498 = vadd.f32 %v4466, %v4496
        %v4499 = vld [vmem:[%s1049 + $0x3] sm:$0xff]
        %v4500 = vld [vmem:[%s1049 + $0xb] sm:$0xff]
        %s4501 = sld [smem:[#allocation13 + $0x9f]]
        %v4502 = vstv %s4501
        %v4503 = vmul.f32 %v4499, %v4502
        %v4504 = vmul.f32 %v4500, %v4502
        %v4505 = vadd.f32 %v4473, %v4503
        %v4506 = vadd.f32 %v4474, %v4504
        %v4507 = vld [vmem:[%s1086 + $0x3] sm:$0xff]
        %v4508 = vld [vmem:[%s1086 + $0xb] sm:$0xff]
        %s4509 = sld [smem:[#allocation13 + $0xa0]]
        %v4510 = vstv %s4509
        %v4511 = vmul.f32 %v4507, %v4510
        %v4512 = vmul.f32 %v4508, %v4510
        %v4513 = vadd.f32 %v4481, %v4511
        %v4514 = vadd.f32 %v4482, %v4512
        %v4515 = vld [vmem:[#allocation5 + $0x6] sm:$0xff]
        %v4516 = vld [vmem:[#allocation5 + $0xe] sm:$0xff]
        %s4517 = sld [smem:[#allocation13 + $0xa1]]
        %v4518 = vstv %s4517
        %v4519 = vmul.f32 %v4515, %v4518
        %v4520 = vmul.f32 %v4516, %v4518
        %v4521 = vadd.f32 %v4489, %v4519
        %v4522 = vadd.f32 %v4490, %v4520
        %v4523 = vld [vmem:[%s894 + $0x6] sm:$0xff]
        %v4524 = vld [vmem:[%s894 + $0xe] sm:$0xff]
        %s4525 = sld [smem:[#allocation13 + $0xa2]]
        %v4526 = vstv %s4525
        %v4527 = vmul.f32 %v4523, %v4526
        %v4528 = vmul.f32 %v4524, %v4526
        %v4529 = vadd.f32 %v4497, %v4527
        %v4530 = vadd.f32 %v4498, %v4528
        %v4531 = vld [vmem:[%s962 + $0x6] sm:$0xff]
        %v4532 = vld [vmem:[%s962 + $0xe] sm:$0xff]
        %s4533 = sld [smem:[#allocation13 + $0xa3]]
        %v4534 = vstv %s4533
        %v4535 = vmul.f32 %v4531, %v4534
        %v4536 = vmul.f32 %v4532, %v4534
        %v4537 = vadd.f32 %v4505, %v4535
        %v4538 = vadd.f32 %v4506, %v4536
        %v4539 = vld [vmem:[%s975 + $0x6] sm:$0xff]
        %v4540 = vld [vmem:[%s975 + $0xe] sm:$0xff]
        %s4541 = sld [smem:[#allocation13 + $0xa4]]
        %v4542 = vstv %s4541
        %v4543 = vmul.f32 %v4539, %v4542
        %v4544 = vmul.f32 %v4540, %v4542
        %v4545 = vadd.f32 %v4513, %v4543
        %v4546 = vadd.f32 %v4514, %v4544
        %v4547 = vld [vmem:[%s1012 + $0x6] sm:$0xff]
        %v4548 = vld [vmem:[%s1012 + $0xe] sm:$0xff]
        %s4549 = sld [smem:[#allocation13 + $0xa5]]
        %v4550 = vstv %s4549
        %v4551 = vmul.f32 %v4547, %v4550
        %v4552 = vmul.f32 %v4548, %v4550
        %v4553 = vadd.f32 %v4521, %v4551
        %v4554 = vadd.f32 %v4522, %v4552
        %v4555 = vld [vmem:[%s1049 + $0x6] sm:$0xff]
        %v4556 = vld [vmem:[%s1049 + $0xe] sm:$0xff]
        %s4557 = sld [smem:[#allocation13 + $0xa6]]
        %v4558 = vstv %s4557
        %v4559 = vmul.f32 %v4555, %v4558
        %v4560 = vmul.f32 %v4556, %v4558
        %v4561 = vadd.f32 %v4529, %v4559
        %v4562 = vadd.f32 %v4530, %v4560
        %v4563 = vld [vmem:[%s1086 + $0x6] sm:$0xff]
        %v4564 = vld [vmem:[%s1086 + $0xe] sm:$0xff]
        %s4565 = sld [smem:[#allocation13 + $0xa7]]
        %v4566 = vstv %s4565
        %v4567 = vmul.f32 %v4563, %v4566
        %v4568 = vmul.f32 %v4564, %v4566
        %v4569 = vadd.f32 %v4537, %v4567
        %v4570 = vadd.f32 %v4538, %v4568
        %v4571 = vld [vmem:[#allocation5 + $0x9] sm:$0xff]
        %v4572 = vld [vmem:[#allocation5 + $0x11] sm:$0xff]
        %s4573 = sld [smem:[#allocation13 + $0xa8]]
        %v4574 = vstv %s4573
        %v4575 = vmul.f32 %v4571, %v4574
        %v4576 = vmul.f32 %v4572, %v4574
        %v4577 = vadd.f32 %v4545, %v4575
        %v4578 = vadd.f32 %v4546, %v4576
        %v4579 = vld [vmem:[%s894 + $0x9] sm:$0xff]
        %v4580 = vld [vmem:[%s894 + $0x11] sm:$0xff]
        %s4581 = sld [smem:[#allocation13 + $0xa9]]
        %v4582 = vstv %s4581
        %v4583 = vmul.f32 %v4579, %v4582
        %v4584 = vmul.f32 %v4580, %v4582
        %v4585 = vadd.f32 %v4553, %v4583
        %v4586 = vadd.f32 %v4554, %v4584
        %v4587 = vld [vmem:[%s962 + $0x9] sm:$0xff]
        %v4588 = vld [vmem:[%s962 + $0x11] sm:$0xff]
        %s4589 = sld [smem:[#allocation13 + $0xaa]]
        %v4590 = vstv %s4589
        %v4591 = vmul.f32 %v4587, %v4590
        %v4592 = vmul.f32 %v4588, %v4590
        %v4593 = vadd.f32 %v4561, %v4591
        %v4594 = vadd.f32 %v4562, %v4592
        %v4595 = vld [vmem:[%s975 + $0x9] sm:$0xff]
        %v4596 = vld [vmem:[%s975 + $0x11] sm:$0xff]
        %s4597 = sld [smem:[#allocation13 + $0xab]]
        %v4598 = vstv %s4597
        %v4599 = vmul.f32 %v4595, %v4598
        %v4600 = vmul.f32 %v4596, %v4598
        %v4601 = vadd.f32 %v4569, %v4599
        %v4602 = vadd.f32 %v4570, %v4600
        %v4603 = vld [vmem:[%s1012 + $0x9] sm:$0xff]
        %v4604 = vld [vmem:[%s1012 + $0x11] sm:$0xff]
        %s4605 = sld [smem:[#allocation13 + $0xac]]
        %v4606 = vstv %s4605
        %v4607 = vmul.f32 %v4603, %v4606
        %v4608 = vmul.f32 %v4604, %v4606
        %v4609 = vadd.f32 %v4577, %v4607
        %v4610 = vadd.f32 %v4578, %v4608
        %v4611 = vld [vmem:[%s1049 + $0x9] sm:$0xff]
        %v4612 = vld [vmem:[%s1049 + $0x11] sm:$0xff]
        %s4613 = sld [smem:[#allocation13 + $0xad]]
        %v4614 = vstv %s4613
        %v4615 = vmul.f32 %v4611, %v4614
        %v4616 = vmul.f32 %v4612, %v4614
        %v4617 = vadd.f32 %v4585, %v4615
        %v4618 = vadd.f32 %v4586, %v4616
        %v4619 = vld [vmem:[%s1086 + $0x9] sm:$0xff]
        %v4620 = vld [vmem:[%s1086 + $0x11] sm:$0xff]
        %s4621 = sld [smem:[#allocation13 + $0xae]]
        %v4622 = vstv %s4621
        %v4623 = vmul.f32 %v4619, %v4622
        %v4624 = vmul.f32 %v4620, %v4622
        %v4625 = vadd.f32 %v4593, %v4623
        %v4626 = vadd.f32 %v4594, %v4624
        %v4627 = vld [vmem:[#allocation5 + $0xc] sm:$0xff]
        %v4628 = vld [vmem:[#allocation5 + $0x14] sm:$0xff]
        %s4629 = sld [smem:[#allocation13 + $0xaf]]
        %v4630 = vstv %s4629
        %v4631 = vmul.f32 %v4627, %v4630
        %v4632 = vmul.f32 %v4628, %v4630
        %v4633 = vadd.f32 %v4601, %v4631
        %v4634 = vadd.f32 %v4602, %v4632
        %v4635 = vld [vmem:[%s894 + $0xc] sm:$0xff]
        %v4636 = vld [vmem:[%s894 + $0x14] sm:$0xff]
        %s4637 = sld [smem:[#allocation13 + $0xb0]]
        %v4638 = vstv %s4637
        %v4639 = vmul.f32 %v4635, %v4638
        %v4640 = vmul.f32 %v4636, %v4638
        %v4641 = vadd.f32 %v4609, %v4639
        %v4642 = vadd.f32 %v4610, %v4640
        %v4643 = vld [vmem:[%s962 + $0xc] sm:$0xff]
        %v4644 = vld [vmem:[%s962 + $0x14] sm:$0xff]
        %s4645 = sld [smem:[#allocation13 + $0xb1]]
        %v4646 = vstv %s4645
        %v4647 = vmul.f32 %v4643, %v4646
        %v4648 = vmul.f32 %v4644, %v4646
        %v4649 = vadd.f32 %v4617, %v4647
        %v4650 = vadd.f32 %v4618, %v4648
        %v4651 = vld [vmem:[%s975 + $0xc] sm:$0xff]
        %v4652 = vld [vmem:[%s975 + $0x14] sm:$0xff]
        %s4653 = sld [smem:[#allocation13 + $0xb2]]
        %v4654 = vstv %s4653
        %v4655 = vmul.f32 %v4651, %v4654
        %v4656 = vmul.f32 %v4652, %v4654
        %v4657 = vadd.f32 %v4625, %v4655
        %v4658 = vadd.f32 %v4626, %v4656
        %v4659 = vld [vmem:[%s1012 + $0xc] sm:$0xff]
        %v4660 = vld [vmem:[%s1012 + $0x14] sm:$0xff]
        %s4661 = sld [smem:[#allocation13 + $0xb3]]
        %v4662 = vstv %s4661
        %v4663 = vmul.f32 %v4659, %v4662
        %v4664 = vmul.f32 %v4660, %v4662
        %v4665 = vadd.f32 %v4633, %v4663
        %v4666 = vadd.f32 %v4634, %v4664
        %v4667 = vld [vmem:[%s1049 + $0xc] sm:$0xff]
        %v4668 = vld [vmem:[%s1049 + $0x14] sm:$0xff]
        %s4669 = sld [smem:[#allocation13 + $0xb4]]
        %v4670 = vstv %s4669
        %v4671 = vmul.f32 %v4667, %v4670
        %v4672 = vmul.f32 %v4668, %v4670
        %v4673 = vadd.f32 %v4641, %v4671
        %v4674 = vadd.f32 %v4642, %v4672
        %v4675 = vld [vmem:[%s1086 + $0xc] sm:$0xff]
        %v4676 = vld [vmem:[%s1086 + $0x14] sm:$0xff]
        %s4677 = sld [smem:[#allocation13 + $0xb5]]
        %v4678 = vstv %s4677
        %v4679 = vmul.f32 %v4675, %v4678
        %v4680 = vmul.f32 %v4676, %v4678
        %v4681 = vadd.f32 %v4649, %v4679
        %v4682 = vadd.f32 %v4650, %v4680
        %v4683 = vld [vmem:[#allocation5 + $0xf] sm:$0xff]
        %v4684 = vld [vmem:[#allocation5 + $0x17] sm:$0xff]
        %s4685 = sld [smem:[#allocation13 + $0xb6]]
        %v4686 = vstv %s4685
        %v4687 = vmul.f32 %v4683, %v4686
        %v4688 = vmul.f32 %v4684, %v4686
        %v4689 = vadd.f32 %v4657, %v4687
        %v4690 = vadd.f32 %v4658, %v4688
        %v4691 = vld [vmem:[%s894 + $0xf] sm:$0xff]
        %v4692 = vld [vmem:[%s894 + $0x17] sm:$0xff]
        %s4693 = sld [smem:[#allocation13 + $0xb7]]
        %v4694 = vstv %s4693
        %v4695 = vmul.f32 %v4691, %v4694
        %v4696 = vmul.f32 %v4692, %v4694
        %v4697 = vadd.f32 %v4665, %v4695
        %v4698 = vadd.f32 %v4666, %v4696
        %v4699 = vld [vmem:[%s962 + $0xf] sm:$0xff]
        %v4700 = vld [vmem:[%s962 + $0x17] sm:$0xff]
        %s4701 = sld [smem:[#allocation13 + $0xb8]]
        %v4702 = vstv %s4701
        %v4703 = vmul.f32 %v4699, %v4702
        %v4704 = vmul.f32 %v4700, %v4702
        %v4705 = vadd.f32 %v4673, %v4703
        %v4706 = vadd.f32 %v4674, %v4704
        %v4707 = vld [vmem:[%s975 + $0xf] sm:$0xff]
        %v4708 = vld [vmem:[%s975 + $0x17] sm:$0xff]
        %s4709 = sld [smem:[#allocation13 + $0xb9]]
        %v4710 = vstv %s4709
        %v4711 = vmul.f32 %v4707, %v4710
        %v4712 = vmul.f32 %v4708, %v4710
        %v4713 = vadd.f32 %v4681, %v4711
        %v4714 = vadd.f32 %v4682, %v4712
        %v4715 = vld [vmem:[%s1012 + $0xf] sm:$0xff]
        %v4716 = vld [vmem:[%s1012 + $0x17] sm:$0xff]
        %s4717 = sld [smem:[#allocation13 + $0xba]]
        %v4718 = vstv %s4717
        %v4719 = vmul.f32 %v4715, %v4718
        %v4720 = vmul.f32 %v4716, %v4718
        %v4721 = vadd.f32 %v4689, %v4719
        %v4722 = vadd.f32 %v4690, %v4720
        %v4723 = vld [vmem:[%s1049 + $0xf] sm:$0xff]
        %v4724 = vld [vmem:[%s1049 + $0x17] sm:$0xff]
        %s4725 = sld [smem:[#allocation13 + $0xbb]]
        %v4726 = vstv %s4725
        %v4727 = vmul.f32 %v4723, %v4726
        %v4728 = vmul.f32 %v4724, %v4726
        %v4729 = vadd.f32 %v4697, %v4727
        %v4730 = vadd.f32 %v4698, %v4728
        %v4731 = vld [vmem:[%s1086 + $0xf] sm:$0xff]
        %v4732 = vld [vmem:[%s1086 + $0x17] sm:$0xff]
        %s4733 = sld [smem:[#allocation13 + $0xbc]]
        %v4734 = vstv %s4733
        %v4735 = vmul.f32 %v4731, %v4734
        %v4736 = vmul.f32 %v4732, %v4734
        %v4737 = vadd.f32 %v4705, %v4735
        %v4738 = vadd.f32 %v4706, %v4736
        %v4739 = vld [vmem:[#allocation5 + $0x12] sm:$0xff]
        %v4740 = vld [vmem:[#allocation5 + $0x1a] sm:$0xff]
        %s4741 = sld [smem:[#allocation13 + $0xbd]]
        %v4742 = vstv %s4741
        %v4743 = vmul.f32 %v4739, %v4742
        %v4744 = vmul.f32 %v4740, %v4742
        %v4745 = vadd.f32 %v4713, %v4743
        %v4746 = vadd.f32 %v4714, %v4744
        %v4747 = vld [vmem:[%s894 + $0x12] sm:$0xff]
        %v4748 = vld [vmem:[%s894 + $0x1a] sm:$0xff]
        %s4749 = sld [smem:[#allocation13 + $0xbe]]
        %v4750 = vstv %s4749
        %v4751 = vmul.f32 %v4747, %v4750
        %v4752 = vmul.f32 %v4748, %v4750
        %v4753 = vadd.f32 %v4721, %v4751
        %v4754 = vadd.f32 %v4722, %v4752
        %v4755 = vld [vmem:[%s962 + $0x12] sm:$0xff]
        %v4756 = vld [vmem:[%s962 + $0x1a] sm:$0xff]
        %s4757 = sld [smem:[#allocation13 + $0xbf]]
        %v4758 = vstv %s4757
        %v4759 = vmul.f32 %v4755, %v4758
        %v4760 = vmul.f32 %v4756, %v4758
        %v4761 = vadd.f32 %v4729, %v4759
        %v4762 = vadd.f32 %v4730, %v4760
        %v4763 = vld [vmem:[%s975 + $0x12] sm:$0xff]
        %v4764 = vld [vmem:[%s975 + $0x1a] sm:$0xff]
        %s4765 = sld [smem:[#allocation13 + $0xc0]]
        %v4766 = vstv %s4765
        %v4767 = vmul.f32 %v4763, %v4766
        %v4768 = vmul.f32 %v4764, %v4766
        %v4769 = vadd.f32 %v4737, %v4767
        %v4770 = vadd.f32 %v4738, %v4768
        %v4771 = vld [vmem:[%s1012 + $0x12] sm:$0xff]
        %v4772 = vld [vmem:[%s1012 + $0x1a] sm:$0xff]
        %s4773 = sld [smem:[#allocation13 + $0xc1]]
        %v4774 = vstv %s4773
        %v4775 = vmul.f32 %v4771, %v4774
        %v4776 = vmul.f32 %v4772, %v4774
        %v4777 = vadd.f32 %v4745, %v4775
        %v4778 = vadd.f32 %v4746, %v4776
        %v4779 = vld [vmem:[%s1049 + $0x12] sm:$0xff]
        %v4780 = vld [vmem:[%s1049 + $0x1a] sm:$0xff]
        %s4781 = sld [smem:[#allocation13 + $0xc2]]
        %v4782 = vstv %s4781
        %v4783 = vmul.f32 %v4779, %v4782
        %v4784 = vmul.f32 %v4780, %v4782
        %v4785 = vadd.f32 %v4753, %v4783
        %v4786 = vadd.f32 %v4754, %v4784
        %v4787 = vld [vmem:[%s1086 + $0x12] sm:$0xff]
        %v4788 = vld [vmem:[%s1086 + $0x1a] sm:$0xff]
        %s4789 = sld [smem:[#allocation13 + $0xc3]]
        %v4790 = vstv %s4789
        %v4791 = vmul.f32 %v4787, %v4790
        %v4792 = vmul.f32 %v4788, %v4790
        %v4793 = vadd.f32 %v4761, %v4791
        %v4794 = vadd.f32 %v4762, %v4792
        %v4795 = vadd.f32 %v4793, %v4769
        %v4796 = vadd.f32 %v4794, %v4770
        %v4797 = vadd.f32 %v4795, %v4777
        %v4798 = vadd.f32 %v4796, %v4778
        %v4799 = vadd.f32 %v4797, %v4785
        %v4800 = vadd.f32 %v4798, %v4786
        %s4801 = sld [smem:[#allocation14 + $0x3]]
        %v4802 = vstv %s4801
        %v4803 = vadd.f32 %v4799, %v4802
        %v4804 = vadd.f32 %v4800, %v4802
        %s4805 = sld [smem:[#allocation16 + $0xc]]
        %v4806 = vstv %s4805
        %v4807 = vmul.f32 %v4803, %v4806
        %v4808 = vmul.f32 %v4804, %v4806
        %v4809 = vld [vmem:[%s373] sm:$0xff]
        %v4810 = vld [vmem:[%s373 + $0x8] sm:$0xff]
        %v4811 = vadd.f32 %v4809, %v4807
        %v4812 = vadd.f32 %v4810, %v4808
        %4813 = vst.msk [vmem:[%s373] sm:$0xff] %vm405, %v4811
        %4814 = vst.msk [vmem:[%s373 + $0x8] sm:$0xff] %vm405, %v4812
        %s4815 = sld [smem:[#allocation16 + $0xd]]
        %v4816 = vstv %s4815
        %v4817 = vmul.f32 %v4803, %v4816
        %v4818 = vmul.f32 %v4804, %v4816
        %v4819 = vld [vmem:[%s1505] sm:$0xff]
        %v4820 = vld [vmem:[%s1505 + $0x8] sm:$0xff]
        %v4821 = vadd.f32 %v4819, %v4817
        %v4822 = vadd.f32 %v4820, %v4818
        %4823 = vst.msk [vmem:[%s1505] sm:$0xff] %vm405, %v4821
        %4824 = vst.msk [vmem:[%s1505 + $0x8] sm:$0xff] %vm405, %v4822
        %s4825 = sld [smem:[#allocation16 + $0xe]]
        %v4826 = vstv %s4825
        %v4827 = vmul.f32 %v4803, %v4826
        %v4828 = vmul.f32 %v4804, %v4826
        %v4829 = vld [vmem:[%s1516] sm:$0xff]
        %v4830 = vld [vmem:[%s1516 + $0x8] sm:$0xff]
        %v4831 = vadd.f32 %v4829, %v4827
        %v4832 = vadd.f32 %v4830, %v4828
        %4833 = vst.msk [vmem:[%s1516] sm:$0xff] %vm405, %v4831
        %4834 = vst.msk [vmem:[%s1516 + $0x8] sm:$0xff] %vm405, %v4832
        %s4835 = sld [smem:[#allocation16 + $0xf]]
        %v4836 = vstv %s4835
        %v4837 = vmul.f32 %v4803, %v4836
        %v4838 = vmul.f32 %v4804, %v4836
        %v4839 = vld [vmem:[%s1527] sm:$0xff]
        %v4840 = vld [vmem:[%s1527 + $0x8] sm:$0xff]
        %v4841 = vadd.f32 %v4839, %v4837
        %v4842 = vadd.f32 %v4840, %v4838
        %4843 = vst.msk [vmem:[%s1527] sm:$0xff] %vm405, %v4841
        %4844 = vst.msk [vmem:[%s1527 + $0x8] sm:$0xff] %vm405, %v4842
        %v4845 = vld [vmem:[%s318] sm:$0xff]
        %v4846 = vld [vmem:[%s318 + $0x8] sm:$0xff]
        %v4847 = vld [vmem:[%s373] sm:$0xff]
        %v4848 = vld [vmem:[%s373 + $0x8] sm:$0xff]
        %v4849 = vmul.f32 %v4845, %v4847
        %v4850 = vmul.f32 %v4846, %v4848
        %4851 = vst.msk [vmem:[%s373] sm:$0xff] %vm405, %v4849
        %4852 = vst.msk [vmem:[%s373 + $0x8] sm:$0xff] %vm405, %v4850
        %v4853 = vld [vmem:[%s1530] sm:$0xff]
        %v4854 = vld [vmem:[%s1530 + $0x8] sm:$0xff]
        %v4855 = vld [vmem:[%s1505] sm:$0xff]
        %v4856 = vld [vmem:[%s1505 + $0x8] sm:$0xff]
        %v4857 = vmul.f32 %v4853, %v4855
        %v4858 = vmul.f32 %v4854, %v4856
        %4859 = vst.msk [vmem:[%s1505] sm:$0xff] %vm405, %v4857
        %4860 = vst.msk [vmem:[%s1505 + $0x8] sm:$0xff] %vm405, %v4858
        %v4861 = vld [vmem:[%s2635] sm:$0xff]
        %v4862 = vld [vmem:[%s2635 + $0x8] sm:$0xff]
        %v4863 = vld [vmem:[%s1516] sm:$0xff]
        %v4864 = vld [vmem:[%s1516 + $0x8] sm:$0xff]
        %v4865 = vmul.f32 %v4861, %v4863
        %v4866 = vmul.f32 %v4862, %v4864
        %4867 = vst.msk [vmem:[%s1516] sm:$0xff] %vm405, %v4865
        %4868 = vst.msk [vmem:[%s1516 + $0x8] sm:$0xff] %vm405, %v4866
        %v4869 = vld [vmem:[%s3740] sm:$0xff]
        %v4870 = vld [vmem:[%s3740 + $0x8] sm:$0xff]
        %v4871 = vld [vmem:[%s1527] sm:$0xff]
        %v4872 = vld [vmem:[%s1527 + $0x8] sm:$0xff]
        %v4873 = vmul.f32 %v4869, %v4871
        %v4874 = vmul.f32 %v4870, %v4872
        %4875 = vst.msk [vmem:[%s1527] sm:$0xff] %vm405, %v4873
        %4876 = vst.msk [vmem:[%s1527 + $0x8] sm:$0xff] %vm405, %v4874
        %s4877 = sand.u32 %s188, 1
        %s4878 = scalar_lea.sflag [#allocation8], %s4877
        %s4879 = sand.u32 %s188, 1
        %s4880 = smul.addr %s4879, 64
        %s4881 = scalar_lea.vmem [#allocation19], %s4880
        // Predicated region
        $region77: #{tpu_custom_call.1} parent=47 // pred_check
          %p4882 = pneg %p198
        $region78: #{tpu_custom_call.1} parent=47 // pred_check_branch
          %4884 = sbr.rel (%p4882) target = $region80
        $region79: #{tpu_custom_call.1} parent=47 // pred_region
          %s4886 = ssub.s32 1024, 1024
          %4887 = vsyncadd %s4878, %s4886
          %s4888 = smul.addr %s28, 8
          %s4889 = smul.addr %s4888, 128
          %s4890 = scalar_lea.hbm %s7, %s4889
          %s4891 = sshll.u32 %s4881, 4
          %s4892 = int_to_ptr.vmem [resolvable:$true] %s4891
          %4897 = dma.vmem_to_hbm [thread:$0]  %s4892, 1024, %s4890, %s4878, 128, 128, 8
        $region80: #{tpu_custom_call.1} parent=47 // pred_fallthru
          _
      $region48: #{tpu_custom_call.1} parent=5 // pred_fallthru
        _
      %p4898 = scmp.le.s32.totalorder 2, %s23
      // Predicated region
      $region81: #{tpu_custom_call.1} parent=5 // pred_check
        %p4899 = pneg %p4898
      $region82: #{tpu_custom_call.1} parent=5 // pred_check_branch
        %4901 = sbr.rel (%p4899) target = $region84
      $region83: #{tpu_custom_call.1} parent=5 // pred_region
        %s4902 = ssub.s32 %s23, 2
        // Predicated region
        $region85: #{tpu_custom_call.1} parent=83 // pred_check
          %p4903 = pneg %p204
        $region86: #{tpu_custom_call.1} parent=83 // pred_check_branch
          %4905 = sbr.rel (%p4903) target = $region88
        $region87: #{tpu_custom_call.1} parent=83 // pred_region
          %s4906 = sand.u32 %s189, 1
          %s4907 = scalar_lea.sflag [#allocation8], %s4906
          %s4908 = sand.u32 %s189, 1
          %s4909 = smul.addr %s4908, 64
          %s4910 = scalar_lea.vmem [#allocation19], %s4909
          %4911 = dma.done %s4907, 1024
        $region88: #{tpu_custom_call.1} parent=83 // pred_fallthru
          _
      $region84: #{tpu_custom_call.1} parent=5 // pred_fallthru
        _
    $region6: #{tpu_custom_call.1} parent=1 // loop_footer
      %s27 = sadd.s32 1, %s23
    $region7: #{tpu_custom_call.1} parent=1 // loop_footer_branch
      %22 = sbr.rel target = $region3
    $region8: #{tpu_custom_call.1} parent=1 // loop_exit
      _
    %4912 = vsyncpa [#allocation7], 1
    %s4913 = scalar_lea.sflag [#allocation7], 1
    %4914 = vsyncpa %s4913, 1
    %4915 = vsyncpa [#allocation8], 1
    %s4916 = scalar_lea.sflag [#allocation8], 1
    %4917 = vsyncpa %s4916, 1
    %4918 = vsyncpa [#allocation9], 1
    %s4919 = scalar_lea.sflag [#allocation9], 1
    %4920 = vsyncpa %s4919, 1
    %4921 = vsyncpa [#allocation12], 1
    %4922 = vsyncpa [#allocation15], 1
    %4923 = vsyncpa [#allocation18], 1

</llo_original>
